<compile_context>
chip_gen: v7x
topology: tpu7x:2x2x1
jax: 0.10.0
libtpu: 0.0.40
codegen_flags: <defaults>
</compile_context>

<pallas_src>
import jax
import jax.numpy as jnp
import numpy as np
from jax.experimental import pallas as pl
from jax.experimental.pallas import tpu as pltpu

ATOM_FEA_LEN = 64          # atom_fea_len
NBR_FEA_LEN = 41           # nbr_fea_len
H_FEA_LEN = 128            # h_fea_len
NUM_NBR = 12               # max_num_nbr
N_CONV = 3                 # n_conv
FULL_ATOM_FEATURE_DIMS = (16, 8, 8)   # synthetic AtomFeatureEncoder.get_full_dims()
EPS = 1e-5                 # BatchNorm1d eps
VMEM_LIMIT_BYTES = 48 * 1024 * 1024   # fits v7x (64 MiB phys) with headroom


def _softplus(x):
    # matches F.softplus (beta=1, threshold=20)
    return jnp.where(x > 20.0, x, jnp.log1p(jnp.exp(jnp.minimum(x, 20.0))))


def _sigmoid(x):
    return 1.0 / (1.0 + jnp.exp(-x))


# ----------------------------------------------------------------------------
# Fully fused kernel: 3 x GCN_Layer + mean-pool + softplus + BN + MLP head
# ----------------------------------------------------------------------------
def _net_kernel(x0_ref, dst_ref, ea_ref, wni_ref, we_ref, bc_ref,
                g1_ref, be1_ref, g2_ref, be2_ref,
                pool_ref, bng_ref, bnb_ref, w1_ref, b1_ref, w2_ref, b2_ref,
                out_ref):
    n, f = x0_ref.shape                     # nodes, atom_fea_len (64)
    e = ea_ref.shape[0]                     # edges = NUM_NBR * n (nbr-major order)
    b = pool_ref.shape[0]                   # graphs
    n_layers = wni_ref.shape[0]
    two_f = 2 * f

    def bn(z, gamma, beta, inv_count):
        # training-mode batch stats, two-pass (robust) variance
        m = jnp.sum(z, axis=0, keepdims=True) * inv_count
        zc = z - m
        var = jnp.sum(zc * zc, axis=0, keepdims=True) * inv_count
        return zc * jax.lax.rsqrt(var + EPS) * gamma + beta

    x = x0_ref[...]                         # [N, F] f32, resident across layers
    ea = ea_ref[...]                        # [E, 41] bf16

    # Destination one-hot built once in-kernel (bf16; values exactly 0/1).
    # No O(E*N) HBM array or DMA; reused by all three layers.
    lane_ids = jax.lax.broadcasted_iota(jnp.int32, (e, n), 1)
    onehot = jnp.where(dst_ref[...] == lane_ids, 1.0, 0.0).astype(jnp.bfloat16)

    for l in range(n_layers):   # unrolled; switch to fori_loop only if spills show
        xb = x.astype(jnp.bfloat16)
        # fc_full hoisted out of the edge dim; nbr/init halves fused into one
        # 256-wide MXU matmul, split at the (free) 128-lane boundary.
        hni = jnp.dot(xb, wni_ref[l], preferred_element_type=jnp.float32)   # [N,256]
        hn = hni[:, :two_f]                 # node features used as *neighbor*
        hi = hni[:, two_f:]                 # node features used as *center*
        he = jnp.dot(ea, we_ref[l], preferred_element_type=jnp.float32)     # [E,128]
        gathered = jnp.dot(onehot, hn.astype(jnp.bfloat16),
                           preferred_element_type=jnp.float32)              # [E,128]
        # edges are neighbor-slot-major: row j*n+i is neighbor slot j of node i,
        # whose source/center node is i  ->  per-edge init features = 12x concat.
        hi_rep = jnp.concatenate([hi] * NUM_NBR, axis=0)                    # [E,128]
        h = gathered + hi_rep + he + bc_ref[l]
        # bn1 (batch stats over E edges)
        h = bn(h, g1_ref[l], be1_ref[l], 1.0 / e)
        # gate: sigmoid on the low 64 lanes, softplus on the high 64 lanes only
        h_filt = h[:, :f]
        h_core = h[:, f:]
        filt = pl.reciprocal(1.0 + jnp.exp(-h_filt), approx=True)           # [E,64]
        core = jnp.where(h_core > 20.0, h_core,
                         jnp.log1p(jnp.exp(jnp.minimum(h_core, 20.0))))     # [E,64]
        gated = filt * core                                                 # [E,64]
        # neighbor segment-sum: 12 static sublane-aligned slice adds
        nbr_sumed = gated[0:n, :]
        for j in range(1, NUM_NBR):
            nbr_sumed = nbr_sumed + gated[j * n:(j + 1) * n, :]
        # bn2 (batch stats over N nodes) + residual softplus
        nbr_sumed = bn(nbr_sumed, g2_ref[l], be2_ref[l], 1.0 / n)
        x = _softplus(x + nbr_sumed)

    # head: mean-pool matmul + softplus + bn + conv_to_fc + softplus + fc_out
    # (tiny matmuls -> kept f32 for accuracy; cost negligible)
    pooled = jnp.dot(pool_ref[...], x, preferred_element_type=jnp.float32)  # [B,F]
    a = _softplus(pooled)
    a = bn(a, bng_ref[...], bnb_ref[...], 1.0 / b)
    h1 = _softplus(jnp.dot(a, w1_ref[...], preferred_element_type=jnp.float32)
                   + b1_ref[...])                                           # [B,H]
    # fc_out as a lane reduction (avoids a 1-lane MXU output)
    out_ref[...] = jnp.sum(h1 * w2_ref[...], axis=-1, keepdims=True) + b2_ref[...]


def net_forward(params, x_int, edge_index, edge_attr, batch, num_graphs):
    n = x_int.shape[0]
    e = edge_attr.shape[0]
    assert e == n * NUM_NBR, "CGCNN layout: exactly NUM_NBR edges per node"

    # AtomEncoder: sum of integer embedding lookups (data-dependent gather glue)
    x0 = jnp.zeros((n, ATOM_FEA_LEN), jnp.float32)
    for i, table in enumerate(params["embed"]):
        x0 = x0 + table[x_int[:, i]]

    # Reorder edges from node-major (node i's NUM_NBR edges contiguous — the
    # ordering the reference reshape(-1, NUM_NBR, F).sum(1) requires, with
    # edge_index[0][k] == k // NUM_NBR) to neighbor-slot-major, so the in-kernel
    # segment-sum is 12 contiguous slice adds and the source features are a
    # plain repeat.  BN stats and the gate are permutation-invariant.
    dst_nbr_major = (edge_index[1].reshape(n, NUM_NBR).T
                     .reshape(e, 1).astype(jnp.int32))                        # [E,1]
    ea_nbr_major = (edge_attr.reshape(n, NUM_NBR, NBR_FEA_LEN)
                    .transpose(1, 0, 2).reshape(e, NBR_FEA_LEN)
                    .astype(jnp.bfloat16))                                    # [E,41]

    # mean-pool matrix (tiny: [B, N])
    one_hot = (batch[None, :] == jnp.arange(num_graphs)[:, None]).astype(jnp.float32)
    counts = jnp.maximum(jnp.sum(one_hot, axis=1, keepdims=True), 1.0)
    pool_mat = one_hot / counts                                               # [B,N]

    # stack per-layer weights; fuse the nbr/init blocks of fc_full into one
    # [64, 256] bf16 weight (fills the 256-wide MXU on v6e/v7x).
    convs = params["convs"]
    wni = jnp.stack([jnp.concatenate([lp["w"][:ATOM_FEA_LEN],
                                      lp["w"][ATOM_FEA_LEN:2 * ATOM_FEA_LEN]],
                                     axis=1)
                     for lp in convs]).astype(jnp.bfloat16)                  # [3,64,256]
    we = jnp.stack([lp["w"][2 * ATOM_FEA_LEN:]
                    for lp in convs]).astype(jnp.bfloat16)                   # [3,41,128]
    bc = jnp.stack([lp["b"] for lp in convs])                                # [3,1,128]
    g1 = jnp.stack([lp["g1"] for lp in convs])
    be1 = jnp.stack([lp["be1"] for lp in convs])
    g2 = jnp.stack([lp["g2"] for lp in convs])
    be2 = jnp.stack([lp["be2"] for lp in convs])
    w2_row = params["w2"].T                                                  # [1,128]

    vmem = pl.BlockSpec(memory_space=pltpu.MemorySpace.VMEM)
    out = pl.pallas_call(
        _net_kernel,
        out_shape=jax.ShapeDtypeStruct((num_graphs, 1), jnp.float32),
        in_specs=[vmem] * 17,
        out_specs=vmem,
        compiler_params=pltpu.CompilerParams(vmem_limit_bytes=VMEM_LIMIT_BYTES),
    )(x0, dst_nbr_major, ea_nbr_major, wni, we, bc, g1, be1, g2, be2,
      pool_mat, params["bn_g"], params["bn_b"],
      params["w1"], params["b1"], w2_row, params["b2"])
    return out


# ----------------------------------------------------------------------------
# Pure-JAX reference (mirrors the PyTorch forward exactly) for validation
# ----------------------------------------------------------------------------
def reference_forward(params, x_int, edge_index, edge_attr, batch, num_graphs):
    def bn(z, g, b):
        m = jnp.mean(z, axis=0, keepdims=True)
        v = jnp.mean((z - m) ** 2, axis=0, keepdims=True)
        return (z - m) / jnp.sqrt(v + EPS) * g + b

    x = jnp.zeros((x_int.shape[0], ATOM_FEA_LEN), jnp.float32)
    for i, table in enumerate(params["embed"]):
        x = x + table[x_int[:, i]]

    for lp in params["convs"]:
        nbr = x[edge_index[1], :]
        init = x[edge_index[0], :]
        feat = jnp.concatenate([nbr, init, edge_attr], axis=1)
        h = feat @ lp["w"] + lp["b"]
        h = bn(h, lp["g1"], lp["be1"])
        nbr_filter, nbr_core = h[:, :ATOM_FEA_LEN], h[:, ATOM_FEA_LEN:]
        gated = _softplus(nbr_core) * _sigmoid(nbr_filter)
        nbr_sumed = gated.reshape(-1, NUM_NBR, ATOM_FEA_LEN).sum(axis=1)
        nbr_sumed = bn(nbr_sumed, lp["g2"], lp["be2"])
        x = _softplus(x + nbr_sumed)

    one_hot = (batch[None, :] == jnp.arange(num_graphs)[:, None]).astype(jnp.float32)
    counts = jnp.maximum(jnp.sum(one_hot, axis=1, keepdims=True), 1.0)
    pooled = (one_hot / counts) @ x
    a = _softplus(pooled)
    a = bn(a, params["bn_g"], params["bn_b"])
    h = _softplus(a @ params["w1"] + params["b1"])
    return h @ params["w2"] + params["b2"]


# ----------------------------------------------------------------------------
# Deterministic parameter initialization (shapes from Net.__init__ defaults)
# ----------------------------------------------------------------------------
def init_params(key):
    keys = iter(jax.random.split(key, 64))
    params = {}

    # AtomEncoder embeddings (xavier uniform)
    embed = []
    for dim in FULL_ATOM_FEATURE_DIMS:
        bound = float(np.sqrt(6.0 / (dim + ATOM_FEA_LEN)))
        embed.append(jax.random.uniform(next(keys), (dim, ATOM_FEA_LEN),
                                        jnp.float32, -bound, bound))
    params["embed"] = embed

    # GCN layers (fc_full weight stored [Din, 2F]; rows 0:64 nbr, 64:128 init, 128:169 edge)
    din = 2 * ATOM_FEA_LEN + NBR_FEA_LEN
    convs = []
    for _ in range(N_CONV):
        bound = 1.0 / np.sqrt(din)
        convs.append(dict(
            w=jax.random.uniform(next(keys), (din, 2 * ATOM_FEA_LEN),
                                 jnp.float32, -bound, bound),
            b=jax.random.uniform(next(keys), (1, 2 * ATOM_FEA_LEN),
                                 jnp.float32, -bound, bound),
            g1=jnp.ones((1, 2 * ATOM_FEA_LEN), jnp.float32),
            be1=jnp.zeros((1, 2 * ATOM_FEA_LEN), jnp.float32),
            g2=jnp.ones((1, ATOM_FEA_LEN), jnp.float32),
            be2=jnp.zeros((1, ATOM_FEA_LEN), jnp.float32),
        ))
    params["convs"] = convs

    # net-level bn
    params["bn_g"] = jnp.ones((1, ATOM_FEA_LEN), jnp.float32)
    params["bn_b"] = jnp.zeros((1, ATOM_FEA_LEN), jnp.float32)

    # conv_to_fc: atom_fea_len -> h_fea_len
    bound = 1.0 / np.sqrt(ATOM_FEA_LEN)
    params["w1"] = jax.random.uniform(next(keys), (ATOM_FEA_LEN, H_FEA_LEN),
                                      jnp.float32, -bound, bound)
    params["b1"] = jax.random.uniform(next(keys), (1, H_FEA_LEN),
                                      jnp.float32, -bound, bound)
    # fc_out: h_fea_len -> 1 (classification=False)
    bound = 1.0 / np.sqrt(H_FEA_LEN)
    params["w2"] = jax.random.uniform(next(keys), (H_FEA_LEN, 1),
                                      jnp.float32, -bound, bound)
    params["b2"] = jax.random.uniform(next(keys), (1, 1),
                                      jnp.float32, -bound, bound)
    return params


if __name__ == "__main__":
    key = jax.random.PRNGKey(0)
    k_param, k_x, k_nbr, k_edge = jax.random.split(key, 4)

    num_graphs = 2
    nodes_per_graph = 12
    num_nodes = num_graphs * nodes_per_graph
    num_edges = num_nodes * NUM_NBR

    params = init_params(k_param)

    # integer atom features [N, n_feat_cols]
    x_cols = []
    kx = jax.random.split(k_x, len(FULL_ATOM_FEATURE_DIMS))
    for kk, dim in zip(kx, FULL_ATOM_FEATURE_DIMS):
        x_cols.append(jax.random.randint(kk, (num_nodes,), 0, dim))
    x_int = jnp.stack(x_cols, axis=1).astype(jnp.int32)

    # CGCNN-style edge_index: every node has exactly NUM_NBR neighbors,
    # edges ordered node-major (required by the reshape(-1, NUM_NBR, F) sum).
    src = jnp.repeat(jnp.arange(num_nodes, dtype=jnp.int32), NUM_NBR)
    graph_of_node = jnp.repeat(jnp.arange(num_graphs, dtype=jnp.int32),
                               nodes_per_graph)
    nbr_local = jax.random.randint(k_nbr, (num_edges,), 0, nodes_per_graph)
    dst = (graph_of_node[src] * nodes_per_graph + nbr_local).astype(jnp.int32)
    edge_index = jnp.stack([src, dst], axis=0)                 # [2, E]

    edge_attr = jax.random.normal(k_edge, (num_edges, NBR_FEA_LEN), jnp.float32)
    batch = graph_of_node                                      # [N] node -> graph id

    out = net_forward(params, x_int, edge_index, edge_attr, batch, num_graphs)
    out = jax.block_until_ready(out)

    ref = reference_forward(params, x_int, edge_index, edge_attr, batch,
                            num_graphs)
    np.testing.assert_allclose(np.asarray(out), np.asarray(ref),
                               rtol=2e-2, atol=2e-2)

    print("KERNEL_OK")
</pallas_src>

<mosaic_0001>
module attributes {stable_mosaic.version = 11 : i64} {
  func.func @_net_kernel(%arg0: memref<24x64xf32, #tpu.memory_space<vmem>>, %arg1: memref<288x1xi32, #tpu.memory_space<vmem>>, %arg2: memref<288x41xbf16, #tpu.memory_space<vmem>>, %arg3: memref<3x64x256xbf16, #tpu.memory_space<vmem>>, %arg4: memref<3x41x128xbf16, #tpu.memory_space<vmem>>, %arg5: memref<3x1x128xf32, #tpu.memory_space<vmem>>, %arg6: memref<3x1x128xf32, #tpu.memory_space<vmem>>, %arg7: memref<3x1x128xf32, #tpu.memory_space<vmem>>, %arg8: memref<3x1x64xf32, #tpu.memory_space<vmem>>, %arg9: memref<3x1x64xf32, #tpu.memory_space<vmem>>, %arg10: memref<2x24xf32, #tpu.memory_space<vmem>>, %arg11: memref<1x64xf32, #tpu.memory_space<vmem>>, %arg12: memref<1x64xf32, #tpu.memory_space<vmem>>, %arg13: memref<64x128xf32, #tpu.memory_space<vmem>>, %arg14: memref<1x128xf32, #tpu.memory_space<vmem>>, %arg15: memref<1x128xf32, #tpu.memory_space<vmem>>, %arg16: memref<1x1xf32, #tpu.memory_space<vmem>>, %arg17: memref<2x1xf32, #tpu.memory_space<vmem>>) attributes {dimension_semantics = [], scalar_prefetch = 0 : i64, scratch_operands = 0 : i64, tpu.core_type = #tpu.core_type<tc>} {
    %c0 = arith.constant 0 : index
    %c0_0 = arith.constant 0 : index
    %0 = vector.load %arg0[%c0, %c0_0] : memref<24x64xf32, #tpu.memory_space<vmem>>, vector<24x64xf32>
    %c0_1 = arith.constant 0 : index
    %c0_2 = arith.constant 0 : index
    %1 = vector.load %arg2[%c0_1, %c0_2] : memref<288x41xbf16, #tpu.memory_space<vmem>>, vector<288x41xbf16>
    %2 = tpu.iota {dimensions = array<i32: 1>} : vector<288x24xi32>
    %c0_3 = arith.constant 0 : index
    %c0_4 = arith.constant 0 : index
    %3 = vector.load %arg1[%c0_3, %c0_4] : memref<288x1xi32, #tpu.memory_space<vmem>>, vector<288x1xi32>
    %4 = vector.broadcast %3 : vector<288x1xi32> to vector<288x24xi32>
    %5 = arith.cmpi eq, %4, %2 : vector<288x24xi32>
    %cst = arith.constant 1.000000e+00 : f32
    %cst_5 = arith.constant 0.000000e+00 : f32
    %6 = vector.broadcast %cst : f32 to vector<288x24xf32>
    %7 = vector.broadcast %cst_5 : f32 to vector<288x24xf32>
    %8 = arith.select %5, %6, %7 : vector<288x24xi1>, vector<288x24xf32>
    %9 = arith.truncf %8 : vector<288x24xf32> to vector<288x24xbf16>
    %10 = arith.truncf %0 : vector<24x64xf32> to vector<24x64xbf16>
    %c0_6 = arith.constant 0 : index
    %c0_7 = arith.constant 0 : index
    %c0_8 = arith.constant 0 : index
    %11 = vector.load %arg3[%c0_6, %c0_7, %c0_8] : memref<3x64x256xbf16, #tpu.memory_space<vmem>>, vector<1x64x256xbf16>
    %12 = vector.shape_cast %11 : vector<1x64x256xbf16> to vector<64x256xbf16>
    %cst_9 = arith.constant dense<0.000000e+00> : vector<24x256xf32>
    %13 = tpu.matmul %10, %12, %cst_9 {dimension_numbers = #tpu.dot_dimension_numbers<[1], [0], [0], [1], [0, 0, 1, 1], [], []>} : vector<24x64xbf16>, vector<64x256xbf16>, vector<24x256xf32> -> vector<24x256xf32>
    %14 = vector.extract_strided_slice %13 {offsets = [0, 0], sizes = [24, 128], strides = [1, 1]} : vector<24x256xf32> to vector<24x128xf32>
    %15 = vector.extract_strided_slice %13 {offsets = [0, 128], sizes = [24, 128], strides = [1, 1]} : vector<24x256xf32> to vector<24x128xf32>
    %c0_10 = arith.constant 0 : index
    %c0_11 = arith.constant 0 : index
    %c0_12 = arith.constant 0 : index
    %16 = vector.load %arg4[%c0_10, %c0_11, %c0_12] : memref<3x41x128xbf16, #tpu.memory_space<vmem>>, vector<1x41x128xbf16>
    %17 = vector.shape_cast %16 : vector<1x41x128xbf16> to vector<41x128xbf16>
    %cst_13 = arith.constant dense<0.000000e+00> : vector<288x128xf32>
    %18 = tpu.matmul %1, %17, %cst_13 {dimension_numbers = #tpu.dot_dimension_numbers<[1], [0], [0], [1], [0, 0, 1, 1], [], []>} : vector<288x41xbf16>, vector<41x128xbf16>, vector<288x128xf32> -> vector<288x128xf32>
    %19 = arith.truncf %14 : vector<24x128xf32> to vector<24x128xbf16>
    %cst_14 = arith.constant dense<0.000000e+00> : vector<288x128xf32>
    %20 = tpu.matmul %9, %19, %cst_14 {dimension_numbers = #tpu.dot_dimension_numbers<[1], [0], [0], [1], [0, 0, 1, 1], [], []>} : vector<288x24xbf16>, vector<24x128xbf16>, vector<288x128xf32> -> vector<288x128xf32>
    %21 = tpu.concatenate %15, %15, %15, %15, %15, %15, %15, %15, %15, %15, %15, %15 in 0 : vector<24x128xf32>, vector<24x128xf32>, vector<24x128xf32>, vector<24x128xf32>, vector<24x128xf32>, vector<24x128xf32>, vector<24x128xf32>, vector<24x128xf32>, vector<24x128xf32>, vector<24x128xf32>, vector<24x128xf32>, vector<24x128xf32> -> vector<288x128xf32>
    %22 = arith.addf %20, %21 : vector<288x128xf32>
    %23 = arith.addf %22, %18 : vector<288x128xf32>
    %c0_15 = arith.constant 0 : index
    %c0_16 = arith.constant 0 : index
    %c0_17 = arith.constant 0 : index
    %24 = vector.load %arg5[%c0_15, %c0_16, %c0_17] : memref<3x1x128xf32, #tpu.memory_space<vmem>>, vector<1x1x128xf32>
    %25 = vector.shape_cast %24 : vector<1x1x128xf32> to vector<1x128xf32>
    %26 = vector.broadcast %25 : vector<1x128xf32> to vector<288x128xf32>
    %27 = arith.addf %23, %26 : vector<288x128xf32>
    %c0_18 = arith.constant 0 : index
    %c0_19 = arith.constant 0 : index
    %c0_20 = arith.constant 0 : index
    %28 = vector.load %arg6[%c0_18, %c0_19, %c0_20] : memref<3x1x128xf32, #tpu.memory_space<vmem>>, vector<1x1x128xf32>
    %29 = vector.shape_cast %28 : vector<1x1x128xf32> to vector<1x128xf32>
    %c0_21 = arith.constant 0 : index
    %c0_22 = arith.constant 0 : index
    %c0_23 = arith.constant 0 : index
    %30 = vector.load %arg7[%c0_21, %c0_22, %c0_23] : memref<3x1x128xf32, #tpu.memory_space<vmem>>, vector<1x1x128xf32>
    %31 = vector.shape_cast %30 : vector<1x1x128xf32> to vector<1x128xf32>
    %cst_24 = arith.constant dense<0.000000e+00> : vector<128xf32>
    %32 = vector.multi_reduction <add>, %27, %cst_24 [0] : vector<288x128xf32> to vector<128xf32>
    %33 = vector.shape_cast %32 : vector<128xf32> to vector<1x128xf32>
    %cst_25 = arith.constant 0.00347222225 : f32
    %34 = vector.broadcast %cst_25 : f32 to vector<1x128xf32>
    %35 = arith.mulf %33, %34 : vector<1x128xf32>
    %36 = vector.broadcast %35 : vector<1x128xf32> to vector<288x128xf32>
    %37 = arith.subf %27, %36 : vector<288x128xf32>
    %38 = arith.mulf %37, %37 : vector<288x128xf32>
    %cst_26 = arith.constant dense<0.000000e+00> : vector<128xf32>
    %39 = vector.multi_reduction <add>, %38, %cst_26 [0] : vector<288x128xf32> to vector<128xf32>
    %40 = vector.shape_cast %39 : vector<128xf32> to vector<1x128xf32>
    %cst_27 = arith.constant 0.00347222225 : f32
    %41 = vector.broadcast %cst_27 : f32 to vector<1x128xf32>
    %42 = arith.mulf %40, %41 : vector<1x128xf32>
    %cst_28 = arith.constant 9.99999974E-6 : f32
    %43 = vector.broadcast %cst_28 : f32 to vector<1x128xf32>
    %44 = arith.addf %42, %43 : vector<1x128xf32>
    %45 = math.rsqrt %44 : vector<1x128xf32>
    %46 = vector.broadcast %45 : vector<1x128xf32> to vector<288x128xf32>
    %47 = arith.mulf %37, %46 : vector<288x128xf32>
    %48 = vector.broadcast %29 : vector<1x128xf32> to vector<288x128xf32>
    %49 = arith.mulf %47, %48 : vector<288x128xf32>
    %50 = vector.broadcast %31 : vector<1x128xf32> to vector<288x128xf32>
    %51 = arith.addf %49, %50 : vector<288x128xf32>
    %52 = vector.extract_strided_slice %51 {offsets = [0, 0], sizes = [288, 64], strides = [1, 1]} : vector<288x128xf32> to vector<288x64xf32>
    %53 = vector.extract_strided_slice %51 {offsets = [0, 64], sizes = [288, 64], strides = [1, 1]} : vector<288x128xf32> to vector<288x64xf32>
    %cst_29 = arith.constant 0.000000e+00 : f32
    %54 = vector.broadcast %cst_29 : f32 to vector<288x64xf32>
    %55 = arith.subf %54, %52 : vector<288x64xf32>
    %56 = math.exp %55 : vector<288x64xf32>
    %cst_30 = arith.constant 1.000000e+00 : f32
    %57 = vector.broadcast %cst_30 : f32 to vector<288x64xf32>
    %58 = arith.addf %57, %56 : vector<288x64xf32>
    %59 = tpu.reciprocal %58 {approx = true} : vector<288x64xf32> -> vector<288x64xf32>
    %cst_31 = arith.constant 2.000000e+01 : f32
    %60 = vector.broadcast %cst_31 : f32 to vector<288x64xf32>
    %61 = arith.cmpf ogt, %53, %60 : vector<288x64xf32>
    %cst_32 = arith.constant 2.000000e+01 : f32
    %62 = vector.broadcast %cst_32 : f32 to vector<288x64xf32>
    %63 = arith.minimumf %53, %62 : vector<288x64xf32>
    %64 = math.exp %63 : vector<288x64xf32>
    %65 = math.log1p %64 : vector<288x64xf32>
    %66 = arith.select %61, %53, %65 : vector<288x64xi1>, vector<288x64xf32>
    %67 = arith.mulf %59, %66 : vector<288x64xf32>
    %68 = vector.extract_strided_slice %67 {offsets = [0, 0], sizes = [24, 64], strides = [1, 1]} : vector<288x64xf32> to vector<24x64xf32>
    %69 = vector.extract_strided_slice %67 {offsets = [24, 0], sizes = [24, 64], strides = [1, 1]} : vector<288x64xf32> to vector<24x64xf32>
    %70 = arith.addf %68, %69 : vector<24x64xf32>
    %71 = vector.extract_strided_slice %67 {offsets = [48, 0], sizes = [24, 64], strides = [1, 1]} : vector<288x64xf32> to vector<24x64xf32>
    %72 = arith.addf %70, %71 : vector<24x64xf32>
    %73 = vector.extract_strided_slice %67 {offsets = [72, 0], sizes = [24, 64], strides = [1, 1]} : vector<288x64xf32> to vector<24x64xf32>
    %74 = arith.addf %72, %73 : vector<24x64xf32>
    %75 = vector.extract_strided_slice %67 {offsets = [96, 0], sizes = [24, 64], strides = [1, 1]} : vector<288x64xf32> to vector<24x64xf32>
    %76 = arith.addf %74, %75 : vector<24x64xf32>
    %77 = vector.extract_strided_slice %67 {offsets = [120, 0], sizes = [24, 64], strides = [1, 1]} : vector<288x64xf32> to vector<24x64xf32>
    %78 = arith.addf %76, %77 : vector<24x64xf32>
    %79 = vector.extract_strided_slice %67 {offsets = [144, 0], sizes = [24, 64], strides = [1, 1]} : vector<288x64xf32> to vector<24x64xf32>
    %80 = arith.addf %78, %79 : vector<24x64xf32>
    %81 = vector.extract_strided_slice %67 {offsets = [168, 0], sizes = [24, 64], strides = [1, 1]} : vector<288x64xf32> to vector<24x64xf32>
    %82 = arith.addf %80, %81 : vector<24x64xf32>
    %83 = vector.extract_strided_slice %67 {offsets = [192, 0], sizes = [24, 64], strides = [1, 1]} : vector<288x64xf32> to vector<24x64xf32>
    %84 = arith.addf %82, %83 : vector<24x64xf32>
    %85 = vector.extract_strided_slice %67 {offsets = [216, 0], sizes = [24, 64], strides = [1, 1]} : vector<288x64xf32> to vector<24x64xf32>
    %86 = arith.addf %84, %85 : vector<24x64xf32>
    %87 = vector.extract_strided_slice %67 {offsets = [240, 0], sizes = [24, 64], strides = [1, 1]} : vector<288x64xf32> to vector<24x64xf32>
    %88 = arith.addf %86, %87 : vector<24x64xf32>
    %89 = vector.extract_strided_slice %67 {offsets = [264, 0], sizes = [24, 64], strides = [1, 1]} : vector<288x64xf32> to vector<24x64xf32>
    %90 = arith.addf %88, %89 : vector<24x64xf32>
    %c0_33 = arith.constant 0 : index
    %c0_34 = arith.constant 0 : index
    %c0_35 = arith.constant 0 : index
    %91 = vector.load %arg8[%c0_33, %c0_34, %c0_35] : memref<3x1x64xf32, #tpu.memory_space<vmem>>, vector<1x1x64xf32>
    %92 = vector.shape_cast %91 : vector<1x1x64xf32> to vector<1x64xf32>
    %c0_36 = arith.constant 0 : index
    %c0_37 = arith.constant 0 : index
    %c0_38 = arith.constant 0 : index
    %93 = vector.load %arg9[%c0_36, %c0_37, %c0_38] : memref<3x1x64xf32, #tpu.memory_space<vmem>>, vector<1x1x64xf32>
    %94 = vector.shape_cast %93 : vector<1x1x64xf32> to vector<1x64xf32>
    %cst_39 = arith.constant dense<0.000000e+00> : vector<64xf32>
    %95 = vector.multi_reduction <add>, %90, %cst_39 [0] : vector<24x64xf32> to vector<64xf32>
    %96 = vector.shape_cast %95 : vector<64xf32> to vector<1x64xf32>
    %cst_40 = arith.constant 0.0416666679 : f32
    %97 = vector.broadcast %cst_40 : f32 to vector<1x64xf32>
    %98 = arith.mulf %96, %97 : vector<1x64xf32>
    %99 = vector.broadcast %98 : vector<1x64xf32> to vector<24x64xf32>
    %100 = arith.subf %90, %99 : vector<24x64xf32>
    %101 = arith.mulf %100, %100 : vector<24x64xf32>
    %cst_41 = arith.constant dense<0.000000e+00> : vector<64xf32>
    %102 = vector.multi_reduction <add>, %101, %cst_41 [0] : vector<24x64xf32> to vector<64xf32>
    %103 = vector.shape_cast %102 : vector<64xf32> to vector<1x64xf32>
    %cst_42 = arith.constant 0.0416666679 : f32
    %104 = vector.broadcast %cst_42 : f32 to vector<1x64xf32>
    %105 = arith.mulf %103, %104 : vector<1x64xf32>
    %cst_43 = arith.constant 9.99999974E-6 : f32
    %106 = vector.broadcast %cst_43 : f32 to vector<1x64xf32>
    %107 = arith.addf %105, %106 : vector<1x64xf32>
    %108 = math.rsqrt %107 : vector<1x64xf32>
    %109 = vector.broadcast %108 : vector<1x64xf32> to vector<24x64xf32>
    %110 = arith.mulf %100, %109 : vector<24x64xf32>
    %111 = vector.broadcast %92 : vector<1x64xf32> to vector<24x64xf32>
    %112 = arith.mulf %110, %111 : vector<24x64xf32>
    %113 = vector.broadcast %94 : vector<1x64xf32> to vector<24x64xf32>
    %114 = arith.addf %112, %113 : vector<24x64xf32>
    %115 = arith.addf %0, %114 : vector<24x64xf32>
    %cst_44 = arith.constant 2.000000e+01 : f32
    %116 = vector.broadcast %cst_44 : f32 to vector<24x64xf32>
    %117 = arith.cmpf ogt, %115, %116 : vector<24x64xf32>
    %cst_45 = arith.constant 2.000000e+01 : f32
    %118 = vector.broadcast %cst_45 : f32 to vector<24x64xf32>
    %119 = arith.minimumf %115, %118 : vector<24x64xf32>
    %120 = math.exp %119 : vector<24x64xf32>
    %121 = math.log1p %120 : vector<24x64xf32>
    %122 = arith.select %117, %115, %121 : vector<24x64xi1>, vector<24x64xf32>
    %123 = arith.truncf %122 : vector<24x64xf32> to vector<24x64xbf16>
    %c1 = arith.constant 1 : index
    %c0_46 = arith.constant 0 : index
    %c0_47 = arith.constant 0 : index
    %124 = vector.load %arg3[%c1, %c0_46, %c0_47] : memref<3x64x256xbf16, #tpu.memory_space<vmem>>, vector<1x64x256xbf16>
    %125 = vector.shape_cast %124 : vector<1x64x256xbf16> to vector<64x256xbf16>
    %cst_48 = arith.constant dense<0.000000e+00> : vector<24x256xf32>
    %126 = tpu.matmul %123, %125, %cst_48 {dimension_numbers = #tpu.dot_dimension_numbers<[1], [0], [0], [1], [0, 0, 1, 1], [], []>} : vector<24x64xbf16>, vector<64x256xbf16>, vector<24x256xf32> -> vector<24x256xf32>
    %127 = vector.extract_strided_slice %126 {offsets = [0, 0], sizes = [24, 128], strides = [1, 1]} : vector<24x256xf32> to vector<24x128xf32>
    %128 = vector.extract_strided_slice %126 {offsets = [0, 128], sizes = [24, 128], strides = [1, 1]} : vector<24x256xf32> to vector<24x128xf32>
    %c1_49 = arith.constant 1 : index
    %c0_50 = arith.constant 0 : index
    %c0_51 = arith.constant 0 : index
    %129 = vector.load %arg4[%c1_49, %c0_50, %c0_51] : memref<3x41x128xbf16, #tpu.memory_space<vmem>>, vector<1x41x128xbf16>
    %130 = vector.shape_cast %129 : vector<1x41x128xbf16> to vector<41x128xbf16>
    %cst_52 = arith.constant dense<0.000000e+00> : vector<288x128xf32>
    %131 = tpu.matmul %1, %130, %cst_52 {dimension_numbers = #tpu.dot_dimension_numbers<[1], [0], [0], [1], [0, 0, 1, 1], [], []>} : vector<288x41xbf16>, vector<41x128xbf16>, vector<288x128xf32> -> vector<288x128xf32>
    %132 = arith.truncf %127 : vector<24x128xf32> to vector<24x128xbf16>
    %cst_53 = arith.constant dense<0.000000e+00> : vector<288x128xf32>
    %133 = tpu.matmul %9, %132, %cst_53 {dimension_numbers = #tpu.dot_dimension_numbers<[1], [0], [0], [1], [0, 0, 1, 1], [], []>} : vector<288x24xbf16>, vector<24x128xbf16>, vector<288x128xf32> -> vector<288x128xf32>
    %134 = tpu.concatenate %128, %128, %128, %128, %128, %128, %128, %128, %128, %128, %128, %128 in 0 : vector<24x128xf32>, vector<24x128xf32>, vector<24x128xf32>, vector<24x128xf32>, vector<24x128xf32>, vector<24x128xf32>, vector<24x128xf32>, vector<24x128xf32>, vector<24x128xf32>, vector<24x128xf32>, vector<24x128xf32>, vector<24x128xf32> -> vector<288x128xf32>
    %135 = arith.addf %133, %134 : vector<288x128xf32>
    %136 = arith.addf %135, %131 : vector<288x128xf32>
    %c1_54 = arith.constant 1 : index
    %c0_55 = arith.constant 0 : index
    %c0_56 = arith.constant 0 : index
    %137 = vector.load %arg5[%c1_54, %c0_55, %c0_56] : memref<3x1x128xf32, #tpu.memory_space<vmem>>, vector<1x1x128xf32>
    %138 = vector.shape_cast %137 : vector<1x1x128xf32> to vector<1x128xf32>
    %139 = vector.broadcast %138 : vector<1x128xf32> to vector<288x128xf32>
    %140 = arith.addf %136, %139 : vector<288x128xf32>
    %c1_57 = arith.constant 1 : index
    %c0_58 = arith.constant 0 : index
    %c0_59 = arith.constant 0 : index
    %141 = vector.load %arg6[%c1_57, %c0_58, %c0_59] : memref<3x1x128xf32, #tpu.memory_space<vmem>>, vector<1x1x128xf32>
    %142 = vector.shape_cast %141 : vector<1x1x128xf32> to vector<1x128xf32>
    %c1_60 = arith.constant 1 : index
    %c0_61 = arith.constant 0 : index
    %c0_62 = arith.constant 0 : index
    %143 = vector.load %arg7[%c1_60, %c0_61, %c0_62] : memref<3x1x128xf32, #tpu.memory_space<vmem>>, vector<1x1x128xf32>
    %144 = vector.shape_cast %143 : vector<1x1x128xf32> to vector<1x128xf32>
    %cst_63 = arith.constant dense<0.000000e+00> : vector<128xf32>
    %145 = vector.multi_reduction <add>, %140, %cst_63 [0] : vector<288x128xf32> to vector<128xf32>
    %146 = vector.shape_cast %145 : vector<128xf32> to vector<1x128xf32>
    %cst_64 = arith.constant 0.00347222225 : f32
    %147 = vector.broadcast %cst_64 : f32 to vector<1x128xf32>
    %148 = arith.mulf %146, %147 : vector<1x128xf32>
    %149 = vector.broadcast %148 : vector<1x128xf32> to vector<288x128xf32>
    %150 = arith.subf %140, %149 : vector<288x128xf32>
    %151 = arith.mulf %150, %150 : vector<288x128xf32>
    %cst_65 = arith.constant dense<0.000000e+00> : vector<128xf32>
    %152 = vector.multi_reduction <add>, %151, %cst_65 [0] : vector<288x128xf32> to vector<128xf32>
    %153 = vector.shape_cast %152 : vector<128xf32> to vector<1x128xf32>
    %cst_66 = arith.constant 0.00347222225 : f32
    %154 = vector.broadcast %cst_66 : f32 to vector<1x128xf32>
    %155 = arith.mulf %153, %154 : vector<1x128xf32>
    %cst_67 = arith.constant 9.99999974E-6 : f32
    %156 = vector.broadcast %cst_67 : f32 to vector<1x128xf32>
    %157 = arith.addf %155, %156 : vector<1x128xf32>
    %158 = math.rsqrt %157 : vector<1x128xf32>
    %159 = vector.broadcast %158 : vector<1x128xf32> to vector<288x128xf32>
    %160 = arith.mulf %150, %159 : vector<288x128xf32>
    %161 = vector.broadcast %142 : vector<1x128xf32> to vector<288x128xf32>
    %162 = arith.mulf %160, %161 : vector<288x128xf32>
    %163 = vector.broadcast %144 : vector<1x128xf32> to vector<288x128xf32>
    %164 = arith.addf %162, %163 : vector<288x128xf32>
    %165 = vector.extract_strided_slice %164 {offsets = [0, 0], sizes = [288, 64], strides = [1, 1]} : vector<288x128xf32> to vector<288x64xf32>
    %166 = vector.extract_strided_slice %164 {offsets = [0, 64], sizes = [288, 64], strides = [1, 1]} : vector<288x128xf32> to vector<288x64xf32>
    %cst_68 = arith.constant 0.000000e+00 : f32
    %167 = vector.broadcast %cst_68 : f32 to vector<288x64xf32>
    %168 = arith.subf %167, %165 : vector<288x64xf32>
    %169 = math.exp %168 : vector<288x64xf32>
    %cst_69 = arith.constant 1.000000e+00 : f32
    %170 = vector.broadcast %cst_69 : f32 to vector<288x64xf32>
    %171 = arith.addf %170, %169 : vector<288x64xf32>
    %172 = tpu.reciprocal %171 {approx = true} : vector<288x64xf32> -> vector<288x64xf32>
    %cst_70 = arith.constant 2.000000e+01 : f32
    %173 = vector.broadcast %cst_70 : f32 to vector<288x64xf32>
    %174 = arith.cmpf ogt, %166, %173 : vector<288x64xf32>
    %cst_71 = arith.constant 2.000000e+01 : f32
    %175 = vector.broadcast %cst_71 : f32 to vector<288x64xf32>
    %176 = arith.minimumf %166, %175 : vector<288x64xf32>
    %177 = math.exp %176 : vector<288x64xf32>
    %178 = math.log1p %177 : vector<288x64xf32>
    %179 = arith.select %174, %166, %178 : vector<288x64xi1>, vector<288x64xf32>
    %180 = arith.mulf %172, %179 : vector<288x64xf32>
    %181 = vector.extract_strided_slice %180 {offsets = [0, 0], sizes = [24, 64], strides = [1, 1]} : vector<288x64xf32> to vector<24x64xf32>
    %182 = vector.extract_strided_slice %180 {offsets = [24, 0], sizes = [24, 64], strides = [1, 1]} : vector<288x64xf32> to vector<24x64xf32>
    %183 = arith.addf %181, %182 : vector<24x64xf32>
    %184 = vector.extract_strided_slice %180 {offsets = [48, 0], sizes = [24, 64], strides = [1, 1]} : vector<288x64xf32> to vector<24x64xf32>
    %185 = arith.addf %183, %184 : vector<24x64xf32>
    %186 = vector.extract_strided_slice %180 {offsets = [72, 0], sizes = [24, 64], strides = [1, 1]} : vector<288x64xf32> to vector<24x64xf32>
    %187 = arith.addf %185, %186 : vector<24x64xf32>
    %188 = vector.extract_strided_slice %180 {offsets = [96, 0], sizes = [24, 64], strides = [1, 1]} : vector<288x64xf32> to vector<24x64xf32>
    %189 = arith.addf %187, %188 : vector<24x64xf32>
    %190 = vector.extract_strided_slice %180 {offsets = [120, 0], sizes = [24, 64], strides = [1, 1]} : vector<288x64xf32> to vector<24x64xf32>
    %191 = arith.addf %189, %190 : vector<24x64xf32>
    %192 = vector.extract_strided_slice %180 {offsets = [144, 0], sizes = [24, 64], strides = [1, 1]} : vector<288x64xf32> to vector<24x64xf32>
    %193 = arith.addf %191, %192 : vector<24x64xf32>
    %194 = vector.extract_strided_slice %180 {offsets = [168, 0], sizes = [24, 64], strides = [1, 1]} : vector<288x64xf32> to vector<24x64xf32>
    %195 = arith.addf %193, %194 : vector<24x64xf32>
    %196 = vector.extract_strided_slice %180 {offsets = [192, 0], sizes = [24, 64], strides = [1, 1]} : vector<288x64xf32> to vector<24x64xf32>
    %197 = arith.addf %195, %196 : vector<24x64xf32>
    %198 = vector.extract_strided_slice %180 {offsets = [216, 0], sizes = [24, 64], strides = [1, 1]} : vector<288x64xf32> to vector<24x64xf32>
    %199 = arith.addf %197, %198 : vector<24x64xf32>
    %200 = vector.extract_strided_slice %180 {offsets = [240, 0], sizes = [24, 64], strides = [1, 1]} : vector<288x64xf32> to vector<24x64xf32>
    %201 = arith.addf %199, %200 : vector<24x64xf32>
    %202 = vector.extract_strided_slice %180 {offsets = [264, 0], sizes = [24, 64], strides = [1, 1]} : vector<288x64xf32> to vector<24x64xf32>
    %203 = arith.addf %201, %202 : vector<24x64xf32>
    %c1_72 = arith.constant 1 : index
    %c0_73 = arith.constant 0 : index
    %c0_74 = arith.constant 0 : index
    %204 = vector.load %arg8[%c1_72, %c0_73, %c0_74] : memref<3x1x64xf32, #tpu.memory_space<vmem>>, vector<1x1x64xf32>
    %205 = vector.shape_cast %204 : vector<1x1x64xf32> to vector<1x64xf32>
    %c1_75 = arith.constant 1 : index
    %c0_76 = arith.constant 0 : index
    %c0_77 = arith.constant 0 : index
    %206 = vector.load %arg9[%c1_75, %c0_76, %c0_77] : memref<3x1x64xf32, #tpu.memory_space<vmem>>, vector<1x1x64xf32>
    %207 = vector.shape_cast %206 : vector<1x1x64xf32> to vector<1x64xf32>
    %cst_78 = arith.constant dense<0.000000e+00> : vector<64xf32>
    %208 = vector.multi_reduction <add>, %203, %cst_78 [0] : vector<24x64xf32> to vector<64xf32>
    %209 = vector.shape_cast %208 : vector<64xf32> to vector<1x64xf32>
    %cst_79 = arith.constant 0.0416666679 : f32
    %210 = vector.broadcast %cst_79 : f32 to vector<1x64xf32>
    %211 = arith.mulf %209, %210 : vector<1x64xf32>
    %212 = vector.broadcast %211 : vector<1x64xf32> to vector<24x64xf32>
    %213 = arith.subf %203, %212 : vector<24x64xf32>
    %214 = arith.mulf %213, %213 : vector<24x64xf32>
    %cst_80 = arith.constant dense<0.000000e+00> : vector<64xf32>
    %215 = vector.multi_reduction <add>, %214, %cst_80 [0] : vector<24x64xf32> to vector<64xf32>
    %216 = vector.shape_cast %215 : vector<64xf32> to vector<1x64xf32>
    %cst_81 = arith.constant 0.0416666679 : f32
    %217 = vector.broadcast %cst_81 : f32 to vector<1x64xf32>
    %218 = arith.mulf %216, %217 : vector<1x64xf32>
    %cst_82 = arith.constant 9.99999974E-6 : f32
    %219 = vector.broadcast %cst_82 : f32 to vector<1x64xf32>
    %220 = arith.addf %218, %219 : vector<1x64xf32>
    %221 = math.rsqrt %220 : vector<1x64xf32>
    %222 = vector.broadcast %221 : vector<1x64xf32> to vector<24x64xf32>
    %223 = arith.mulf %213, %222 : vector<24x64xf32>
    %224 = vector.broadcast %205 : vector<1x64xf32> to vector<24x64xf32>
    %225 = arith.mulf %223, %224 : vector<24x64xf32>
    %226 = vector.broadcast %207 : vector<1x64xf32> to vector<24x64xf32>
    %227 = arith.addf %225, %226 : vector<24x64xf32>
    %228 = arith.addf %122, %227 : vector<24x64xf32>
    %cst_83 = arith.constant 2.000000e+01 : f32
    %229 = vector.broadcast %cst_83 : f32 to vector<24x64xf32>
    %230 = arith.cmpf ogt, %228, %229 : vector<24x64xf32>
    %cst_84 = arith.constant 2.000000e+01 : f32
    %231 = vector.broadcast %cst_84 : f32 to vector<24x64xf32>
    %232 = arith.minimumf %228, %231 : vector<24x64xf32>
    %233 = math.exp %232 : vector<24x64xf32>
    %234 = math.log1p %233 : vector<24x64xf32>
    %235 = arith.select %230, %228, %234 : vector<24x64xi1>, vector<24x64xf32>
    %236 = arith.truncf %235 : vector<24x64xf32> to vector<24x64xbf16>
    %c2 = arith.constant 2 : index
    %c0_85 = arith.constant 0 : index
    %c0_86 = arith.constant 0 : index
    %237 = vector.load %arg3[%c2, %c0_85, %c0_86] : memref<3x64x256xbf16, #tpu.memory_space<vmem>>, vector<1x64x256xbf16>
    %238 = vector.shape_cast %237 : vector<1x64x256xbf16> to vector<64x256xbf16>
    %cst_87 = arith.constant dense<0.000000e+00> : vector<24x256xf32>
    %239 = tpu.matmul %236, %238, %cst_87 {dimension_numbers = #tpu.dot_dimension_numbers<[1], [0], [0], [1], [0, 0, 1, 1], [], []>} : vector<24x64xbf16>, vector<64x256xbf16>, vector<24x256xf32> -> vector<24x256xf32>
    %240 = vector.extract_strided_slice %239 {offsets = [0, 0], sizes = [24, 128], strides = [1, 1]} : vector<24x256xf32> to vector<24x128xf32>
    %241 = vector.extract_strided_slice %239 {offsets = [0, 128], sizes = [24, 128], strides = [1, 1]} : vector<24x256xf32> to vector<24x128xf32>
    %c2_88 = arith.constant 2 : index
    %c0_89 = arith.constant 0 : index
    %c0_90 = arith.constant 0 : index
    %242 = vector.load %arg4[%c2_88, %c0_89, %c0_90] : memref<3x41x128xbf16, #tpu.memory_space<vmem>>, vector<1x41x128xbf16>
    %243 = vector.shape_cast %242 : vector<1x41x128xbf16> to vector<41x128xbf16>
    %cst_91 = arith.constant dense<0.000000e+00> : vector<288x128xf32>
    %244 = tpu.matmul %1, %243, %cst_91 {dimension_numbers = #tpu.dot_dimension_numbers<[1], [0], [0], [1], [0, 0, 1, 1], [], []>} : vector<288x41xbf16>, vector<41x128xbf16>, vector<288x128xf32> -> vector<288x128xf32>
    %245 = arith.truncf %240 : vector<24x128xf32> to vector<24x128xbf16>
    %cst_92 = arith.constant dense<0.000000e+00> : vector<288x128xf32>
    %246 = tpu.matmul %9, %245, %cst_92 {dimension_numbers = #tpu.dot_dimension_numbers<[1], [0], [0], [1], [0, 0, 1, 1], [], []>} : vector<288x24xbf16>, vector<24x128xbf16>, vector<288x128xf32> -> vector<288x128xf32>
    %247 = tpu.concatenate %241, %241, %241, %241, %241, %241, %241, %241, %241, %241, %241, %241 in 0 : vector<24x128xf32>, vector<24x128xf32>, vector<24x128xf32>, vector<24x128xf32>, vector<24x128xf32>, vector<24x128xf32>, vector<24x128xf32>, vector<24x128xf32>, vector<24x128xf32>, vector<24x128xf32>, vector<24x128xf32>, vector<24x128xf32> -> vector<288x128xf32>
    %248 = arith.addf %246, %247 : vector<288x128xf32>
    %249 = arith.addf %248, %244 : vector<288x128xf32>
    %c2_93 = arith.constant 2 : index
    %c0_94 = arith.constant 0 : index
    %c0_95 = arith.constant 0 : index
    %250 = vector.load %arg5[%c2_93, %c0_94, %c0_95] : memref<3x1x128xf32, #tpu.memory_space<vmem>>, vector<1x1x128xf32>
    %251 = vector.shape_cast %250 : vector<1x1x128xf32> to vector<1x128xf32>
    %252 = vector.broadcast %251 : vector<1x128xf32> to vector<288x128xf32>
    %253 = arith.addf %249, %252 : vector<288x128xf32>
    %c2_96 = arith.constant 2 : index
    %c0_97 = arith.constant 0 : index
    %c0_98 = arith.constant 0 : index
    %254 = vector.load %arg6[%c2_96, %c0_97, %c0_98] : memref<3x1x128xf32, #tpu.memory_space<vmem>>, vector<1x1x128xf32>
    %255 = vector.shape_cast %254 : vector<1x1x128xf32> to vector<1x128xf32>
    %c2_99 = arith.constant 2 : index
    %c0_100 = arith.constant 0 : index
    %c0_101 = arith.constant 0 : index
    %256 = vector.load %arg7[%c2_99, %c0_100, %c0_101] : memref<3x1x128xf32, #tpu.memory_space<vmem>>, vector<1x1x128xf32>
    %257 = vector.shape_cast %256 : vector<1x1x128xf32> to vector<1x128xf32>
    %cst_102 = arith.constant dense<0.000000e+00> : vector<128xf32>
    %258 = vector.multi_reduction <add>, %253, %cst_102 [0] : vector<288x128xf32> to vector<128xf32>
    %259 = vector.shape_cast %258 : vector<128xf32> to vector<1x128xf32>
    %cst_103 = arith.constant 0.00347222225 : f32
    %260 = vector.broadcast %cst_103 : f32 to vector<1x128xf32>
    %261 = arith.mulf %259, %260 : vector<1x128xf32>
    %262 = vector.broadcast %261 : vector<1x128xf32> to vector<288x128xf32>
    %263 = arith.subf %253, %262 : vector<288x128xf32>
    %264 = arith.mulf %263, %263 : vector<288x128xf32>
    %cst_104 = arith.constant dense<0.000000e+00> : vector<128xf32>
    %265 = vector.multi_reduction <add>, %264, %cst_104 [0] : vector<288x128xf32> to vector<128xf32>
    %266 = vector.shape_cast %265 : vector<128xf32> to vector<1x128xf32>
    %cst_105 = arith.constant 0.00347222225 : f32
    %267 = vector.broadcast %cst_105 : f32 to vector<1x128xf32>
    %268 = arith.mulf %266, %267 : vector<1x128xf32>
    %cst_106 = arith.constant 9.99999974E-6 : f32
    %269 = vector.broadcast %cst_106 : f32 to vector<1x128xf32>
    %270 = arith.addf %268, %269 : vector<1x128xf32>
    %271 = math.rsqrt %270 : vector<1x128xf32>
    %272 = vector.broadcast %271 : vector<1x128xf32> to vector<288x128xf32>
    %273 = arith.mulf %263, %272 : vector<288x128xf32>
    %274 = vector.broadcast %255 : vector<1x128xf32> to vector<288x128xf32>
    %275 = arith.mulf %273, %274 : vector<288x128xf32>
    %276 = vector.broadcast %257 : vector<1x128xf32> to vector<288x128xf32>
    %277 = arith.addf %275, %276 : vector<288x128xf32>
    %278 = vector.extract_strided_slice %277 {offsets = [0, 0], sizes = [288, 64], strides = [1, 1]} : vector<288x128xf32> to vector<288x64xf32>
    %279 = vector.extract_strided_slice %277 {offsets = [0, 64], sizes = [288, 64], strides = [1, 1]} : vector<288x128xf32> to vector<288x64xf32>
    %cst_107 = arith.constant 0.000000e+00 : f32
    %280 = vector.broadcast %cst_107 : f32 to vector<288x64xf32>
    %281 = arith.subf %280, %278 : vector<288x64xf32>
    %282 = math.exp %281 : vector<288x64xf32>
    %cst_108 = arith.constant 1.000000e+00 : f32
    %283 = vector.broadcast %cst_108 : f32 to vector<288x64xf32>
    %284 = arith.addf %283, %282 : vector<288x64xf32>
    %285 = tpu.reciprocal %284 {approx = true} : vector<288x64xf32> -> vector<288x64xf32>
    %cst_109 = arith.constant 2.000000e+01 : f32
    %286 = vector.broadcast %cst_109 : f32 to vector<288x64xf32>
    %287 = arith.cmpf ogt, %279, %286 : vector<288x64xf32>
    %cst_110 = arith.constant 2.000000e+01 : f32
    %288 = vector.broadcast %cst_110 : f32 to vector<288x64xf32>
    %289 = arith.minimumf %279, %288 : vector<288x64xf32>
    %290 = math.exp %289 : vector<288x64xf32>
    %291 = math.log1p %290 : vector<288x64xf32>
    %292 = arith.select %287, %279, %291 : vector<288x64xi1>, vector<288x64xf32>
    %293 = arith.mulf %285, %292 : vector<288x64xf32>
    %294 = vector.extract_strided_slice %293 {offsets = [0, 0], sizes = [24, 64], strides = [1, 1]} : vector<288x64xf32> to vector<24x64xf32>
    %295 = vector.extract_strided_slice %293 {offsets = [24, 0], sizes = [24, 64], strides = [1, 1]} : vector<288x64xf32> to vector<24x64xf32>
    %296 = arith.addf %294, %295 : vector<24x64xf32>
    %297 = vector.extract_strided_slice %293 {offsets = [48, 0], sizes = [24, 64], strides = [1, 1]} : vector<288x64xf32> to vector<24x64xf32>
    %298 = arith.addf %296, %297 : vector<24x64xf32>
    %299 = vector.extract_strided_slice %293 {offsets = [72, 0], sizes = [24, 64], strides = [1, 1]} : vector<288x64xf32> to vector<24x64xf32>
    %300 = arith.addf %298, %299 : vector<24x64xf32>
    %301 = vector.extract_strided_slice %293 {offsets = [96, 0], sizes = [24, 64], strides = [1, 1]} : vector<288x64xf32> to vector<24x64xf32>
    %302 = arith.addf %300, %301 : vector<24x64xf32>
    %303 = vector.extract_strided_slice %293 {offsets = [120, 0], sizes = [24, 64], strides = [1, 1]} : vector<288x64xf32> to vector<24x64xf32>
    %304 = arith.addf %302, %303 : vector<24x64xf32>
    %305 = vector.extract_strided_slice %293 {offsets = [144, 0], sizes = [24, 64], strides = [1, 1]} : vector<288x64xf32> to vector<24x64xf32>
    %306 = arith.addf %304, %305 : vector<24x64xf32>
    %307 = vector.extract_strided_slice %293 {offsets = [168, 0], sizes = [24, 64], strides = [1, 1]} : vector<288x64xf32> to vector<24x64xf32>
    %308 = arith.addf %306, %307 : vector<24x64xf32>
    %309 = vector.extract_strided_slice %293 {offsets = [192, 0], sizes = [24, 64], strides = [1, 1]} : vector<288x64xf32> to vector<24x64xf32>
    %310 = arith.addf %308, %309 : vector<24x64xf32>
    %311 = vector.extract_strided_slice %293 {offsets = [216, 0], sizes = [24, 64], strides = [1, 1]} : vector<288x64xf32> to vector<24x64xf32>
    %312 = arith.addf %310, %311 : vector<24x64xf32>
    %313 = vector.extract_strided_slice %293 {offsets = [240, 0], sizes = [24, 64], strides = [1, 1]} : vector<288x64xf32> to vector<24x64xf32>
    %314 = arith.addf %312, %313 : vector<24x64xf32>
    %315 = vector.extract_strided_slice %293 {offsets = [264, 0], sizes = [24, 64], strides = [1, 1]} : vector<288x64xf32> to vector<24x64xf32>
    %316 = arith.addf %314, %315 : vector<24x64xf32>
    %c2_111 = arith.constant 2 : index
    %c0_112 = arith.constant 0 : index
    %c0_113 = arith.constant 0 : index
    %317 = vector.load %arg8[%c2_111, %c0_112, %c0_113] : memref<3x1x64xf32, #tpu.memory_space<vmem>>, vector<1x1x64xf32>
    %318 = vector.shape_cast %317 : vector<1x1x64xf32> to vector<1x64xf32>
    %c2_114 = arith.constant 2 : index
    %c0_115 = arith.constant 0 : index
    %c0_116 = arith.constant 0 : index
    %319 = vector.load %arg9[%c2_114, %c0_115, %c0_116] : memref<3x1x64xf32, #tpu.memory_space<vmem>>, vector<1x1x64xf32>
    %320 = vector.shape_cast %319 : vector<1x1x64xf32> to vector<1x64xf32>
    %cst_117 = arith.constant dense<0.000000e+00> : vector<64xf32>
    %321 = vector.multi_reduction <add>, %316, %cst_117 [0] : vector<24x64xf32> to vector<64xf32>
    %322 = vector.shape_cast %321 : vector<64xf32> to vector<1x64xf32>
    %cst_118 = arith.constant 0.0416666679 : f32
    %323 = vector.broadcast %cst_118 : f32 to vector<1x64xf32>
    %324 = arith.mulf %322, %323 : vector<1x64xf32>
    %325 = vector.broadcast %324 : vector<1x64xf32> to vector<24x64xf32>
    %326 = arith.subf %316, %325 : vector<24x64xf32>
    %327 = arith.mulf %326, %326 : vector<24x64xf32>
    %cst_119 = arith.constant dense<0.000000e+00> : vector<64xf32>
    %328 = vector.multi_reduction <add>, %327, %cst_119 [0] : vector<24x64xf32> to vector<64xf32>
    %329 = vector.shape_cast %328 : vector<64xf32> to vector<1x64xf32>
    %cst_120 = arith.constant 0.0416666679 : f32
    %330 = vector.broadcast %cst_120 : f32 to vector<1x64xf32>
    %331 = arith.mulf %329, %330 : vector<1x64xf32>
    %cst_121 = arith.constant 9.99999974E-6 : f32
    %332 = vector.broadcast %cst_121 : f32 to vector<1x64xf32>
    %333 = arith.addf %331, %332 : vector<1x64xf32>
    %334 = math.rsqrt %333 : vector<1x64xf32>
    %335 = vector.broadcast %334 : vector<1x64xf32> to vector<24x64xf32>
    %336 = arith.mulf %326, %335 : vector<24x64xf32>
    %337 = vector.broadcast %318 : vector<1x64xf32> to vector<24x64xf32>
    %338 = arith.mulf %336, %337 : vector<24x64xf32>
    %339 = vector.broadcast %320 : vector<1x64xf32> to vector<24x64xf32>
    %340 = arith.addf %338, %339 : vector<24x64xf32>
    %341 = arith.addf %235, %340 : vector<24x64xf32>
    %cst_122 = arith.constant 2.000000e+01 : f32
    %342 = vector.broadcast %cst_122 : f32 to vector<24x64xf32>
    %343 = arith.cmpf ogt, %341, %342 : vector<24x64xf32>
    %cst_123 = arith.constant 2.000000e+01 : f32
    %344 = vector.broadcast %cst_123 : f32 to vector<24x64xf32>
    %345 = arith.minimumf %341, %344 : vector<24x64xf32>
    %346 = math.exp %345 : vector<24x64xf32>
    %347 = math.log1p %346 : vector<24x64xf32>
    %348 = arith.select %343, %341, %347 : vector<24x64xi1>, vector<24x64xf32>
    %c0_124 = arith.constant 0 : index
    %c0_125 = arith.constant 0 : index
    %349 = vector.load %arg10[%c0_124, %c0_125] : memref<2x24xf32, #tpu.memory_space<vmem>>, vector<2x24xf32>
    %cst_126 = arith.constant dense<0.000000e+00> : vector<2x64xf32>
    %350 = tpu.matmul %349, %348, %cst_126 {dimension_numbers = #tpu.dot_dimension_numbers<[1], [0], [0], [1], [0, 0, 1, 1], [], []>} : vector<2x24xf32>, vector<24x64xf32>, vector<2x64xf32> -> vector<2x64xf32>
    %cst_127 = arith.constant 2.000000e+01 : f32
    %351 = vector.broadcast %cst_127 : f32 to vector<2x64xf32>
    %352 = arith.cmpf ogt, %350, %351 : vector<2x64xf32>
    %cst_128 = arith.constant 2.000000e+01 : f32
    %353 = vector.broadcast %cst_128 : f32 to vector<2x64xf32>
    %354 = arith.minimumf %350, %353 : vector<2x64xf32>
    %355 = math.exp %354 : vector<2x64xf32>
    %356 = math.log1p %355 : vector<2x64xf32>
    %357 = arith.select %352, %350, %356 : vector<2x64xi1>, vector<2x64xf32>
    %c0_129 = arith.constant 0 : index
    %c0_130 = arith.constant 0 : index
    %358 = vector.load %arg11[%c0_129, %c0_130] : memref<1x64xf32, #tpu.memory_space<vmem>>, vector<1x64xf32>
    %c0_131 = arith.constant 0 : index
    %c0_132 = arith.constant 0 : index
    %359 = vector.load %arg12[%c0_131, %c0_132] : memref<1x64xf32, #tpu.memory_space<vmem>>, vector<1x64xf32>
    %cst_133 = arith.constant dense<0.000000e+00> : vector<64xf32>
    %360 = vector.multi_reduction <add>, %357, %cst_133 [0] : vector<2x64xf32> to vector<64xf32>
    %361 = vector.shape_cast %360 : vector<64xf32> to vector<1x64xf32>
    %cst_134 = arith.constant 5.000000e-01 : f32
    %362 = vector.broadcast %cst_134 : f32 to vector<1x64xf32>
    %363 = arith.mulf %361, %362 : vector<1x64xf32>
    %364 = vector.broadcast %363 : vector<1x64xf32> to vector<2x64xf32>
    %365 = arith.subf %357, %364 : vector<2x64xf32>
    %366 = arith.mulf %365, %365 : vector<2x64xf32>
    %cst_135 = arith.constant dense<0.000000e+00> : vector<64xf32>
    %367 = vector.multi_reduction <add>, %366, %cst_135 [0] : vector<2x64xf32> to vector<64xf32>
    %368 = vector.shape_cast %367 : vector<64xf32> to vector<1x64xf32>
    %cst_136 = arith.constant 5.000000e-01 : f32
    %369 = vector.broadcast %cst_136 : f32 to vector<1x64xf32>
    %370 = arith.mulf %368, %369 : vector<1x64xf32>
    %cst_137 = arith.constant 9.99999974E-6 : f32
    %371 = vector.broadcast %cst_137 : f32 to vector<1x64xf32>
    %372 = arith.addf %370, %371 : vector<1x64xf32>
    %373 = math.rsqrt %372 : vector<1x64xf32>
    %374 = vector.broadcast %373 : vector<1x64xf32> to vector<2x64xf32>
    %375 = arith.mulf %365, %374 : vector<2x64xf32>
    %376 = vector.broadcast %358 : vector<1x64xf32> to vector<2x64xf32>
    %377 = arith.mulf %375, %376 : vector<2x64xf32>
    %378 = vector.broadcast %359 : vector<1x64xf32> to vector<2x64xf32>
    %379 = arith.addf %377, %378 : vector<2x64xf32>
    %c0_138 = arith.constant 0 : index
    %c0_139 = arith.constant 0 : index
    %380 = vector.load %arg13[%c0_138, %c0_139] : memref<64x128xf32, #tpu.memory_space<vmem>>, vector<64x128xf32>
    %cst_140 = arith.constant dense<0.000000e+00> : vector<2x128xf32>
    %381 = tpu.matmul %379, %380, %cst_140 {dimension_numbers = #tpu.dot_dimension_numbers<[1], [0], [0], [1], [0, 0, 1, 1], [], []>} : vector<2x64xf32>, vector<64x128xf32>, vector<2x128xf32> -> vector<2x128xf32>
    %c0_141 = arith.constant 0 : index
    %c0_142 = arith.constant 0 : index
    %382 = vector.load %arg14[%c0_141, %c0_142] : memref<1x128xf32, #tpu.memory_space<vmem>>, vector<1x128xf32>
    %383 = vector.broadcast %382 : vector<1x128xf32> to vector<2x128xf32>
    %384 = arith.addf %381, %383 : vector<2x128xf32>
    %cst_143 = arith.constant 2.000000e+01 : f32
    %385 = vector.broadcast %cst_143 : f32 to vector<2x128xf32>
    %386 = arith.cmpf ogt, %384, %385 : vector<2x128xf32>
    %cst_144 = arith.constant 2.000000e+01 : f32
    %387 = vector.broadcast %cst_144 : f32 to vector<2x128xf32>
    %388 = arith.minimumf %384, %387 : vector<2x128xf32>
    %389 = math.exp %388 : vector<2x128xf32>
    %390 = math.log1p %389 : vector<2x128xf32>
    %391 = arith.select %386, %384, %390 : vector<2x128xi1>, vector<2x128xf32>
    %c0_145 = arith.constant 0 : index
    %c0_146 = arith.constant 0 : index
    %392 = vector.load %arg15[%c0_145, %c0_146] : memref<1x128xf32, #tpu.memory_space<vmem>>, vector<1x128xf32>
    %393 = vector.broadcast %392 : vector<1x128xf32> to vector<2x128xf32>
    %394 = arith.mulf %391, %393 : vector<2x128xf32>
    %cst_147 = arith.constant dense<0.000000e+00> : vector<2xf32>
    %395 = vector.multi_reduction <add>, %394, %cst_147 [1] : vector<2x128xf32> to vector<2xf32>
    %396 = vector.shape_cast %395 : vector<2xf32> to vector<2x1xf32>
    %c0_148 = arith.constant 0 : index
    %c0_149 = arith.constant 0 : index
    %397 = vector.load %arg16[%c0_148, %c0_149] : memref<1x1xf32, #tpu.memory_space<vmem>>, vector<1x1xf32>
    %398 = vector.broadcast %397 : vector<1x1xf32> to vector<2x1xf32>
    %399 = arith.addf %396, %398 : vector<2x1xf32>
    %c0_150 = arith.constant 0 : index
    %c0_151 = arith.constant 0 : index
    %400 = vector.load %arg17[%c0_150, %c0_151] : memref<2x1xf32, #tpu.memory_space<vmem>>, vector<2x1xf32>
    tpu.vector_store %arg17[%c0_150, %c0_151], %399 {strides = array<i32>} : memref<2x1xf32, #tpu.memory_space<vmem>>, vector<2x1xf32>,
    return
  }
}

</mosaic_0001>

<llo_original>
// kernel: tpu_custom_call.1
$region0: #{tpu_custom_call.1}
  #allocation0 [shape = 'u32[]', space=smem, size = 0x4, offset = 0x4, fixed_abs, tag = 'smem constant byte address 0x4 - core index']
  #allocation1 [shape = 'u32[144,128]{1,0:T(1,128)}', space=vmem, size = 0x12000, scoped, tag = 'internal scratch']
  #allocation2 [shape = 'f32[1,1]{1,0:T(1,128)S(1)}', space=vmem, size = 0x200, scoped, tag = 'scoped memory for tpu_custom_call.1']
  %s0 = inlined_call_operand.vmem [shape: f32[24,64], index: 0, kind: input, shape index: {}]
  %s1 = inlined_call_operand.vmem [shape: s32[288,1], index: 1, kind: input, shape index: {}]
  %s2 = inlined_call_operand.vmem [shape: bf16[288,41], index: 2, kind: input, shape index: {}]
  %s3 = inlined_call_operand.vmem [shape: bf16[3,64,256], index: 3, kind: input, shape index: {}]
  %s4 = inlined_call_operand.vmem [shape: bf16[3,41,128], index: 4, kind: input, shape index: {}]
  %s5 = inlined_call_operand.vmem [shape: f32[3,1,128], index: 5, kind: input, shape index: {}]
  %s6 = inlined_call_operand.vmem [shape: f32[3,1,128], index: 6, kind: input, shape index: {}]
  %s7 = inlined_call_operand.vmem [shape: f32[3,1,128], index: 7, kind: input, shape index: {}]
  %s8 = inlined_call_operand.vmem [shape: f32[3,1,64], index: 8, kind: input, shape index: {}]
  %s9 = inlined_call_operand.vmem [shape: f32[3,1,64], index: 9, kind: input, shape index: {}]
  %s10 = inlined_call_operand.vmem [shape: f32[2,24], index: 10, kind: input, shape index: {}]
  %s11 = inlined_call_operand.vmem [shape: f32[1,64], index: 11, kind: input, shape index: {}]
  %s12 = inlined_call_operand.vmem [shape: f32[1,64], index: 12, kind: input, shape index: {}]
  %s13 = inlined_call_operand.vmem [shape: f32[64,128], index: 13, kind: input, shape index: {}]
  %s14 = inlined_call_operand.vmem [shape: f32[1,128], index: 14, kind: input, shape index: {}]
  %s15 = inlined_call_operand.vmem [shape: f32[1,128], index: 15, kind: input, shape index: {}]
  %s16 = inlined_call_operand.<no memory space> [shape: f32[1,1], index: 16, kind: input, shape index: {}]
  %s17 = inlined_call_operand.vmem [shape: f32[2,1], index: 17, kind: output, shape index: {}]
  %s18 = sld [smem:[#allocation0]]
  $region78: #{tpu_custom_call.1} parent=0
    _
  %s20 = ssub.s32 1, %s18
  %s21 = scalar_select 0, %s20, %s18
  %v22 = vstv %s16
  %23 = vst [vmem:[#allocation2] sm:$0x1] %v22
  // Predicated region
  $region2: #{tpu_custom_call.1} parent=0 // pred_check
    _
  $region3: #{tpu_custom_call.1} parent=0 // pred_check_branch
    %25 = sbr.rel (0) target = $region5
  $region4: #{tpu_custom_call.1} parent=0 // pred_region
    _
  $region5: #{tpu_custom_call.1} parent=0 // pred_fallthru
    _
  // Predicated region
  $region6: #{tpu_custom_call.1} parent=0 // pred_check
    _
  $region7: #{tpu_custom_call.1} parent=0 // pred_check_branch
    %27 = sbr.rel (0) target = $region9
  $region8: #{tpu_custom_call.1} parent=0 // pred_region
    _
  $region9: #{tpu_custom_call.1} parent=0 // pred_fallthru
    _
  // Predicated region
  $region10: #{tpu_custom_call.1} parent=0 // pred_check
    _
  $region11: #{tpu_custom_call.1} parent=0 // pred_check_branch
    %29 = sbr.rel (0) target = $region13
  $region12: #{tpu_custom_call.1} parent=0 // pred_region
    _
  $region13: #{tpu_custom_call.1} parent=0 // pred_fallthru
    _
  // Predicated region
  $region14: #{tpu_custom_call.1} parent=0 // pred_check
    _
  $region15: #{tpu_custom_call.1} parent=0 // pred_check_branch
    %31 = sbr.rel (0) target = $region17
  $region16: #{tpu_custom_call.1} parent=0 // pred_region
    _
  $region17: #{tpu_custom_call.1} parent=0 // pred_fallthru
    _
  // Predicated region
  $region18: #{tpu_custom_call.1} parent=0 // pred_check
    _
  $region19: #{tpu_custom_call.1} parent=0 // pred_check_branch
    %33 = sbr.rel (0) target = $region21
  $region20: #{tpu_custom_call.1} parent=0 // pred_region
    _
  $region21: #{tpu_custom_call.1} parent=0 // pred_fallthru
    _
  // Predicated region
  $region22: #{tpu_custom_call.1} parent=0 // pred_check
    _
  $region23: #{tpu_custom_call.1} parent=0 // pred_check_branch
    %35 = sbr.rel (0) target = $region25
  $region24: #{tpu_custom_call.1} parent=0 // pred_region
    _
  $region25: #{tpu_custom_call.1} parent=0 // pred_fallthru
    _
  // Predicated region
  $region26: #{tpu_custom_call.1} parent=0 // pred_check
    _
  $region27: #{tpu_custom_call.1} parent=0 // pred_check_branch
    %37 = sbr.rel (0) target = $region29
  $region28: #{tpu_custom_call.1} parent=0 // pred_region
    _
  $region29: #{tpu_custom_call.1} parent=0 // pred_fallthru
    _
  // Predicated region
  $region30: #{tpu_custom_call.1} parent=0 // pred_check
    _
  $region31: #{tpu_custom_call.1} parent=0 // pred_check_branch
    %39 = sbr.rel (0) target = $region33
  $region32: #{tpu_custom_call.1} parent=0 // pred_region
    _
  $region33: #{tpu_custom_call.1} parent=0 // pred_fallthru
    _
  // Predicated region
  $region34: #{tpu_custom_call.1} parent=0 // pred_check
    _
  $region35: #{tpu_custom_call.1} parent=0 // pred_check_branch
    %41 = sbr.rel (0) target = $region37
  $region36: #{tpu_custom_call.1} parent=0 // pred_region
    _
  $region37: #{tpu_custom_call.1} parent=0 // pred_fallthru
    _
  // Predicated region
  $region38: #{tpu_custom_call.1} parent=0 // pred_check
    _
  $region39: #{tpu_custom_call.1} parent=0 // pred_check_branch
    %43 = sbr.rel (0) target = $region41
  $region40: #{tpu_custom_call.1} parent=0 // pred_region
    _
  $region41: #{tpu_custom_call.1} parent=0 // pred_fallthru
    _
  // Predicated region
  $region42: #{tpu_custom_call.1} parent=0 // pred_check
    _
  $region43: #{tpu_custom_call.1} parent=0 // pred_check_branch
    %45 = sbr.rel (0) target = $region45
  $region44: #{tpu_custom_call.1} parent=0 // pred_region
    _
  $region45: #{tpu_custom_call.1} parent=0 // pred_fallthru
    _
  // Predicated region
  $region46: #{tpu_custom_call.1} parent=0 // pred_check
    _
  $region47: #{tpu_custom_call.1} parent=0 // pred_check_branch
    %47 = sbr.rel (0) target = $region49
  $region48: #{tpu_custom_call.1} parent=0 // pred_region
    _
  $region49: #{tpu_custom_call.1} parent=0 // pred_fallthru
    _
  // Predicated region
  $region50: #{tpu_custom_call.1} parent=0 // pred_check
    _
  $region51: #{tpu_custom_call.1} parent=0 // pred_check_branch
    %49 = sbr.rel (0) target = $region53
  $region52: #{tpu_custom_call.1} parent=0 // pred_region
    _
  $region53: #{tpu_custom_call.1} parent=0 // pred_fallthru
    _
  // Predicated region
  $region54: #{tpu_custom_call.1} parent=0 // pred_check
    _
  $region55: #{tpu_custom_call.1} parent=0 // pred_check_branch
    %51 = sbr.rel (0) target = $region57
  $region56: #{tpu_custom_call.1} parent=0 // pred_region
    _
  $region57: #{tpu_custom_call.1} parent=0 // pred_fallthru
    _
  // Predicated region
  $region58: #{tpu_custom_call.1} parent=0 // pred_check
    _
  $region59: #{tpu_custom_call.1} parent=0 // pred_check_branch
    %53 = sbr.rel (0) target = $region61
  $region60: #{tpu_custom_call.1} parent=0 // pred_region
    _
  $region61: #{tpu_custom_call.1} parent=0 // pred_fallthru
    _
  // Predicated region
  $region62: #{tpu_custom_call.1} parent=0 // pred_check
    _
  $region63: #{tpu_custom_call.1} parent=0 // pred_check_branch
    %55 = sbr.rel (0) target = $region65
  $region64: #{tpu_custom_call.1} parent=0 // pred_region
    _
  $region65: #{tpu_custom_call.1} parent=0 // pred_fallthru
    _
  // Predicated region
  $region66: #{tpu_custom_call.1} parent=0 // pred_check
    _
  $region67: #{tpu_custom_call.1} parent=0 // pred_check_branch
    %57 = sbr.rel (0) target = $region69
  $region68: #{tpu_custom_call.1} parent=0 // pred_region
    _
  $region69: #{tpu_custom_call.1} parent=0 // pred_fallthru
    _
  %v59 = vld [vmem:[%s0] sm:$0xff]
  %v60 = vld [vmem:[%s0 + $0x8] sm:$0xff]
  %v61 = vld [vmem:[%s0 + $0x10] sm:$0xff]
  %v62 = vld [vmem:[%s2] sm:$0xf]
  %v63 = vld [vmem:[%s2 + $0x4] sm:$0xf]
  %v64 = vld [vmem:[%s2 + $0x8] sm:$0xf]
  %v65 = vld [vmem:[%s2 + $0xc] sm:$0xf]
  %v66 = vld [vmem:[%s2 + $0x10] sm:$0xf]
  %v67 = vld [vmem:[%s2 + $0x14] sm:$0xf]
  %v68 = vld [vmem:[%s2 + $0x18] sm:$0xf]
  %v69 = vld [vmem:[%s2 + $0x1c] sm:$0xf]
  %v70 = vld [vmem:[%s2 + $0x20] sm:$0xf]
  %v71 = vld [vmem:[%s2 + $0x24] sm:$0xf]
  %v72 = vld [vmem:[%s2 + $0x28] sm:$0xf]
  %v73 = vld [vmem:[%s2 + $0x2c] sm:$0xf]
  %v74 = vld [vmem:[%s2 + $0x30] sm:$0xf]
  %v75 = vld [vmem:[%s2 + $0x34] sm:$0xf]
  %v76 = vld [vmem:[%s2 + $0x38] sm:$0xf]
  %v77 = vld [vmem:[%s2 + $0x3c] sm:$0xf]
  %v78 = vld [vmem:[%s2 + $0x40] sm:$0xf]
  %v79 = vld [vmem:[%s2 + $0x44] sm:$0xf]
  %v80 = vld [vmem:[%s2 + $0x48] sm:$0xf]
  %v81 = vld [vmem:[%s2 + $0x4c] sm:$0xf]
  %v82 = vld [vmem:[%s2 + $0x50] sm:$0xf]
  %v83 = vld [vmem:[%s2 + $0x54] sm:$0xf]
  %v84 = vld [vmem:[%s2 + $0x58] sm:$0xf]
  %v85 = vld [vmem:[%s2 + $0x5c] sm:$0xf]
  %v86 = vld [vmem:[%s2 + $0x60] sm:$0xf]
  %v87 = vld [vmem:[%s2 + $0x64] sm:$0xf]
  %v88 = vld [vmem:[%s2 + $0x68] sm:$0xf]
  %v89 = vld [vmem:[%s2 + $0x6c] sm:$0xf]
  %v90 = vld [vmem:[%s2 + $0x70] sm:$0xf]
  %v91 = vld [vmem:[%s2 + $0x74] sm:$0xf]
  %v92 = vld [vmem:[%s2 + $0x78] sm:$0xf]
  %v93 = vld [vmem:[%s2 + $0x7c] sm:$0xf]
  %v94 = vld [vmem:[%s2 + $0x80] sm:$0xf]
  %v95 = vld [vmem:[%s2 + $0x84] sm:$0xf]
  %v96 = vld [vmem:[%s2 + $0x88] sm:$0xf]
  %v97 = vld [vmem:[%s2 + $0x8c] sm:$0xf]
  %v98 = vlaneseq
  %v99 = vand.u32 %v98, 127
  %v100 = vld [vmem:[%s1] sm:$0xff]
  %v101 = vld [vmem:[%s1 + $0x8] sm:$0xff]
  %v102 = vld [vmem:[%s1 + $0x10] sm:$0xff]
  %v103 = vld [vmem:[%s1 + $0x18] sm:$0xff]
  %v104 = vld [vmem:[%s1 + $0x20] sm:$0xff]
  %v105 = vld [vmem:[%s1 + $0x28] sm:$0xff]
  %v106 = vld [vmem:[%s1 + $0x30] sm:$0xff]
  %v107 = vld [vmem:[%s1 + $0x38] sm:$0xff]
  %v108 = vld [vmem:[%s1 + $0x40] sm:$0xff]
  %v109 = vld [vmem:[%s1 + $0x48] sm:$0xff]
  %v110 = vld [vmem:[%s1 + $0x50] sm:$0xff]
  %v111 = vld [vmem:[%s1 + $0x58] sm:$0xff]
  %v112 = vld [vmem:[%s1 + $0x60] sm:$0xff]
  %v113 = vld [vmem:[%s1 + $0x68] sm:$0xff]
  %v114 = vld [vmem:[%s1 + $0x70] sm:$0xff]
  %v115 = vld [vmem:[%s1 + $0x78] sm:$0xff]
  %v116 = vld [vmem:[%s1 + $0x80] sm:$0xff]
  %v117 = vld [vmem:[%s1 + $0x88] sm:$0xff]
  %v118 = vld [vmem:[%s1 + $0x90] sm:$0xff]
  %v119 = vld [vmem:[%s1 + $0x98] sm:$0xff]
  %v120 = vld [vmem:[%s1 + $0xa0] sm:$0xff]
  %v121 = vld [vmem:[%s1 + $0xa8] sm:$0xff]
  %v122 = vld [vmem:[%s1 + $0xb0] sm:$0xff]
  %v123 = vld [vmem:[%s1 + $0xb8] sm:$0xff]
  %v124 = vld [vmem:[%s1 + $0xc0] sm:$0xff]
  %v125 = vld [vmem:[%s1 + $0xc8] sm:$0xff]
  %v126 = vld [vmem:[%s1 + $0xd0] sm:$0xff]
  %v127 = vld [vmem:[%s1 + $0xd8] sm:$0xff]
  %v128 = vld [vmem:[%s1 + $0xe0] sm:$0xff]
  %v129 = vld [vmem:[%s1 + $0xe8] sm:$0xff]
  %v130 = vld [vmem:[%s1 + $0xf0] sm:$0xff]
  %v131 = vld [vmem:[%s1 + $0xf8] sm:$0xff]
  %v132 = vld [vmem:[%s1 + $0x100] sm:$0xff]
  %v133 = vld [vmem:[%s1 + $0x108] sm:$0xff]
  %v134 = vld [vmem:[%s1 + $0x110] sm:$0xff]
  %v135 = vld [vmem:[%s1 + $0x118] sm:$0xff]
  %136 = vset.pattern.permute.xlu0 0
  %137 = vperm.xlu0 %136, %v100
  %v138 = vpop.permute.xlu0 %137
  %139 = vset.pattern.permute.xlu0 0
  %140 = vperm.xlu0 %139, %v101
  %v141 = vpop.permute.xlu0 %140
  %142 = vset.pattern.permute.xlu0 0
  %143 = vperm.xlu0 %142, %v102
  %v144 = vpop.permute.xlu0 %143
  %145 = vset.pattern.permute.xlu0 0
  %146 = vperm.xlu0 %145, %v103
  %v147 = vpop.permute.xlu0 %146
  %148 = vset.pattern.permute.xlu0 0
  %149 = vperm.xlu0 %148, %v104
  %v150 = vpop.permute.xlu0 %149
  %151 = vset.pattern.permute.xlu0 0
  %152 = vperm.xlu0 %151, %v105
  %v153 = vpop.permute.xlu0 %152
  %154 = vset.pattern.permute.xlu0 0
  %155 = vperm.xlu0 %154, %v106
  %v156 = vpop.permute.xlu0 %155
  %157 = vset.pattern.permute.xlu0 0
  %158 = vperm.xlu0 %157, %v107
  %v159 = vpop.permute.xlu0 %158
  %160 = vset.pattern.permute.xlu0 0
  %161 = vperm.xlu0 %160, %v108
  %v162 = vpop.permute.xlu0 %161
  %163 = vset.pattern.permute.xlu0 0
  %164 = vperm.xlu0 %163, %v109
  %v165 = vpop.permute.xlu0 %164
  %166 = vset.pattern.permute.xlu0 0
  %167 = vperm.xlu0 %166, %v110
  %v168 = vpop.permute.xlu0 %167
  %169 = vset.pattern.permute.xlu0 0
  %170 = vperm.xlu0 %169, %v111
  %v171 = vpop.permute.xlu0 %170
  %172 = vset.pattern.permute.xlu0 0
  %173 = vperm.xlu0 %172, %v112
  %v174 = vpop.permute.xlu0 %173
  %175 = vset.pattern.permute.xlu0 0
  %176 = vperm.xlu0 %175, %v113
  %v177 = vpop.permute.xlu0 %176
  %178 = vset.pattern.permute.xlu0 0
  %179 = vperm.xlu0 %178, %v114
  %v180 = vpop.permute.xlu0 %179
  %181 = vset.pattern.permute.xlu0 0
  %182 = vperm.xlu0 %181, %v115
  %v183 = vpop.permute.xlu0 %182
  %184 = vset.pattern.permute.xlu0 0
  %185 = vperm.xlu0 %184, %v116
  %v186 = vpop.permute.xlu0 %185
  %187 = vset.pattern.permute.xlu0 0
  %188 = vperm.xlu0 %187, %v117
  %v189 = vpop.permute.xlu0 %188
  %190 = vset.pattern.permute.xlu0 0
  %191 = vperm.xlu0 %190, %v118
  %v192 = vpop.permute.xlu0 %191
  %193 = vset.pattern.permute.xlu0 0
  %194 = vperm.xlu0 %193, %v119
  %v195 = vpop.permute.xlu0 %194
  %196 = vset.pattern.permute.xlu0 0
  %197 = vperm.xlu0 %196, %v120
  %v198 = vpop.permute.xlu0 %197
  %199 = vset.pattern.permute.xlu0 0
  %200 = vperm.xlu0 %199, %v121
  %v201 = vpop.permute.xlu0 %200
  %202 = vset.pattern.permute.xlu0 0
  %203 = vperm.xlu0 %202, %v122
  %v204 = vpop.permute.xlu0 %203
  %205 = vset.pattern.permute.xlu0 0
  %206 = vperm.xlu0 %205, %v123
  %v207 = vpop.permute.xlu0 %206
  %208 = vset.pattern.permute.xlu0 0
  %209 = vperm.xlu0 %208, %v124
  %v210 = vpop.permute.xlu0 %209
  %211 = vset.pattern.permute.xlu0 0
  %212 = vperm.xlu0 %211, %v125
  %v213 = vpop.permute.xlu0 %212
  %214 = vset.pattern.permute.xlu0 0
  %215 = vperm.xlu0 %214, %v126
  %v216 = vpop.permute.xlu0 %215
  %217 = vset.pattern.permute.xlu0 0
  %218 = vperm.xlu0 %217, %v127
  %v219 = vpop.permute.xlu0 %218
  %220 = vset.pattern.permute.xlu0 0
  %221 = vperm.xlu0 %220, %v128
  %v222 = vpop.permute.xlu0 %221
  %223 = vset.pattern.permute.xlu0 0
  %224 = vperm.xlu0 %223, %v129
  %v225 = vpop.permute.xlu0 %224
  %226 = vset.pattern.permute.xlu0 0
  %227 = vperm.xlu0 %226, %v130
  %v228 = vpop.permute.xlu0 %227
  %229 = vset.pattern.permute.xlu0 0
  %230 = vperm.xlu0 %229, %v131
  %v231 = vpop.permute.xlu0 %230
  %232 = vset.pattern.permute.xlu0 0
  %233 = vperm.xlu0 %232, %v132
  %v234 = vpop.permute.xlu0 %233
  %235 = vset.pattern.permute.xlu0 0
  %236 = vperm.xlu0 %235, %v133
  %v237 = vpop.permute.xlu0 %236
  %238 = vset.pattern.permute.xlu0 0
  %239 = vperm.xlu0 %238, %v134
  %v240 = vpop.permute.xlu0 %239
  %241 = vset.pattern.permute.xlu0 0
  %242 = vperm.xlu0 %241, %v135
  %v243 = vpop.permute.xlu0 %242
  %vm244 = vcmp.eq.s32.totalorder %v138, %v99
  %vm245 = vcmp.eq.s32.totalorder %v141, %v99
  %vm246 = vcmp.eq.s32.totalorder %v144, %v99
  %vm247 = vcmp.eq.s32.totalorder %v147, %v99
  %vm248 = vcmp.eq.s32.totalorder %v150, %v99
  %vm249 = vcmp.eq.s32.totalorder %v153, %v99
  %vm250 = vcmp.eq.s32.totalorder %v156, %v99
  %vm251 = vcmp.eq.s32.totalorder %v159, %v99
  %vm252 = vcmp.eq.s32.totalorder %v162, %v99
  %vm253 = vcmp.eq.s32.totalorder %v165, %v99
  %vm254 = vcmp.eq.s32.totalorder %v168, %v99
  %vm255 = vcmp.eq.s32.totalorder %v171, %v99
  %vm256 = vcmp.eq.s32.totalorder %v174, %v99
  %vm257 = vcmp.eq.s32.totalorder %v177, %v99
  %vm258 = vcmp.eq.s32.totalorder %v180, %v99
  %vm259 = vcmp.eq.s32.totalorder %v183, %v99
  %vm260 = vcmp.eq.s32.totalorder %v186, %v99
  %vm261 = vcmp.eq.s32.totalorder %v189, %v99
  %vm262 = vcmp.eq.s32.totalorder %v192, %v99
  %vm263 = vcmp.eq.s32.totalorder %v195, %v99
  %vm264 = vcmp.eq.s32.totalorder %v198, %v99
  %vm265 = vcmp.eq.s32.totalorder %v201, %v99
  %vm266 = vcmp.eq.s32.totalorder %v204, %v99
  %vm267 = vcmp.eq.s32.totalorder %v207, %v99
  %vm268 = vcmp.eq.s32.totalorder %v210, %v99
  %vm269 = vcmp.eq.s32.totalorder %v213, %v99
  %vm270 = vcmp.eq.s32.totalorder %v216, %v99
  %vm271 = vcmp.eq.s32.totalorder %v219, %v99
  %vm272 = vcmp.eq.s32.totalorder %v222, %v99
  %vm273 = vcmp.eq.s32.totalorder %v225, %v99
  %vm274 = vcmp.eq.s32.totalorder %v228, %v99
  %vm275 = vcmp.eq.s32.totalorder %v231, %v99
  %vm276 = vcmp.eq.s32.totalorder %v234, %v99
  %vm277 = vcmp.eq.s32.totalorder %v237, %v99
  %vm278 = vcmp.eq.s32.totalorder %v240, %v99
  %vm279 = vcmp.eq.s32.totalorder %v243, %v99
  %v280 = vsel %vm244, 1.0, 0.0
  %v281 = vsel %vm245, 1.0, 0.0
  %v282 = vsel %vm246, 1.0, 0.0
  %v283 = vsel %vm247, 1.0, 0.0
  %v284 = vsel %vm248, 1.0, 0.0
  %v285 = vsel %vm249, 1.0, 0.0
  %v286 = vsel %vm250, 1.0, 0.0
  %v287 = vsel %vm251, 1.0, 0.0
  %v288 = vsel %vm252, 1.0, 0.0
  %v289 = vsel %vm253, 1.0, 0.0
  %v290 = vsel %vm254, 1.0, 0.0
  %v291 = vsel %vm255, 1.0, 0.0
  %v292 = vsel %vm256, 1.0, 0.0
  %v293 = vsel %vm257, 1.0, 0.0
  %v294 = vsel %vm258, 1.0, 0.0
  %v295 = vsel %vm259, 1.0, 0.0
  %v296 = vsel %vm260, 1.0, 0.0
  %v297 = vsel %vm261, 1.0, 0.0
  %v298 = vsel %vm262, 1.0, 0.0
  %v299 = vsel %vm263, 1.0, 0.0
  %v300 = vsel %vm264, 1.0, 0.0
  %v301 = vsel %vm265, 1.0, 0.0
  %v302 = vsel %vm266, 1.0, 0.0
  %v303 = vsel %vm267, 1.0, 0.0
  %v304 = vsel %vm268, 1.0, 0.0
  %v305 = vsel %vm269, 1.0, 0.0
  %v306 = vsel %vm270, 1.0, 0.0
  %v307 = vsel %vm271, 1.0, 0.0
  %v308 = vsel %vm272, 1.0, 0.0
  %v309 = vsel %vm273, 1.0, 0.0
  %v310 = vsel %vm274, 1.0, 0.0
  %v311 = vsel %vm275, 1.0, 0.0
  %v312 = vsel %vm276, 1.0, 0.0
  %v313 = vsel %vm277, 1.0, 0.0
  %v314 = vsel %vm278, 1.0, 0.0
  %v315 = vsel %vm279, 1.0, 0.0
  %v316 = vpack.c.bf16 %v281, %v280
  %v317 = vpack.c.bf16 %v283, %v282
  %v318 = vpack.c.bf16 %v285, %v284
  %v319 = vpack.c.bf16 %v287, %v286
  %v320 = vpack.c.bf16 %v289, %v288
  %v321 = vpack.c.bf16 %v291, %v290
  %v322 = vpack.c.bf16 %v293, %v292
  %v323 = vpack.c.bf16 %v295, %v294
  %v324 = vpack.c.bf16 %v297, %v296
  %v325 = vpack.c.bf16 %v299, %v298
  %v326 = vpack.c.bf16 %v301, %v300
  %v327 = vpack.c.bf16 %v303, %v302
  %v328 = vpack.c.bf16 %v305, %v304
  %v329 = vpack.c.bf16 %v307, %v306
  %v330 = vpack.c.bf16 %v309, %v308
  %v331 = vpack.c.bf16 %v311, %v310
  %v332 = vpack.c.bf16 %v313, %v312
  %v333 = vpack.c.bf16 %v315, %v314
  %v334 = vpack.c.bf16 %v60, %v59
  %v335 = vpack.c.bf16 %v61, %v61
  %v336 = vld [vmem:[%s3] sm:$0xff]
  %v337 = vld [vmem:[%s3 + $0x8] sm:$0xff]
  %v338 = vld [vmem:[%s3 + $0x10] sm:$0xff]
  %v339 = vld [vmem:[%s3 + $0x18] sm:$0xff]
  %v340 = vld [vmem:[%s3 + $0x20] sm:$0xff]
  %v341 = vld [vmem:[%s3 + $0x28] sm:$0xff]
  %v342 = vld [vmem:[%s3 + $0x30] sm:$0xff]
  %v343 = vld [vmem:[%s3 + $0x38] sm:$0xff]
  %v352 = vunpack.c.l.b16 %v336
  %v353 = vunpack.c.h.b16 %v336
  %v354 = vunpack.c.l.b16 %v337
  %v355 = vunpack.c.h.b16 %v337
  %v356 = vunpack.c.l.b16 %v338
  %v357 = vunpack.c.h.b16 %v338
  %v358 = vunpack.c.l.b16 %v339
  %v359 = vunpack.c.h.b16 %v339
  %v360 = vunpack.c.l.b16 %v340
  %v361 = vunpack.c.h.b16 %v340
  %v362 = vunpack.c.l.b16 %v341
  %v363 = vunpack.c.h.b16 %v341
  %v364 = vunpack.c.l.b16 %v342
  %v365 = vunpack.c.h.b16 %v342
  %v366 = vunpack.c.l.b16 %v343
  %v367 = vunpack.c.h.b16 %v343
  %v368 = vpack.c.b16 %v354, %v352
  %v369 = vpack.c.b16 %v355, %v353
  %v370 = vpack.c.b16 %v358, %v356
  %v371 = vpack.c.b16 %v359, %v357
  %v372 = vpack.c.b16 %v362, %v360
  %v373 = vpack.c.b16 %v363, %v361
  %v374 = vpack.c.b16 %v366, %v364
  %v375 = vpack.c.b16 %v367, %v365
  %vm384 = vcmask 523264
  %v386 = vsel %vm384, %v334, 0
  %v389 = vsel %vm384, %v335, 0
  %391 = vmatprep.subr.bf16.mxu0 %v369
  %392 = vmatpush1.bf16.msra.mxu0 %v368
  %393 = vmatprep.subr.bf16.mxu0 %v371
  %394 = vmatpush1.bf16.msra.mxu0 %v370
  %395 = vmatprep.subr.bf16.mxu0 %v373
  %396 = vmatpush1.bf16.msra.mxu0 %v372
  %397 = vmatprep.subr.bf16.mxu0 %v375
  %398 = vmatpush1.bf16.msra.mxu0 %v374
  %399 = vmatprep.subr.bf16.mxu0 0
  %400 = vmatpush1.bf16.msra.mxu0 0
  %401 = vmatprep.subr.bf16.mxu0 0
  %402 = vmatpush1.bf16.msra.mxu0 0
  %403 = vmatprep.subr.bf16.mxu0 0
  %404 = vmatpush1.bf16.msra.mxu0 0
  %405 = vmatprep.subr.bf16.mxu0 0
  %406 = vmatpush1.bf16.msra.mxu0 0
  %407 = vmatprep.subr.bf16.mxu0 0
  %408 = vmatpush1.bf16.msra.mxu0 0
  %409 = vmatprep.subr.bf16.mxu0 0
  %410 = vmatpush1.bf16.msra.mxu0 0
  %411 = vmatprep.subr.bf16.mxu0 0
  %412 = vmatpush1.bf16.msra.mxu0 0
  %413 = vmatprep.subr.bf16.mxu0 0
  %414 = vmatpush1.bf16.msra.mxu0 0
  %415 = vmatprep.subr.bf16.mxu0 0
  %416 = vmatpush1.bf16.msra.mxu0 0
  %417 = vmatprep.subr.bf16.mxu0 0
  %418 = vmatpush1.bf16.msra.mxu0 0
  %419 = vmatprep.subr.bf16.mxu0 0
  %420 = vmatpush1.bf16.msra.mxu0 0
  %421 = vmatprep.subr.bf16.mxu0 0
  %422 = vmatpush1.bf16.msra.mxu0 0
  %423 = vmatprep.mubr.bf16.mxu0 0
  %424 = vmatmul.mubr.bf16.gmra.mrb[0].mxu0 %v386
  %v425 = vpop.f32.mrb[0].mxu0
  %v426 = vadd.f32 0.0, %v425
  %v427 = vpop.f32.mrb[0].mxu0
  %v428 = vadd.f32 0.0, %v427
  %v429 = vpop.f32.mrb[0].mxu0
  %v430 = vadd.f32 0.0, %v429
  %v431 = vpop.f32.mrb[0].mxu0
  %v432 = vadd.f32 0.0, %v431
  %433 = vmatprep.mubr.bf16.mxu0 0
  %434 = vmatmul.mubr.bf16.gmra.mrb[0].mxu0 %v389
  %v435 = vpop.f32.mrb[0].mxu0
  %v436 = vadd.f32 0.0, %v435
  %v437 = vpop.f32.mrb[0].mxu0
  %v438 = vadd.f32 0.0, %v437
  %v439 = vpop.f32.mrb[0].mxu0
  %v440 = vpop.f32.mrb[0].mxu0
  %441 = vdwg.mxu0
  %v442 = vld [vmem:[%s4] sm:$0xf]
  %v443 = vld [vmem:[%s4 + $0x4] sm:$0xf]
  %v444 = vld [vmem:[%s4 + $0x8] sm:$0xf]
  %v445 = vld [vmem:[%s4 + $0xc] sm:$0xf]
  %v446 = vld [vmem:[%s4 + $0x10] sm:$0xf]
  %v447 = vld [vmem:[%s4 + $0x14] sm:$0x1]
  %v484 = vunpack.c.l.b16 %v62
  %v485 = vunpack.c.l.b16 %v63
  %v486 = vunpack.c.l.b16 %v64
  %v487 = vunpack.c.l.b16 %v65
  %v488 = vunpack.c.l.b16 %v66
  %v489 = vunpack.c.l.b16 %v67
  %v490 = vunpack.c.l.b16 %v68
  %v491 = vunpack.c.l.b16 %v69
  %v492 = vunpack.c.l.b16 %v70
  %v493 = vunpack.c.l.b16 %v71
  %v494 = vunpack.c.l.b16 %v72
  %v495 = vunpack.c.l.b16 %v73
  %v496 = vunpack.c.l.b16 %v74
  %v497 = vunpack.c.l.b16 %v75
  %v498 = vunpack.c.l.b16 %v76
  %v499 = vunpack.c.l.b16 %v77
  %v500 = vunpack.c.l.b16 %v78
  %v501 = vunpack.c.l.b16 %v79
  %v502 = vunpack.c.l.b16 %v80
  %v503 = vunpack.c.l.b16 %v81
  %v504 = vunpack.c.l.b16 %v82
  %v505 = vunpack.c.l.b16 %v83
  %v506 = vunpack.c.l.b16 %v84
  %v507 = vunpack.c.l.b16 %v85
  %v508 = vunpack.c.l.b16 %v86
  %v509 = vunpack.c.l.b16 %v87
  %v510 = vunpack.c.l.b16 %v88
  %v511 = vunpack.c.l.b16 %v89
  %v512 = vunpack.c.l.b16 %v90
  %v513 = vunpack.c.l.b16 %v91
  %v514 = vunpack.c.l.b16 %v92
  %v515 = vunpack.c.l.b16 %v93
  %v516 = vunpack.c.l.b16 %v94
  %v517 = vunpack.c.l.b16 %v95
  %v518 = vunpack.c.l.b16 %v96
  %v519 = vunpack.c.l.b16 %v97
  %v520 = vpack.c.b16 %v485, %v484
  %v521 = vpack.c.b16 %v487, %v486
  %v522 = vpack.c.b16 %v489, %v488
  %v523 = vpack.c.b16 %v491, %v490
  %v524 = vpack.c.b16 %v493, %v492
  %v525 = vpack.c.b16 %v495, %v494
  %v526 = vpack.c.b16 %v497, %v496
  %v527 = vpack.c.b16 %v499, %v498
  %v528 = vpack.c.b16 %v501, %v500
  %v529 = vpack.c.b16 %v503, %v502
  %v530 = vpack.c.b16 %v505, %v504
  %v531 = vpack.c.b16 %v507, %v506
  %v532 = vpack.c.b16 %v509, %v508
  %v533 = vpack.c.b16 %v511, %v510
  %v534 = vpack.c.b16 %v513, %v512
  %v535 = vpack.c.b16 %v515, %v514
  %v536 = vpack.c.b16 %v517, %v516
  %v537 = vpack.c.b16 %v519, %v518
  %v544 = vunpack.c.l.b16 %v442
  %v545 = vunpack.c.l.b16 %v443
  %v546 = vunpack.c.l.b16 %v444
  %v547 = vunpack.c.l.b16 %v445
  %v548 = vunpack.c.l.b16 %v446
  %v549 = vunpack.c.l.b16 %v447
  %v550 = vpack.c.b16 %v545, %v544
  %v551 = vpack.c.b16 %v547, %v546
  %v552 = vpack.c.b16 %v549, %v548
  %vm555 = vcmask 334848
  %v557 = vsel %vm555, %v520, 0
  %v560 = vsel %vm555, %v521, 0
  %v563 = vsel %vm555, %v522, 0
  %v566 = vsel %vm555, %v523, 0
  %v569 = vsel %vm555, %v524, 0
  %v572 = vsel %vm555, %v525, 0
  %v575 = vsel %vm555, %v526, 0
  %v578 = vsel %vm555, %v527, 0
  %v581 = vsel %vm555, %v528, 0
  %v584 = vsel %vm555, %v529, 0
  %v587 = vsel %vm555, %v530, 0
  %v590 = vsel %vm555, %v531, 0
  %v593 = vsel %vm555, %v532, 0
  %v596 = vsel %vm555, %v533, 0
  %v599 = vsel %vm555, %v534, 0
  %v602 = vsel %vm555, %v535, 0
  %v605 = vsel %vm555, %v536, 0
  %v608 = vsel %vm555, %v537, 0
  %vm610 = vcmask 1043456
  %vm611 = vcmask 1044480
  %v612 = vsel %vm610, 4294967295, 65535
  %v613 = vsel %vm611, %v612, 0
  %v615 = vand.u32 %v552, %v613
  %617 = vmatprep.subr.bf16.mxu0 0
  %618 = vmatpush1.bf16.msra.mxu0 %v550
  %619 = vmatprep.subr.bf16.mxu0 0
  %620 = vmatpush1.bf16.msra.mxu0 %v551
  %621 = vmatprep.subr.bf16.mxu0 0
  %622 = vmatpush1.bf16.msra.mxu0 %v615
  %623 = vmatprep.subr.bf16.mxu0 0
  %624 = vmatpush1.bf16.msra.mxu0 0
  %625 = vmatprep.subr.bf16.mxu0 0
  %626 = vmatpush1.bf16.msra.mxu0 0
  %627 = vmatprep.subr.bf16.mxu0 0
  %628 = vmatpush1.bf16.msra.mxu0 0
  %629 = vmatprep.subr.bf16.mxu0 0
  %630 = vmatpush1.bf16.msra.mxu0 0
  %631 = vmatprep.subr.bf16.mxu0 0
  %632 = vmatpush1.bf16.msra.mxu0 0
  %633 = vmatprep.subr.bf16.mxu0 0
  %634 = vmatpush1.bf16.msra.mxu0 0
  %635 = vmatprep.subr.bf16.mxu0 0
  %636 = vmatpush1.bf16.msra.mxu0 0
  %637 = vmatprep.subr.bf16.mxu0 0
  %638 = vmatpush1.bf16.msra.mxu0 0
  %639 = vmatprep.subr.bf16.mxu0 0
  %640 = vmatpush1.bf16.msra.mxu0 0
  %641 = vmatprep.subr.bf16.mxu0 0
  %642 = vmatpush1.bf16.msra.mxu0 0
  %643 = vmatprep.subr.bf16.mxu0 0
  %644 = vmatpush1.bf16.msra.mxu0 0
  %645 = vmatprep.subr.bf16.mxu0 0
  %646 = vmatpush1.bf16.msra.mxu0 0
  %647 = vmatprep.subr.bf16.mxu0 0
  %648 = vmatpush1.bf16.msra.mxu0 0
  %649 = vmatprep.mubr.bf16.mxu0 0
  %650 = vmatmul.mubr.bf16.gmra.mrb[0].mxu0 %v557
  %v651 = vpop.f32.mrb[0].mxu0
  %v652 = vadd.f32 0.0, %v651
  %v653 = vpop.f32.mrb[0].mxu0
  %v654 = vpop.f32.mrb[0].mxu0
  %v655 = vadd.f32 0.0, %v654
  %v656 = vpop.f32.mrb[0].mxu0
  %657 = vmatprep.mubr.bf16.mxu0 0
  %658 = vmatmul.mubr.bf16.gmra.mrb[0].mxu0 %v560
  %v659 = vpop.f32.mrb[0].mxu0
  %v660 = vadd.f32 0.0, %v659
  %v661 = vpop.f32.mrb[0].mxu0
  %v662 = vpop.f32.mrb[0].mxu0
  %v663 = vadd.f32 0.0, %v662
  %v664 = vpop.f32.mrb[0].mxu0
  %665 = vmatprep.mubr.bf16.mxu0 0
  %666 = vmatmul.mubr.bf16.gmra.mrb[0].mxu0 %v563
  %v667 = vpop.f32.mrb[0].mxu0
  %v668 = vadd.f32 0.0, %v667
  %v669 = vpop.f32.mrb[0].mxu0
  %v670 = vpop.f32.mrb[0].mxu0
  %v671 = vadd.f32 0.0, %v670
  %v672 = vpop.f32.mrb[0].mxu0
  %673 = vmatprep.mubr.bf16.mxu0 0
  %674 = vmatmul.mubr.bf16.gmra.mrb[0].mxu0 %v566
  %v675 = vpop.f32.mrb[0].mxu0
  %v676 = vadd.f32 0.0, %v675
  %v677 = vpop.f32.mrb[0].mxu0
  %v678 = vpop.f32.mrb[0].mxu0
  %v679 = vadd.f32 0.0, %v678
  %v680 = vpop.f32.mrb[0].mxu0
  %681 = vmatprep.mubr.bf16.mxu0 0
  %682 = vmatmul.mubr.bf16.gmra.mrb[0].mxu0 %v569
  %v683 = vpop.f32.mrb[0].mxu0
  %v684 = vadd.f32 0.0, %v683
  %v685 = vpop.f32.mrb[0].mxu0
  %v686 = vpop.f32.mrb[0].mxu0
  %v687 = vadd.f32 0.0, %v686
  %v688 = vpop.f32.mrb[0].mxu0
  %689 = vmatprep.mubr.bf16.mxu0 0
  %690 = vmatmul.mubr.bf16.gmra.mrb[0].mxu0 %v572
  %v691 = vpop.f32.mrb[0].mxu0
  %v692 = vadd.f32 0.0, %v691
  %v693 = vpop.f32.mrb[0].mxu0
  %v694 = vpop.f32.mrb[0].mxu0
  %v695 = vadd.f32 0.0, %v694
  %v696 = vpop.f32.mrb[0].mxu0
  %697 = vmatprep.mubr.bf16.mxu0 0
  %698 = vmatmul.mubr.bf16.gmra.mrb[0].mxu0 %v575
  %v699 = vpop.f32.mrb[0].mxu0
  %v700 = vadd.f32 0.0, %v699
  %v701 = vpop.f32.mrb[0].mxu0
  %v702 = vpop.f32.mrb[0].mxu0
  %v703 = vadd.f32 0.0, %v702
  %v704 = vpop.f32.mrb[0].mxu0
  %705 = vmatprep.mubr.bf16.mxu0 0
  %706 = vmatmul.mubr.bf16.gmra.mrb[0].mxu0 %v578
  %v707 = vpop.f32.mrb[0].mxu0
  %v708 = vadd.f32 0.0, %v707
  %v709 = vpop.f32.mrb[0].mxu0
  %v710 = vpop.f32.mrb[0].mxu0
  %v711 = vadd.f32 0.0, %v710
  %v712 = vpop.f32.mrb[0].mxu0
  %713 = vmatprep.mubr.bf16.mxu0 0
  %714 = vmatmul.mubr.bf16.gmra.mrb[0].mxu0 %v581
  %v715 = vpop.f32.mrb[0].mxu0
  %v716 = vadd.f32 0.0, %v715
  %v717 = vpop.f32.mrb[0].mxu0
  %v718 = vpop.f32.mrb[0].mxu0
  %v719 = vadd.f32 0.0, %v718
  %v720 = vpop.f32.mrb[0].mxu0
  %721 = vmatprep.mubr.bf16.mxu0 0
  %722 = vmatmul.mubr.bf16.gmra.mrb[0].mxu0 %v584
  %v723 = vpop.f32.mrb[0].mxu0
  %v724 = vadd.f32 0.0, %v723
  %v725 = vpop.f32.mrb[0].mxu0
  %v726 = vpop.f32.mrb[0].mxu0
  %v727 = vadd.f32 0.0, %v726
  %v728 = vpop.f32.mrb[0].mxu0
  %729 = vmatprep.mubr.bf16.mxu0 0
  %730 = vmatmul.mubr.bf16.gmra.mrb[0].mxu0 %v587
  %v731 = vpop.f32.mrb[0].mxu0
  %v732 = vadd.f32 0.0, %v731
  %v733 = vpop.f32.mrb[0].mxu0
  %v734 = vpop.f32.mrb[0].mxu0
  %v735 = vadd.f32 0.0, %v734
  %v736 = vpop.f32.mrb[0].mxu0
  %737 = vmatprep.mubr.bf16.mxu0 0
  %738 = vmatmul.mubr.bf16.gmra.mrb[0].mxu0 %v590
  %v739 = vpop.f32.mrb[0].mxu0
  %v740 = vadd.f32 0.0, %v739
  %v741 = vpop.f32.mrb[0].mxu0
  %v742 = vpop.f32.mrb[0].mxu0
  %v743 = vadd.f32 0.0, %v742
  %v744 = vpop.f32.mrb[0].mxu0
  %745 = vmatprep.mubr.bf16.mxu0 0
  %746 = vmatmul.mubr.bf16.gmra.mrb[0].mxu0 %v593
  %v747 = vpop.f32.mrb[0].mxu0
  %v748 = vadd.f32 0.0, %v747
  %v749 = vpop.f32.mrb[0].mxu0
  %v750 = vpop.f32.mrb[0].mxu0
  %v751 = vadd.f32 0.0, %v750
  %v752 = vpop.f32.mrb[0].mxu0
  %753 = vmatprep.mubr.bf16.mxu0 0
  %754 = vmatmul.mubr.bf16.gmra.mrb[0].mxu0 %v596
  %v755 = vpop.f32.mrb[0].mxu0
  %v756 = vadd.f32 0.0, %v755
  %v757 = vpop.f32.mrb[0].mxu0
  %v758 = vpop.f32.mrb[0].mxu0
  %v759 = vadd.f32 0.0, %v758
  %v760 = vpop.f32.mrb[0].mxu0
  %761 = vmatprep.mubr.bf16.mxu0 0
  %762 = vmatmul.mubr.bf16.gmra.mrb[0].mxu0 %v599
  %v763 = vpop.f32.mrb[0].mxu0
  %v764 = vadd.f32 0.0, %v763
  %v765 = vpop.f32.mrb[0].mxu0
  %v766 = vpop.f32.mrb[0].mxu0
  %v767 = vadd.f32 0.0, %v766
  %v768 = vpop.f32.mrb[0].mxu0
  %769 = vmatprep.mubr.bf16.mxu0 0
  %770 = vmatmul.mubr.bf16.gmra.mrb[0].mxu0 %v602
  %v771 = vpop.f32.mrb[0].mxu0
  %v772 = vadd.f32 0.0, %v771
  %v773 = vpop.f32.mrb[0].mxu0
  %v774 = vpop.f32.mrb[0].mxu0
  %v775 = vadd.f32 0.0, %v774
  %v776 = vpop.f32.mrb[0].mxu0
  %777 = vmatprep.mubr.bf16.mxu0 0
  %778 = vmatmul.mubr.bf16.gmra.mrb[0].mxu0 %v605
  %v779 = vpop.f32.mrb[0].mxu0
  %v780 = vadd.f32 0.0, %v779
  %v781 = vpop.f32.mrb[0].mxu0
  %v782 = vpop.f32.mrb[0].mxu0
  %v783 = vadd.f32 0.0, %v782
  %v784 = vpop.f32.mrb[0].mxu0
  %785 = vmatprep.mubr.bf16.mxu0 0
  %786 = vmatmul.mubr.bf16.gmra.mrb[0].mxu0 %v608
  %v787 = vpop.f32.mrb[0].mxu0
  %v788 = vadd.f32 0.0, %v787
  %v789 = vpop.f32.mrb[0].mxu0
  %v790 = vpop.f32.mrb[0].mxu0
  %v791 = vadd.f32 0.0, %v790
  %v792 = vpop.f32.mrb[0].mxu0
  %793 = vdwg.mxu0
  %v794 = vpack.c.bf16 %v430, %v426
  %v795 = vpack.c.bf16 %v436, %v436
  %vm796 = vcmask 195584
  %v798 = vsel %vm796, %v316, 0
  %v801 = vsel %vm796, %v317, 0
  %v804 = vsel %vm796, %v318, 0
  %v807 = vsel %vm796, %v319, 0
  %v810 = vsel %vm796, %v320, 0
  %v813 = vsel %vm796, %v321, 0
  %v816 = vsel %vm796, %v322, 0
  %v819 = vsel %vm796, %v323, 0
  %v822 = vsel %vm796, %v324, 0
  %v825 = vsel %vm796, %v325, 0
  %v828 = vsel %vm796, %v326, 0
  %v831 = vsel %vm796, %v327, 0
  %v834 = vsel %vm796, %v328, 0
  %v837 = vsel %vm796, %v329, 0
  %v840 = vsel %vm796, %v330, 0
  %v843 = vsel %vm796, %v331, 0
  %v846 = vsel %vm796, %v332, 0
  %v849 = vsel %vm796, %v333, 0
  %v852 = vsel %vm610, %v795, 0
  %854 = vmatprep.subr.bf16.mxu0 0
  %855 = vmatpush1.bf16.msra.mxu0 %v794
  %856 = vmatprep.subr.bf16.mxu0 0
  %857 = vmatpush1.bf16.msra.mxu0 %v852
  %858 = vmatprep.subr.bf16.mxu0 0
  %859 = vmatpush1.bf16.msra.mxu0 0
  %860 = vmatprep.subr.bf16.mxu0 0
  %861 = vmatpush1.bf16.msra.mxu0 0
  %862 = vmatprep.subr.bf16.mxu0 0
  %863 = vmatpush1.bf16.msra.mxu0 0
  %864 = vmatprep.subr.bf16.mxu0 0
  %865 = vmatpush1.bf16.msra.mxu0 0
  %866 = vmatprep.subr.bf16.mxu0 0
  %867 = vmatpush1.bf16.msra.mxu0 0
  %868 = vmatprep.subr.bf16.mxu0 0
  %869 = vmatpush1.bf16.msra.mxu0 0
  %870 = vmatprep.subr.bf16.mxu0 0
  %871 = vmatpush1.bf16.msra.mxu0 0
  %872 = vmatprep.subr.bf16.mxu0 0
  %873 = vmatpush1.bf16.msra.mxu0 0
  %874 = vmatprep.subr.bf16.mxu0 0
  %875 = vmatpush1.bf16.msra.mxu0 0
  %876 = vmatprep.subr.bf16.mxu0 0
  %877 = vmatpush1.bf16.msra.mxu0 0
  %878 = vmatprep.subr.bf16.mxu0 0
  %879 = vmatpush1.bf16.msra.mxu0 0
  %880 = vmatprep.subr.bf16.mxu0 0
  %881 = vmatpush1.bf16.msra.mxu0 0
  %882 = vmatprep.subr.bf16.mxu0 0
  %883 = vmatpush1.bf16.msra.mxu0 0
  %884 = vmatprep.subr.bf16.mxu0 0
  %885 = vmatpush1.bf16.msra.mxu0 0
  %886 = vmatprep.mubr.bf16.mxu0 0
  %887 = vmatmul.mubr.bf16.gmra.mrb[0].mxu0 %v798
  %v888 = vpop.f32.mrb[0].mxu0
  %v889 = vadd.f32 %v428, %v888
  %v890 = vpop.f32.mrb[0].mxu0
  %v891 = vpop.f32.mrb[0].mxu0
  %v892 = vadd.f32 %v432, %v891
  %v893 = vpop.f32.mrb[0].mxu0
  %894 = vmatprep.mubr.bf16.mxu0 0
  %895 = vmatmul.mubr.bf16.gmra.mrb[0].mxu0 %v801
  %v896 = vpop.f32.mrb[0].mxu0
  %v897 = vadd.f32 %v438, %v896
  %v898 = vpop.f32.mrb[0].mxu0
  %v899 = vpop.f32.mrb[0].mxu0
  %v900 = vadd.f32 %v428, %v899
  %v901 = vpop.f32.mrb[0].mxu0
  %902 = vmatprep.mubr.bf16.mxu0 0
  %903 = vmatmul.mubr.bf16.gmra.mrb[0].mxu0 %v804
  %v904 = vpop.f32.mrb[0].mxu0
  %v905 = vadd.f32 %v432, %v904
  %v906 = vpop.f32.mrb[0].mxu0
  %v907 = vpop.f32.mrb[0].mxu0
  %v908 = vadd.f32 %v438, %v907
  %v909 = vpop.f32.mrb[0].mxu0
  %910 = vmatprep.mubr.bf16.mxu0 0
  %911 = vmatmul.mubr.bf16.gmra.mrb[0].mxu0 %v807
  %v912 = vpop.f32.mrb[0].mxu0
  %v913 = vadd.f32 %v428, %v912
  %v914 = vpop.f32.mrb[0].mxu0
  %v915 = vpop.f32.mrb[0].mxu0
  %v916 = vadd.f32 %v432, %v915
  %v917 = vpop.f32.mrb[0].mxu0
  %918 = vmatprep.mubr.bf16.mxu0 0
  %919 = vmatmul.mubr.bf16.gmra.mrb[0].mxu0 %v810
  %v920 = vpop.f32.mrb[0].mxu0
  %v921 = vadd.f32 %v438, %v920
  %v922 = vpop.f32.mrb[0].mxu0
  %v923 = vpop.f32.mrb[0].mxu0
  %v924 = vadd.f32 %v428, %v923
  %v925 = vpop.f32.mrb[0].mxu0
  %926 = vmatprep.mubr.bf16.mxu0 0
  %927 = vmatmul.mubr.bf16.gmra.mrb[0].mxu0 %v813
  %v928 = vpop.f32.mrb[0].mxu0
  %v929 = vadd.f32 %v432, %v928
  %v930 = vpop.f32.mrb[0].mxu0
  %v931 = vpop.f32.mrb[0].mxu0
  %v932 = vadd.f32 %v438, %v931
  %v933 = vpop.f32.mrb[0].mxu0
  %934 = vmatprep.mubr.bf16.mxu0 0
  %935 = vmatmul.mubr.bf16.gmra.mrb[0].mxu0 %v816
  %v936 = vpop.f32.mrb[0].mxu0
  %v937 = vadd.f32 %v428, %v936
  %v938 = vpop.f32.mrb[0].mxu0
  %v939 = vpop.f32.mrb[0].mxu0
  %v940 = vadd.f32 %v432, %v939
  %v941 = vpop.f32.mrb[0].mxu0
  %942 = vmatprep.mubr.bf16.mxu0 0
  %943 = vmatmul.mubr.bf16.gmra.mrb[0].mxu0 %v819
  %v944 = vpop.f32.mrb[0].mxu0
  %v945 = vadd.f32 %v438, %v944
  %v946 = vpop.f32.mrb[0].mxu0
  %v947 = vpop.f32.mrb[0].mxu0
  %v948 = vadd.f32 %v428, %v947
  %v949 = vpop.f32.mrb[0].mxu0
  %950 = vmatprep.mubr.bf16.mxu0 0
  %951 = vmatmul.mubr.bf16.gmra.mrb[0].mxu0 %v822
  %v952 = vpop.f32.mrb[0].mxu0
  %v953 = vadd.f32 %v432, %v952
  %v954 = vpop.f32.mrb[0].mxu0
  %v955 = vpop.f32.mrb[0].mxu0
  %v956 = vadd.f32 %v438, %v955
  %v957 = vpop.f32.mrb[0].mxu0
  %958 = vmatprep.mubr.bf16.mxu0 0
  %959 = vmatmul.mubr.bf16.gmra.mrb[0].mxu0 %v825
  %v960 = vpop.f32.mrb[0].mxu0
  %v961 = vadd.f32 %v428, %v960
  %v962 = vpop.f32.mrb[0].mxu0
  %v963 = vpop.f32.mrb[0].mxu0
  %v964 = vadd.f32 %v432, %v963
  %v965 = vpop.f32.mrb[0].mxu0
  %966 = vmatprep.mubr.bf16.mxu0 0
  %967 = vmatmul.mubr.bf16.gmra.mrb[0].mxu0 %v828
  %v968 = vpop.f32.mrb[0].mxu0
  %v969 = vadd.f32 %v438, %v968
  %v970 = vpop.f32.mrb[0].mxu0
  %v971 = vpop.f32.mrb[0].mxu0
  %v972 = vadd.f32 %v428, %v971
  %v973 = vpop.f32.mrb[0].mxu0
  %974 = vmatprep.mubr.bf16.mxu0 0
  %975 = vmatmul.mubr.bf16.gmra.mrb[0].mxu0 %v831
  %v976 = vpop.f32.mrb[0].mxu0
  %v977 = vadd.f32 %v432, %v976
  %v978 = vpop.f32.mrb[0].mxu0
  %v979 = vpop.f32.mrb[0].mxu0
  %v980 = vadd.f32 %v438, %v979
  %v981 = vpop.f32.mrb[0].mxu0
  %982 = vmatprep.mubr.bf16.mxu0 0
  %983 = vmatmul.mubr.bf16.gmra.mrb[0].mxu0 %v834
  %v984 = vpop.f32.mrb[0].mxu0
  %v985 = vadd.f32 %v428, %v984
  %v986 = vpop.f32.mrb[0].mxu0
  %v987 = vpop.f32.mrb[0].mxu0
  %v988 = vadd.f32 %v432, %v987
  %v989 = vpop.f32.mrb[0].mxu0
  %990 = vmatprep.mubr.bf16.mxu0 0
  %991 = vmatmul.mubr.bf16.gmra.mrb[0].mxu0 %v837
  %v992 = vpop.f32.mrb[0].mxu0
  %v993 = vadd.f32 %v438, %v992
  %v994 = vpop.f32.mrb[0].mxu0
  %v995 = vpop.f32.mrb[0].mxu0
  %v996 = vadd.f32 %v428, %v995
  %v997 = vpop.f32.mrb[0].mxu0
  %998 = vmatprep.mubr.bf16.mxu0 0
  %999 = vmatmul.mubr.bf16.gmra.mrb[0].mxu0 %v840
  %v1000 = vpop.f32.mrb[0].mxu0
  %v1001 = vadd.f32 %v432, %v1000
  %v1002 = vpop.f32.mrb[0].mxu0
  %v1003 = vpop.f32.mrb[0].mxu0
  %v1004 = vadd.f32 %v438, %v1003
  %v1005 = vpop.f32.mrb[0].mxu0
  %1006 = vmatprep.mubr.bf16.mxu0 0
  %1007 = vmatmul.mubr.bf16.gmra.mrb[0].mxu0 %v843
  %v1008 = vpop.f32.mrb[0].mxu0
  %v1009 = vadd.f32 %v428, %v1008
  %v1010 = vpop.f32.mrb[0].mxu0
  %v1011 = vpop.f32.mrb[0].mxu0
  %v1012 = vadd.f32 %v432, %v1011
  %v1013 = vpop.f32.mrb[0].mxu0
  %1014 = vmatprep.mubr.bf16.mxu0 0
  %1015 = vmatmul.mubr.bf16.gmra.mrb[0].mxu0 %v846
  %v1016 = vpop.f32.mrb[0].mxu0
  %v1017 = vadd.f32 %v438, %v1016
  %v1018 = vpop.f32.mrb[0].mxu0
  %v1019 = vpop.f32.mrb[0].mxu0
  %v1020 = vadd.f32 %v428, %v1019
  %v1021 = vpop.f32.mrb[0].mxu0
  %1022 = vmatprep.mubr.bf16.mxu0 0
  %1023 = vmatmul.mubr.bf16.gmra.mrb[0].mxu0 %v849
  %v1024 = vpop.f32.mrb[0].mxu0
  %v1025 = vadd.f32 %v432, %v1024
  %v1026 = vpop.f32.mrb[0].mxu0
  %v1027 = vpop.f32.mrb[0].mxu0
  %v1028 = vadd.f32 %v438, %v1027
  %v1029 = vpop.f32.mrb[0].mxu0
  %1030 = vdwg.mxu0
  %v1031 = vadd.f32 %v889, %v652
  %v1032 = vadd.f32 %v892, %v655
  %v1033 = vadd.f32 %v897, %v660
  %v1034 = vadd.f32 %v900, %v663
  %v1035 = vadd.f32 %v905, %v668
  %v1036 = vadd.f32 %v908, %v671
  %v1037 = vadd.f32 %v913, %v676
  %v1038 = vadd.f32 %v916, %v679
  %v1039 = vadd.f32 %v921, %v684
  %v1040 = vadd.f32 %v924, %v687
  %v1041 = vadd.f32 %v929, %v692
  %v1042 = vadd.f32 %v932, %v695
  %v1043 = vadd.f32 %v937, %v700
  %v1044 = vadd.f32 %v940, %v703
  %v1045 = vadd.f32 %v945, %v708
  %v1046 = vadd.f32 %v948, %v711
  %v1047 = vadd.f32 %v953, %v716
  %v1048 = vadd.f32 %v956, %v719
  %v1049 = vadd.f32 %v961, %v724
  %v1050 = vadd.f32 %v964, %v727
  %v1051 = vadd.f32 %v969, %v732
  %v1052 = vadd.f32 %v972, %v735
  %v1053 = vadd.f32 %v977, %v740
  %v1054 = vadd.f32 %v980, %v743
  %v1055 = vadd.f32 %v985, %v748
  %v1056 = vadd.f32 %v988, %v751
  %v1057 = vadd.f32 %v993, %v756
  %v1058 = vadd.f32 %v996, %v759
  %v1059 = vadd.f32 %v1001, %v764
  %v1060 = vadd.f32 %v1004, %v767
  %v1061 = vadd.f32 %v1009, %v772
  %v1062 = vadd.f32 %v1012, %v775
  %v1063 = vadd.f32 %v1017, %v780
  %v1064 = vadd.f32 %v1020, %v783
  %v1065 = vadd.f32 %v1025, %v788
  %v1066 = vadd.f32 %v1028, %v791
  %v1067 = vld [vmem:[%s5] sm:$0x1]
  %v1069 = vlaneseq
  %v1070 = vshrl.u32 %v1069, 7
  %v1071 = vsub.s32 0, %v1070
  %v1072 = vrot.slane %v1067, %v1071
  %v1074 = vadd.f32 %v1031, %v1072
  %v1075 = vadd.f32 %v1032, %v1072
  %v1076 = vadd.f32 %v1033, %v1072
  %v1077 = vadd.f32 %v1034, %v1072
  %v1078 = vadd.f32 %v1035, %v1072
  %v1079 = vadd.f32 %v1036, %v1072
  %v1080 = vadd.f32 %v1037, %v1072
  %v1081 = vadd.f32 %v1038, %v1072
  %v1082 = vadd.f32 %v1039, %v1072
  %v1083 = vadd.f32 %v1040, %v1072
  %v1084 = vadd.f32 %v1041, %v1072
  %v1085 = vadd.f32 %v1042, %v1072
  %v1086 = vadd.f32 %v1043, %v1072
  %v1087 = vadd.f32 %v1044, %v1072
  %v1088 = vadd.f32 %v1045, %v1072
  %v1089 = vadd.f32 %v1046, %v1072
  %v1090 = vadd.f32 %v1047, %v1072
  %v1091 = vadd.f32 %v1048, %v1072
  %v1092 = vadd.f32 %v1049, %v1072
  %v1093 = vadd.f32 %v1050, %v1072
  %v1094 = vadd.f32 %v1051, %v1072
  %v1095 = vadd.f32 %v1052, %v1072
  %v1096 = vadd.f32 %v1053, %v1072
  %v1097 = vadd.f32 %v1054, %v1072
  %v1098 = vadd.f32 %v1055, %v1072
  %v1099 = vadd.f32 %v1056, %v1072
  %v1100 = vadd.f32 %v1057, %v1072
  %v1101 = vadd.f32 %v1058, %v1072
  %v1102 = vadd.f32 %v1059, %v1072
  %v1103 = vadd.f32 %v1060, %v1072
  %v1104 = vadd.f32 %v1061, %v1072
  %v1105 = vadd.f32 %v1062, %v1072
  %v1106 = vadd.f32 %v1063, %v1072
  %v1107 = vadd.f32 %v1064, %v1072
  %v1108 = vadd.f32 %v1065, %v1072
  %v1109 = vadd.f32 %v1066, %v1072
  %v1110 = vld [vmem:[%s6] sm:$0x1]
  %v1111 = vld [vmem:[%s7] sm:$0x1]
  %v1112 = vadd.f32 %v1074, %v1075
  %v1113 = vadd.f32 %v1112, %v1076
  %v1114 = vadd.f32 %v1113, %v1077
  %v1115 = vadd.f32 %v1114, %v1078
  %v1116 = vadd.f32 %v1115, %v1079
  %v1117 = vadd.f32 %v1116, %v1080
  %v1118 = vadd.f32 %v1117, %v1081
  %v1119 = vadd.f32 %v1118, %v1082
  %v1120 = vadd.f32 %v1119, %v1083
  %v1121 = vadd.f32 %v1120, %v1084
  %v1122 = vadd.f32 %v1121, %v1085
  %v1123 = vadd.f32 %v1122, %v1086
  %v1124 = vadd.f32 %v1123, %v1087
  %v1125 = vadd.f32 %v1124, %v1088
  %v1126 = vadd.f32 %v1125, %v1089
  %v1127 = vadd.f32 %v1126, %v1090
  %v1128 = vadd.f32 %v1127, %v1091
  %v1129 = vadd.f32 %v1128, %v1092
  %v1130 = vadd.f32 %v1129, %v1093
  %v1131 = vadd.f32 %v1130, %v1094
  %v1132 = vadd.f32 %v1131, %v1095
  %v1133 = vadd.f32 %v1132, %v1096
  %v1134 = vadd.f32 %v1133, %v1097
  %v1135 = vadd.f32 %v1134, %v1098
  %v1136 = vadd.f32 %v1135, %v1099
  %v1137 = vadd.f32 %v1136, %v1100
  %v1138 = vadd.f32 %v1137, %v1101
  %v1139 = vadd.f32 %v1138, %v1102
  %v1140 = vadd.f32 %v1139, %v1103
  %v1141 = vadd.f32 %v1140, %v1104
  %v1142 = vadd.f32 %v1141, %v1105
  %v1143 = vadd.f32 %v1142, %v1106
  %v1144 = vadd.f32 %v1143, %v1107
  %v1145 = vadd.f32 %v1144, %v1108
  %v1146 = vadd.f32 %v1145, %v1109
  %v1147 = vrot.slane %v1146, 4
  %v1148 = vadd.f32 %v1146, %v1147
  %v1149 = vrot.slane %v1148, 2
  %v1150 = vadd.f32 %v1148, %v1149
  %v1151 = vrot.slane %v1150, 1
  %v1152 = vadd.f32 %v1150, %v1151
  %v1153 = vmul.f32 %v1152, 0.0034722222
  %v1154 = vsub.f32 %v1074, %v1153
  %v1155 = vsub.f32 %v1075, %v1153
  %v1156 = vsub.f32 %v1076, %v1153
  %v1157 = vsub.f32 %v1077, %v1153
  %v1158 = vsub.f32 %v1078, %v1153
  %v1159 = vsub.f32 %v1079, %v1153
  %v1160 = vsub.f32 %v1080, %v1153
  %v1161 = vsub.f32 %v1081, %v1153
  %v1162 = vsub.f32 %v1082, %v1153
  %v1163 = vsub.f32 %v1083, %v1153
  %v1164 = vsub.f32 %v1084, %v1153
  %v1165 = vsub.f32 %v1085, %v1153
  %v1166 = vsub.f32 %v1086, %v1153
  %v1167 = vsub.f32 %v1087, %v1153
  %v1168 = vsub.f32 %v1088, %v1153
  %v1169 = vsub.f32 %v1089, %v1153
  %v1170 = vsub.f32 %v1090, %v1153
  %v1171 = vsub.f32 %v1091, %v1153
  %v1172 = vsub.f32 %v1092, %v1153
  %v1173 = vsub.f32 %v1093, %v1153
  %v1174 = vsub.f32 %v1094, %v1153
  %v1175 = vsub.f32 %v1095, %v1153
  %v1176 = vsub.f32 %v1096, %v1153
  %v1177 = vsub.f32 %v1097, %v1153
  %v1178 = vsub.f32 %v1098, %v1153
  %v1179 = vsub.f32 %v1099, %v1153
  %v1180 = vsub.f32 %v1100, %v1153
  %v1181 = vsub.f32 %v1101, %v1153
  %v1182 = vsub.f32 %v1102, %v1153
  %v1183 = vsub.f32 %v1103, %v1153
  %v1184 = vsub.f32 %v1104, %v1153
  %v1185 = vsub.f32 %v1105, %v1153
  %v1186 = vsub.f32 %v1106, %v1153
  %v1187 = vsub.f32 %v1107, %v1153
  %v1188 = vsub.f32 %v1108, %v1153
  %v1189 = vsub.f32 %v1109, %v1153
  %v1190 = vmul.f32 %v1154, %v1154
  %v1191 = vmul.f32 %v1155, %v1155
  %v1192 = vmul.f32 %v1156, %v1156
  %v1193 = vmul.f32 %v1157, %v1157
  %v1194 = vmul.f32 %v1158, %v1158
  %v1195 = vmul.f32 %v1159, %v1159
  %v1196 = vmul.f32 %v1160, %v1160
  %v1197 = vmul.f32 %v1161, %v1161
  %v1198 = vmul.f32 %v1162, %v1162
  %v1199 = vmul.f32 %v1163, %v1163
  %v1200 = vmul.f32 %v1164, %v1164
  %v1201 = vmul.f32 %v1165, %v1165
  %v1202 = vmul.f32 %v1166, %v1166
  %v1203 = vmul.f32 %v1167, %v1167
  %v1204 = vmul.f32 %v1168, %v1168
  %v1205 = vmul.f32 %v1169, %v1169
  %v1206 = vmul.f32 %v1170, %v1170
  %v1207 = vmul.f32 %v1171, %v1171
  %v1208 = vmul.f32 %v1172, %v1172
  %v1209 = vmul.f32 %v1173, %v1173
  %v1210 = vmul.f32 %v1174, %v1174
  %v1211 = vmul.f32 %v1175, %v1175
  %v1212 = vmul.f32 %v1176, %v1176
  %v1213 = vmul.f32 %v1177, %v1177
  %v1214 = vmul.f32 %v1178, %v1178
  %v1215 = vmul.f32 %v1179, %v1179
  %v1216 = vmul.f32 %v1180, %v1180
  %v1217 = vmul.f32 %v1181, %v1181
  %v1218 = vmul.f32 %v1182, %v1182
  %v1219 = vmul.f32 %v1183, %v1183
  %v1220 = vmul.f32 %v1184, %v1184
  %v1221 = vmul.f32 %v1185, %v1185
  %v1222 = vmul.f32 %v1186, %v1186
  %v1223 = vmul.f32 %v1187, %v1187
  %v1224 = vmul.f32 %v1188, %v1188
  %v1225 = vmul.f32 %v1189, %v1189
  %v1226 = vadd.f32 %v1190, %v1191
  %v1227 = vadd.f32 %v1226, %v1192
  %v1228 = vadd.f32 %v1227, %v1193
  %v1229 = vadd.f32 %v1228, %v1194
  %v1230 = vadd.f32 %v1229, %v1195
  %v1231 = vadd.f32 %v1230, %v1196
  %v1232 = vadd.f32 %v1231, %v1197
  %v1233 = vadd.f32 %v1232, %v1198
  %v1234 = vadd.f32 %v1233, %v1199
  %v1235 = vadd.f32 %v1234, %v1200
  %v1236 = vadd.f32 %v1235, %v1201
  %v1237 = vadd.f32 %v1236, %v1202
  %v1238 = vadd.f32 %v1237, %v1203
  %v1239 = vadd.f32 %v1238, %v1204
  %v1240 = vadd.f32 %v1239, %v1205
  %v1241 = vadd.f32 %v1240, %v1206
  %v1242 = vadd.f32 %v1241, %v1207
  %v1243 = vadd.f32 %v1242, %v1208
  %v1244 = vadd.f32 %v1243, %v1209
  %v1245 = vadd.f32 %v1244, %v1210
  %v1246 = vadd.f32 %v1245, %v1211
  %v1247 = vadd.f32 %v1246, %v1212
  %v1248 = vadd.f32 %v1247, %v1213
  %v1249 = vadd.f32 %v1248, %v1214
  %v1250 = vadd.f32 %v1249, %v1215
  %v1251 = vadd.f32 %v1250, %v1216
  %v1252 = vadd.f32 %v1251, %v1217
  %v1253 = vadd.f32 %v1252, %v1218
  %v1254 = vadd.f32 %v1253, %v1219
  %v1255 = vadd.f32 %v1254, %v1220
  %v1256 = vadd.f32 %v1255, %v1221
  %v1257 = vadd.f32 %v1256, %v1222
  %v1258 = vadd.f32 %v1257, %v1223
  %v1259 = vadd.f32 %v1258, %v1224
  %v1260 = vadd.f32 %v1259, %v1225
  %v1261 = vrot.slane %v1260, 4
  %v1262 = vadd.f32 %v1260, %v1261
  %v1263 = vrot.slane %v1262, 2
  %v1264 = vadd.f32 %v1262, %v1263
  %v1265 = vrot.slane %v1264, 1
  %v1266 = vadd.f32 %v1264, %v1265
  %v1267 = vmul.f32 %v1266, 0.0034722222
  %v1268 = vadd.f32 %v1267, 1e-05
  %v1269 = vrsqrt.pop %v1268
  %v1270 = vmul.f32 %v1154, %v1269
  %v1271 = vmul.f32 %v1155, %v1269
  %v1272 = vmul.f32 %v1156, %v1269
  %v1273 = vmul.f32 %v1157, %v1269
  %v1274 = vmul.f32 %v1158, %v1269
  %v1275 = vmul.f32 %v1159, %v1269
  %v1276 = vmul.f32 %v1160, %v1269
  %v1277 = vmul.f32 %v1161, %v1269
  %v1278 = vmul.f32 %v1162, %v1269
  %v1279 = vmul.f32 %v1163, %v1269
  %v1280 = vmul.f32 %v1164, %v1269
  %v1281 = vmul.f32 %v1165, %v1269
  %v1282 = vmul.f32 %v1166, %v1269
  %v1283 = vmul.f32 %v1167, %v1269
  %v1284 = vmul.f32 %v1168, %v1269
  %v1285 = vmul.f32 %v1169, %v1269
  %v1286 = vmul.f32 %v1170, %v1269
  %v1287 = vmul.f32 %v1171, %v1269
  %v1288 = vmul.f32 %v1172, %v1269
  %v1289 = vmul.f32 %v1173, %v1269
  %v1290 = vmul.f32 %v1174, %v1269
  %v1291 = vmul.f32 %v1175, %v1269
  %v1292 = vmul.f32 %v1176, %v1269
  %v1293 = vmul.f32 %v1177, %v1269
  %v1294 = vmul.f32 %v1178, %v1269
  %v1295 = vmul.f32 %v1179, %v1269
  %v1296 = vmul.f32 %v1180, %v1269
  %v1297 = vmul.f32 %v1181, %v1269
  %v1298 = vmul.f32 %v1182, %v1269
  %v1299 = vmul.f32 %v1183, %v1269
  %v1300 = vmul.f32 %v1184, %v1269
  %v1301 = vmul.f32 %v1185, %v1269
  %v1302 = vmul.f32 %v1186, %v1269
  %v1303 = vmul.f32 %v1187, %v1269
  %v1304 = vmul.f32 %v1188, %v1269
  %v1305 = vmul.f32 %v1189, %v1269
  %v1307 = vlaneseq
  %v1308 = vshrl.u32 %v1307, 7
  %v1309 = vsub.s32 0, %v1308
  %v1310 = vrot.slane %v1110, %v1309
  %v1312 = vmul.f32 %v1270, %v1310
  %v1313 = vmul.f32 %v1271, %v1310
  %v1314 = vmul.f32 %v1272, %v1310
  %v1315 = vmul.f32 %v1273, %v1310
  %v1316 = vmul.f32 %v1274, %v1310
  %v1317 = vmul.f32 %v1275, %v1310
  %v1318 = vmul.f32 %v1276, %v1310
  %v1319 = vmul.f32 %v1277, %v1310
  %v1320 = vmul.f32 %v1278, %v1310
  %v1321 = vmul.f32 %v1279, %v1310
  %v1322 = vmul.f32 %v1280, %v1310
  %v1323 = vmul.f32 %v1281, %v1310
  %v1324 = vmul.f32 %v1282, %v1310
  %v1325 = vmul.f32 %v1283, %v1310
  %v1326 = vmul.f32 %v1284, %v1310
  %v1327 = vmul.f32 %v1285, %v1310
  %v1328 = vmul.f32 %v1286, %v1310
  %v1329 = vmul.f32 %v1287, %v1310
  %v1330 = vmul.f32 %v1288, %v1310
  %v1331 = vmul.f32 %v1289, %v1310
  %v1332 = vmul.f32 %v1290, %v1310
  %v1333 = vmul.f32 %v1291, %v1310
  %v1334 = vmul.f32 %v1292, %v1310
  %v1335 = vmul.f32 %v1293, %v1310
  %v1336 = vmul.f32 %v1294, %v1310
  %v1337 = vmul.f32 %v1295, %v1310
  %v1338 = vmul.f32 %v1296, %v1310
  %v1339 = vmul.f32 %v1297, %v1310
  %v1340 = vmul.f32 %v1298, %v1310
  %v1341 = vmul.f32 %v1299, %v1310
  %v1342 = vmul.f32 %v1300, %v1310
  %v1343 = vmul.f32 %v1301, %v1310
  %v1344 = vmul.f32 %v1302, %v1310
  %v1345 = vmul.f32 %v1303, %v1310
  %v1346 = vmul.f32 %v1304, %v1310
  %v1347 = vmul.f32 %v1305, %v1310
  %v1349 = vlaneseq
  %v1350 = vshrl.u32 %v1349, 7
  %v1351 = vsub.s32 0, %v1350
  %v1352 = vrot.slane %v1111, %v1351
  %v1354 = vadd.f32 %v1312, %v1352
  %v1355 = vadd.f32 %v1313, %v1352
  %v1356 = vadd.f32 %v1314, %v1352
  %v1357 = vadd.f32 %v1315, %v1352
  %v1358 = vadd.f32 %v1316, %v1352
  %v1359 = vadd.f32 %v1317, %v1352
  %v1360 = vadd.f32 %v1318, %v1352
  %v1361 = vadd.f32 %v1319, %v1352
  %v1362 = vadd.f32 %v1320, %v1352
  %v1363 = vadd.f32 %v1321, %v1352
  %v1364 = vadd.f32 %v1322, %v1352
  %v1365 = vadd.f32 %v1323, %v1352
  %v1366 = vadd.f32 %v1324, %v1352
  %v1367 = vadd.f32 %v1325, %v1352
  %v1368 = vadd.f32 %v1326, %v1352
  %v1369 = vadd.f32 %v1327, %v1352
  %v1370 = vadd.f32 %v1328, %v1352
  %v1371 = vadd.f32 %v1329, %v1352
  %v1372 = vadd.f32 %v1330, %v1352
  %v1373 = vadd.f32 %v1331, %v1352
  %v1374 = vadd.f32 %v1332, %v1352
  %v1375 = vadd.f32 %v1333, %v1352
  %v1376 = vadd.f32 %v1334, %v1352
  %v1377 = vadd.f32 %v1335, %v1352
  %v1378 = vadd.f32 %v1336, %v1352
  %v1379 = vadd.f32 %v1337, %v1352
  %v1380 = vadd.f32 %v1338, %v1352
  %v1381 = vadd.f32 %v1339, %v1352
  %v1382 = vadd.f32 %v1340, %v1352
  %v1383 = vadd.f32 %v1341, %v1352
  %v1384 = vadd.f32 %v1342, %v1352
  %v1385 = vadd.f32 %v1343, %v1352
  %v1386 = vadd.f32 %v1344, %v1352
  %v1387 = vadd.f32 %v1345, %v1352
  %v1388 = vadd.f32 %v1346, %v1352
  %v1389 = vadd.f32 %v1347, %v1352
  %v1390 = vsub.f32 0.0, %v1354
  %v1391 = vsub.f32 0.0, %v1355
  %v1392 = vsub.f32 0.0, %v1356
  %v1393 = vsub.f32 0.0, %v1357
  %v1394 = vsub.f32 0.0, %v1358
  %v1395 = vsub.f32 0.0, %v1359
  %v1396 = vsub.f32 0.0, %v1360
  %v1397 = vsub.f32 0.0, %v1361
  %v1398 = vsub.f32 0.0, %v1362
  %v1399 = vsub.f32 0.0, %v1363
  %v1400 = vsub.f32 0.0, %v1364
  %v1401 = vsub.f32 0.0, %v1365
  %v1402 = vsub.f32 0.0, %v1366
  %v1403 = vsub.f32 0.0, %v1367
  %v1404 = vsub.f32 0.0, %v1368
  %v1405 = vsub.f32 0.0, %v1369
  %v1406 = vsub.f32 0.0, %v1370
  %v1407 = vsub.f32 0.0, %v1371
  %v1408 = vsub.f32 0.0, %v1372
  %v1409 = vsub.f32 0.0, %v1373
  %v1410 = vsub.f32 0.0, %v1374
  %v1411 = vsub.f32 0.0, %v1375
  %v1412 = vsub.f32 0.0, %v1376
  %v1413 = vsub.f32 0.0, %v1377
  %v1414 = vsub.f32 0.0, %v1378
  %v1415 = vsub.f32 0.0, %v1379
  %v1416 = vsub.f32 0.0, %v1380
  %v1417 = vsub.f32 0.0, %v1381
  %v1418 = vsub.f32 0.0, %v1382
  %v1419 = vsub.f32 0.0, %v1383
  %v1420 = vsub.f32 0.0, %v1384
  %v1421 = vsub.f32 0.0, %v1385
  %v1422 = vsub.f32 0.0, %v1386
  %v1423 = vsub.f32 0.0, %v1387
  %v1424 = vsub.f32 0.0, %v1388
  %v1425 = vsub.f32 0.0, %v1389
  %v1426 = vmul.f32 %v1390, 1.442695
  %v1427 = vpow.pop %v1426
  %v1428 = vmul.f32 %v1391, 1.442695
  %v1429 = vpow.pop %v1428
  %v1430 = vmul.f32 %v1392, 1.442695
  %v1431 = vpow.pop %v1430
  %v1432 = vmul.f32 %v1393, 1.442695
  %v1433 = vpow.pop %v1432
  %v1434 = vmul.f32 %v1394, 1.442695
  %v1435 = vpow.pop %v1434
  %v1436 = vmul.f32 %v1395, 1.442695
  %v1437 = vpow.pop %v1436
  %v1438 = vmul.f32 %v1396, 1.442695
  %v1439 = vpow.pop %v1438
  %v1440 = vmul.f32 %v1397, 1.442695
  %v1441 = vpow.pop %v1440
  %v1442 = vmul.f32 %v1398, 1.442695
  %v1443 = vpow.pop %v1442
  %v1444 = vmul.f32 %v1399, 1.442695
  %v1445 = vpow.pop %v1444
  %v1446 = vmul.f32 %v1400, 1.442695
  %v1447 = vpow.pop %v1446
  %v1448 = vmul.f32 %v1401, 1.442695
  %v1449 = vpow.pop %v1448
  %v1450 = vmul.f32 %v1402, 1.442695
  %v1451 = vpow.pop %v1450
  %v1452 = vmul.f32 %v1403, 1.442695
  %v1453 = vpow.pop %v1452
  %v1454 = vmul.f32 %v1404, 1.442695
  %v1455 = vpow.pop %v1454
  %v1456 = vmul.f32 %v1405, 1.442695
  %v1457 = vpow.pop %v1456
  %v1458 = vmul.f32 %v1406, 1.442695
  %v1459 = vpow.pop %v1458
  %v1460 = vmul.f32 %v1407, 1.442695
  %v1461 = vpow.pop %v1460
  %v1462 = vmul.f32 %v1408, 1.442695
  %v1463 = vpow.pop %v1462
  %v1464 = vmul.f32 %v1409, 1.442695
  %v1465 = vpow.pop %v1464
  %v1466 = vmul.f32 %v1410, 1.442695
  %v1467 = vpow.pop %v1466
  %v1468 = vmul.f32 %v1411, 1.442695
  %v1469 = vpow.pop %v1468
  %v1470 = vmul.f32 %v1412, 1.442695
  %v1471 = vpow.pop %v1470
  %v1472 = vmul.f32 %v1413, 1.442695
  %v1473 = vpow.pop %v1472
  %v1474 = vmul.f32 %v1414, 1.442695
  %v1475 = vpow.pop %v1474
  %v1476 = vmul.f32 %v1415, 1.442695
  %v1477 = vpow.pop %v1476
  %v1478 = vmul.f32 %v1416, 1.442695
  %v1479 = vpow.pop %v1478
  %v1480 = vmul.f32 %v1417, 1.442695
  %v1481 = vpow.pop %v1480
  %v1482 = vmul.f32 %v1418, 1.442695
  %v1483 = vpow.pop %v1482
  %v1484 = vmul.f32 %v1419, 1.442695
  %v1485 = vpow.pop %v1484
  %v1486 = vmul.f32 %v1420, 1.442695
  %v1487 = vpow.pop %v1486
  %v1488 = vmul.f32 %v1421, 1.442695
  %v1489 = vpow.pop %v1488
  %v1490 = vmul.f32 %v1422, 1.442695
  %v1491 = vpow.pop %v1490
  %v1492 = vmul.f32 %v1423, 1.442695
  %v1493 = vpow.pop %v1492
  %v1494 = vmul.f32 %v1424, 1.442695
  %v1495 = vpow.pop %v1494
  %v1496 = vmul.f32 %v1425, 1.442695
  %v1497 = vpow.pop %v1496
  %v1498 = vadd.f32 %v1427, 1.0
  %v1499 = vadd.f32 %v1429, 1.0
  %v1500 = vadd.f32 %v1431, 1.0
  %v1501 = vadd.f32 %v1433, 1.0
  %v1502 = vadd.f32 %v1435, 1.0
  %v1503 = vadd.f32 %v1437, 1.0
  %v1504 = vadd.f32 %v1439, 1.0
  %v1505 = vadd.f32 %v1441, 1.0
  %v1506 = vadd.f32 %v1443, 1.0
  %v1507 = vadd.f32 %v1445, 1.0
  %v1508 = vadd.f32 %v1447, 1.0
  %v1509 = vadd.f32 %v1449, 1.0
  %v1510 = vadd.f32 %v1451, 1.0
  %v1511 = vadd.f32 %v1453, 1.0
  %v1512 = vadd.f32 %v1455, 1.0
  %v1513 = vadd.f32 %v1457, 1.0
  %v1514 = vadd.f32 %v1459, 1.0
  %v1515 = vadd.f32 %v1461, 1.0
  %v1516 = vadd.f32 %v1463, 1.0
  %v1517 = vadd.f32 %v1465, 1.0
  %v1518 = vadd.f32 %v1467, 1.0
  %v1519 = vadd.f32 %v1469, 1.0
  %v1520 = vadd.f32 %v1471, 1.0
  %v1521 = vadd.f32 %v1473, 1.0
  %v1522 = vadd.f32 %v1475, 1.0
  %v1523 = vadd.f32 %v1477, 1.0
  %v1524 = vadd.f32 %v1479, 1.0
  %v1525 = vadd.f32 %v1481, 1.0
  %v1526 = vadd.f32 %v1483, 1.0
  %v1527 = vadd.f32 %v1485, 1.0
  %v1528 = vadd.f32 %v1487, 1.0
  %v1529 = vadd.f32 %v1489, 1.0
  %v1530 = vadd.f32 %v1491, 1.0
  %v1531 = vadd.f32 %v1493, 1.0
  %v1532 = vadd.f32 %v1495, 1.0
  %v1533 = vadd.f32 %v1497, 1.0
  %v1534 = vrcp.pop %v1498
  %v1535 = vrcp.pop %v1499
  %v1536 = vrcp.pop %v1500
  %v1537 = vrcp.pop %v1501
  %v1538 = vrcp.pop %v1502
  %v1539 = vrcp.pop %v1503
  %v1540 = vrcp.pop %v1504
  %v1541 = vrcp.pop %v1505
  %v1542 = vrcp.pop %v1506
  %v1543 = vrcp.pop %v1507
  %v1544 = vrcp.pop %v1508
  %v1545 = vrcp.pop %v1509
  %v1546 = vrcp.pop %v1510
  %v1547 = vrcp.pop %v1511
  %v1548 = vrcp.pop %v1512
  %v1549 = vrcp.pop %v1513
  %v1550 = vrcp.pop %v1514
  %v1551 = vrcp.pop %v1515
  %v1552 = vrcp.pop %v1516
  %v1553 = vrcp.pop %v1517
  %v1554 = vrcp.pop %v1518
  %v1555 = vrcp.pop %v1519
  %v1556 = vrcp.pop %v1520
  %v1557 = vrcp.pop %v1521
  %v1558 = vrcp.pop %v1522
  %v1559 = vrcp.pop %v1523
  %v1560 = vrcp.pop %v1524
  %v1561 = vrcp.pop %v1525
  %v1562 = vrcp.pop %v1526
  %v1563 = vrcp.pop %v1527
  %v1564 = vrcp.pop %v1528
  %v1565 = vrcp.pop %v1529
  %v1566 = vrcp.pop %v1530
  %v1567 = vrcp.pop %v1531
  %v1568 = vrcp.pop %v1532
  %v1569 = vrcp.pop %v1533
  %vm1570 = vcmp.gt.f32.partialorder %v1354, 20.0
  %vm1571 = vcmp.gt.f32.partialorder %v1355, 20.0
  %vm1572 = vcmp.gt.f32.partialorder %v1356, 20.0
  %vm1573 = vcmp.gt.f32.partialorder %v1357, 20.0
  %vm1574 = vcmp.gt.f32.partialorder %v1358, 20.0
  %vm1575 = vcmp.gt.f32.partialorder %v1359, 20.0
  %vm1576 = vcmp.gt.f32.partialorder %v1360, 20.0
  %vm1577 = vcmp.gt.f32.partialorder %v1361, 20.0
  %vm1578 = vcmp.gt.f32.partialorder %v1362, 20.0
  %vm1579 = vcmp.gt.f32.partialorder %v1363, 20.0
  %vm1580 = vcmp.gt.f32.partialorder %v1364, 20.0
  %vm1581 = vcmp.gt.f32.partialorder %v1365, 20.0
  %vm1582 = vcmp.gt.f32.partialorder %v1366, 20.0
  %vm1583 = vcmp.gt.f32.partialorder %v1367, 20.0
  %vm1584 = vcmp.gt.f32.partialorder %v1368, 20.0
  %vm1585 = vcmp.gt.f32.partialorder %v1369, 20.0
  %vm1586 = vcmp.gt.f32.partialorder %v1370, 20.0
  %vm1587 = vcmp.gt.f32.partialorder %v1371, 20.0
  %vm1588 = vcmp.gt.f32.partialorder %v1372, 20.0
  %vm1589 = vcmp.gt.f32.partialorder %v1373, 20.0
  %vm1590 = vcmp.gt.f32.partialorder %v1374, 20.0
  %vm1591 = vcmp.gt.f32.partialorder %v1375, 20.0
  %vm1592 = vcmp.gt.f32.partialorder %v1376, 20.0
  %vm1593 = vcmp.gt.f32.partialorder %v1377, 20.0
  %vm1594 = vcmp.gt.f32.partialorder %v1378, 20.0
  %vm1595 = vcmp.gt.f32.partialorder %v1379, 20.0
  %vm1596 = vcmp.gt.f32.partialorder %v1380, 20.0
  %vm1597 = vcmp.gt.f32.partialorder %v1381, 20.0
  %vm1598 = vcmp.gt.f32.partialorder %v1382, 20.0
  %vm1599 = vcmp.gt.f32.partialorder %v1383, 20.0
  %vm1600 = vcmp.gt.f32.partialorder %v1384, 20.0
  %vm1601 = vcmp.gt.f32.partialorder %v1385, 20.0
  %vm1602 = vcmp.gt.f32.partialorder %v1386, 20.0
  %vm1603 = vcmp.gt.f32.partialorder %v1387, 20.0
  %vm1604 = vcmp.gt.f32.partialorder %v1388, 20.0
  %vm1605 = vcmp.gt.f32.partialorder %v1389, 20.0
  %v1606 = vmin.f32 %v1354, 20.0
  %v1607 = vmin.f32 %v1355, 20.0
  %v1608 = vmin.f32 %v1356, 20.0
  %v1609 = vmin.f32 %v1357, 20.0
  %v1610 = vmin.f32 %v1358, 20.0
  %v1611 = vmin.f32 %v1359, 20.0
  %v1612 = vmin.f32 %v1360, 20.0
  %v1613 = vmin.f32 %v1361, 20.0
  %v1614 = vmin.f32 %v1362, 20.0
  %v1615 = vmin.f32 %v1363, 20.0
  %v1616 = vmin.f32 %v1364, 20.0
  %v1617 = vmin.f32 %v1365, 20.0
  %v1618 = vmin.f32 %v1366, 20.0
  %v1619 = vmin.f32 %v1367, 20.0
  %v1620 = vmin.f32 %v1368, 20.0
  %v1621 = vmin.f32 %v1369, 20.0
  %v1622 = vmin.f32 %v1370, 20.0
  %v1623 = vmin.f32 %v1371, 20.0
  %v1624 = vmin.f32 %v1372, 20.0
  %v1625 = vmin.f32 %v1373, 20.0
  %v1626 = vmin.f32 %v1374, 20.0
  %v1627 = vmin.f32 %v1375, 20.0
  %v1628 = vmin.f32 %v1376, 20.0
  %v1629 = vmin.f32 %v1377, 20.0
  %v1630 = vmin.f32 %v1378, 20.0
  %v1631 = vmin.f32 %v1379, 20.0
  %v1632 = vmin.f32 %v1380, 20.0
  %v1633 = vmin.f32 %v1381, 20.0
  %v1634 = vmin.f32 %v1382, 20.0
  %v1635 = vmin.f32 %v1383, 20.0
  %v1636 = vmin.f32 %v1384, 20.0
  %v1637 = vmin.f32 %v1385, 20.0
  %v1638 = vmin.f32 %v1386, 20.0
  %v1639 = vmin.f32 %v1387, 20.0
  %v1640 = vmin.f32 %v1388, 20.0
  %v1641 = vmin.f32 %v1389, 20.0
  %v1642 = vmul.f32 %v1606, 1.442695
  %v1643 = vpow.pop %v1642
  %v1644 = vmul.f32 %v1607, 1.442695
  %v1645 = vpow.pop %v1644
  %v1646 = vmul.f32 %v1608, 1.442695
  %v1647 = vpow.pop %v1646
  %v1648 = vmul.f32 %v1609, 1.442695
  %v1649 = vpow.pop %v1648
  %v1650 = vmul.f32 %v1610, 1.442695
  %v1651 = vpow.pop %v1650
  %v1652 = vmul.f32 %v1611, 1.442695
  %v1653 = vpow.pop %v1652
  %v1654 = vmul.f32 %v1612, 1.442695
  %v1655 = vpow.pop %v1654
  %v1656 = vmul.f32 %v1613, 1.442695
  %v1657 = vpow.pop %v1656
  %v1658 = vmul.f32 %v1614, 1.442695
  %v1659 = vpow.pop %v1658
  %v1660 = vmul.f32 %v1615, 1.442695
  %v1661 = vpow.pop %v1660
  %v1662 = vmul.f32 %v1616, 1.442695
  %v1663 = vpow.pop %v1662
  %v1664 = vmul.f32 %v1617, 1.442695
  %v1665 = vpow.pop %v1664
  %v1666 = vmul.f32 %v1618, 1.442695
  %v1667 = vpow.pop %v1666
  %v1668 = vmul.f32 %v1619, 1.442695
  %v1669 = vpow.pop %v1668
  %v1670 = vmul.f32 %v1620, 1.442695
  %v1671 = vpow.pop %v1670
  %v1672 = vmul.f32 %v1621, 1.442695
  %v1673 = vpow.pop %v1672
  %v1674 = vmul.f32 %v1622, 1.442695
  %v1675 = vpow.pop %v1674
  %v1676 = vmul.f32 %v1623, 1.442695
  %v1677 = vpow.pop %v1676
  %v1678 = vmul.f32 %v1624, 1.442695
  %v1679 = vpow.pop %v1678
  %v1680 = vmul.f32 %v1625, 1.442695
  %v1681 = vpow.pop %v1680
  %v1682 = vmul.f32 %v1626, 1.442695
  %v1683 = vpow.pop %v1682
  %v1684 = vmul.f32 %v1627, 1.442695
  %v1685 = vpow.pop %v1684
  %v1686 = vmul.f32 %v1628, 1.442695
  %v1687 = vpow.pop %v1686
  %v1688 = vmul.f32 %v1629, 1.442695
  %v1689 = vpow.pop %v1688
  %v1690 = vmul.f32 %v1630, 1.442695
  %v1691 = vpow.pop %v1690
  %v1692 = vmul.f32 %v1631, 1.442695
  %v1693 = vpow.pop %v1692
  %v1694 = vmul.f32 %v1632, 1.442695
  %v1695 = vpow.pop %v1694
  %v1696 = vmul.f32 %v1633, 1.442695
  %v1697 = vpow.pop %v1696
  %v1698 = vmul.f32 %v1634, 1.442695
  %v1699 = vpow.pop %v1698
  %v1700 = vmul.f32 %v1635, 1.442695
  %v1701 = vpow.pop %v1700
  %v1702 = vmul.f32 %v1636, 1.442695
  %v1703 = vpow.pop %v1702
  %v1704 = vmul.f32 %v1637, 1.442695
  %v1705 = vpow.pop %v1704
  %v1706 = vmul.f32 %v1638, 1.442695
  %v1707 = vpow.pop %v1706
  %v1708 = vmul.f32 %v1639, 1.442695
  %v1709 = vpow.pop %v1708
  %v1710 = vmul.f32 %v1640, 1.442695
  %v1711 = vpow.pop %v1710
  %v1712 = vmul.f32 %v1641, 1.442695
  %v1713 = vpow.pop %v1712
  %v1714 = vadd.f32 %v1643, 1.0
  %v1715 = vlog2.pop %v1714
  %v1716 = vmul.f32 %v1715, 0.6931472
  %v1717 = vmul.f32 -0.5, %v1643
  %v1718 = vadd.f32 %v1717, 1.0
  %v1719 = vmul.f32 %v1718, %v1643
  %v1720 = vand.u32 2147483647, %v1643
  %vm1721 = vcmp.lt.f32.partialorder %v1720, 0.0004427343
  %v1722 = vsel %vm1721, %v1719, %v1716
  %v1723 = vadd.f32 %v1645, 1.0
  %v1724 = vlog2.pop %v1723
  %v1725 = vmul.f32 %v1724, 0.6931472
  %v1726 = vmul.f32 -0.5, %v1645
  %v1727 = vadd.f32 %v1726, 1.0
  %v1728 = vmul.f32 %v1727, %v1645
  %v1729 = vand.u32 2147483647, %v1645
  %vm1730 = vcmp.lt.f32.partialorder %v1729, 0.0004427343
  %v1731 = vsel %vm1730, %v1728, %v1725
  %v1732 = vadd.f32 %v1647, 1.0
  %v1733 = vlog2.pop %v1732
  %v1734 = vmul.f32 %v1733, 0.6931472
  %v1735 = vmul.f32 -0.5, %v1647
  %v1736 = vadd.f32 %v1735, 1.0
  %v1737 = vmul.f32 %v1736, %v1647
  %v1738 = vand.u32 2147483647, %v1647
  %vm1739 = vcmp.lt.f32.partialorder %v1738, 0.0004427343
  %v1740 = vsel %vm1739, %v1737, %v1734
  %v1741 = vadd.f32 %v1649, 1.0
  %v1742 = vlog2.pop %v1741
  %v1743 = vmul.f32 %v1742, 0.6931472
  %v1744 = vmul.f32 -0.5, %v1649
  %v1745 = vadd.f32 %v1744, 1.0
  %v1746 = vmul.f32 %v1745, %v1649
  %v1747 = vand.u32 2147483647, %v1649
  %vm1748 = vcmp.lt.f32.partialorder %v1747, 0.0004427343
  %v1749 = vsel %vm1748, %v1746, %v1743
  %v1750 = vadd.f32 %v1651, 1.0
  %v1751 = vlog2.pop %v1750
  %v1752 = vmul.f32 %v1751, 0.6931472
  %v1753 = vmul.f32 -0.5, %v1651
  %v1754 = vadd.f32 %v1753, 1.0
  %v1755 = vmul.f32 %v1754, %v1651
  %v1756 = vand.u32 2147483647, %v1651
  %vm1757 = vcmp.lt.f32.partialorder %v1756, 0.0004427343
  %v1758 = vsel %vm1757, %v1755, %v1752
  %v1759 = vadd.f32 %v1653, 1.0
  %v1760 = vlog2.pop %v1759
  %v1761 = vmul.f32 %v1760, 0.6931472
  %v1762 = vmul.f32 -0.5, %v1653
  %v1763 = vadd.f32 %v1762, 1.0
  %v1764 = vmul.f32 %v1763, %v1653
  %v1765 = vand.u32 2147483647, %v1653
  %vm1766 = vcmp.lt.f32.partialorder %v1765, 0.0004427343
  %v1767 = vsel %vm1766, %v1764, %v1761
  %v1768 = vadd.f32 %v1655, 1.0
  %v1769 = vlog2.pop %v1768
  %v1770 = vmul.f32 %v1769, 0.6931472
  %v1771 = vmul.f32 -0.5, %v1655
  %v1772 = vadd.f32 %v1771, 1.0
  %v1773 = vmul.f32 %v1772, %v1655
  %v1774 = vand.u32 2147483647, %v1655
  %vm1775 = vcmp.lt.f32.partialorder %v1774, 0.0004427343
  %v1776 = vsel %vm1775, %v1773, %v1770
  %v1777 = vadd.f32 %v1657, 1.0
  %v1778 = vlog2.pop %v1777
  %v1779 = vmul.f32 %v1778, 0.6931472
  %v1780 = vmul.f32 -0.5, %v1657
  %v1781 = vadd.f32 %v1780, 1.0
  %v1782 = vmul.f32 %v1781, %v1657
  %v1783 = vand.u32 2147483647, %v1657
  %vm1784 = vcmp.lt.f32.partialorder %v1783, 0.0004427343
  %v1785 = vsel %vm1784, %v1782, %v1779
  %v1786 = vadd.f32 %v1659, 1.0
  %v1787 = vlog2.pop %v1786
  %v1788 = vmul.f32 %v1787, 0.6931472
  %v1789 = vmul.f32 -0.5, %v1659
  %v1790 = vadd.f32 %v1789, 1.0
  %v1791 = vmul.f32 %v1790, %v1659
  %v1792 = vand.u32 2147483647, %v1659
  %vm1793 = vcmp.lt.f32.partialorder %v1792, 0.0004427343
  %v1794 = vsel %vm1793, %v1791, %v1788
  %v1795 = vadd.f32 %v1661, 1.0
  %v1796 = vlog2.pop %v1795
  %v1797 = vmul.f32 %v1796, 0.6931472
  %v1798 = vmul.f32 -0.5, %v1661
  %v1799 = vadd.f32 %v1798, 1.0
  %v1800 = vmul.f32 %v1799, %v1661
  %v1801 = vand.u32 2147483647, %v1661
  %vm1802 = vcmp.lt.f32.partialorder %v1801, 0.0004427343
  %v1803 = vsel %vm1802, %v1800, %v1797
  %v1804 = vadd.f32 %v1663, 1.0
  %v1805 = vlog2.pop %v1804
  %v1806 = vmul.f32 %v1805, 0.6931472
  %v1807 = vmul.f32 -0.5, %v1663
  %v1808 = vadd.f32 %v1807, 1.0
  %v1809 = vmul.f32 %v1808, %v1663
  %v1810 = vand.u32 2147483647, %v1663
  %vm1811 = vcmp.lt.f32.partialorder %v1810, 0.0004427343
  %v1812 = vsel %vm1811, %v1809, %v1806
  %v1813 = vadd.f32 %v1665, 1.0
  %v1814 = vlog2.pop %v1813
  %v1815 = vmul.f32 %v1814, 0.6931472
  %v1816 = vmul.f32 -0.5, %v1665
  %v1817 = vadd.f32 %v1816, 1.0
  %v1818 = vmul.f32 %v1817, %v1665
  %v1819 = vand.u32 2147483647, %v1665
  %vm1820 = vcmp.lt.f32.partialorder %v1819, 0.0004427343
  %v1821 = vsel %vm1820, %v1818, %v1815
  %v1822 = vadd.f32 %v1667, 1.0
  %v1823 = vlog2.pop %v1822
  %v1824 = vmul.f32 %v1823, 0.6931472
  %v1825 = vmul.f32 -0.5, %v1667
  %v1826 = vadd.f32 %v1825, 1.0
  %v1827 = vmul.f32 %v1826, %v1667
  %v1828 = vand.u32 2147483647, %v1667
  %vm1829 = vcmp.lt.f32.partialorder %v1828, 0.0004427343
  %v1830 = vsel %vm1829, %v1827, %v1824
  %v1831 = vadd.f32 %v1669, 1.0
  %v1832 = vlog2.pop %v1831
  %v1833 = vmul.f32 %v1832, 0.6931472
  %v1834 = vmul.f32 -0.5, %v1669
  %v1835 = vadd.f32 %v1834, 1.0
  %v1836 = vmul.f32 %v1835, %v1669
  %v1837 = vand.u32 2147483647, %v1669
  %vm1838 = vcmp.lt.f32.partialorder %v1837, 0.0004427343
  %v1839 = vsel %vm1838, %v1836, %v1833
  %v1840 = vadd.f32 %v1671, 1.0
  %v1841 = vlog2.pop %v1840
  %v1842 = vmul.f32 %v1841, 0.6931472
  %v1843 = vmul.f32 -0.5, %v1671
  %v1844 = vadd.f32 %v1843, 1.0
  %v1845 = vmul.f32 %v1844, %v1671
  %v1846 = vand.u32 2147483647, %v1671
  %vm1847 = vcmp.lt.f32.partialorder %v1846, 0.0004427343
  %v1848 = vsel %vm1847, %v1845, %v1842
  %v1849 = vadd.f32 %v1673, 1.0
  %v1850 = vlog2.pop %v1849
  %v1851 = vmul.f32 %v1850, 0.6931472
  %v1852 = vmul.f32 -0.5, %v1673
  %v1853 = vadd.f32 %v1852, 1.0
  %v1854 = vmul.f32 %v1853, %v1673
  %v1855 = vand.u32 2147483647, %v1673
  %vm1856 = vcmp.lt.f32.partialorder %v1855, 0.0004427343
  %v1857 = vsel %vm1856, %v1854, %v1851
  %v1858 = vadd.f32 %v1675, 1.0
  %v1859 = vlog2.pop %v1858
  %v1860 = vmul.f32 %v1859, 0.6931472
  %v1861 = vmul.f32 -0.5, %v1675
  %v1862 = vadd.f32 %v1861, 1.0
  %v1863 = vmul.f32 %v1862, %v1675
  %v1864 = vand.u32 2147483647, %v1675
  %vm1865 = vcmp.lt.f32.partialorder %v1864, 0.0004427343
  %v1866 = vsel %vm1865, %v1863, %v1860
  %v1867 = vadd.f32 %v1677, 1.0
  %v1868 = vlog2.pop %v1867
  %v1869 = vmul.f32 %v1868, 0.6931472
  %v1870 = vmul.f32 -0.5, %v1677
  %v1871 = vadd.f32 %v1870, 1.0
  %v1872 = vmul.f32 %v1871, %v1677
  %v1873 = vand.u32 2147483647, %v1677
  %vm1874 = vcmp.lt.f32.partialorder %v1873, 0.0004427343
  %v1875 = vsel %vm1874, %v1872, %v1869
  %v1876 = vadd.f32 %v1679, 1.0
  %v1877 = vlog2.pop %v1876
  %v1878 = vmul.f32 %v1877, 0.6931472
  %v1879 = vmul.f32 -0.5, %v1679
  %v1880 = vadd.f32 %v1879, 1.0
  %v1881 = vmul.f32 %v1880, %v1679
  %v1882 = vand.u32 2147483647, %v1679
  %vm1883 = vcmp.lt.f32.partialorder %v1882, 0.0004427343
  %v1884 = vsel %vm1883, %v1881, %v1878
  %v1885 = vadd.f32 %v1681, 1.0
  %v1886 = vlog2.pop %v1885
  %v1887 = vmul.f32 %v1886, 0.6931472
  %v1888 = vmul.f32 -0.5, %v1681
  %v1889 = vadd.f32 %v1888, 1.0
  %v1890 = vmul.f32 %v1889, %v1681
  %v1891 = vand.u32 2147483647, %v1681
  %vm1892 = vcmp.lt.f32.partialorder %v1891, 0.0004427343
  %v1893 = vsel %vm1892, %v1890, %v1887
  %v1894 = vadd.f32 %v1683, 1.0
  %v1895 = vlog2.pop %v1894
  %v1896 = vmul.f32 %v1895, 0.6931472
  %v1897 = vmul.f32 -0.5, %v1683
  %v1898 = vadd.f32 %v1897, 1.0
  %v1899 = vmul.f32 %v1898, %v1683
  %v1900 = vand.u32 2147483647, %v1683
  %vm1901 = vcmp.lt.f32.partialorder %v1900, 0.0004427343
  %v1902 = vsel %vm1901, %v1899, %v1896
  %v1903 = vadd.f32 %v1685, 1.0
  %v1904 = vlog2.pop %v1903
  %v1905 = vmul.f32 %v1904, 0.6931472
  %v1906 = vmul.f32 -0.5, %v1685
  %v1907 = vadd.f32 %v1906, 1.0
  %v1908 = vmul.f32 %v1907, %v1685
  %v1909 = vand.u32 2147483647, %v1685
  %vm1910 = vcmp.lt.f32.partialorder %v1909, 0.0004427343
  %v1911 = vsel %vm1910, %v1908, %v1905
  %v1912 = vadd.f32 %v1687, 1.0
  %v1913 = vlog2.pop %v1912
  %v1914 = vmul.f32 %v1913, 0.6931472
  %v1915 = vmul.f32 -0.5, %v1687
  %v1916 = vadd.f32 %v1915, 1.0
  %v1917 = vmul.f32 %v1916, %v1687
  %v1918 = vand.u32 2147483647, %v1687
  %vm1919 = vcmp.lt.f32.partialorder %v1918, 0.0004427343
  %v1920 = vsel %vm1919, %v1917, %v1914
  %v1921 = vadd.f32 %v1689, 1.0
  %v1922 = vlog2.pop %v1921
  %v1923 = vmul.f32 %v1922, 0.6931472
  %v1924 = vmul.f32 -0.5, %v1689
  %v1925 = vadd.f32 %v1924, 1.0
  %v1926 = vmul.f32 %v1925, %v1689
  %v1927 = vand.u32 2147483647, %v1689
  %vm1928 = vcmp.lt.f32.partialorder %v1927, 0.0004427343
  %v1929 = vsel %vm1928, %v1926, %v1923
  %v1930 = vadd.f32 %v1691, 1.0
  %v1931 = vlog2.pop %v1930
  %v1932 = vmul.f32 %v1931, 0.6931472
  %v1933 = vmul.f32 -0.5, %v1691
  %v1934 = vadd.f32 %v1933, 1.0
  %v1935 = vmul.f32 %v1934, %v1691
  %v1936 = vand.u32 2147483647, %v1691
  %vm1937 = vcmp.lt.f32.partialorder %v1936, 0.0004427343
  %v1938 = vsel %vm1937, %v1935, %v1932
  %v1939 = vadd.f32 %v1693, 1.0
  %v1940 = vlog2.pop %v1939
  %v1941 = vmul.f32 %v1940, 0.6931472
  %v1942 = vmul.f32 -0.5, %v1693
  %v1943 = vadd.f32 %v1942, 1.0
  %v1944 = vmul.f32 %v1943, %v1693
  %v1945 = vand.u32 2147483647, %v1693
  %vm1946 = vcmp.lt.f32.partialorder %v1945, 0.0004427343
  %v1947 = vsel %vm1946, %v1944, %v1941
  %v1948 = vadd.f32 %v1695, 1.0
  %v1949 = vlog2.pop %v1948
  %v1950 = vmul.f32 %v1949, 0.6931472
  %v1951 = vmul.f32 -0.5, %v1695
  %v1952 = vadd.f32 %v1951, 1.0
  %v1953 = vmul.f32 %v1952, %v1695
  %v1954 = vand.u32 2147483647, %v1695
  %vm1955 = vcmp.lt.f32.partialorder %v1954, 0.0004427343
  %v1956 = vsel %vm1955, %v1953, %v1950
  %v1957 = vadd.f32 %v1697, 1.0
  %v1958 = vlog2.pop %v1957
  %v1959 = vmul.f32 %v1958, 0.6931472
  %v1960 = vmul.f32 -0.5, %v1697
  %v1961 = vadd.f32 %v1960, 1.0
  %v1962 = vmul.f32 %v1961, %v1697
  %v1963 = vand.u32 2147483647, %v1697
  %vm1964 = vcmp.lt.f32.partialorder %v1963, 0.0004427343
  %v1965 = vsel %vm1964, %v1962, %v1959
  %v1966 = vadd.f32 %v1699, 1.0
  %v1967 = vlog2.pop %v1966
  %v1968 = vmul.f32 %v1967, 0.6931472
  %v1969 = vmul.f32 -0.5, %v1699
  %v1970 = vadd.f32 %v1969, 1.0
  %v1971 = vmul.f32 %v1970, %v1699
  %v1972 = vand.u32 2147483647, %v1699
  %vm1973 = vcmp.lt.f32.partialorder %v1972, 0.0004427343
  %v1974 = vsel %vm1973, %v1971, %v1968
  %v1975 = vadd.f32 %v1701, 1.0
  %v1976 = vlog2.pop %v1975
  %v1977 = vmul.f32 %v1976, 0.6931472
  %v1978 = vmul.f32 -0.5, %v1701
  %v1979 = vadd.f32 %v1978, 1.0
  %v1980 = vmul.f32 %v1979, %v1701
  %v1981 = vand.u32 2147483647, %v1701
  %vm1982 = vcmp.lt.f32.partialorder %v1981, 0.0004427343
  %v1983 = vsel %vm1982, %v1980, %v1977
  %v1984 = vadd.f32 %v1703, 1.0
  %v1985 = vlog2.pop %v1984
  %v1986 = vmul.f32 %v1985, 0.6931472
  %v1987 = vmul.f32 -0.5, %v1703
  %v1988 = vadd.f32 %v1987, 1.0
  %v1989 = vmul.f32 %v1988, %v1703
  %v1990 = vand.u32 2147483647, %v1703
  %vm1991 = vcmp.lt.f32.partialorder %v1990, 0.0004427343
  %v1992 = vsel %vm1991, %v1989, %v1986
  %v1993 = vadd.f32 %v1705, 1.0
  %v1994 = vlog2.pop %v1993
  %v1995 = vmul.f32 %v1994, 0.6931472
  %v1996 = vmul.f32 -0.5, %v1705
  %v1997 = vadd.f32 %v1996, 1.0
  %v1998 = vmul.f32 %v1997, %v1705
  %v1999 = vand.u32 2147483647, %v1705
  %vm2000 = vcmp.lt.f32.partialorder %v1999, 0.0004427343
  %v2001 = vsel %vm2000, %v1998, %v1995
  %v2002 = vadd.f32 %v1707, 1.0
  %v2003 = vlog2.pop %v2002
  %v2004 = vmul.f32 %v2003, 0.6931472
  %v2005 = vmul.f32 -0.5, %v1707
  %v2006 = vadd.f32 %v2005, 1.0
  %v2007 = vmul.f32 %v2006, %v1707
  %v2008 = vand.u32 2147483647, %v1707
  %vm2009 = vcmp.lt.f32.partialorder %v2008, 0.0004427343
  %v2010 = vsel %vm2009, %v2007, %v2004
  %v2011 = vadd.f32 %v1709, 1.0
  %v2012 = vlog2.pop %v2011
  %v2013 = vmul.f32 %v2012, 0.6931472
  %v2014 = vmul.f32 -0.5, %v1709
  %v2015 = vadd.f32 %v2014, 1.0
  %v2016 = vmul.f32 %v2015, %v1709
  %v2017 = vand.u32 2147483647, %v1709
  %vm2018 = vcmp.lt.f32.partialorder %v2017, 0.0004427343
  %v2019 = vsel %vm2018, %v2016, %v2013
  %v2020 = vadd.f32 %v1711, 1.0
  %v2021 = vlog2.pop %v2020
  %v2022 = vmul.f32 %v2021, 0.6931472
  %v2023 = vmul.f32 -0.5, %v1711
  %v2024 = vadd.f32 %v2023, 1.0
  %v2025 = vmul.f32 %v2024, %v1711
  %v2026 = vand.u32 2147483647, %v1711
  %vm2027 = vcmp.lt.f32.partialorder %v2026, 0.0004427343
  %v2028 = vsel %vm2027, %v2025, %v2022
  %v2029 = vadd.f32 %v1713, 1.0
  %v2030 = vlog2.pop %v2029
  %v2031 = vmul.f32 %v2030, 0.6931472
  %v2032 = vmul.f32 -0.5, %v1713
  %v2033 = vadd.f32 %v2032, 1.0
  %v2034 = vmul.f32 %v2033, %v1713
  %v2035 = vand.u32 2147483647, %v1713
  %vm2036 = vcmp.lt.f32.partialorder %v2035, 0.0004427343
  %v2037 = vsel %vm2036, %v2034, %v2031
  %v2038 = vsel %vm1570, %v1354, %v1722
  %v2039 = vsel %vm1571, %v1355, %v1731
  %v2040 = vsel %vm1572, %v1356, %v1740
  %v2041 = vsel %vm1573, %v1357, %v1749
  %v2042 = vsel %vm1574, %v1358, %v1758
  %v2043 = vsel %vm1575, %v1359, %v1767
  %v2044 = vsel %vm1576, %v1360, %v1776
  %v2045 = vsel %vm1577, %v1361, %v1785
  %v2046 = vsel %vm1578, %v1362, %v1794
  %v2047 = vsel %vm1579, %v1363, %v1803
  %v2048 = vsel %vm1580, %v1364, %v1812
  %v2049 = vsel %vm1581, %v1365, %v1821
  %v2050 = vsel %vm1582, %v1366, %v1830
  %v2051 = vsel %vm1583, %v1367, %v1839
  %v2052 = vsel %vm1584, %v1368, %v1848
  %v2053 = vsel %vm1585, %v1369, %v1857
  %v2054 = vsel %vm1586, %v1370, %v1866
  %v2055 = vsel %vm1587, %v1371, %v1875
  %v2056 = vsel %vm1588, %v1372, %v1884
  %v2057 = vsel %vm1589, %v1373, %v1893
  %v2058 = vsel %vm1590, %v1374, %v1902
  %v2059 = vsel %vm1591, %v1375, %v1911
  %v2060 = vsel %vm1592, %v1376, %v1920
  %v2061 = vsel %vm1593, %v1377, %v1929
  %v2062 = vsel %vm1594, %v1378, %v1938
  %v2063 = vsel %vm1595, %v1379, %v1947
  %v2064 = vsel %vm1596, %v1380, %v1956
  %v2065 = vsel %vm1597, %v1381, %v1965
  %v2066 = vsel %vm1598, %v1382, %v1974
  %v2067 = vsel %vm1599, %v1383, %v1983
  %v2068 = vsel %vm1600, %v1384, %v1992
  %v2069 = vsel %vm1601, %v1385, %v2001
  %v2070 = vsel %vm1602, %v1386, %v2010
  %v2071 = vsel %vm1603, %v1387, %v2019
  %v2072 = vsel %vm1604, %v1388, %v2028
  %v2073 = vsel %vm1605, %v1389, %v2037
  %2110 = vrot.lane.b32.xlu0 %v2038, 64
  %v2111 = vpop.permute.xlu0 %2110
  %2112 = vrot.lane.b32.xlu0 %v2039, 64
  %v2113 = vpop.permute.xlu0 %2112
  %2114 = vrot.lane.b32.xlu0 %v2040, 64
  %v2115 = vpop.permute.xlu0 %2114
  %2116 = vrot.lane.b32.xlu0 %v2041, 64
  %v2117 = vpop.permute.xlu0 %2116
  %2118 = vrot.lane.b32.xlu0 %v2042, 64
  %v2119 = vpop.permute.xlu0 %2118
  %2120 = vrot.lane.b32.xlu0 %v2043, 64
  %v2121 = vpop.permute.xlu0 %2120
  %2122 = vrot.lane.b32.xlu0 %v2044, 64
  %v2123 = vpop.permute.xlu0 %2122
  %2124 = vrot.lane.b32.xlu0 %v2045, 64
  %v2125 = vpop.permute.xlu0 %2124
  %2126 = vrot.lane.b32.xlu0 %v2046, 64
  %v2127 = vpop.permute.xlu0 %2126
  %2128 = vrot.lane.b32.xlu0 %v2047, 64
  %v2129 = vpop.permute.xlu0 %2128
  %2130 = vrot.lane.b32.xlu0 %v2048, 64
  %v2131 = vpop.permute.xlu0 %2130
  %2132 = vrot.lane.b32.xlu0 %v2049, 64
  %v2133 = vpop.permute.xlu0 %2132
  %2134 = vrot.lane.b32.xlu0 %v2050, 64
  %v2135 = vpop.permute.xlu0 %2134
  %2136 = vrot.lane.b32.xlu0 %v2051, 64
  %v2137 = vpop.permute.xlu0 %2136
  %2138 = vrot.lane.b32.xlu0 %v2052, 64
  %v2139 = vpop.permute.xlu0 %2138
  %2140 = vrot.lane.b32.xlu0 %v2053, 64
  %v2141 = vpop.permute.xlu0 %2140
  %2142 = vrot.lane.b32.xlu0 %v2054, 64
  %v2143 = vpop.permute.xlu0 %2142
  %2144 = vrot.lane.b32.xlu0 %v2055, 64
  %v2145 = vpop.permute.xlu0 %2144
  %2146 = vrot.lane.b32.xlu0 %v2056, 64
  %v2147 = vpop.permute.xlu0 %2146
  %2148 = vrot.lane.b32.xlu0 %v2057, 64
  %v2149 = vpop.permute.xlu0 %2148
  %2150 = vrot.lane.b32.xlu0 %v2058, 64
  %v2151 = vpop.permute.xlu0 %2150
  %2152 = vrot.lane.b32.xlu0 %v2059, 64
  %v2153 = vpop.permute.xlu0 %2152
  %2154 = vrot.lane.b32.xlu0 %v2060, 64
  %v2155 = vpop.permute.xlu0 %2154
  %2156 = vrot.lane.b32.xlu0 %v2061, 64
  %v2157 = vpop.permute.xlu0 %2156
  %2158 = vrot.lane.b32.xlu0 %v2062, 64
  %v2159 = vpop.permute.xlu0 %2158
  %2160 = vrot.lane.b32.xlu0 %v2063, 64
  %v2161 = vpop.permute.xlu0 %2160
  %2162 = vrot.lane.b32.xlu0 %v2064, 64
  %v2163 = vpop.permute.xlu0 %2162
  %2164 = vrot.lane.b32.xlu0 %v2065, 64
  %v2165 = vpop.permute.xlu0 %2164
  %2166 = vrot.lane.b32.xlu0 %v2066, 64
  %v2167 = vpop.permute.xlu0 %2166
  %2168 = vrot.lane.b32.xlu0 %v2067, 64
  %v2169 = vpop.permute.xlu0 %2168
  %2170 = vrot.lane.b32.xlu0 %v2068, 64
  %v2171 = vpop.permute.xlu0 %2170
  %2172 = vrot.lane.b32.xlu0 %v2069, 64
  %v2173 = vpop.permute.xlu0 %2172
  %2174 = vrot.lane.b32.xlu0 %v2070, 64
  %v2175 = vpop.permute.xlu0 %2174
  %2176 = vrot.lane.b32.xlu0 %v2071, 64
  %v2177 = vpop.permute.xlu0 %2176
  %2178 = vrot.lane.b32.xlu0 %v2072, 64
  %v2179 = vpop.permute.xlu0 %2178
  %2180 = vrot.lane.b32.xlu0 %v2073, 64
  %v2181 = vpop.permute.xlu0 %2180
  %v2218 = vmul.f32 %v1534, %v2111
  %v2219 = vmul.f32 %v1535, %v2113
  %v2220 = vmul.f32 %v1536, %v2115
  %v2221 = vmul.f32 %v1537, %v2117
  %v2222 = vmul.f32 %v1538, %v2119
  %v2223 = vmul.f32 %v1539, %v2121
  %v2224 = vmul.f32 %v1540, %v2123
  %v2225 = vmul.f32 %v1541, %v2125
  %v2226 = vmul.f32 %v1542, %v2127
  %v2227 = vmul.f32 %v1543, %v2129
  %v2228 = vmul.f32 %v1544, %v2131
  %v2229 = vmul.f32 %v1545, %v2133
  %v2230 = vmul.f32 %v1546, %v2135
  %v2231 = vmul.f32 %v1547, %v2137
  %v2232 = vmul.f32 %v1548, %v2139
  %v2233 = vmul.f32 %v1549, %v2141
  %v2234 = vmul.f32 %v1550, %v2143
  %v2235 = vmul.f32 %v1551, %v2145
  %v2236 = vmul.f32 %v1552, %v2147
  %v2237 = vmul.f32 %v1553, %v2149
  %v2238 = vmul.f32 %v1554, %v2151
  %v2239 = vmul.f32 %v1555, %v2153
  %v2240 = vmul.f32 %v1556, %v2155
  %v2241 = vmul.f32 %v1557, %v2157
  %v2242 = vmul.f32 %v1558, %v2159
  %v2243 = vmul.f32 %v1559, %v2161
  %v2244 = vmul.f32 %v1560, %v2163
  %v2245 = vmul.f32 %v1561, %v2165
  %v2246 = vmul.f32 %v1562, %v2167
  %v2247 = vmul.f32 %v1563, %v2169
  %v2248 = vmul.f32 %v1564, %v2171
  %v2249 = vmul.f32 %v1565, %v2173
  %v2250 = vmul.f32 %v1566, %v2175
  %v2251 = vmul.f32 %v1567, %v2177
  %v2252 = vmul.f32 %v1568, %v2179
  %v2253 = vmul.f32 %v1569, %v2181
  %v2254 = vadd.f32 %v2218, %v2221
  %v2255 = vadd.f32 %v2219, %v2222
  %v2256 = vadd.f32 %v2220, %v2223
  %v2257 = vadd.f32 %v2254, %v2224
  %v2258 = vadd.f32 %v2255, %v2225
  %v2259 = vadd.f32 %v2256, %v2226
  %v2260 = vadd.f32 %v2257, %v2227
  %v2261 = vadd.f32 %v2258, %v2228
  %v2262 = vadd.f32 %v2259, %v2229
  %v2263 = vadd.f32 %v2260, %v2230
  %v2264 = vadd.f32 %v2261, %v2231
  %v2265 = vadd.f32 %v2262, %v2232
  %v2266 = vadd.f32 %v2263, %v2233
  %v2267 = vadd.f32 %v2264, %v2234
  %v2268 = vadd.f32 %v2265, %v2235
  %v2269 = vadd.f32 %v2266, %v2236
  %v2270 = vadd.f32 %v2267, %v2237
  %v2271 = vadd.f32 %v2268, %v2238
  %v2272 = vadd.f32 %v2269, %v2239
  %v2273 = vadd.f32 %v2270, %v2240
  %v2274 = vadd.f32 %v2271, %v2241
  %v2275 = vadd.f32 %v2272, %v2242
  %v2276 = vadd.f32 %v2273, %v2243
  %v2277 = vadd.f32 %v2274, %v2244
  %v2278 = vadd.f32 %v2275, %v2245
  %v2279 = vadd.f32 %v2276, %v2246
  %v2280 = vadd.f32 %v2277, %v2247
  %v2281 = vadd.f32 %v2278, %v2248
  %v2282 = vadd.f32 %v2279, %v2249
  %v2283 = vadd.f32 %v2280, %v2250
  %v2284 = vadd.f32 %v2281, %v2251
  %v2285 = vadd.f32 %v2282, %v2252
  %v2286 = vadd.f32 %v2283, %v2253
  %v2287 = vld [vmem:[%s8] sm:$0x1]
  %v2288 = vld [vmem:[%s9] sm:$0x1]
  %v2289 = vsel %vm384, %v2284, 0.0
  %v2290 = vsel %vm384, %v2285, 0.0
  %v2291 = vadd.f32 %v2289, %v2290
  %v2292 = vsel %vm384, %v2286, 0.0
  %v2293 = vadd.f32 %v2291, %v2292
  %v2294 = vrot.slane %v2293, 4
  %v2295 = vadd.f32 %v2293, %v2294
  %v2296 = vrot.slane %v2295, 2
  %v2297 = vadd.f32 %v2295, %v2296
  %v2298 = vrot.slane %v2297, 1
  %v2299 = vadd.f32 %v2297, %v2298
  %v2300 = vmul.f32 %v2299, 0.041666668
  %v2301 = vsub.f32 %v2284, %v2300
  %v2302 = vsub.f32 %v2285, %v2300
  %v2303 = vsub.f32 %v2286, %v2300
  %v2304 = vmul.f32 %v2301, %v2301
  %v2305 = vmul.f32 %v2302, %v2302
  %v2306 = vmul.f32 %v2303, %v2303
  %v2307 = vsel %vm384, %v2304, 0.0
  %v2308 = vsel %vm384, %v2305, 0.0
  %v2309 = vadd.f32 %v2307, %v2308
  %v2310 = vsel %vm384, %v2306, 0.0
  %v2311 = vadd.f32 %v2309, %v2310
  %v2312 = vrot.slane %v2311, 4
  %v2313 = vadd.f32 %v2311, %v2312
  %v2314 = vrot.slane %v2313, 2
  %v2315 = vadd.f32 %v2313, %v2314
  %v2316 = vrot.slane %v2315, 1
  %v2317 = vadd.f32 %v2315, %v2316
  %v2318 = vmul.f32 %v2317, 0.041666668
  %v2319 = vadd.f32 %v2318, 1e-05
  %v2320 = vrsqrt.pop %v2319
  %v2321 = vmul.f32 %v2301, %v2320
  %v2322 = vmul.f32 %v2302, %v2320
  %v2323 = vmul.f32 %v2303, %v2320
  %v2325 = vlaneseq
  %v2326 = vshrl.u32 %v2325, 7
  %v2327 = vsub.s32 0, %v2326
  %v2328 = vrot.slane %v2287, %v2327
  %v2330 = vmul.f32 %v2321, %v2328
  %v2331 = vmul.f32 %v2322, %v2328
  %v2332 = vmul.f32 %v2323, %v2328
  %v2334 = vlaneseq
  %v2335 = vshrl.u32 %v2334, 7
  %v2336 = vsub.s32 0, %v2335
  %v2337 = vrot.slane %v2288, %v2336
  %v2339 = vadd.f32 %v2330, %v2337
  %v2340 = vadd.f32 %v2331, %v2337
  %v2341 = vadd.f32 %v2332, %v2337
  %v2342 = vadd.f32 %v59, %v2339
  %v2343 = vadd.f32 %v60, %v2340
  %v2344 = vadd.f32 %v61, %v2341
  %vm2345 = vcmp.gt.f32.partialorder %v2342, 20.0
  %vm2346 = vcmp.gt.f32.partialorder %v2343, 20.0
  %vm2347 = vcmp.gt.f32.partialorder %v2344, 20.0
  %v2348 = vmin.f32 %v2342, 20.0
  %v2349 = vmin.f32 %v2343, 20.0
  %v2350 = vmin.f32 %v2344, 20.0
  %v2351 = vmul.f32 %v2348, 1.442695
  %v2352 = vpow.pop %v2351
  %v2353 = vmul.f32 %v2349, 1.442695
  %v2354 = vpow.pop %v2353
  %v2355 = vmul.f32 %v2350, 1.442695
  %v2356 = vpow.pop %v2355
  %v2357 = vadd.f32 %v2352, 1.0
  %v2358 = vlog2.pop %v2357
  %v2359 = vmul.f32 %v2358, 0.6931472
  %v2360 = vmul.f32 -0.5, %v2352
  %v2361 = vadd.f32 %v2360, 1.0
  %v2362 = vmul.f32 %v2361, %v2352
  %v2363 = vand.u32 2147483647, %v2352
  %vm2364 = vcmp.lt.f32.partialorder %v2363, 0.0004427343
  %v2365 = vsel %vm2364, %v2362, %v2359
  %v2366 = vadd.f32 %v2354, 1.0
  %v2367 = vlog2.pop %v2366
  %v2368 = vmul.f32 %v2367, 0.6931472
  %v2369 = vmul.f32 -0.5, %v2354
  %v2370 = vadd.f32 %v2369, 1.0
  %v2371 = vmul.f32 %v2370, %v2354
  %v2372 = vand.u32 2147483647, %v2354
  %vm2373 = vcmp.lt.f32.partialorder %v2372, 0.0004427343
  %v2374 = vsel %vm2373, %v2371, %v2368
  %v2375 = vadd.f32 %v2356, 1.0
  %v2376 = vlog2.pop %v2375
  %v2377 = vmul.f32 %v2376, 0.6931472
  %v2378 = vmul.f32 -0.5, %v2356
  %v2379 = vadd.f32 %v2378, 1.0
  %v2380 = vmul.f32 %v2379, %v2356
  %v2381 = vand.u32 2147483647, %v2356
  %vm2382 = vcmp.lt.f32.partialorder %v2381, 0.0004427343
  %v2383 = vsel %vm2382, %v2380, %v2377
  %v2384 = vsel %vm2345, %v2342, %v2365
  %v2385 = vsel %vm2346, %v2343, %v2374
  %v2386 = vsel %vm2347, %v2344, %v2383
  %v2387 = vpack.c.bf16 %v2385, %v2384
  %v2388 = vpack.c.bf16 %v2386, %v2386
  %s2389 = scalar_lea.vmem %s3, 64
  %v2390 = vld [vmem:[%s2389] sm:$0xff]
  %v2391 = vld [vmem:[%s2389 + $0x8] sm:$0xff]
  %v2392 = vld [vmem:[%s2389 + $0x10] sm:$0xff]
  %v2393 = vld [vmem:[%s2389 + $0x18] sm:$0xff]
  %v2394 = vld [vmem:[%s2389 + $0x20] sm:$0xff]
  %v2395 = vld [vmem:[%s2389 + $0x28] sm:$0xff]
  %v2396 = vld [vmem:[%s2389 + $0x30] sm:$0xff]
  %v2397 = vld [vmem:[%s2389 + $0x38] sm:$0xff]
  %v2406 = vunpack.c.l.b16 %v2390
  %v2407 = vunpack.c.h.b16 %v2390
  %v2408 = vunpack.c.l.b16 %v2391
  %v2409 = vunpack.c.h.b16 %v2391
  %v2410 = vunpack.c.l.b16 %v2392
  %v2411 = vunpack.c.h.b16 %v2392
  %v2412 = vunpack.c.l.b16 %v2393
  %v2413 = vunpack.c.h.b16 %v2393
  %v2414 = vunpack.c.l.b16 %v2394
  %v2415 = vunpack.c.h.b16 %v2394
  %v2416 = vunpack.c.l.b16 %v2395
  %v2417 = vunpack.c.h.b16 %v2395
  %v2418 = vunpack.c.l.b16 %v2396
  %v2419 = vunpack.c.h.b16 %v2396
  %v2420 = vunpack.c.l.b16 %v2397
  %v2421 = vunpack.c.h.b16 %v2397
  %v2422 = vpack.c.b16 %v2408, %v2406
  %v2423 = vpack.c.b16 %v2409, %v2407
  %v2424 = vpack.c.b16 %v2412, %v2410
  %v2425 = vpack.c.b16 %v2413, %v2411
  %v2426 = vpack.c.b16 %v2416, %v2414
  %v2427 = vpack.c.b16 %v2417, %v2415
  %v2428 = vpack.c.b16 %v2420, %v2418
  %v2429 = vpack.c.b16 %v2421, %v2419
  %v2439 = vsel %vm384, %v2387, 0
  %v2442 = vsel %vm384, %v2388, 0
  %2444 = vmatprep.subr.bf16.mxu0 %v2423
  %2445 = vmatpush1.bf16.msra.mxu0 %v2422
  %2446 = vmatprep.subr.bf16.mxu0 %v2425
  %2447 = vmatpush1.bf16.msra.mxu0 %v2424
  %2448 = vmatprep.subr.bf16.mxu0 %v2427
  %2449 = vmatpush1.bf16.msra.mxu0 %v2426
  %2450 = vmatprep.subr.bf16.mxu0 %v2429
  %2451 = vmatpush1.bf16.msra.mxu0 %v2428
  %2452 = vmatprep.subr.bf16.mxu0 0
  %2453 = vmatpush1.bf16.msra.mxu0 0
  %2454 = vmatprep.subr.bf16.mxu0 0
  %2455 = vmatpush1.bf16.msra.mxu0 0
  %2456 = vmatprep.subr.bf16.mxu0 0
  %2457 = vmatpush1.bf16.msra.mxu0 0
  %2458 = vmatprep.subr.bf16.mxu0 0
  %2459 = vmatpush1.bf16.msra.mxu0 0
  %2460 = vmatprep.subr.bf16.mxu0 0
  %2461 = vmatpush1.bf16.msra.mxu0 0
  %2462 = vmatprep.subr.bf16.mxu0 0
  %2463 = vmatpush1.bf16.msra.mxu0 0
  %2464 = vmatprep.subr.bf16.mxu0 0
  %2465 = vmatpush1.bf16.msra.mxu0 0
  %2466 = vmatprep.subr.bf16.mxu0 0
  %2467 = vmatpush1.bf16.msra.mxu0 0
  %2468 = vmatprep.subr.bf16.mxu0 0
  %2469 = vmatpush1.bf16.msra.mxu0 0
  %2470 = vmatprep.subr.bf16.mxu0 0
  %2471 = vmatpush1.bf16.msra.mxu0 0
  %2472 = vmatprep.subr.bf16.mxu0 0
  %2473 = vmatpush1.bf16.msra.mxu0 0
  %2474 = vmatprep.subr.bf16.mxu0 0
  %2475 = vmatpush1.bf16.msra.mxu0 0
  %2476 = vmatprep.mubr.bf16.mxu0 0
  %2477 = vmatmul.mubr.bf16.gmra.mrb[0].mxu0 %v2439
  %v2478 = vpop.f32.mrb[0].mxu0
  %v2479 = vadd.f32 0.0, %v2478
  %v2480 = vpop.f32.mrb[0].mxu0
  %v2481 = vadd.f32 0.0, %v2480
  %v2482 = vpop.f32.mrb[0].mxu0
  %v2483 = vadd.f32 0.0, %v2482
  %v2484 = vpop.f32.mrb[0].mxu0
  %v2485 = vadd.f32 0.0, %v2484
  %2486 = vmatprep.mubr.bf16.mxu0 0
  %2487 = vmatmul.mubr.bf16.gmra.mrb[0].mxu0 %v2442
  %v2488 = vpop.f32.mrb[0].mxu0
  %v2489 = vadd.f32 0.0, %v2488
  %v2490 = vpop.f32.mrb[0].mxu0
  %v2491 = vadd.f32 0.0, %v2490
  %v2492 = vpop.f32.mrb[0].mxu0
  %v2493 = vpop.f32.mrb[0].mxu0
  %2494 = vdwg.mxu0
  %s2495 = scalar_lea.vmem %s4, 24
  %v2496 = vld [vmem:[%s2495] sm:$0xf]
  %v2497 = vld [vmem:[%s2495 + $0x4] sm:$0xf]
  %v2498 = vld [vmem:[%s2495 + $0x8] sm:$0xf]
  %v2499 = vld [vmem:[%s2495 + $0xc] sm:$0xf]
  %v2500 = vld [vmem:[%s2495 + $0x10] sm:$0xf]
  %v2501 = vld [vmem:[%s2495 + $0x14] sm:$0x1]
  %v2508 = vunpack.c.l.b16 %v2496
  %v2509 = vunpack.c.l.b16 %v2497
  %v2510 = vunpack.c.l.b16 %v2498
  %v2511 = vunpack.c.l.b16 %v2499
  %v2512 = vunpack.c.l.b16 %v2500
  %v2513 = vunpack.c.l.b16 %v2501
  %v2514 = vpack.c.b16 %v2509, %v2508
  %v2515 = vpack.c.b16 %v2511, %v2510
  %v2516 = vpack.c.b16 %v2513, %v2512
  %v2520 = vand.u32 %v2516, %v613
  %2522 = vmatprep.subr.bf16.mxu0 0
  %2523 = vmatpush1.bf16.msra.mxu0 %v2514
  %2524 = vmatprep.subr.bf16.mxu0 0
  %2525 = vmatpush1.bf16.msra.mxu0 %v2515
  %2526 = vmatprep.subr.bf16.mxu0 0
  %2527 = vmatpush1.bf16.msra.mxu0 %v2520
  %2528 = vmatprep.subr.bf16.mxu0 0
  %2529 = vmatpush1.bf16.msra.mxu0 0
  %2530 = vmatprep.subr.bf16.mxu0 0
  %2531 = vmatpush1.bf16.msra.mxu0 0
  %2532 = vmatprep.subr.bf16.mxu0 0
  %2533 = vmatpush1.bf16.msra.mxu0 0
  %2534 = vmatprep.subr.bf16.mxu0 0
  %2535 = vmatpush1.bf16.msra.mxu0 0
  %2536 = vmatprep.subr.bf16.mxu0 0
  %2537 = vmatpush1.bf16.msra.mxu0 0
  %2538 = vmatprep.subr.bf16.mxu0 0
  %2539 = vmatpush1.bf16.msra.mxu0 0
  %2540 = vmatprep.subr.bf16.mxu0 0
  %2541 = vmatpush1.bf16.msra.mxu0 0
  %2542 = vmatprep.subr.bf16.mxu0 0
  %2543 = vmatpush1.bf16.msra.mxu0 0
  %2544 = vmatprep.subr.bf16.mxu0 0
  %2545 = vmatpush1.bf16.msra.mxu0 0
  %2546 = vmatprep.subr.bf16.mxu0 0
  %2547 = vmatpush1.bf16.msra.mxu0 0
  %2548 = vmatprep.subr.bf16.mxu0 0
  %2549 = vmatpush1.bf16.msra.mxu0 0
  %2550 = vmatprep.subr.bf16.mxu0 0
  %2551 = vmatpush1.bf16.msra.mxu0 0
  %2552 = vmatprep.subr.bf16.mxu0 0
  %2553 = vmatpush1.bf16.msra.mxu0 0
  %2554 = vmatprep.mubr.bf16.mxu0 0
  %2555 = vmatmul.mubr.bf16.gmra.mrb[0].mxu0 %v557
  %v2556 = vpop.f32.mrb[0].mxu0
  %v2557 = vadd.f32 0.0, %v2556
  %v2558 = vpop.f32.mrb[0].mxu0
  %v2559 = vpop.f32.mrb[0].mxu0
  %v2560 = vadd.f32 0.0, %v2559
  %v2561 = vpop.f32.mrb[0].mxu0
  %2562 = vmatprep.mubr.bf16.mxu0 0
  %2563 = vmatmul.mubr.bf16.gmra.mrb[0].mxu0 %v560
  %v2564 = vpop.f32.mrb[0].mxu0
  %v2565 = vadd.f32 0.0, %v2564
  %v2566 = vpop.f32.mrb[0].mxu0
  %v2567 = vpop.f32.mrb[0].mxu0
  %v2568 = vadd.f32 0.0, %v2567
  %v2569 = vpop.f32.mrb[0].mxu0
  %2570 = vmatprep.mubr.bf16.mxu0 0
  %2571 = vmatmul.mubr.bf16.gmra.mrb[0].mxu0 %v563
  %v2572 = vpop.f32.mrb[0].mxu0
  %v2573 = vadd.f32 0.0, %v2572
  %v2574 = vpop.f32.mrb[0].mxu0
  %v2575 = vpop.f32.mrb[0].mxu0
  %v2576 = vadd.f32 0.0, %v2575
  %v2577 = vpop.f32.mrb[0].mxu0
  %2578 = vmatprep.mubr.bf16.mxu0 0
  %2579 = vmatmul.mubr.bf16.gmra.mrb[0].mxu0 %v566
  %v2580 = vpop.f32.mrb[0].mxu0
  %v2581 = vadd.f32 0.0, %v2580
  %v2582 = vpop.f32.mrb[0].mxu0
  %v2583 = vpop.f32.mrb[0].mxu0
  %v2584 = vadd.f32 0.0, %v2583
  %v2585 = vpop.f32.mrb[0].mxu0
  %2586 = vmatprep.mubr.bf16.mxu0 0
  %2587 = vmatmul.mubr.bf16.gmra.mrb[0].mxu0 %v569
  %v2588 = vpop.f32.mrb[0].mxu0
  %v2589 = vadd.f32 0.0, %v2588
  %v2590 = vpop.f32.mrb[0].mxu0
  %v2591 = vpop.f32.mrb[0].mxu0
  %v2592 = vadd.f32 0.0, %v2591
  %v2593 = vpop.f32.mrb[0].mxu0
  %2594 = vmatprep.mubr.bf16.mxu0 0
  %2595 = vmatmul.mubr.bf16.gmra.mrb[0].mxu0 %v572
  %v2596 = vpop.f32.mrb[0].mxu0
  %v2597 = vadd.f32 0.0, %v2596
  %v2598 = vpop.f32.mrb[0].mxu0
  %v2599 = vpop.f32.mrb[0].mxu0
  %v2600 = vadd.f32 0.0, %v2599
  %v2601 = vpop.f32.mrb[0].mxu0
  %2602 = vmatprep.mubr.bf16.mxu0 0
  %2603 = vmatmul.mubr.bf16.gmra.mrb[0].mxu0 %v575
  %v2604 = vpop.f32.mrb[0].mxu0
  %v2605 = vadd.f32 0.0, %v2604
  %v2606 = vpop.f32.mrb[0].mxu0
  %v2607 = vpop.f32.mrb[0].mxu0
  %v2608 = vadd.f32 0.0, %v2607
  %v2609 = vpop.f32.mrb[0].mxu0
  %2610 = vmatprep.mubr.bf16.mxu0 0
  %2611 = vmatmul.mubr.bf16.gmra.mrb[0].mxu0 %v578
  %v2612 = vpop.f32.mrb[0].mxu0
  %v2613 = vadd.f32 0.0, %v2612
  %v2614 = vpop.f32.mrb[0].mxu0
  %v2615 = vpop.f32.mrb[0].mxu0
  %v2616 = vadd.f32 0.0, %v2615
  %v2617 = vpop.f32.mrb[0].mxu0
  %2618 = vmatprep.mubr.bf16.mxu0 0
  %2619 = vmatmul.mubr.bf16.gmra.mrb[0].mxu0 %v581
  %v2620 = vpop.f32.mrb[0].mxu0
  %v2621 = vadd.f32 0.0, %v2620
  %v2622 = vpop.f32.mrb[0].mxu0
  %v2623 = vpop.f32.mrb[0].mxu0
  %v2624 = vadd.f32 0.0, %v2623
  %v2625 = vpop.f32.mrb[0].mxu0
  %2626 = vmatprep.mubr.bf16.mxu0 0
  %2627 = vmatmul.mubr.bf16.gmra.mrb[0].mxu0 %v584
  %v2628 = vpop.f32.mrb[0].mxu0
  %v2629 = vadd.f32 0.0, %v2628
  %v2630 = vpop.f32.mrb[0].mxu0
  %v2631 = vpop.f32.mrb[0].mxu0
  %v2632 = vadd.f32 0.0, %v2631
  %v2633 = vpop.f32.mrb[0].mxu0
  %2634 = vmatprep.mubr.bf16.mxu0 0
  %2635 = vmatmul.mubr.bf16.gmra.mrb[0].mxu0 %v587
  %v2636 = vpop.f32.mrb[0].mxu0
  %v2637 = vadd.f32 0.0, %v2636
  %v2638 = vpop.f32.mrb[0].mxu0
  %v2639 = vpop.f32.mrb[0].mxu0
  %v2640 = vadd.f32 0.0, %v2639
  %v2641 = vpop.f32.mrb[0].mxu0
  %2642 = vmatprep.mubr.bf16.mxu0 0
  %2643 = vmatmul.mubr.bf16.gmra.mrb[0].mxu0 %v590
  %v2644 = vpop.f32.mrb[0].mxu0
  %v2645 = vadd.f32 0.0, %v2644
  %v2646 = vpop.f32.mrb[0].mxu0
  %v2647 = vpop.f32.mrb[0].mxu0
  %v2648 = vadd.f32 0.0, %v2647
  %v2649 = vpop.f32.mrb[0].mxu0
  %2650 = vmatprep.mubr.bf16.mxu0 0
  %2651 = vmatmul.mubr.bf16.gmra.mrb[0].mxu0 %v593
  %v2652 = vpop.f32.mrb[0].mxu0
  %v2653 = vadd.f32 0.0, %v2652
  %v2654 = vpop.f32.mrb[0].mxu0
  %v2655 = vpop.f32.mrb[0].mxu0
  %v2656 = vadd.f32 0.0, %v2655
  %v2657 = vpop.f32.mrb[0].mxu0
  %2658 = vmatprep.mubr.bf16.mxu0 0
  %2659 = vmatmul.mubr.bf16.gmra.mrb[0].mxu0 %v596
  %v2660 = vpop.f32.mrb[0].mxu0
  %v2661 = vadd.f32 0.0, %v2660
  %v2662 = vpop.f32.mrb[0].mxu0
  %v2663 = vpop.f32.mrb[0].mxu0
  %v2664 = vadd.f32 0.0, %v2663
  %v2665 = vpop.f32.mrb[0].mxu0
  %2666 = vmatprep.mubr.bf16.mxu0 0
  %2667 = vmatmul.mubr.bf16.gmra.mrb[0].mxu0 %v599
  %v2668 = vpop.f32.mrb[0].mxu0
  %v2669 = vadd.f32 0.0, %v2668
  %v2670 = vpop.f32.mrb[0].mxu0
  %v2671 = vpop.f32.mrb[0].mxu0
  %v2672 = vadd.f32 0.0, %v2671
  %v2673 = vpop.f32.mrb[0].mxu0
  %2674 = vmatprep.mubr.bf16.mxu0 0
  %2675 = vmatmul.mubr.bf16.gmra.mrb[0].mxu0 %v602
  %v2676 = vpop.f32.mrb[0].mxu0
  %v2677 = vadd.f32 0.0, %v2676
  %v2678 = vpop.f32.mrb[0].mxu0
  %v2679 = vpop.f32.mrb[0].mxu0
  %v2680 = vadd.f32 0.0, %v2679
  %v2681 = vpop.f32.mrb[0].mxu0
  %2682 = vmatprep.mubr.bf16.mxu0 0
  %2683 = vmatmul.mubr.bf16.gmra.mrb[0].mxu0 %v605
  %v2684 = vpop.f32.mrb[0].mxu0
  %v2685 = vadd.f32 0.0, %v2684
  %v2686 = vpop.f32.mrb[0].mxu0
  %v2687 = vpop.f32.mrb[0].mxu0
  %v2688 = vadd.f32 0.0, %v2687
  %v2689 = vpop.f32.mrb[0].mxu0
  %2690 = vmatprep.mubr.bf16.mxu0 0
  %2691 = vmatmul.mubr.bf16.gmra.mrb[0].mxu0 %v608
  %v2692 = vpop.f32.mrb[0].mxu0
  %v2693 = vadd.f32 0.0, %v2692
  %v2694 = vpop.f32.mrb[0].mxu0
  %v2695 = vpop.f32.mrb[0].mxu0
  %v2696 = vadd.f32 0.0, %v2695
  %v2697 = vpop.f32.mrb[0].mxu0
  %2698 = vdwg.mxu0
  %v2699 = vpack.c.bf16 %v2483, %v2479
  %v2700 = vpack.c.bf16 %v2489, %v2489
  %v2702 = vsel %vm610, %v2700, 0
  %2704 = vmatprep.subr.bf16.mxu0 0
  %2705 = vmatpush1.bf16.msra.mxu0 %v2699
  %2706 = vmatprep.subr.bf16.mxu0 0
  %2707 = vmatpush1.bf16.msra.mxu0 %v2702
  %2708 = vmatprep.subr.bf16.mxu0 0
  %2709 = vmatpush1.bf16.msra.mxu0 0
  %2710 = vmatprep.subr.bf16.mxu0 0
  %2711 = vmatpush1.bf16.msra.mxu0 0
  %2712 = vmatprep.subr.bf16.mxu0 0
  %2713 = vmatpush1.bf16.msra.mxu0 0
  %2714 = vmatprep.subr.bf16.mxu0 0
  %2715 = vmatpush1.bf16.msra.mxu0 0
  %2716 = vmatprep.subr.bf16.mxu0 0
  %2717 = vmatpush1.bf16.msra.mxu0 0
  %2718 = vmatprep.subr.bf16.mxu0 0
  %2719 = vmatpush1.bf16.msra.mxu0 0
  %2720 = vmatprep.subr.bf16.mxu0 0
  %2721 = vmatpush1.bf16.msra.mxu0 0
  %2722 = vmatprep.subr.bf16.mxu0 0
  %2723 = vmatpush1.bf16.msra.mxu0 0
  %2724 = vmatprep.subr.bf16.mxu0 0
  %2725 = vmatpush1.bf16.msra.mxu0 0
  %2726 = vmatprep.subr.bf16.mxu0 0
  %2727 = vmatpush1.bf16.msra.mxu0 0
  %2728 = vmatprep.subr.bf16.mxu0 0
  %2729 = vmatpush1.bf16.msra.mxu0 0
  %2730 = vmatprep.subr.bf16.mxu0 0
  %2731 = vmatpush1.bf16.msra.mxu0 0
  %2732 = vmatprep.subr.bf16.mxu0 0
  %2733 = vmatpush1.bf16.msra.mxu0 0
  %2734 = vmatprep.subr.bf16.mxu0 0
  %2735 = vmatpush1.bf16.msra.mxu0 0
  %2736 = vmatprep.mubr.bf16.mxu0 0
  %2737 = vmatmul.mubr.bf16.gmra.mrb[0].mxu0 %v798
  %v2738 = vpop.f32.mrb[0].mxu0
  %v2739 = vadd.f32 %v2481, %v2738
  %v2740 = vpop.f32.mrb[0].mxu0
  %v2741 = vpop.f32.mrb[0].mxu0
  %v2742 = vadd.f32 %v2485, %v2741
  %v2743 = vpop.f32.mrb[0].mxu0
  %2744 = vmatprep.mubr.bf16.mxu0 0
  %2745 = vmatmul.mubr.bf16.gmra.mrb[0].mxu0 %v801
  %v2746 = vpop.f32.mrb[0].mxu0
  %v2747 = vadd.f32 %v2491, %v2746
  %v2748 = vpop.f32.mrb[0].mxu0
  %v2749 = vpop.f32.mrb[0].mxu0
  %v2750 = vadd.f32 %v2481, %v2749
  %v2751 = vpop.f32.mrb[0].mxu0
  %2752 = vmatprep.mubr.bf16.mxu0 0
  %2753 = vmatmul.mubr.bf16.gmra.mrb[0].mxu0 %v804
  %v2754 = vpop.f32.mrb[0].mxu0
  %v2755 = vadd.f32 %v2485, %v2754
  %v2756 = vpop.f32.mrb[0].mxu0
  %v2757 = vpop.f32.mrb[0].mxu0
  %v2758 = vadd.f32 %v2491, %v2757
  %v2759 = vpop.f32.mrb[0].mxu0
  %2760 = vmatprep.mubr.bf16.mxu0 0
  %2761 = vmatmul.mubr.bf16.gmra.mrb[0].mxu0 %v807
  %v2762 = vpop.f32.mrb[0].mxu0
  %v2763 = vadd.f32 %v2481, %v2762
  %v2764 = vpop.f32.mrb[0].mxu0
  %v2765 = vpop.f32.mrb[0].mxu0
  %v2766 = vadd.f32 %v2485, %v2765
  %v2767 = vpop.f32.mrb[0].mxu0
  %2768 = vmatprep.mubr.bf16.mxu0 0
  %2769 = vmatmul.mubr.bf16.gmra.mrb[0].mxu0 %v810
  %v2770 = vpop.f32.mrb[0].mxu0
  %v2771 = vadd.f32 %v2491, %v2770
  %v2772 = vpop.f32.mrb[0].mxu0
  %v2773 = vpop.f32.mrb[0].mxu0
  %v2774 = vadd.f32 %v2481, %v2773
  %v2775 = vpop.f32.mrb[0].mxu0
  %2776 = vmatprep.mubr.bf16.mxu0 0
  %2777 = vmatmul.mubr.bf16.gmra.mrb[0].mxu0 %v813
  %v2778 = vpop.f32.mrb[0].mxu0
  %v2779 = vadd.f32 %v2485, %v2778
  %v2780 = vpop.f32.mrb[0].mxu0
  %v2781 = vpop.f32.mrb[0].mxu0
  %v2782 = vadd.f32 %v2491, %v2781
  %v2783 = vpop.f32.mrb[0].mxu0
  %2784 = vmatprep.mubr.bf16.mxu0 0
  %2785 = vmatmul.mubr.bf16.gmra.mrb[0].mxu0 %v816
  %v2786 = vpop.f32.mrb[0].mxu0
  %v2787 = vadd.f32 %v2481, %v2786
  %v2788 = vpop.f32.mrb[0].mxu0
  %v2789 = vpop.f32.mrb[0].mxu0
  %v2790 = vadd.f32 %v2485, %v2789
  %v2791 = vpop.f32.mrb[0].mxu0
  %2792 = vmatprep.mubr.bf16.mxu0 0
  %2793 = vmatmul.mubr.bf16.gmra.mrb[0].mxu0 %v819
  %v2794 = vpop.f32.mrb[0].mxu0
  %v2795 = vadd.f32 %v2491, %v2794
  %v2796 = vpop.f32.mrb[0].mxu0
  %v2797 = vpop.f32.mrb[0].mxu0
  %v2798 = vadd.f32 %v2481, %v2797
  %v2799 = vpop.f32.mrb[0].mxu0
  %2800 = vmatprep.mubr.bf16.mxu0 0
  %2801 = vmatmul.mubr.bf16.gmra.mrb[0].mxu0 %v822
  %v2802 = vpop.f32.mrb[0].mxu0
  %v2803 = vadd.f32 %v2485, %v2802
  %v2804 = vpop.f32.mrb[0].mxu0
  %v2805 = vpop.f32.mrb[0].mxu0
  %v2806 = vadd.f32 %v2491, %v2805
  %v2807 = vpop.f32.mrb[0].mxu0
  %2808 = vmatprep.mubr.bf16.mxu0 0
  %2809 = vmatmul.mubr.bf16.gmra.mrb[0].mxu0 %v825
  %v2810 = vpop.f32.mrb[0].mxu0
  %v2811 = vadd.f32 %v2481, %v2810
  %v2812 = vpop.f32.mrb[0].mxu0
  %v2813 = vpop.f32.mrb[0].mxu0
  %v2814 = vadd.f32 %v2485, %v2813
  %v2815 = vpop.f32.mrb[0].mxu0
  %2816 = vmatprep.mubr.bf16.mxu0 0
  %2817 = vmatmul.mubr.bf16.gmra.mrb[0].mxu0 %v828
  %v2818 = vpop.f32.mrb[0].mxu0
  %v2819 = vadd.f32 %v2491, %v2818
  %v2820 = vpop.f32.mrb[0].mxu0
  %v2821 = vpop.f32.mrb[0].mxu0
  %v2822 = vadd.f32 %v2481, %v2821
  %v2823 = vpop.f32.mrb[0].mxu0
  %2824 = vmatprep.mubr.bf16.mxu0 0
  %2825 = vmatmul.mubr.bf16.gmra.mrb[0].mxu0 %v831
  %v2826 = vpop.f32.mrb[0].mxu0
  %v2827 = vadd.f32 %v2485, %v2826
  %v2828 = vpop.f32.mrb[0].mxu0
  %v2829 = vpop.f32.mrb[0].mxu0
  %v2830 = vadd.f32 %v2491, %v2829
  %v2831 = vpop.f32.mrb[0].mxu0
  %2832 = vmatprep.mubr.bf16.mxu0 0
  %2833 = vmatmul.mubr.bf16.gmra.mrb[0].mxu0 %v834
  %v2834 = vpop.f32.mrb[0].mxu0
  %v2835 = vadd.f32 %v2481, %v2834
  %v2836 = vpop.f32.mrb[0].mxu0
  %v2837 = vpop.f32.mrb[0].mxu0
  %v2838 = vadd.f32 %v2485, %v2837
  %v2839 = vpop.f32.mrb[0].mxu0
  %2840 = vmatprep.mubr.bf16.mxu0 0
  %2841 = vmatmul.mubr.bf16.gmra.mrb[0].mxu0 %v837
  %v2842 = vpop.f32.mrb[0].mxu0
  %v2843 = vadd.f32 %v2491, %v2842
  %v2844 = vpop.f32.mrb[0].mxu0
  %v2845 = vpop.f32.mrb[0].mxu0
  %v2846 = vadd.f32 %v2481, %v2845
  %v2847 = vpop.f32.mrb[0].mxu0
  %2848 = vmatprep.mubr.bf16.mxu0 0
  %2849 = vmatmul.mubr.bf16.gmra.mrb[0].mxu0 %v840
  %v2850 = vpop.f32.mrb[0].mxu0
  %v2851 = vadd.f32 %v2485, %v2850
  %v2852 = vpop.f32.mrb[0].mxu0
  %v2853 = vpop.f32.mrb[0].mxu0
  %v2854 = vadd.f32 %v2491, %v2853
  %v2855 = vpop.f32.mrb[0].mxu0
  %2856 = vmatprep.mubr.bf16.mxu0 0
  %2857 = vmatmul.mubr.bf16.gmra.mrb[0].mxu0 %v843
  %v2858 = vpop.f32.mrb[0].mxu0
  %v2859 = vadd.f32 %v2481, %v2858
  %v2860 = vpop.f32.mrb[0].mxu0
  %v2861 = vpop.f32.mrb[0].mxu0
  %v2862 = vadd.f32 %v2485, %v2861
  %v2863 = vpop.f32.mrb[0].mxu0
  %2864 = vmatprep.mubr.bf16.mxu0 0
  %2865 = vmatmul.mubr.bf16.gmra.mrb[0].mxu0 %v846
  %v2866 = vpop.f32.mrb[0].mxu0
  %v2867 = vadd.f32 %v2491, %v2866
  %v2868 = vpop.f32.mrb[0].mxu0
  %v2869 = vpop.f32.mrb[0].mxu0
  %v2870 = vadd.f32 %v2481, %v2869
  %v2871 = vpop.f32.mrb[0].mxu0
  %2872 = vmatprep.mubr.bf16.mxu0 0
  %2873 = vmatmul.mubr.bf16.gmra.mrb[0].mxu0 %v849
  %v2874 = vpop.f32.mrb[0].mxu0
  %v2875 = vadd.f32 %v2485, %v2874
  %v2876 = vpop.f32.mrb[0].mxu0
  %v2877 = vpop.f32.mrb[0].mxu0
  %v2878 = vadd.f32 %v2491, %v2877
  %v2879 = vpop.f32.mrb[0].mxu0
  %2880 = vdwg.mxu0
  %v2881 = vadd.f32 %v2739, %v2557
  %v2882 = vadd.f32 %v2742, %v2560
  %v2883 = vadd.f32 %v2747, %v2565
  %v2884 = vadd.f32 %v2750, %v2568
  %v2885 = vadd.f32 %v2755, %v2573
  %v2886 = vadd.f32 %v2758, %v2576
  %v2887 = vadd.f32 %v2763, %v2581
  %v2888 = vadd.f32 %v2766, %v2584
  %v2889 = vadd.f32 %v2771, %v2589
  %v2890 = vadd.f32 %v2774, %v2592
  %v2891 = vadd.f32 %v2779, %v2597
  %v2892 = vadd.f32 %v2782, %v2600
  %v2893 = vadd.f32 %v2787, %v2605
  %v2894 = vadd.f32 %v2790, %v2608
  %v2895 = vadd.f32 %v2795, %v2613
  %v2896 = vadd.f32 %v2798, %v2616
  %v2897 = vadd.f32 %v2803, %v2621
  %v2898 = vadd.f32 %v2806, %v2624
  %v2899 = vadd.f32 %v2811, %v2629
  %v2900 = vadd.f32 %v2814, %v2632
  %v2901 = vadd.f32 %v2819, %v2637
  %v2902 = vadd.f32 %v2822, %v2640
  %v2903 = vadd.f32 %v2827, %v2645
  %v2904 = vadd.f32 %v2830, %v2648
  %v2905 = vadd.f32 %v2835, %v2653
  %v2906 = vadd.f32 %v2838, %v2656
  %v2907 = vadd.f32 %v2843, %v2661
  %v2908 = vadd.f32 %v2846, %v2664
  %v2909 = vadd.f32 %v2851, %v2669
  %v2910 = vadd.f32 %v2854, %v2672
  %v2911 = vadd.f32 %v2859, %v2677
  %v2912 = vadd.f32 %v2862, %v2680
  %v2913 = vadd.f32 %v2867, %v2685
  %v2914 = vadd.f32 %v2870, %v2688
  %v2915 = vadd.f32 %v2875, %v2693
  %v2916 = vadd.f32 %v2878, %v2696
  %s2917 = scalar_lea.vmem %s5, 1
  %v2918 = vld [vmem:[%s2917] sm:$0x1]
  %v2920 = vlaneseq
  %v2921 = vshrl.u32 %v2920, 7
  %v2922 = vsub.s32 0, %v2921
  %v2923 = vrot.slane %v2918, %v2922
  %v2925 = vadd.f32 %v2881, %v2923
  %v2926 = vadd.f32 %v2882, %v2923
  %v2927 = vadd.f32 %v2883, %v2923
  %v2928 = vadd.f32 %v2884, %v2923
  %v2929 = vadd.f32 %v2885, %v2923
  %v2930 = vadd.f32 %v2886, %v2923
  %v2931 = vadd.f32 %v2887, %v2923
  %v2932 = vadd.f32 %v2888, %v2923
  %v2933 = vadd.f32 %v2889, %v2923
  %v2934 = vadd.f32 %v2890, %v2923
  %v2935 = vadd.f32 %v2891, %v2923
  %v2936 = vadd.f32 %v2892, %v2923
  %v2937 = vadd.f32 %v2893, %v2923
  %v2938 = vadd.f32 %v2894, %v2923
  %v2939 = vadd.f32 %v2895, %v2923
  %v2940 = vadd.f32 %v2896, %v2923
  %v2941 = vadd.f32 %v2897, %v2923
  %v2942 = vadd.f32 %v2898, %v2923
  %v2943 = vadd.f32 %v2899, %v2923
  %v2944 = vadd.f32 %v2900, %v2923
  %v2945 = vadd.f32 %v2901, %v2923
  %v2946 = vadd.f32 %v2902, %v2923
  %v2947 = vadd.f32 %v2903, %v2923
  %v2948 = vadd.f32 %v2904, %v2923
  %v2949 = vadd.f32 %v2905, %v2923
  %v2950 = vadd.f32 %v2906, %v2923
  %v2951 = vadd.f32 %v2907, %v2923
  %v2952 = vadd.f32 %v2908, %v2923
  %v2953 = vadd.f32 %v2909, %v2923
  %v2954 = vadd.f32 %v2910, %v2923
  %v2955 = vadd.f32 %v2911, %v2923
  %v2956 = vadd.f32 %v2912, %v2923
  %v2957 = vadd.f32 %v2913, %v2923
  %v2958 = vadd.f32 %v2914, %v2923
  %v2959 = vadd.f32 %v2915, %v2923
  %v2960 = vadd.f32 %v2916, %v2923
  %s2961 = scalar_lea.vmem %s6, 1
  %v2962 = vld [vmem:[%s2961] sm:$0x1]
  %s2963 = scalar_lea.vmem %s7, 1
  %v2964 = vld [vmem:[%s2963] sm:$0x1]
  %v2965 = vadd.f32 %v2925, %v2926
  %v2966 = vadd.f32 %v2965, %v2927
  %v2967 = vadd.f32 %v2966, %v2928
  %v2968 = vadd.f32 %v2967, %v2929
  %v2969 = vadd.f32 %v2968, %v2930
  %v2970 = vadd.f32 %v2969, %v2931
  %v2971 = vadd.f32 %v2970, %v2932
  %v2972 = vadd.f32 %v2971, %v2933
  %v2973 = vadd.f32 %v2972, %v2934
  %v2974 = vadd.f32 %v2973, %v2935
  %v2975 = vadd.f32 %v2974, %v2936
  %v2976 = vadd.f32 %v2975, %v2937
  %v2977 = vadd.f32 %v2976, %v2938
  %v2978 = vadd.f32 %v2977, %v2939
  %v2979 = vadd.f32 %v2978, %v2940
  %v2980 = vadd.f32 %v2979, %v2941
  %v2981 = vadd.f32 %v2980, %v2942
  %v2982 = vadd.f32 %v2981, %v2943
  %v2983 = vadd.f32 %v2982, %v2944
  %v2984 = vadd.f32 %v2983, %v2945
  %v2985 = vadd.f32 %v2984, %v2946
  %v2986 = vadd.f32 %v2985, %v2947
  %v2987 = vadd.f32 %v2986, %v2948
  %v2988 = vadd.f32 %v2987, %v2949
  %v2989 = vadd.f32 %v2988, %v2950
  %v2990 = vadd.f32 %v2989, %v2951
  %v2991 = vadd.f32 %v2990, %v2952
  %v2992 = vadd.f32 %v2991, %v2953
  %v2993 = vadd.f32 %v2992, %v2954
  %v2994 = vadd.f32 %v2993, %v2955
  %v2995 = vadd.f32 %v2994, %v2956
  %v2996 = vadd.f32 %v2995, %v2957
  %v2997 = vadd.f32 %v2996, %v2958
  %v2998 = vadd.f32 %v2997, %v2959
  %v2999 = vadd.f32 %v2998, %v2960
  %v3000 = vrot.slane %v2999, 4
  %v3001 = vadd.f32 %v2999, %v3000
  %v3002 = vrot.slane %v3001, 2
  %v3003 = vadd.f32 %v3001, %v3002
  %v3004 = vrot.slane %v3003, 1
  %v3005 = vadd.f32 %v3003, %v3004
  %v3006 = vmul.f32 %v3005, 0.0034722222
  %v3007 = vsub.f32 %v2925, %v3006
  %v3008 = vsub.f32 %v2926, %v3006
  %v3009 = vsub.f32 %v2927, %v3006
  %v3010 = vsub.f32 %v2928, %v3006
  %v3011 = vsub.f32 %v2929, %v3006
  %v3012 = vsub.f32 %v2930, %v3006
  %v3013 = vsub.f32 %v2931, %v3006
  %v3014 = vsub.f32 %v2932, %v3006
  %v3015 = vsub.f32 %v2933, %v3006
  %v3016 = vsub.f32 %v2934, %v3006
  %v3017 = vsub.f32 %v2935, %v3006
  %v3018 = vsub.f32 %v2936, %v3006
  %v3019 = vsub.f32 %v2937, %v3006
  %v3020 = vsub.f32 %v2938, %v3006
  %v3021 = vsub.f32 %v2939, %v3006
  %v3022 = vsub.f32 %v2940, %v3006
  %v3023 = vsub.f32 %v2941, %v3006
  %v3024 = vsub.f32 %v2942, %v3006
  %v3025 = vsub.f32 %v2943, %v3006
  %v3026 = vsub.f32 %v2944, %v3006
  %v3027 = vsub.f32 %v2945, %v3006
  %v3028 = vsub.f32 %v2946, %v3006
  %v3029 = vsub.f32 %v2947, %v3006
  %v3030 = vsub.f32 %v2948, %v3006
  %v3031 = vsub.f32 %v2949, %v3006
  %v3032 = vsub.f32 %v2950, %v3006
  %v3033 = vsub.f32 %v2951, %v3006
  %v3034 = vsub.f32 %v2952, %v3006
  %v3035 = vsub.f32 %v2953, %v3006
  %v3036 = vsub.f32 %v2954, %v3006
  %v3037 = vsub.f32 %v2955, %v3006
  %v3038 = vsub.f32 %v2956, %v3006
  %v3039 = vsub.f32 %v2957, %v3006
  %v3040 = vsub.f32 %v2958, %v3006
  %v3041 = vsub.f32 %v2959, %v3006
  %v3042 = vsub.f32 %v2960, %v3006
  %v3043 = vmul.f32 %v3007, %v3007
  %v3044 = vmul.f32 %v3008, %v3008
  %v3045 = vmul.f32 %v3009, %v3009
  %v3046 = vmul.f32 %v3010, %v3010
  %v3047 = vmul.f32 %v3011, %v3011
  %v3048 = vmul.f32 %v3012, %v3012
  %v3049 = vmul.f32 %v3013, %v3013
  %v3050 = vmul.f32 %v3014, %v3014
  %v3051 = vmul.f32 %v3015, %v3015
  %v3052 = vmul.f32 %v3016, %v3016
  %v3053 = vmul.f32 %v3017, %v3017
  %v3054 = vmul.f32 %v3018, %v3018
  %v3055 = vmul.f32 %v3019, %v3019
  %v3056 = vmul.f32 %v3020, %v3020
  %v3057 = vmul.f32 %v3021, %v3021
  %v3058 = vmul.f32 %v3022, %v3022
  %v3059 = vmul.f32 %v3023, %v3023
  %v3060 = vmul.f32 %v3024, %v3024
  %v3061 = vmul.f32 %v3025, %v3025
  %v3062 = vmul.f32 %v3026, %v3026
  %v3063 = vmul.f32 %v3027, %v3027
  %v3064 = vmul.f32 %v3028, %v3028
  %v3065 = vmul.f32 %v3029, %v3029
  %v3066 = vmul.f32 %v3030, %v3030
  %v3067 = vmul.f32 %v3031, %v3031
  %v3068 = vmul.f32 %v3032, %v3032
  %v3069 = vmul.f32 %v3033, %v3033
  %v3070 = vmul.f32 %v3034, %v3034
  %v3071 = vmul.f32 %v3035, %v3035
  %v3072 = vmul.f32 %v3036, %v3036
  %v3073 = vmul.f32 %v3037, %v3037
  %v3074 = vmul.f32 %v3038, %v3038
  %v3075 = vmul.f32 %v3039, %v3039
  %v3076 = vmul.f32 %v3040, %v3040
  %v3077 = vmul.f32 %v3041, %v3041
  %v3078 = vmul.f32 %v3042, %v3042
  %v3079 = vadd.f32 %v3043, %v3044
  %v3080 = vadd.f32 %v3079, %v3045
  %v3081 = vadd.f32 %v3080, %v3046
  %v3082 = vadd.f32 %v3081, %v3047
  %v3083 = vadd.f32 %v3082, %v3048
  %v3084 = vadd.f32 %v3083, %v3049
  %v3085 = vadd.f32 %v3084, %v3050
  %v3086 = vadd.f32 %v3085, %v3051
  %v3087 = vadd.f32 %v3086, %v3052
  %v3088 = vadd.f32 %v3087, %v3053
  %v3089 = vadd.f32 %v3088, %v3054
  %v3090 = vadd.f32 %v3089, %v3055
  %v3091 = vadd.f32 %v3090, %v3056
  %v3092 = vadd.f32 %v3091, %v3057
  %v3093 = vadd.f32 %v3092, %v3058
  %v3094 = vadd.f32 %v3093, %v3059
  %v3095 = vadd.f32 %v3094, %v3060
  %v3096 = vadd.f32 %v3095, %v3061
  %v3097 = vadd.f32 %v3096, %v3062
  %v3098 = vadd.f32 %v3097, %v3063
  %v3099 = vadd.f32 %v3098, %v3064
  %v3100 = vadd.f32 %v3099, %v3065
  %v3101 = vadd.f32 %v3100, %v3066
  %v3102 = vadd.f32 %v3101, %v3067
  %v3103 = vadd.f32 %v3102, %v3068
  %v3104 = vadd.f32 %v3103, %v3069
  %v3105 = vadd.f32 %v3104, %v3070
  %v3106 = vadd.f32 %v3105, %v3071
  %v3107 = vadd.f32 %v3106, %v3072
  %v3108 = vadd.f32 %v3107, %v3073
  %v3109 = vadd.f32 %v3108, %v3074
  %v3110 = vadd.f32 %v3109, %v3075
  %v3111 = vadd.f32 %v3110, %v3076
  %v3112 = vadd.f32 %v3111, %v3077
  %v3113 = vadd.f32 %v3112, %v3078
  %v3114 = vrot.slane %v3113, 4
  %v3115 = vadd.f32 %v3113, %v3114
  %v3116 = vrot.slane %v3115, 2
  %v3117 = vadd.f32 %v3115, %v3116
  %v3118 = vrot.slane %v3117, 1
  %v3119 = vadd.f32 %v3117, %v3118
  %v3120 = vmul.f32 %v3119, 0.0034722222
  %v3121 = vadd.f32 %v3120, 1e-05
  %v3122 = vrsqrt.pop %v3121
  %v3123 = vmul.f32 %v3007, %v3122
  %v3124 = vmul.f32 %v3008, %v3122
  %v3125 = vmul.f32 %v3009, %v3122
  %v3126 = vmul.f32 %v3010, %v3122
  %v3127 = vmul.f32 %v3011, %v3122
  %v3128 = vmul.f32 %v3012, %v3122
  %v3129 = vmul.f32 %v3013, %v3122
  %v3130 = vmul.f32 %v3014, %v3122
  %v3131 = vmul.f32 %v3015, %v3122
  %v3132 = vmul.f32 %v3016, %v3122
  %v3133 = vmul.f32 %v3017, %v3122
  %v3134 = vmul.f32 %v3018, %v3122
  %v3135 = vmul.f32 %v3019, %v3122
  %v3136 = vmul.f32 %v3020, %v3122
  %v3137 = vmul.f32 %v3021, %v3122
  %v3138 = vmul.f32 %v3022, %v3122
  %v3139 = vmul.f32 %v3023, %v3122
  %v3140 = vmul.f32 %v3024, %v3122
  %v3141 = vmul.f32 %v3025, %v3122
  %v3142 = vmul.f32 %v3026, %v3122
  %v3143 = vmul.f32 %v3027, %v3122
  %v3144 = vmul.f32 %v3028, %v3122
  %v3145 = vmul.f32 %v3029, %v3122
  %v3146 = vmul.f32 %v3030, %v3122
  %v3147 = vmul.f32 %v3031, %v3122
  %v3148 = vmul.f32 %v3032, %v3122
  %v3149 = vmul.f32 %v3033, %v3122
  %v3150 = vmul.f32 %v3034, %v3122
  %v3151 = vmul.f32 %v3035, %v3122
  %v3152 = vmul.f32 %v3036, %v3122
  %v3153 = vmul.f32 %v3037, %v3122
  %v3154 = vmul.f32 %v3038, %v3122
  %v3155 = vmul.f32 %v3039, %v3122
  %v3156 = vmul.f32 %v3040, %v3122
  %v3157 = vmul.f32 %v3041, %v3122
  %v3158 = vmul.f32 %v3042, %v3122
  %v3160 = vlaneseq
  %v3161 = vshrl.u32 %v3160, 7
  %v3162 = vsub.s32 0, %v3161
  %v3163 = vrot.slane %v2962, %v3162
  %v3165 = vmul.f32 %v3123, %v3163
  %v3166 = vmul.f32 %v3124, %v3163
  %v3167 = vmul.f32 %v3125, %v3163
  %v3168 = vmul.f32 %v3126, %v3163
  %v3169 = vmul.f32 %v3127, %v3163
  %v3170 = vmul.f32 %v3128, %v3163
  %v3171 = vmul.f32 %v3129, %v3163
  %v3172 = vmul.f32 %v3130, %v3163
  %v3173 = vmul.f32 %v3131, %v3163
  %v3174 = vmul.f32 %v3132, %v3163
  %v3175 = vmul.f32 %v3133, %v3163
  %v3176 = vmul.f32 %v3134, %v3163
  %v3177 = vmul.f32 %v3135, %v3163
  %v3178 = vmul.f32 %v3136, %v3163
  %v3179 = vmul.f32 %v3137, %v3163
  %v3180 = vmul.f32 %v3138, %v3163
  %v3181 = vmul.f32 %v3139, %v3163
  %v3182 = vmul.f32 %v3140, %v3163
  %v3183 = vmul.f32 %v3141, %v3163
  %v3184 = vmul.f32 %v3142, %v3163
  %v3185 = vmul.f32 %v3143, %v3163
  %v3186 = vmul.f32 %v3144, %v3163
  %v3187 = vmul.f32 %v3145, %v3163
  %v3188 = vmul.f32 %v3146, %v3163
  %v3189 = vmul.f32 %v3147, %v3163
  %v3190 = vmul.f32 %v3148, %v3163
  %v3191 = vmul.f32 %v3149, %v3163
  %v3192 = vmul.f32 %v3150, %v3163
  %v3193 = vmul.f32 %v3151, %v3163
  %v3194 = vmul.f32 %v3152, %v3163
  %v3195 = vmul.f32 %v3153, %v3163
  %v3196 = vmul.f32 %v3154, %v3163
  %v3197 = vmul.f32 %v3155, %v3163
  %v3198 = vmul.f32 %v3156, %v3163
  %v3199 = vmul.f32 %v3157, %v3163
  %v3200 = vmul.f32 %v3158, %v3163
  %v3202 = vlaneseq
  %v3203 = vshrl.u32 %v3202, 7
  %v3204 = vsub.s32 0, %v3203
  %v3205 = vrot.slane %v2964, %v3204
  %v3207 = vadd.f32 %v3165, %v3205
  %v3208 = vadd.f32 %v3166, %v3205
  %v3209 = vadd.f32 %v3167, %v3205
  %v3210 = vadd.f32 %v3168, %v3205
  %v3211 = vadd.f32 %v3169, %v3205
  %v3212 = vadd.f32 %v3170, %v3205
  %v3213 = vadd.f32 %v3171, %v3205
  %v3214 = vadd.f32 %v3172, %v3205
  %v3215 = vadd.f32 %v3173, %v3205
  %v3216 = vadd.f32 %v3174, %v3205
  %v3217 = vadd.f32 %v3175, %v3205
  %v3218 = vadd.f32 %v3176, %v3205
  %v3219 = vadd.f32 %v3177, %v3205
  %v3220 = vadd.f32 %v3178, %v3205
  %v3221 = vadd.f32 %v3179, %v3205
  %v3222 = vadd.f32 %v3180, %v3205
  %v3223 = vadd.f32 %v3181, %v3205
  %v3224 = vadd.f32 %v3182, %v3205
  %v3225 = vadd.f32 %v3183, %v3205
  %v3226 = vadd.f32 %v3184, %v3205
  %v3227 = vadd.f32 %v3185, %v3205
  %v3228 = vadd.f32 %v3186, %v3205
  %v3229 = vadd.f32 %v3187, %v3205
  %v3230 = vadd.f32 %v3188, %v3205
  %v3231 = vadd.f32 %v3189, %v3205
  %v3232 = vadd.f32 %v3190, %v3205
  %v3233 = vadd.f32 %v3191, %v3205
  %v3234 = vadd.f32 %v3192, %v3205
  %v3235 = vadd.f32 %v3193, %v3205
  %v3236 = vadd.f32 %v3194, %v3205
  %v3237 = vadd.f32 %v3195, %v3205
  %v3238 = vadd.f32 %v3196, %v3205
  %v3239 = vadd.f32 %v3197, %v3205
  %v3240 = vadd.f32 %v3198, %v3205
  %v3241 = vadd.f32 %v3199, %v3205
  %v3242 = vadd.f32 %v3200, %v3205
  %v3243 = vsub.f32 0.0, %v3207
  %v3244 = vsub.f32 0.0, %v3208
  %v3245 = vsub.f32 0.0, %v3209
  %v3246 = vsub.f32 0.0, %v3210
  %v3247 = vsub.f32 0.0, %v3211
  %v3248 = vsub.f32 0.0, %v3212
  %v3249 = vsub.f32 0.0, %v3213
  %v3250 = vsub.f32 0.0, %v3214
  %v3251 = vsub.f32 0.0, %v3215
  %v3252 = vsub.f32 0.0, %v3216
  %v3253 = vsub.f32 0.0, %v3217
  %v3254 = vsub.f32 0.0, %v3218
  %v3255 = vsub.f32 0.0, %v3219
  %v3256 = vsub.f32 0.0, %v3220
  %v3257 = vsub.f32 0.0, %v3221
  %v3258 = vsub.f32 0.0, %v3222
  %v3259 = vsub.f32 0.0, %v3223
  %v3260 = vsub.f32 0.0, %v3224
  %v3261 = vsub.f32 0.0, %v3225
  %v3262 = vsub.f32 0.0, %v3226
  %v3263 = vsub.f32 0.0, %v3227
  %v3264 = vsub.f32 0.0, %v3228
  %v3265 = vsub.f32 0.0, %v3229
  %v3266 = vsub.f32 0.0, %v3230
  %v3267 = vsub.f32 0.0, %v3231
  %v3268 = vsub.f32 0.0, %v3232
  %v3269 = vsub.f32 0.0, %v3233
  %v3270 = vsub.f32 0.0, %v3234
  %v3271 = vsub.f32 0.0, %v3235
  %v3272 = vsub.f32 0.0, %v3236
  %v3273 = vsub.f32 0.0, %v3237
  %v3274 = vsub.f32 0.0, %v3238
  %v3275 = vsub.f32 0.0, %v3239
  %v3276 = vsub.f32 0.0, %v3240
  %v3277 = vsub.f32 0.0, %v3241
  %v3278 = vsub.f32 0.0, %v3242
  %v3279 = vmul.f32 %v3243, 1.442695
  %v3280 = vpow.pop %v3279
  %v3281 = vmul.f32 %v3244, 1.442695
  %v3282 = vpow.pop %v3281
  %v3283 = vmul.f32 %v3245, 1.442695
  %v3284 = vpow.pop %v3283
  %v3285 = vmul.f32 %v3246, 1.442695
  %v3286 = vpow.pop %v3285
  %v3287 = vmul.f32 %v3247, 1.442695
  %v3288 = vpow.pop %v3287
  %v3289 = vmul.f32 %v3248, 1.442695
  %v3290 = vpow.pop %v3289
  %v3291 = vmul.f32 %v3249, 1.442695
  %v3292 = vpow.pop %v3291
  %v3293 = vmul.f32 %v3250, 1.442695
  %v3294 = vpow.pop %v3293
  %v3295 = vmul.f32 %v3251, 1.442695
  %v3296 = vpow.pop %v3295
  %v3297 = vmul.f32 %v3252, 1.442695
  %v3298 = vpow.pop %v3297
  %v3299 = vmul.f32 %v3253, 1.442695
  %v3300 = vpow.pop %v3299
  %v3301 = vmul.f32 %v3254, 1.442695
  %v3302 = vpow.pop %v3301
  %v3303 = vmul.f32 %v3255, 1.442695
  %v3304 = vpow.pop %v3303
  %v3305 = vmul.f32 %v3256, 1.442695
  %v3306 = vpow.pop %v3305
  %v3307 = vmul.f32 %v3257, 1.442695
  %v3308 = vpow.pop %v3307
  %v3309 = vmul.f32 %v3258, 1.442695
  %v3310 = vpow.pop %v3309
  %v3311 = vmul.f32 %v3259, 1.442695
  %v3312 = vpow.pop %v3311
  %v3313 = vmul.f32 %v3260, 1.442695
  %v3314 = vpow.pop %v3313
  %v3315 = vmul.f32 %v3261, 1.442695
  %v3316 = vpow.pop %v3315
  %v3317 = vmul.f32 %v3262, 1.442695
  %v3318 = vpow.pop %v3317
  %v3319 = vmul.f32 %v3263, 1.442695
  %v3320 = vpow.pop %v3319
  %v3321 = vmul.f32 %v3264, 1.442695
  %v3322 = vpow.pop %v3321
  %v3323 = vmul.f32 %v3265, 1.442695
  %v3324 = vpow.pop %v3323
  %v3325 = vmul.f32 %v3266, 1.442695
  %v3326 = vpow.pop %v3325
  %v3327 = vmul.f32 %v3267, 1.442695
  %v3328 = vpow.pop %v3327
  %v3329 = vmul.f32 %v3268, 1.442695
  %v3330 = vpow.pop %v3329
  %v3331 = vmul.f32 %v3269, 1.442695
  %v3332 = vpow.pop %v3331
  %v3333 = vmul.f32 %v3270, 1.442695
  %v3334 = vpow.pop %v3333
  %v3335 = vmul.f32 %v3271, 1.442695
  %v3336 = vpow.pop %v3335
  %v3337 = vmul.f32 %v3272, 1.442695
  %v3338 = vpow.pop %v3337
  %v3339 = vmul.f32 %v3273, 1.442695
  %v3340 = vpow.pop %v3339
  %v3341 = vmul.f32 %v3274, 1.442695
  %v3342 = vpow.pop %v3341
  %v3343 = vmul.f32 %v3275, 1.442695
  %v3344 = vpow.pop %v3343
  %v3345 = vmul.f32 %v3276, 1.442695
  %v3346 = vpow.pop %v3345
  %v3347 = vmul.f32 %v3277, 1.442695
  %v3348 = vpow.pop %v3347
  %v3349 = vmul.f32 %v3278, 1.442695
  %v3350 = vpow.pop %v3349
  %v3351 = vadd.f32 %v3280, 1.0
  %v3352 = vadd.f32 %v3282, 1.0
  %v3353 = vadd.f32 %v3284, 1.0
  %v3354 = vadd.f32 %v3286, 1.0
  %v3355 = vadd.f32 %v3288, 1.0
  %v3356 = vadd.f32 %v3290, 1.0
  %v3357 = vadd.f32 %v3292, 1.0
  %v3358 = vadd.f32 %v3294, 1.0
  %v3359 = vadd.f32 %v3296, 1.0
  %v3360 = vadd.f32 %v3298, 1.0
  %v3361 = vadd.f32 %v3300, 1.0
  %v3362 = vadd.f32 %v3302, 1.0
  %v3363 = vadd.f32 %v3304, 1.0
  %v3364 = vadd.f32 %v3306, 1.0
  %v3365 = vadd.f32 %v3308, 1.0
  %v3366 = vadd.f32 %v3310, 1.0
  %v3367 = vadd.f32 %v3312, 1.0
  %v3368 = vadd.f32 %v3314, 1.0
  %v3369 = vadd.f32 %v3316, 1.0
  %v3370 = vadd.f32 %v3318, 1.0
  %v3371 = vadd.f32 %v3320, 1.0
  %v3372 = vadd.f32 %v3322, 1.0
  %v3373 = vadd.f32 %v3324, 1.0
  %v3374 = vadd.f32 %v3326, 1.0
  %v3375 = vadd.f32 %v3328, 1.0
  %v3376 = vadd.f32 %v3330, 1.0
  %v3377 = vadd.f32 %v3332, 1.0
  %v3378 = vadd.f32 %v3334, 1.0
  %v3379 = vadd.f32 %v3336, 1.0
  %v3380 = vadd.f32 %v3338, 1.0
  %v3381 = vadd.f32 %v3340, 1.0
  %v3382 = vadd.f32 %v3342, 1.0
  %v3383 = vadd.f32 %v3344, 1.0
  %v3384 = vadd.f32 %v3346, 1.0
  %v3385 = vadd.f32 %v3348, 1.0
  %v3386 = vadd.f32 %v3350, 1.0
  %v3387 = vrcp.pop %v3351
  %v3388 = vrcp.pop %v3352
  %v3389 = vrcp.pop %v3353
  %v3390 = vrcp.pop %v3354
  %v3391 = vrcp.pop %v3355
  %v3392 = vrcp.pop %v3356
  %v3393 = vrcp.pop %v3357
  %v3394 = vrcp.pop %v3358
  %v3395 = vrcp.pop %v3359
  %v3396 = vrcp.pop %v3360
  %v3397 = vrcp.pop %v3361
  %v3398 = vrcp.pop %v3362
  %v3399 = vrcp.pop %v3363
  %v3400 = vrcp.pop %v3364
  %v3401 = vrcp.pop %v3365
  %v3402 = vrcp.pop %v3366
  %v3403 = vrcp.pop %v3367
  %v3404 = vrcp.pop %v3368
  %v3405 = vrcp.pop %v3369
  %v3406 = vrcp.pop %v3370
  %v3407 = vrcp.pop %v3371
  %v3408 = vrcp.pop %v3372
  %v3409 = vrcp.pop %v3373
  %v3410 = vrcp.pop %v3374
  %v3411 = vrcp.pop %v3375
  %v3412 = vrcp.pop %v3376
  %v3413 = vrcp.pop %v3377
  %v3414 = vrcp.pop %v3378
  %v3415 = vrcp.pop %v3379
  %v3416 = vrcp.pop %v3380
  %v3417 = vrcp.pop %v3381
  %v3418 = vrcp.pop %v3382
  %v3419 = vrcp.pop %v3383
  %v3420 = vrcp.pop %v3384
  %v3421 = vrcp.pop %v3385
  %v3422 = vrcp.pop %v3386
  %vm3423 = vcmp.gt.f32.partialorder %v3207, 20.0
  %vm3424 = vcmp.gt.f32.partialorder %v3208, 20.0
  %vm3425 = vcmp.gt.f32.partialorder %v3209, 20.0
  %vm3426 = vcmp.gt.f32.partialorder %v3210, 20.0
  %vm3427 = vcmp.gt.f32.partialorder %v3211, 20.0
  %vm3428 = vcmp.gt.f32.partialorder %v3212, 20.0
  %vm3429 = vcmp.gt.f32.partialorder %v3213, 20.0
  %vm3430 = vcmp.gt.f32.partialorder %v3214, 20.0
  %vm3431 = vcmp.gt.f32.partialorder %v3215, 20.0
  %vm3432 = vcmp.gt.f32.partialorder %v3216, 20.0
  %vm3433 = vcmp.gt.f32.partialorder %v3217, 20.0
  %vm3434 = vcmp.gt.f32.partialorder %v3218, 20.0
  %vm3435 = vcmp.gt.f32.partialorder %v3219, 20.0
  %vm3436 = vcmp.gt.f32.partialorder %v3220, 20.0
  %vm3437 = vcmp.gt.f32.partialorder %v3221, 20.0
  %vm3438 = vcmp.gt.f32.partialorder %v3222, 20.0
  %vm3439 = vcmp.gt.f32.partialorder %v3223, 20.0
  %vm3440 = vcmp.gt.f32.partialorder %v3224, 20.0
  %vm3441 = vcmp.gt.f32.partialorder %v3225, 20.0
  %vm3442 = vcmp.gt.f32.partialorder %v3226, 20.0
  %vm3443 = vcmp.gt.f32.partialorder %v3227, 20.0
  %vm3444 = vcmp.gt.f32.partialorder %v3228, 20.0
  %vm3445 = vcmp.gt.f32.partialorder %v3229, 20.0
  %vm3446 = vcmp.gt.f32.partialorder %v3230, 20.0
  %vm3447 = vcmp.gt.f32.partialorder %v3231, 20.0
  %vm3448 = vcmp.gt.f32.partialorder %v3232, 20.0
  %vm3449 = vcmp.gt.f32.partialorder %v3233, 20.0
  %vm3450 = vcmp.gt.f32.partialorder %v3234, 20.0
  %vm3451 = vcmp.gt.f32.partialorder %v3235, 20.0
  %vm3452 = vcmp.gt.f32.partialorder %v3236, 20.0
  %vm3453 = vcmp.gt.f32.partialorder %v3237, 20.0
  %vm3454 = vcmp.gt.f32.partialorder %v3238, 20.0
  %vm3455 = vcmp.gt.f32.partialorder %v3239, 20.0
  %vm3456 = vcmp.gt.f32.partialorder %v3240, 20.0
  %vm3457 = vcmp.gt.f32.partialorder %v3241, 20.0
  %vm3458 = vcmp.gt.f32.partialorder %v3242, 20.0
  %v3459 = vmin.f32 %v3207, 20.0
  %v3460 = vmin.f32 %v3208, 20.0
  %v3461 = vmin.f32 %v3209, 20.0
  %v3462 = vmin.f32 %v3210, 20.0
  %v3463 = vmin.f32 %v3211, 20.0
  %v3464 = vmin.f32 %v3212, 20.0
  %v3465 = vmin.f32 %v3213, 20.0
  %v3466 = vmin.f32 %v3214, 20.0
  %v3467 = vmin.f32 %v3215, 20.0
  %v3468 = vmin.f32 %v3216, 20.0
  %v3469 = vmin.f32 %v3217, 20.0
  %v3470 = vmin.f32 %v3218, 20.0
  %v3471 = vmin.f32 %v3219, 20.0
  %v3472 = vmin.f32 %v3220, 20.0
  %v3473 = vmin.f32 %v3221, 20.0
  %v3474 = vmin.f32 %v3222, 20.0
  %v3475 = vmin.f32 %v3223, 20.0
  %v3476 = vmin.f32 %v3224, 20.0
  %v3477 = vmin.f32 %v3225, 20.0
  %v3478 = vmin.f32 %v3226, 20.0
  %v3479 = vmin.f32 %v3227, 20.0
  %v3480 = vmin.f32 %v3228, 20.0
  %v3481 = vmin.f32 %v3229, 20.0
  %v3482 = vmin.f32 %v3230, 20.0
  %v3483 = vmin.f32 %v3231, 20.0
  %v3484 = vmin.f32 %v3232, 20.0
  %v3485 = vmin.f32 %v3233, 20.0
  %v3486 = vmin.f32 %v3234, 20.0
  %v3487 = vmin.f32 %v3235, 20.0
  %v3488 = vmin.f32 %v3236, 20.0
  %v3489 = vmin.f32 %v3237, 20.0
  %v3490 = vmin.f32 %v3238, 20.0
  %v3491 = vmin.f32 %v3239, 20.0
  %v3492 = vmin.f32 %v3240, 20.0
  %v3493 = vmin.f32 %v3241, 20.0
  %v3494 = vmin.f32 %v3242, 20.0
  %v3495 = vmul.f32 %v3459, 1.442695
  %v3496 = vpow.pop %v3495
  %v3497 = vmul.f32 %v3460, 1.442695
  %v3498 = vpow.pop %v3497
  %v3499 = vmul.f32 %v3461, 1.442695
  %v3500 = vpow.pop %v3499
  %v3501 = vmul.f32 %v3462, 1.442695
  %v3502 = vpow.pop %v3501
  %v3503 = vmul.f32 %v3463, 1.442695
  %v3504 = vpow.pop %v3503
  %v3505 = vmul.f32 %v3464, 1.442695
  %v3506 = vpow.pop %v3505
  %v3507 = vmul.f32 %v3465, 1.442695
  %v3508 = vpow.pop %v3507
  %v3509 = vmul.f32 %v3466, 1.442695
  %v3510 = vpow.pop %v3509
  %v3511 = vmul.f32 %v3467, 1.442695
  %v3512 = vpow.pop %v3511
  %v3513 = vmul.f32 %v3468, 1.442695
  %v3514 = vpow.pop %v3513
  %v3515 = vmul.f32 %v3469, 1.442695
  %v3516 = vpow.pop %v3515
  %v3517 = vmul.f32 %v3470, 1.442695
  %v3518 = vpow.pop %v3517
  %v3519 = vmul.f32 %v3471, 1.442695
  %v3520 = vpow.pop %v3519
  %v3521 = vmul.f32 %v3472, 1.442695
  %v3522 = vpow.pop %v3521
  %v3523 = vmul.f32 %v3473, 1.442695
  %v3524 = vpow.pop %v3523
  %v3525 = vmul.f32 %v3474, 1.442695
  %v3526 = vpow.pop %v3525
  %v3527 = vmul.f32 %v3475, 1.442695
  %v3528 = vpow.pop %v3527
  %v3529 = vmul.f32 %v3476, 1.442695
  %v3530 = vpow.pop %v3529
  %v3531 = vmul.f32 %v3477, 1.442695
  %v3532 = vpow.pop %v3531
  %v3533 = vmul.f32 %v3478, 1.442695
  %v3534 = vpow.pop %v3533
  %v3535 = vmul.f32 %v3479, 1.442695
  %v3536 = vpow.pop %v3535
  %v3537 = vmul.f32 %v3480, 1.442695
  %v3538 = vpow.pop %v3537
  %v3539 = vmul.f32 %v3481, 1.442695
  %v3540 = vpow.pop %v3539
  %v3541 = vmul.f32 %v3482, 1.442695
  %v3542 = vpow.pop %v3541
  %v3543 = vmul.f32 %v3483, 1.442695
  %v3544 = vpow.pop %v3543
  %v3545 = vmul.f32 %v3484, 1.442695
  %v3546 = vpow.pop %v3545
  %v3547 = vmul.f32 %v3485, 1.442695
  %v3548 = vpow.pop %v3547
  %v3549 = vmul.f32 %v3486, 1.442695
  %v3550 = vpow.pop %v3549
  %v3551 = vmul.f32 %v3487, 1.442695
  %v3552 = vpow.pop %v3551
  %v3553 = vmul.f32 %v3488, 1.442695
  %v3554 = vpow.pop %v3553
  %v3555 = vmul.f32 %v3489, 1.442695
  %v3556 = vpow.pop %v3555
  %v3557 = vmul.f32 %v3490, 1.442695
  %v3558 = vpow.pop %v3557
  %v3559 = vmul.f32 %v3491, 1.442695
  %v3560 = vpow.pop %v3559
  %v3561 = vmul.f32 %v3492, 1.442695
  %v3562 = vpow.pop %v3561
  %v3563 = vmul.f32 %v3493, 1.442695
  %v3564 = vpow.pop %v3563
  %v3565 = vmul.f32 %v3494, 1.442695
  %v3566 = vpow.pop %v3565
  %v3567 = vadd.f32 %v3496, 1.0
  %v3568 = vlog2.pop %v3567
  %v3569 = vmul.f32 %v3568, 0.6931472
  %v3570 = vmul.f32 -0.5, %v3496
  %v3571 = vadd.f32 %v3570, 1.0
  %v3572 = vmul.f32 %v3571, %v3496
  %v3573 = vand.u32 2147483647, %v3496
  %vm3574 = vcmp.lt.f32.partialorder %v3573, 0.0004427343
  %v3575 = vsel %vm3574, %v3572, %v3569
  %v3576 = vadd.f32 %v3498, 1.0
  %v3577 = vlog2.pop %v3576
  %v3578 = vmul.f32 %v3577, 0.6931472
  %v3579 = vmul.f32 -0.5, %v3498
  %v3580 = vadd.f32 %v3579, 1.0
  %v3581 = vmul.f32 %v3580, %v3498
  %v3582 = vand.u32 2147483647, %v3498
  %vm3583 = vcmp.lt.f32.partialorder %v3582, 0.0004427343
  %v3584 = vsel %vm3583, %v3581, %v3578
  %v3585 = vadd.f32 %v3500, 1.0
  %v3586 = vlog2.pop %v3585
  %v3587 = vmul.f32 %v3586, 0.6931472
  %v3588 = vmul.f32 -0.5, %v3500
  %v3589 = vadd.f32 %v3588, 1.0
  %v3590 = vmul.f32 %v3589, %v3500
  %v3591 = vand.u32 2147483647, %v3500
  %vm3592 = vcmp.lt.f32.partialorder %v3591, 0.0004427343
  %v3593 = vsel %vm3592, %v3590, %v3587
  %v3594 = vadd.f32 %v3502, 1.0
  %v3595 = vlog2.pop %v3594
  %v3596 = vmul.f32 %v3595, 0.6931472
  %v3597 = vmul.f32 -0.5, %v3502
  %v3598 = vadd.f32 %v3597, 1.0
  %v3599 = vmul.f32 %v3598, %v3502
  %v3600 = vand.u32 2147483647, %v3502
  %vm3601 = vcmp.lt.f32.partialorder %v3600, 0.0004427343
  %v3602 = vsel %vm3601, %v3599, %v3596
  %v3603 = vadd.f32 %v3504, 1.0
  %v3604 = vlog2.pop %v3603
  %v3605 = vmul.f32 %v3604, 0.6931472
  %v3606 = vmul.f32 -0.5, %v3504
  %v3607 = vadd.f32 %v3606, 1.0
  %v3608 = vmul.f32 %v3607, %v3504
  %v3609 = vand.u32 2147483647, %v3504
  %vm3610 = vcmp.lt.f32.partialorder %v3609, 0.0004427343
  %v3611 = vsel %vm3610, %v3608, %v3605
  %v3612 = vadd.f32 %v3506, 1.0
  %v3613 = vlog2.pop %v3612
  %v3614 = vmul.f32 %v3613, 0.6931472
  %v3615 = vmul.f32 -0.5, %v3506
  %v3616 = vadd.f32 %v3615, 1.0
  %v3617 = vmul.f32 %v3616, %v3506
  %v3618 = vand.u32 2147483647, %v3506
  %vm3619 = vcmp.lt.f32.partialorder %v3618, 0.0004427343
  %v3620 = vsel %vm3619, %v3617, %v3614
  %v3621 = vadd.f32 %v3508, 1.0
  %v3622 = vlog2.pop %v3621
  %v3623 = vmul.f32 %v3622, 0.6931472
  %v3624 = vmul.f32 -0.5, %v3508
  %v3625 = vadd.f32 %v3624, 1.0
  %v3626 = vmul.f32 %v3625, %v3508
  %v3627 = vand.u32 2147483647, %v3508
  %vm3628 = vcmp.lt.f32.partialorder %v3627, 0.0004427343
  %v3629 = vsel %vm3628, %v3626, %v3623
  %v3630 = vadd.f32 %v3510, 1.0
  %v3631 = vlog2.pop %v3630
  %v3632 = vmul.f32 %v3631, 0.6931472
  %v3633 = vmul.f32 -0.5, %v3510
  %v3634 = vadd.f32 %v3633, 1.0
  %v3635 = vmul.f32 %v3634, %v3510
  %v3636 = vand.u32 2147483647, %v3510
  %vm3637 = vcmp.lt.f32.partialorder %v3636, 0.0004427343
  %v3638 = vsel %vm3637, %v3635, %v3632
  %v3639 = vadd.f32 %v3512, 1.0
  %v3640 = vlog2.pop %v3639
  %v3641 = vmul.f32 %v3640, 0.6931472
  %v3642 = vmul.f32 -0.5, %v3512
  %v3643 = vadd.f32 %v3642, 1.0
  %v3644 = vmul.f32 %v3643, %v3512
  %v3645 = vand.u32 2147483647, %v3512
  %vm3646 = vcmp.lt.f32.partialorder %v3645, 0.0004427343
  %v3647 = vsel %vm3646, %v3644, %v3641
  %v3648 = vadd.f32 %v3514, 1.0
  %v3649 = vlog2.pop %v3648
  %v3650 = vmul.f32 %v3649, 0.6931472
  %v3651 = vmul.f32 -0.5, %v3514
  %v3652 = vadd.f32 %v3651, 1.0
  %v3653 = vmul.f32 %v3652, %v3514
  %v3654 = vand.u32 2147483647, %v3514
  %vm3655 = vcmp.lt.f32.partialorder %v3654, 0.0004427343
  %v3656 = vsel %vm3655, %v3653, %v3650
  %v3657 = vadd.f32 %v3516, 1.0
  %v3658 = vlog2.pop %v3657
  %v3659 = vmul.f32 %v3658, 0.6931472
  %v3660 = vmul.f32 -0.5, %v3516
  %v3661 = vadd.f32 %v3660, 1.0
  %v3662 = vmul.f32 %v3661, %v3516
  %v3663 = vand.u32 2147483647, %v3516
  %vm3664 = vcmp.lt.f32.partialorder %v3663, 0.0004427343
  %v3665 = vsel %vm3664, %v3662, %v3659
  %v3666 = vadd.f32 %v3518, 1.0
  %v3667 = vlog2.pop %v3666
  %v3668 = vmul.f32 %v3667, 0.6931472
  %v3669 = vmul.f32 -0.5, %v3518
  %v3670 = vadd.f32 %v3669, 1.0
  %v3671 = vmul.f32 %v3670, %v3518
  %v3672 = vand.u32 2147483647, %v3518
  %vm3673 = vcmp.lt.f32.partialorder %v3672, 0.0004427343
  %v3674 = vsel %vm3673, %v3671, %v3668
  %v3675 = vadd.f32 %v3520, 1.0
  %v3676 = vlog2.pop %v3675
  %v3677 = vmul.f32 %v3676, 0.6931472
  %v3678 = vmul.f32 -0.5, %v3520
  %v3679 = vadd.f32 %v3678, 1.0
  %v3680 = vmul.f32 %v3679, %v3520
  %v3681 = vand.u32 2147483647, %v3520
  %vm3682 = vcmp.lt.f32.partialorder %v3681, 0.0004427343
  %v3683 = vsel %vm3682, %v3680, %v3677
  %v3684 = vadd.f32 %v3522, 1.0
  %v3685 = vlog2.pop %v3684
  %v3686 = vmul.f32 %v3685, 0.6931472
  %v3687 = vmul.f32 -0.5, %v3522
  %v3688 = vadd.f32 %v3687, 1.0
  %v3689 = vmul.f32 %v3688, %v3522
  %v3690 = vand.u32 2147483647, %v3522
  %vm3691 = vcmp.lt.f32.partialorder %v3690, 0.0004427343
  %v3692 = vsel %vm3691, %v3689, %v3686
  %v3693 = vadd.f32 %v3524, 1.0
  %v3694 = vlog2.pop %v3693
  %v3695 = vmul.f32 %v3694, 0.6931472
  %v3696 = vmul.f32 -0.5, %v3524
  %v3697 = vadd.f32 %v3696, 1.0
  %v3698 = vmul.f32 %v3697, %v3524
  %v3699 = vand.u32 2147483647, %v3524
  %vm3700 = vcmp.lt.f32.partialorder %v3699, 0.0004427343
  %v3701 = vsel %vm3700, %v3698, %v3695
  %v3702 = vadd.f32 %v3526, 1.0
  %v3703 = vlog2.pop %v3702
  %v3704 = vmul.f32 %v3703, 0.6931472
  %v3705 = vmul.f32 -0.5, %v3526
  %v3706 = vadd.f32 %v3705, 1.0
  %v3707 = vmul.f32 %v3706, %v3526
  %v3708 = vand.u32 2147483647, %v3526
  %vm3709 = vcmp.lt.f32.partialorder %v3708, 0.0004427343
  %v3710 = vsel %vm3709, %v3707, %v3704
  %v3711 = vadd.f32 %v3528, 1.0
  %v3712 = vlog2.pop %v3711
  %v3713 = vmul.f32 %v3712, 0.6931472
  %v3714 = vmul.f32 -0.5, %v3528
  %v3715 = vadd.f32 %v3714, 1.0
  %v3716 = vmul.f32 %v3715, %v3528
  %v3717 = vand.u32 2147483647, %v3528
  %vm3718 = vcmp.lt.f32.partialorder %v3717, 0.0004427343
  %v3719 = vsel %vm3718, %v3716, %v3713
  %v3720 = vadd.f32 %v3530, 1.0
  %v3721 = vlog2.pop %v3720
  %v3722 = vmul.f32 %v3721, 0.6931472
  %v3723 = vmul.f32 -0.5, %v3530
  %v3724 = vadd.f32 %v3723, 1.0
  %v3725 = vmul.f32 %v3724, %v3530
  %v3726 = vand.u32 2147483647, %v3530
  %vm3727 = vcmp.lt.f32.partialorder %v3726, 0.0004427343
  %v3728 = vsel %vm3727, %v3725, %v3722
  %v3729 = vadd.f32 %v3532, 1.0
  %v3730 = vlog2.pop %v3729
  %v3731 = vmul.f32 %v3730, 0.6931472
  %v3732 = vmul.f32 -0.5, %v3532
  %v3733 = vadd.f32 %v3732, 1.0
  %v3734 = vmul.f32 %v3733, %v3532
  %v3735 = vand.u32 2147483647, %v3532
  %vm3736 = vcmp.lt.f32.partialorder %v3735, 0.0004427343
  %v3737 = vsel %vm3736, %v3734, %v3731
  %v3738 = vadd.f32 %v3534, 1.0
  %v3739 = vlog2.pop %v3738
  %v3740 = vmul.f32 %v3739, 0.6931472
  %v3741 = vmul.f32 -0.5, %v3534
  %v3742 = vadd.f32 %v3741, 1.0
  %v3743 = vmul.f32 %v3742, %v3534
  %v3744 = vand.u32 2147483647, %v3534
  %vm3745 = vcmp.lt.f32.partialorder %v3744, 0.0004427343
  %v3746 = vsel %vm3745, %v3743, %v3740
  %v3747 = vadd.f32 %v3536, 1.0
  %v3748 = vlog2.pop %v3747
  %v3749 = vmul.f32 %v3748, 0.6931472
  %v3750 = vmul.f32 -0.5, %v3536
  %v3751 = vadd.f32 %v3750, 1.0
  %v3752 = vmul.f32 %v3751, %v3536
  %v3753 = vand.u32 2147483647, %v3536
  %vm3754 = vcmp.lt.f32.partialorder %v3753, 0.0004427343
  %v3755 = vsel %vm3754, %v3752, %v3749
  %v3756 = vadd.f32 %v3538, 1.0
  %v3757 = vlog2.pop %v3756
  %v3758 = vmul.f32 %v3757, 0.6931472
  %v3759 = vmul.f32 -0.5, %v3538
  %v3760 = vadd.f32 %v3759, 1.0
  %v3761 = vmul.f32 %v3760, %v3538
  %v3762 = vand.u32 2147483647, %v3538
  %vm3763 = vcmp.lt.f32.partialorder %v3762, 0.0004427343
  %v3764 = vsel %vm3763, %v3761, %v3758
  %v3765 = vadd.f32 %v3540, 1.0
  %v3766 = vlog2.pop %v3765
  %v3767 = vmul.f32 %v3766, 0.6931472
  %v3768 = vmul.f32 -0.5, %v3540
  %v3769 = vadd.f32 %v3768, 1.0
  %v3770 = vmul.f32 %v3769, %v3540
  %v3771 = vand.u32 2147483647, %v3540
  %vm3772 = vcmp.lt.f32.partialorder %v3771, 0.0004427343
  %v3773 = vsel %vm3772, %v3770, %v3767
  %v3774 = vadd.f32 %v3542, 1.0
  %v3775 = vlog2.pop %v3774
  %v3776 = vmul.f32 %v3775, 0.6931472
  %v3777 = vmul.f32 -0.5, %v3542
  %v3778 = vadd.f32 %v3777, 1.0
  %v3779 = vmul.f32 %v3778, %v3542
  %v3780 = vand.u32 2147483647, %v3542
  %vm3781 = vcmp.lt.f32.partialorder %v3780, 0.0004427343
  %v3782 = vsel %vm3781, %v3779, %v3776
  %v3783 = vadd.f32 %v3544, 1.0
  %v3784 = vlog2.pop %v3783
  %v3785 = vmul.f32 %v3784, 0.6931472
  %v3786 = vmul.f32 -0.5, %v3544
  %v3787 = vadd.f32 %v3786, 1.0
  %v3788 = vmul.f32 %v3787, %v3544
  %v3789 = vand.u32 2147483647, %v3544
  %vm3790 = vcmp.lt.f32.partialorder %v3789, 0.0004427343
  %v3791 = vsel %vm3790, %v3788, %v3785
  %v3792 = vadd.f32 %v3546, 1.0
  %v3793 = vlog2.pop %v3792
  %v3794 = vmul.f32 %v3793, 0.6931472
  %v3795 = vmul.f32 -0.5, %v3546
  %v3796 = vadd.f32 %v3795, 1.0
  %v3797 = vmul.f32 %v3796, %v3546
  %v3798 = vand.u32 2147483647, %v3546
  %vm3799 = vcmp.lt.f32.partialorder %v3798, 0.0004427343
  %v3800 = vsel %vm3799, %v3797, %v3794
  %v3801 = vadd.f32 %v3548, 1.0
  %v3802 = vlog2.pop %v3801
  %v3803 = vmul.f32 %v3802, 0.6931472
  %v3804 = vmul.f32 -0.5, %v3548
  %v3805 = vadd.f32 %v3804, 1.0
  %v3806 = vmul.f32 %v3805, %v3548
  %v3807 = vand.u32 2147483647, %v3548
  %vm3808 = vcmp.lt.f32.partialorder %v3807, 0.0004427343
  %v3809 = vsel %vm3808, %v3806, %v3803
  %v3810 = vadd.f32 %v3550, 1.0
  %v3811 = vlog2.pop %v3810
  %v3812 = vmul.f32 %v3811, 0.6931472
  %v3813 = vmul.f32 -0.5, %v3550
  %v3814 = vadd.f32 %v3813, 1.0
  %v3815 = vmul.f32 %v3814, %v3550
  %v3816 = vand.u32 2147483647, %v3550
  %vm3817 = vcmp.lt.f32.partialorder %v3816, 0.0004427343
  %v3818 = vsel %vm3817, %v3815, %v3812
  %v3819 = vadd.f32 %v3552, 1.0
  %v3820 = vlog2.pop %v3819
  %v3821 = vmul.f32 %v3820, 0.6931472
  %v3822 = vmul.f32 -0.5, %v3552
  %v3823 = vadd.f32 %v3822, 1.0
  %v3824 = vmul.f32 %v3823, %v3552
  %v3825 = vand.u32 2147483647, %v3552
  %vm3826 = vcmp.lt.f32.partialorder %v3825, 0.0004427343
  %v3827 = vsel %vm3826, %v3824, %v3821
  %v3828 = vadd.f32 %v3554, 1.0
  %v3829 = vlog2.pop %v3828
  %v3830 = vmul.f32 %v3829, 0.6931472
  %v3831 = vmul.f32 -0.5, %v3554
  %v3832 = vadd.f32 %v3831, 1.0
  %v3833 = vmul.f32 %v3832, %v3554
  %v3834 = vand.u32 2147483647, %v3554
  %vm3835 = vcmp.lt.f32.partialorder %v3834, 0.0004427343
  %v3836 = vsel %vm3835, %v3833, %v3830
  %v3837 = vadd.f32 %v3556, 1.0
  %v3838 = vlog2.pop %v3837
  %v3839 = vmul.f32 %v3838, 0.6931472
  %v3840 = vmul.f32 -0.5, %v3556
  %v3841 = vadd.f32 %v3840, 1.0
  %v3842 = vmul.f32 %v3841, %v3556
  %v3843 = vand.u32 2147483647, %v3556
  %vm3844 = vcmp.lt.f32.partialorder %v3843, 0.0004427343
  %v3845 = vsel %vm3844, %v3842, %v3839
  %v3846 = vadd.f32 %v3558, 1.0
  %v3847 = vlog2.pop %v3846
  %v3848 = vmul.f32 %v3847, 0.6931472
  %v3849 = vmul.f32 -0.5, %v3558
  %v3850 = vadd.f32 %v3849, 1.0
  %v3851 = vmul.f32 %v3850, %v3558
  %v3852 = vand.u32 2147483647, %v3558
  %vm3853 = vcmp.lt.f32.partialorder %v3852, 0.0004427343
  %v3854 = vsel %vm3853, %v3851, %v3848
  %v3855 = vadd.f32 %v3560, 1.0
  %v3856 = vlog2.pop %v3855
  %v3857 = vmul.f32 %v3856, 0.6931472
  %v3858 = vmul.f32 -0.5, %v3560
  %v3859 = vadd.f32 %v3858, 1.0
  %v3860 = vmul.f32 %v3859, %v3560
  %v3861 = vand.u32 2147483647, %v3560
  %vm3862 = vcmp.lt.f32.partialorder %v3861, 0.0004427343
  %v3863 = vsel %vm3862, %v3860, %v3857
  %v3864 = vadd.f32 %v3562, 1.0
  %v3865 = vlog2.pop %v3864
  %v3866 = vmul.f32 %v3865, 0.6931472
  %v3867 = vmul.f32 -0.5, %v3562
  %v3868 = vadd.f32 %v3867, 1.0
  %v3869 = vmul.f32 %v3868, %v3562
  %v3870 = vand.u32 2147483647, %v3562
  %vm3871 = vcmp.lt.f32.partialorder %v3870, 0.0004427343
  %v3872 = vsel %vm3871, %v3869, %v3866
  %v3873 = vadd.f32 %v3564, 1.0
  %v3874 = vlog2.pop %v3873
  %v3875 = vmul.f32 %v3874, 0.6931472
  %v3876 = vmul.f32 -0.5, %v3564
  %v3877 = vadd.f32 %v3876, 1.0
  %v3878 = vmul.f32 %v3877, %v3564
  %v3879 = vand.u32 2147483647, %v3564
  %vm3880 = vcmp.lt.f32.partialorder %v3879, 0.0004427343
  %v3881 = vsel %vm3880, %v3878, %v3875
  %v3882 = vadd.f32 %v3566, 1.0
  %v3883 = vlog2.pop %v3882
  %v3884 = vmul.f32 %v3883, 0.6931472
  %v3885 = vmul.f32 -0.5, %v3566
  %v3886 = vadd.f32 %v3885, 1.0
  %v3887 = vmul.f32 %v3886, %v3566
  %v3888 = vand.u32 2147483647, %v3566
  %vm3889 = vcmp.lt.f32.partialorder %v3888, 0.0004427343
  %v3890 = vsel %vm3889, %v3887, %v3884
  %v3891 = vsel %vm3423, %v3207, %v3575
  %v3892 = vsel %vm3424, %v3208, %v3584
  %v3893 = vsel %vm3425, %v3209, %v3593
  %v3894 = vsel %vm3426, %v3210, %v3602
  %v3895 = vsel %vm3427, %v3211, %v3611
  %v3896 = vsel %vm3428, %v3212, %v3620
  %v3897 = vsel %vm3429, %v3213, %v3629
  %v3898 = vsel %vm3430, %v3214, %v3638
  %v3899 = vsel %vm3431, %v3215, %v3647
  %v3900 = vsel %vm3432, %v3216, %v3656
  %v3901 = vsel %vm3433, %v3217, %v3665
  %v3902 = vsel %vm3434, %v3218, %v3674
  %v3903 = vsel %vm3435, %v3219, %v3683
  %v3904 = vsel %vm3436, %v3220, %v3692
  %v3905 = vsel %vm3437, %v3221, %v3701
  %v3906 = vsel %vm3438, %v3222, %v3710
  %v3907 = vsel %vm3439, %v3223, %v3719
  %v3908 = vsel %vm3440, %v3224, %v3728
  %v3909 = vsel %vm3441, %v3225, %v3737
  %v3910 = vsel %vm3442, %v3226, %v3746
  %v3911 = vsel %vm3443, %v3227, %v3755
  %v3912 = vsel %vm3444, %v3228, %v3764
  %v3913 = vsel %vm3445, %v3229, %v3773
  %v3914 = vsel %vm3446, %v3230, %v3782
  %v3915 = vsel %vm3447, %v3231, %v3791
  %v3916 = vsel %vm3448, %v3232, %v3800
  %v3917 = vsel %vm3449, %v3233, %v3809
  %v3918 = vsel %vm3450, %v3234, %v3818
  %v3919 = vsel %vm3451, %v3235, %v3827
  %v3920 = vsel %vm3452, %v3236, %v3836
  %v3921 = vsel %vm3453, %v3237, %v3845
  %v3922 = vsel %vm3454, %v3238, %v3854
  %v3923 = vsel %vm3455, %v3239, %v3863
  %v3924 = vsel %vm3456, %v3240, %v3872
  %v3925 = vsel %vm3457, %v3241, %v3881
  %v3926 = vsel %vm3458, %v3242, %v3890
  %3963 = vrot.lane.b32.xlu0 %v3891, 64
  %v3964 = vpop.permute.xlu0 %3963
  %3965 = vrot.lane.b32.xlu0 %v3892, 64
  %v3966 = vpop.permute.xlu0 %3965
  %3967 = vrot.lane.b32.xlu0 %v3893, 64
  %v3968 = vpop.permute.xlu0 %3967
  %3969 = vrot.lane.b32.xlu0 %v3894, 64
  %v3970 = vpop.permute.xlu0 %3969
  %3971 = vrot.lane.b32.xlu0 %v3895, 64
  %v3972 = vpop.permute.xlu0 %3971
  %3973 = vrot.lane.b32.xlu0 %v3896, 64
  %v3974 = vpop.permute.xlu0 %3973
  %3975 = vrot.lane.b32.xlu0 %v3897, 64
  %v3976 = vpop.permute.xlu0 %3975
  %3977 = vrot.lane.b32.xlu0 %v3898, 64
  %v3978 = vpop.permute.xlu0 %3977
  %3979 = vrot.lane.b32.xlu0 %v3899, 64
  %v3980 = vpop.permute.xlu0 %3979
  %3981 = vrot.lane.b32.xlu0 %v3900, 64
  %v3982 = vpop.permute.xlu0 %3981
  %3983 = vrot.lane.b32.xlu0 %v3901, 64
  %v3984 = vpop.permute.xlu0 %3983
  %3985 = vrot.lane.b32.xlu0 %v3902, 64
  %v3986 = vpop.permute.xlu0 %3985
  %3987 = vrot.lane.b32.xlu0 %v3903, 64
  %v3988 = vpop.permute.xlu0 %3987
  %3989 = vrot.lane.b32.xlu0 %v3904, 64
  %v3990 = vpop.permute.xlu0 %3989
  %3991 = vrot.lane.b32.xlu0 %v3905, 64
  %v3992 = vpop.permute.xlu0 %3991
  %3993 = vrot.lane.b32.xlu0 %v3906, 64
  %v3994 = vpop.permute.xlu0 %3993
  %3995 = vrot.lane.b32.xlu0 %v3907, 64
  %v3996 = vpop.permute.xlu0 %3995
  %3997 = vrot.lane.b32.xlu0 %v3908, 64
  %v3998 = vpop.permute.xlu0 %3997
  %3999 = vrot.lane.b32.xlu0 %v3909, 64
  %v4000 = vpop.permute.xlu0 %3999
  %4001 = vrot.lane.b32.xlu0 %v3910, 64
  %v4002 = vpop.permute.xlu0 %4001
  %4003 = vrot.lane.b32.xlu0 %v3911, 64
  %v4004 = vpop.permute.xlu0 %4003
  %4005 = vrot.lane.b32.xlu0 %v3912, 64
  %v4006 = vpop.permute.xlu0 %4005
  %4007 = vrot.lane.b32.xlu0 %v3913, 64
  %v4008 = vpop.permute.xlu0 %4007
  %4009 = vrot.lane.b32.xlu0 %v3914, 64
  %v4010 = vpop.permute.xlu0 %4009
  %4011 = vrot.lane.b32.xlu0 %v3915, 64
  %v4012 = vpop.permute.xlu0 %4011
  %4013 = vrot.lane.b32.xlu0 %v3916, 64
  %v4014 = vpop.permute.xlu0 %4013
  %4015 = vrot.lane.b32.xlu0 %v3917, 64
  %v4016 = vpop.permute.xlu0 %4015
  %4017 = vrot.lane.b32.xlu0 %v3918, 64
  %v4018 = vpop.permute.xlu0 %4017
  %4019 = vrot.lane.b32.xlu0 %v3919, 64
  %v4020 = vpop.permute.xlu0 %4019
  %4021 = vrot.lane.b32.xlu0 %v3920, 64
  %v4022 = vpop.permute.xlu0 %4021
  %4023 = vrot.lane.b32.xlu0 %v3921, 64
  %v4024 = vpop.permute.xlu0 %4023
  %4025 = vrot.lane.b32.xlu0 %v3922, 64
  %v4026 = vpop.permute.xlu0 %4025
  %4027 = vrot.lane.b32.xlu0 %v3923, 64
  %v4028 = vpop.permute.xlu0 %4027
  %4029 = vrot.lane.b32.xlu0 %v3924, 64
  %v4030 = vpop.permute.xlu0 %4029
  %4031 = vrot.lane.b32.xlu0 %v3925, 64
  %v4032 = vpop.permute.xlu0 %4031
  %4033 = vrot.lane.b32.xlu0 %v3926, 64
  %v4034 = vpop.permute.xlu0 %4033
  %v4071 = vmul.f32 %v3387, %v3964
  %v4072 = vmul.f32 %v3388, %v3966
  %v4073 = vmul.f32 %v3389, %v3968
  %v4074 = vmul.f32 %v3390, %v3970
  %v4075 = vmul.f32 %v3391, %v3972
  %v4076 = vmul.f32 %v3392, %v3974
  %v4077 = vmul.f32 %v3393, %v3976
  %v4078 = vmul.f32 %v3394, %v3978
  %v4079 = vmul.f32 %v3395, %v3980
  %v4080 = vmul.f32 %v3396, %v3982
  %v4081 = vmul.f32 %v3397, %v3984
  %v4082 = vmul.f32 %v3398, %v3986
  %v4083 = vmul.f32 %v3399, %v3988
  %v4084 = vmul.f32 %v3400, %v3990
  %v4085 = vmul.f32 %v3401, %v3992
  %v4086 = vmul.f32 %v3402, %v3994
  %v4087 = vmul.f32 %v3403, %v3996
  %v4088 = vmul.f32 %v3404, %v3998
  %v4089 = vmul.f32 %v3405, %v4000
  %v4090 = vmul.f32 %v3406, %v4002
  %v4091 = vmul.f32 %v3407, %v4004
  %v4092 = vmul.f32 %v3408, %v4006
  %v4093 = vmul.f32 %v3409, %v4008
  %v4094 = vmul.f32 %v3410, %v4010
  %v4095 = vmul.f32 %v3411, %v4012
  %v4096 = vmul.f32 %v3412, %v4014
  %v4097 = vmul.f32 %v3413, %v4016
  %v4098 = vmul.f32 %v3414, %v4018
  %v4099 = vmul.f32 %v3415, %v4020
  %v4100 = vmul.f32 %v3416, %v4022
  %v4101 = vmul.f32 %v3417, %v4024
  %v4102 = vmul.f32 %v3418, %v4026
  %v4103 = vmul.f32 %v3419, %v4028
  %v4104 = vmul.f32 %v3420, %v4030
  %v4105 = vmul.f32 %v3421, %v4032
  %v4106 = vmul.f32 %v3422, %v4034
  %v4107 = vadd.f32 %v4071, %v4074
  %v4108 = vadd.f32 %v4072, %v4075
  %v4109 = vadd.f32 %v4073, %v4076
  %v4110 = vadd.f32 %v4107, %v4077
  %v4111 = vadd.f32 %v4108, %v4078
  %v4112 = vadd.f32 %v4109, %v4079
  %v4113 = vadd.f32 %v4110, %v4080
  %v4114 = vadd.f32 %v4111, %v4081
  %v4115 = vadd.f32 %v4112, %v4082
  %v4116 = vadd.f32 %v4113, %v4083
  %v4117 = vadd.f32 %v4114, %v4084
  %v4118 = vadd.f32 %v4115, %v4085
  %v4119 = vadd.f32 %v4116, %v4086
  %v4120 = vadd.f32 %v4117, %v4087
  %v4121 = vadd.f32 %v4118, %v4088
  %v4122 = vadd.f32 %v4119, %v4089
  %v4123 = vadd.f32 %v4120, %v4090
  %v4124 = vadd.f32 %v4121, %v4091
  %v4125 = vadd.f32 %v4122, %v4092
  %v4126 = vadd.f32 %v4123, %v4093
  %v4127 = vadd.f32 %v4124, %v4094
  %v4128 = vadd.f32 %v4125, %v4095
  %v4129 = vadd.f32 %v4126, %v4096
  %v4130 = vadd.f32 %v4127, %v4097
  %v4131 = vadd.f32 %v4128, %v4098
  %v4132 = vadd.f32 %v4129, %v4099
  %v4133 = vadd.f32 %v4130, %v4100
  %v4134 = vadd.f32 %v4131, %v4101
  %v4135 = vadd.f32 %v4132, %v4102
  %v4136 = vadd.f32 %v4133, %v4103
  %v4137 = vadd.f32 %v4134, %v4104
  %v4138 = vadd.f32 %v4135, %v4105
  %v4139 = vadd.f32 %v4136, %v4106
  %s4140 = scalar_lea.vmem %s8, 1
  %v4141 = vld [vmem:[%s4140] sm:$0x1]
  %s4142 = scalar_lea.vmem %s9, 1
  %v4143 = vld [vmem:[%s4142] sm:$0x1]
  %v4144 = vsel %vm384, %v4137, 0.0
  %v4145 = vsel %vm384, %v4138, 0.0
  %v4146 = vadd.f32 %v4144, %v4145
  %v4147 = vsel %vm384, %v4139, 0.0
  %v4148 = vadd.f32 %v4146, %v4147
  %v4149 = vrot.slane %v4148, 4
  %v4150 = vadd.f32 %v4148, %v4149
  %v4151 = vrot.slane %v4150, 2
  %v4152 = vadd.f32 %v4150, %v4151
  %v4153 = vrot.slane %v4152, 1
  %v4154 = vadd.f32 %v4152, %v4153
  %v4155 = vmul.f32 %v4154, 0.041666668
  %v4156 = vsub.f32 %v4137, %v4155
  %v4157 = vsub.f32 %v4138, %v4155
  %v4158 = vsub.f32 %v4139, %v4155
  %v4159 = vmul.f32 %v4156, %v4156
  %v4160 = vmul.f32 %v4157, %v4157
  %v4161 = vmul.f32 %v4158, %v4158
  %v4162 = vsel %vm384, %v4159, 0.0
  %v4163 = vsel %vm384, %v4160, 0.0
  %v4164 = vadd.f32 %v4162, %v4163
  %v4165 = vsel %vm384, %v4161, 0.0
  %v4166 = vadd.f32 %v4164, %v4165
  %v4167 = vrot.slane %v4166, 4
  %v4168 = vadd.f32 %v4166, %v4167
  %v4169 = vrot.slane %v4168, 2
  %v4170 = vadd.f32 %v4168, %v4169
  %v4171 = vrot.slane %v4170, 1
  %v4172 = vadd.f32 %v4170, %v4171
  %v4173 = vmul.f32 %v4172, 0.041666668
  %v4174 = vadd.f32 %v4173, 1e-05
  %v4175 = vrsqrt.pop %v4174
  %v4176 = vmul.f32 %v4156, %v4175
  %v4177 = vmul.f32 %v4157, %v4175
  %v4178 = vmul.f32 %v4158, %v4175
  %v4180 = vlaneseq
  %v4181 = vshrl.u32 %v4180, 7
  %v4182 = vsub.s32 0, %v4181
  %v4183 = vrot.slane %v4141, %v4182
  %v4185 = vmul.f32 %v4176, %v4183
  %v4186 = vmul.f32 %v4177, %v4183
  %v4187 = vmul.f32 %v4178, %v4183
  %v4189 = vlaneseq
  %v4190 = vshrl.u32 %v4189, 7
  %v4191 = vsub.s32 0, %v4190
  %v4192 = vrot.slane %v4143, %v4191
  %v4194 = vadd.f32 %v4185, %v4192
  %v4195 = vadd.f32 %v4186, %v4192
  %v4196 = vadd.f32 %v4187, %v4192
  %v4197 = vadd.f32 %v2384, %v4194
  %v4198 = vadd.f32 %v2385, %v4195
  %v4199 = vadd.f32 %v2386, %v4196
  %vm4200 = vcmp.gt.f32.partialorder %v4197, 20.0
  %vm4201 = vcmp.gt.f32.partialorder %v4198, 20.0
  %vm4202 = vcmp.gt.f32.partialorder %v4199, 20.0
  %v4203 = vmin.f32 %v4197, 20.0
  %v4204 = vmin.f32 %v4198, 20.0
  %v4205 = vmin.f32 %v4199, 20.0
  %v4206 = vmul.f32 %v4203, 1.442695
  %v4207 = vpow.pop %v4206
  %v4208 = vmul.f32 %v4204, 1.442695
  %v4209 = vpow.pop %v4208
  %v4210 = vmul.f32 %v4205, 1.442695
  %v4211 = vpow.pop %v4210
  %v4212 = vadd.f32 %v4207, 1.0
  %v4213 = vlog2.pop %v4212
  %v4214 = vmul.f32 %v4213, 0.6931472
  %v4215 = vmul.f32 -0.5, %v4207
  %v4216 = vadd.f32 %v4215, 1.0
  %v4217 = vmul.f32 %v4216, %v4207
  %v4218 = vand.u32 2147483647, %v4207
  %vm4219 = vcmp.lt.f32.partialorder %v4218, 0.0004427343
  %v4220 = vsel %vm4219, %v4217, %v4214
  %v4221 = vadd.f32 %v4209, 1.0
  %v4222 = vlog2.pop %v4221
  %v4223 = vmul.f32 %v4222, 0.6931472
  %v4224 = vmul.f32 -0.5, %v4209
  %v4225 = vadd.f32 %v4224, 1.0
  %v4226 = vmul.f32 %v4225, %v4209
  %v4227 = vand.u32 2147483647, %v4209
  %vm4228 = vcmp.lt.f32.partialorder %v4227, 0.0004427343
  %v4229 = vsel %vm4228, %v4226, %v4223
  %v4230 = vadd.f32 %v4211, 1.0
  %v4231 = vlog2.pop %v4230
  %v4232 = vmul.f32 %v4231, 0.6931472
  %v4233 = vmul.f32 -0.5, %v4211
  %v4234 = vadd.f32 %v4233, 1.0
  %v4235 = vmul.f32 %v4234, %v4211
  %v4236 = vand.u32 2147483647, %v4211
  %vm4237 = vcmp.lt.f32.partialorder %v4236, 0.0004427343
  %v4238 = vsel %vm4237, %v4235, %v4232
  %v4239 = vsel %vm4200, %v4197, %v4220
  %v4240 = vsel %vm4201, %v4198, %v4229
  %v4241 = vsel %vm4202, %v4199, %v4238
  %v4242 = vpack.c.bf16 %v4240, %v4239
  %v4243 = vpack.c.bf16 %v4241, %v4241
  %s4244 = scalar_lea.vmem %s3, 128
  %v4245 = vld [vmem:[%s4244] sm:$0xff]
  %v4246 = vld [vmem:[%s4244 + $0x8] sm:$0xff]
  %v4247 = vld [vmem:[%s4244 + $0x10] sm:$0xff]
  %v4248 = vld [vmem:[%s4244 + $0x18] sm:$0xff]
  %v4249 = vld [vmem:[%s4244 + $0x20] sm:$0xff]
  %v4250 = vld [vmem:[%s4244 + $0x28] sm:$0xff]
  %v4251 = vld [vmem:[%s4244 + $0x30] sm:$0xff]
  %v4252 = vld [vmem:[%s4244 + $0x38] sm:$0xff]
  %v4261 = vunpack.c.l.b16 %v4245
  %v4262 = vunpack.c.h.b16 %v4245
  %v4263 = vunpack.c.l.b16 %v4246
  %v4264 = vunpack.c.h.b16 %v4246
  %v4265 = vunpack.c.l.b16 %v4247
  %v4266 = vunpack.c.h.b16 %v4247
  %v4267 = vunpack.c.l.b16 %v4248
  %v4268 = vunpack.c.h.b16 %v4248
  %v4269 = vunpack.c.l.b16 %v4249
  %v4270 = vunpack.c.h.b16 %v4249
  %v4271 = vunpack.c.l.b16 %v4250
  %v4272 = vunpack.c.h.b16 %v4250
  %v4273 = vunpack.c.l.b16 %v4251
  %v4274 = vunpack.c.h.b16 %v4251
  %v4275 = vunpack.c.l.b16 %v4252
  %v4276 = vunpack.c.h.b16 %v4252
  %v4277 = vpack.c.b16 %v4263, %v4261
  %v4278 = vpack.c.b16 %v4264, %v4262
  %v4279 = vpack.c.b16 %v4267, %v4265
  %v4280 = vpack.c.b16 %v4268, %v4266
  %v4281 = vpack.c.b16 %v4271, %v4269
  %v4282 = vpack.c.b16 %v4272, %v4270
  %v4283 = vpack.c.b16 %v4275, %v4273
  %v4284 = vpack.c.b16 %v4276, %v4274
  %v4294 = vsel %vm384, %v4242, 0
  %v4297 = vsel %vm384, %v4243, 0
  %4299 = vmatprep.subr.bf16.mxu0 %v4278
  %4300 = vmatpush1.bf16.msra.mxu0 %v4277
  %4301 = vmatprep.subr.bf16.mxu0 %v4280
  %4302 = vmatpush1.bf16.msra.mxu0 %v4279
  %4303 = vmatprep.subr.bf16.mxu0 %v4282
  %4304 = vmatpush1.bf16.msra.mxu0 %v4281
  %4305 = vmatprep.subr.bf16.mxu0 %v4284
  %4306 = vmatpush1.bf16.msra.mxu0 %v4283
  %4307 = vmatprep.subr.bf16.mxu0 0
  %4308 = vmatpush1.bf16.msra.mxu0 0
  %4309 = vmatprep.subr.bf16.mxu0 0
  %4310 = vmatpush1.bf16.msra.mxu0 0
  %4311 = vmatprep.subr.bf16.mxu0 0
  %4312 = vmatpush1.bf16.msra.mxu0 0
  %4313 = vmatprep.subr.bf16.mxu0 0
  %4314 = vmatpush1.bf16.msra.mxu0 0
  %4315 = vmatprep.subr.bf16.mxu0 0
  %4316 = vmatpush1.bf16.msra.mxu0 0
  %4317 = vmatprep.subr.bf16.mxu0 0
  %4318 = vmatpush1.bf16.msra.mxu0 0
  %4319 = vmatprep.subr.bf16.mxu0 0
  %4320 = vmatpush1.bf16.msra.mxu0 0
  %4321 = vmatprep.subr.bf16.mxu0 0
  %4322 = vmatpush1.bf16.msra.mxu0 0
  %4323 = vmatprep.subr.bf16.mxu0 0
  %4324 = vmatpush1.bf16.msra.mxu0 0
  %4325 = vmatprep.subr.bf16.mxu0 0
  %4326 = vmatpush1.bf16.msra.mxu0 0
  %4327 = vmatprep.subr.bf16.mxu0 0
  %4328 = vmatpush1.bf16.msra.mxu0 0
  %4329 = vmatprep.subr.bf16.mxu0 0
  %4330 = vmatpush1.bf16.msra.mxu0 0
  %4331 = vmatprep.mubr.bf16.mxu0 0
  %4332 = vmatmul.mubr.bf16.gmra.mrb[0].mxu0 %v4294
  %v4333 = vpop.f32.mrb[0].mxu0
  %v4334 = vadd.f32 0.0, %v4333
  %v4335 = vpop.f32.mrb[0].mxu0
  %v4336 = vadd.f32 0.0, %v4335
  %v4337 = vpop.f32.mrb[0].mxu0
  %v4338 = vadd.f32 0.0, %v4337
  %v4339 = vpop.f32.mrb[0].mxu0
  %v4340 = vadd.f32 0.0, %v4339
  %4341 = vmatprep.mubr.bf16.mxu0 0
  %4342 = vmatmul.mubr.bf16.gmra.mrb[0].mxu0 %v4297
  %v4343 = vpop.f32.mrb[0].mxu0
  %v4344 = vadd.f32 0.0, %v4343
  %v4345 = vpop.f32.mrb[0].mxu0
  %v4346 = vadd.f32 0.0, %v4345
  %v4347 = vpop.f32.mrb[0].mxu0
  %v4348 = vpop.f32.mrb[0].mxu0
  %4349 = vdwg.mxu0
  %s4350 = scalar_lea.vmem %s4, 48
  %v4351 = vld [vmem:[%s4350] sm:$0xf]
  %v4352 = vld [vmem:[%s4350 + $0x4] sm:$0xf]
  %v4353 = vld [vmem:[%s4350 + $0x8] sm:$0xf]
  %v4354 = vld [vmem:[%s4350 + $0xc] sm:$0xf]
  %v4355 = vld [vmem:[%s4350 + $0x10] sm:$0xf]
  %v4356 = vld [vmem:[%s4350 + $0x14] sm:$0x1]
  %v4363 = vunpack.c.l.b16 %v4351
  %v4364 = vunpack.c.l.b16 %v4352
  %v4365 = vunpack.c.l.b16 %v4353
  %v4366 = vunpack.c.l.b16 %v4354
  %v4367 = vunpack.c.l.b16 %v4355
  %v4368 = vunpack.c.l.b16 %v4356
  %v4369 = vpack.c.b16 %v4364, %v4363
  %v4370 = vpack.c.b16 %v4366, %v4365
  %v4371 = vpack.c.b16 %v4368, %v4367
  %v4375 = vand.u32 %v4371, %v613
  %4377 = vmatprep.subr.bf16.mxu0 0
  %4378 = vmatpush1.bf16.msra.mxu0 %v4369
  %4379 = vmatprep.subr.bf16.mxu0 0
  %4380 = vmatpush1.bf16.msra.mxu0 %v4370
  %4381 = vmatprep.subr.bf16.mxu0 0
  %4382 = vmatpush1.bf16.msra.mxu0 %v4375
  %4383 = vmatprep.subr.bf16.mxu0 0
  %4384 = vmatpush1.bf16.msra.mxu0 0
  %4385 = vmatprep.subr.bf16.mxu0 0
  %4386 = vmatpush1.bf16.msra.mxu0 0
  %4387 = vmatprep.subr.bf16.mxu0 0
  %4388 = vmatpush1.bf16.msra.mxu0 0
  %4389 = vmatprep.subr.bf16.mxu0 0
  %4390 = vmatpush1.bf16.msra.mxu0 0
  %4391 = vmatprep.subr.bf16.mxu0 0
  %4392 = vmatpush1.bf16.msra.mxu0 0
  %4393 = vmatprep.subr.bf16.mxu0 0
  %4394 = vmatpush1.bf16.msra.mxu0 0
  %4395 = vmatprep.subr.bf16.mxu0 0
  %4396 = vmatpush1.bf16.msra.mxu0 0
  %4397 = vmatprep.subr.bf16.mxu0 0
  %4398 = vmatpush1.bf16.msra.mxu0 0
  %4399 = vmatprep.subr.bf16.mxu0 0
  %4400 = vmatpush1.bf16.msra.mxu0 0
  %4401 = vmatprep.subr.bf16.mxu0 0
  %4402 = vmatpush1.bf16.msra.mxu0 0
  %4403 = vmatprep.subr.bf16.mxu0 0
  %4404 = vmatpush1.bf16.msra.mxu0 0
  %4405 = vmatprep.subr.bf16.mxu0 0
  %4406 = vmatpush1.bf16.msra.mxu0 0
  %4407 = vmatprep.subr.bf16.mxu0 0
  %4408 = vmatpush1.bf16.msra.mxu0 0
  %4409 = vmatprep.mubr.bf16.mxu0 0
  %4410 = vmatmul.mubr.bf16.gmra.mrb[0].mxu0 %v557
  %v4411 = vpop.f32.mrb[0].mxu0
  %v4412 = vadd.f32 0.0, %v4411
  %v4413 = vpop.f32.mrb[0].mxu0
  %v4414 = vpop.f32.mrb[0].mxu0
  %v4415 = vadd.f32 0.0, %v4414
  %v4416 = vpop.f32.mrb[0].mxu0
  %4417 = vmatprep.mubr.bf16.mxu0 0
  %4418 = vmatmul.mubr.bf16.gmra.mrb[0].mxu0 %v560
  %v4419 = vpop.f32.mrb[0].mxu0
  %v4420 = vadd.f32 0.0, %v4419
  %v4421 = vpop.f32.mrb[0].mxu0
  %v4422 = vpop.f32.mrb[0].mxu0
  %v4423 = vadd.f32 0.0, %v4422
  %v4424 = vpop.f32.mrb[0].mxu0
  %4425 = vmatprep.mubr.bf16.mxu0 0
  %4426 = vmatmul.mubr.bf16.gmra.mrb[0].mxu0 %v563
  %v4427 = vpop.f32.mrb[0].mxu0
  %v4428 = vadd.f32 0.0, %v4427
  %v4429 = vpop.f32.mrb[0].mxu0
  %v4430 = vpop.f32.mrb[0].mxu0
  %v4431 = vadd.f32 0.0, %v4430
  %v4432 = vpop.f32.mrb[0].mxu0
  %4433 = vmatprep.mubr.bf16.mxu0 0
  %4434 = vmatmul.mubr.bf16.gmra.mrb[0].mxu0 %v566
  %v4435 = vpop.f32.mrb[0].mxu0
  %v4436 = vadd.f32 0.0, %v4435
  %v4437 = vpop.f32.mrb[0].mxu0
  %v4438 = vpop.f32.mrb[0].mxu0
  %v4439 = vadd.f32 0.0, %v4438
  %v4440 = vpop.f32.mrb[0].mxu0
  %4441 = vmatprep.mubr.bf16.mxu0 0
  %4442 = vmatmul.mubr.bf16.gmra.mrb[0].mxu0 %v569
  %v4443 = vpop.f32.mrb[0].mxu0
  %v4444 = vadd.f32 0.0, %v4443
  %v4445 = vpop.f32.mrb[0].mxu0
  %v4446 = vpop.f32.mrb[0].mxu0
  %v4447 = vadd.f32 0.0, %v4446
  %v4448 = vpop.f32.mrb[0].mxu0
  %4449 = vmatprep.mubr.bf16.mxu0 0
  %4450 = vmatmul.mubr.bf16.gmra.mrb[0].mxu0 %v572
  %v4451 = vpop.f32.mrb[0].mxu0
  %v4452 = vadd.f32 0.0, %v4451
  %v4453 = vpop.f32.mrb[0].mxu0
  %v4454 = vpop.f32.mrb[0].mxu0
  %v4455 = vadd.f32 0.0, %v4454
  %v4456 = vpop.f32.mrb[0].mxu0
  %4457 = vmatprep.mubr.bf16.mxu0 0
  %4458 = vmatmul.mubr.bf16.gmra.mrb[0].mxu0 %v575
  %v4459 = vpop.f32.mrb[0].mxu0
  %v4460 = vadd.f32 0.0, %v4459
  %v4461 = vpop.f32.mrb[0].mxu0
  %v4462 = vpop.f32.mrb[0].mxu0
  %v4463 = vadd.f32 0.0, %v4462
  %v4464 = vpop.f32.mrb[0].mxu0
  %4465 = vmatprep.mubr.bf16.mxu0 0
  %4466 = vmatmul.mubr.bf16.gmra.mrb[0].mxu0 %v578
  %v4467 = vpop.f32.mrb[0].mxu0
  %v4468 = vadd.f32 0.0, %v4467
  %v4469 = vpop.f32.mrb[0].mxu0
  %v4470 = vpop.f32.mrb[0].mxu0
  %v4471 = vadd.f32 0.0, %v4470
  %v4472 = vpop.f32.mrb[0].mxu0
  %4473 = vmatprep.mubr.bf16.mxu0 0
  %4474 = vmatmul.mubr.bf16.gmra.mrb[0].mxu0 %v581
  %v4475 = vpop.f32.mrb[0].mxu0
  %v4476 = vadd.f32 0.0, %v4475
  %v4477 = vpop.f32.mrb[0].mxu0
  %v4478 = vpop.f32.mrb[0].mxu0
  %v4479 = vadd.f32 0.0, %v4478
  %v4480 = vpop.f32.mrb[0].mxu0
  %4481 = vmatprep.mubr.bf16.mxu0 0
  %4482 = vmatmul.mubr.bf16.gmra.mrb[0].mxu0 %v584
  %v4483 = vpop.f32.mrb[0].mxu0
  %v4484 = vadd.f32 0.0, %v4483
  %v4485 = vpop.f32.mrb[0].mxu0
  %v4486 = vpop.f32.mrb[0].mxu0
  %v4487 = vadd.f32 0.0, %v4486
  %v4488 = vpop.f32.mrb[0].mxu0
  %4489 = vmatprep.mubr.bf16.mxu0 0
  %4490 = vmatmul.mubr.bf16.gmra.mrb[0].mxu0 %v587
  %v4491 = vpop.f32.mrb[0].mxu0
  %v4492 = vadd.f32 0.0, %v4491
  %v4493 = vpop.f32.mrb[0].mxu0
  %v4494 = vpop.f32.mrb[0].mxu0
  %v4495 = vadd.f32 0.0, %v4494
  %v4496 = vpop.f32.mrb[0].mxu0
  %4497 = vmatprep.mubr.bf16.mxu0 0
  %4498 = vmatmul.mubr.bf16.gmra.mrb[0].mxu0 %v590
  %v4499 = vpop.f32.mrb[0].mxu0
  %v4500 = vadd.f32 0.0, %v4499
  %v4501 = vpop.f32.mrb[0].mxu0
  %v4502 = vpop.f32.mrb[0].mxu0
  %v4503 = vadd.f32 0.0, %v4502
  %v4504 = vpop.f32.mrb[0].mxu0
  %4505 = vmatprep.mubr.bf16.mxu0 0
  %4506 = vmatmul.mubr.bf16.gmra.mrb[0].mxu0 %v593
  %v4507 = vpop.f32.mrb[0].mxu0
  %v4508 = vadd.f32 0.0, %v4507
  %v4509 = vpop.f32.mrb[0].mxu0
  %v4510 = vpop.f32.mrb[0].mxu0
  %v4511 = vadd.f32 0.0, %v4510
  %v4512 = vpop.f32.mrb[0].mxu0
  %4513 = vmatprep.mubr.bf16.mxu0 0
  %4514 = vmatmul.mubr.bf16.gmra.mrb[0].mxu0 %v596
  %v4515 = vpop.f32.mrb[0].mxu0
  %v4516 = vadd.f32 0.0, %v4515
  %v4517 = vpop.f32.mrb[0].mxu0
  %v4518 = vpop.f32.mrb[0].mxu0
  %v4519 = vadd.f32 0.0, %v4518
  %v4520 = vpop.f32.mrb[0].mxu0
  %4521 = vmatprep.mubr.bf16.mxu0 0
  %4522 = vmatmul.mubr.bf16.gmra.mrb[0].mxu0 %v599
  %v4523 = vpop.f32.mrb[0].mxu0
  %v4524 = vadd.f32 0.0, %v4523
  %v4525 = vpop.f32.mrb[0].mxu0
  %v4526 = vpop.f32.mrb[0].mxu0
  %v4527 = vadd.f32 0.0, %v4526
  %v4528 = vpop.f32.mrb[0].mxu0
  %4529 = vmatprep.mubr.bf16.mxu0 0
  %4530 = vmatmul.mubr.bf16.gmra.mrb[0].mxu0 %v602
  %v4531 = vpop.f32.mrb[0].mxu0
  %v4532 = vadd.f32 0.0, %v4531
  %v4533 = vpop.f32.mrb[0].mxu0
  %v4534 = vpop.f32.mrb[0].mxu0
  %v4535 = vadd.f32 0.0, %v4534
  %v4536 = vpop.f32.mrb[0].mxu0
  %4537 = vmatprep.mubr.bf16.mxu0 0
  %4538 = vmatmul.mubr.bf16.gmra.mrb[0].mxu0 %v605
  %v4539 = vpop.f32.mrb[0].mxu0
  %v4540 = vadd.f32 0.0, %v4539
  %v4541 = vpop.f32.mrb[0].mxu0
  %v4542 = vpop.f32.mrb[0].mxu0
  %v4543 = vadd.f32 0.0, %v4542
  %v4544 = vpop.f32.mrb[0].mxu0
  %4545 = vmatprep.mubr.bf16.mxu0 0
  %4546 = vmatmul.mubr.bf16.gmra.mrb[0].mxu0 %v608
  %v4547 = vpop.f32.mrb[0].mxu0
  %v4548 = vadd.f32 0.0, %v4547
  %v4549 = vpop.f32.mrb[0].mxu0
  %v4550 = vpop.f32.mrb[0].mxu0
  %v4551 = vadd.f32 0.0, %v4550
  %v4552 = vpop.f32.mrb[0].mxu0
  %4553 = vdwg.mxu0
  %v4554 = vpack.c.bf16 %v4338, %v4334
  %v4555 = vpack.c.bf16 %v4344, %v4344
  %v4557 = vsel %vm610, %v4555, 0
  %4559 = vmatprep.subr.bf16.mxu0 0
  %4560 = vmatpush1.bf16.msra.mxu0 %v4554
  %4561 = vmatprep.subr.bf16.mxu0 0
  %4562 = vmatpush1.bf16.msra.mxu0 %v4557
  %4563 = vmatprep.subr.bf16.mxu0 0
  %4564 = vmatpush1.bf16.msra.mxu0 0
  %4565 = vmatprep.subr.bf16.mxu0 0
  %4566 = vmatpush1.bf16.msra.mxu0 0
  %4567 = vmatprep.subr.bf16.mxu0 0
  %4568 = vmatpush1.bf16.msra.mxu0 0
  %4569 = vmatprep.subr.bf16.mxu0 0
  %4570 = vmatpush1.bf16.msra.mxu0 0
  %4571 = vmatprep.subr.bf16.mxu0 0
  %4572 = vmatpush1.bf16.msra.mxu0 0
  %4573 = vmatprep.subr.bf16.mxu0 0
  %4574 = vmatpush1.bf16.msra.mxu0 0
  %4575 = vmatprep.subr.bf16.mxu0 0
  %4576 = vmatpush1.bf16.msra.mxu0 0
  %4577 = vmatprep.subr.bf16.mxu0 0
  %4578 = vmatpush1.bf16.msra.mxu0 0
  %4579 = vmatprep.subr.bf16.mxu0 0
  %4580 = vmatpush1.bf16.msra.mxu0 0
  %4581 = vmatprep.subr.bf16.mxu0 0
  %4582 = vmatpush1.bf16.msra.mxu0 0
  %4583 = vmatprep.subr.bf16.mxu0 0
  %4584 = vmatpush1.bf16.msra.mxu0 0
  %4585 = vmatprep.subr.bf16.mxu0 0
  %4586 = vmatpush1.bf16.msra.mxu0 0
  %4587 = vmatprep.subr.bf16.mxu0 0
  %4588 = vmatpush1.bf16.msra.mxu0 0
  %4589 = vmatprep.subr.bf16.mxu0 0
  %4590 = vmatpush1.bf16.msra.mxu0 0
  %4591 = vmatprep.mubr.bf16.mxu0 0
  %4592 = vmatmul.mubr.bf16.gmra.mrb[0].mxu0 %v798
  %v4593 = vpop.f32.mrb[0].mxu0
  %v4594 = vadd.f32 %v4336, %v4593
  %v4595 = vpop.f32.mrb[0].mxu0
  %v4596 = vpop.f32.mrb[0].mxu0
  %v4597 = vadd.f32 %v4340, %v4596
  %v4598 = vpop.f32.mrb[0].mxu0
  %4599 = vmatprep.mubr.bf16.mxu0 0
  %4600 = vmatmul.mubr.bf16.gmra.mrb[0].mxu0 %v801
  %v4601 = vpop.f32.mrb[0].mxu0
  %v4602 = vadd.f32 %v4346, %v4601
  %v4603 = vpop.f32.mrb[0].mxu0
  %v4604 = vpop.f32.mrb[0].mxu0
  %v4605 = vadd.f32 %v4336, %v4604
  %v4606 = vpop.f32.mrb[0].mxu0
  %4607 = vmatprep.mubr.bf16.mxu0 0
  %4608 = vmatmul.mubr.bf16.gmra.mrb[0].mxu0 %v804
  %v4609 = vpop.f32.mrb[0].mxu0
  %v4610 = vadd.f32 %v4340, %v4609
  %v4611 = vpop.f32.mrb[0].mxu0
  %v4612 = vpop.f32.mrb[0].mxu0
  %v4613 = vadd.f32 %v4346, %v4612
  %v4614 = vpop.f32.mrb[0].mxu0
  %4615 = vmatprep.mubr.bf16.mxu0 0
  %4616 = vmatmul.mubr.bf16.gmra.mrb[0].mxu0 %v807
  %v4617 = vpop.f32.mrb[0].mxu0
  %v4618 = vadd.f32 %v4336, %v4617
  %v4619 = vpop.f32.mrb[0].mxu0
  %v4620 = vpop.f32.mrb[0].mxu0
  %v4621 = vadd.f32 %v4340, %v4620
  %v4622 = vpop.f32.mrb[0].mxu0
  %4623 = vmatprep.mubr.bf16.mxu0 0
  %4624 = vmatmul.mubr.bf16.gmra.mrb[0].mxu0 %v810
  %v4625 = vpop.f32.mrb[0].mxu0
  %v4626 = vadd.f32 %v4346, %v4625
  %v4627 = vpop.f32.mrb[0].mxu0
  %v4628 = vpop.f32.mrb[0].mxu0
  %v4629 = vadd.f32 %v4336, %v4628
  %v4630 = vpop.f32.mrb[0].mxu0
  %4631 = vmatprep.mubr.bf16.mxu0 0
  %4632 = vmatmul.mubr.bf16.gmra.mrb[0].mxu0 %v813
  %v4633 = vpop.f32.mrb[0].mxu0
  %v4634 = vadd.f32 %v4340, %v4633
  %v4635 = vpop.f32.mrb[0].mxu0
  %v4636 = vpop.f32.mrb[0].mxu0
  %v4637 = vadd.f32 %v4346, %v4636
  %v4638 = vpop.f32.mrb[0].mxu0
  %4639 = vmatprep.mubr.bf16.mxu0 0
  %4640 = vmatmul.mubr.bf16.gmra.mrb[0].mxu0 %v816
  %v4641 = vpop.f32.mrb[0].mxu0
  %v4642 = vadd.f32 %v4336, %v4641
  %v4643 = vpop.f32.mrb[0].mxu0
  %v4644 = vpop.f32.mrb[0].mxu0
  %v4645 = vadd.f32 %v4340, %v4644
  %v4646 = vpop.f32.mrb[0].mxu0
  %4647 = vmatprep.mubr.bf16.mxu0 0
  %4648 = vmatmul.mubr.bf16.gmra.mrb[0].mxu0 %v819
  %v4649 = vpop.f32.mrb[0].mxu0
  %v4650 = vadd.f32 %v4346, %v4649
  %v4651 = vpop.f32.mrb[0].mxu0
  %v4652 = vpop.f32.mrb[0].mxu0
  %v4653 = vadd.f32 %v4336, %v4652
  %v4654 = vpop.f32.mrb[0].mxu0
  %4655 = vmatprep.mubr.bf16.mxu0 0
  %4656 = vmatmul.mubr.bf16.gmra.mrb[0].mxu0 %v822
  %v4657 = vpop.f32.mrb[0].mxu0
  %v4658 = vadd.f32 %v4340, %v4657
  %v4659 = vpop.f32.mrb[0].mxu0
  %v4660 = vpop.f32.mrb[0].mxu0
  %v4661 = vadd.f32 %v4346, %v4660
  %v4662 = vpop.f32.mrb[0].mxu0
  %4663 = vmatprep.mubr.bf16.mxu0 0
  %4664 = vmatmul.mubr.bf16.gmra.mrb[0].mxu0 %v825
  %v4665 = vpop.f32.mrb[0].mxu0
  %v4666 = vadd.f32 %v4336, %v4665
  %v4667 = vpop.f32.mrb[0].mxu0
  %v4668 = vpop.f32.mrb[0].mxu0
  %v4669 = vadd.f32 %v4340, %v4668
  %v4670 = vpop.f32.mrb[0].mxu0
  %4671 = vmatprep.mubr.bf16.mxu0 0
  %4672 = vmatmul.mubr.bf16.gmra.mrb[0].mxu0 %v828
  %v4673 = vpop.f32.mrb[0].mxu0
  %v4674 = vadd.f32 %v4346, %v4673
  %v4675 = vpop.f32.mrb[0].mxu0
  %v4676 = vpop.f32.mrb[0].mxu0
  %v4677 = vadd.f32 %v4336, %v4676
  %v4678 = vpop.f32.mrb[0].mxu0
  %4679 = vmatprep.mubr.bf16.mxu0 0
  %4680 = vmatmul.mubr.bf16.gmra.mrb[0].mxu0 %v831
  %v4681 = vpop.f32.mrb[0].mxu0
  %v4682 = vadd.f32 %v4340, %v4681
  %v4683 = vpop.f32.mrb[0].mxu0
  %v4684 = vpop.f32.mrb[0].mxu0
  %v4685 = vadd.f32 %v4346, %v4684
  %v4686 = vpop.f32.mrb[0].mxu0
  %4687 = vmatprep.mubr.bf16.mxu0 0
  %4688 = vmatmul.mubr.bf16.gmra.mrb[0].mxu0 %v834
  %v4689 = vpop.f32.mrb[0].mxu0
  %v4690 = vadd.f32 %v4336, %v4689
  %v4691 = vpop.f32.mrb[0].mxu0
  %v4692 = vpop.f32.mrb[0].mxu0
  %v4693 = vadd.f32 %v4340, %v4692
  %v4694 = vpop.f32.mrb[0].mxu0
  %4695 = vmatprep.mubr.bf16.mxu0 0
  %4696 = vmatmul.mubr.bf16.gmra.mrb[0].mxu0 %v837
  %v4697 = vpop.f32.mrb[0].mxu0
  %v4698 = vadd.f32 %v4346, %v4697
  %v4699 = vpop.f32.mrb[0].mxu0
  %v4700 = vpop.f32.mrb[0].mxu0
  %v4701 = vadd.f32 %v4336, %v4700
  %v4702 = vpop.f32.mrb[0].mxu0
  %4703 = vmatprep.mubr.bf16.mxu0 0
  %4704 = vmatmul.mubr.bf16.gmra.mrb[0].mxu0 %v840
  %v4705 = vpop.f32.mrb[0].mxu0
  %v4706 = vadd.f32 %v4340, %v4705
  %v4707 = vpop.f32.mrb[0].mxu0
  %v4708 = vpop.f32.mrb[0].mxu0
  %v4709 = vadd.f32 %v4346, %v4708
  %v4710 = vpop.f32.mrb[0].mxu0
  %4711 = vmatprep.mubr.bf16.mxu0 0
  %4712 = vmatmul.mubr.bf16.gmra.mrb[0].mxu0 %v843
  %v4713 = vpop.f32.mrb[0].mxu0
  %v4714 = vadd.f32 %v4336, %v4713
  %v4715 = vpop.f32.mrb[0].mxu0
  %v4716 = vpop.f32.mrb[0].mxu0
  %v4717 = vadd.f32 %v4340, %v4716
  %v4718 = vpop.f32.mrb[0].mxu0
  %4719 = vmatprep.mubr.bf16.mxu0 0
  %4720 = vmatmul.mubr.bf16.gmra.mrb[0].mxu0 %v846
  %v4721 = vpop.f32.mrb[0].mxu0
  %v4722 = vadd.f32 %v4346, %v4721
  %v4723 = vpop.f32.mrb[0].mxu0
  %v4724 = vpop.f32.mrb[0].mxu0
  %v4725 = vadd.f32 %v4336, %v4724
  %v4726 = vpop.f32.mrb[0].mxu0
  %4727 = vmatprep.mubr.bf16.mxu0 0
  %4728 = vmatmul.mubr.bf16.gmra.mrb[0].mxu0 %v849
  %v4729 = vpop.f32.mrb[0].mxu0
  %v4730 = vadd.f32 %v4340, %v4729
  %v4731 = vpop.f32.mrb[0].mxu0
  %v4732 = vpop.f32.mrb[0].mxu0
  %v4733 = vadd.f32 %v4346, %v4732
  %v4734 = vpop.f32.mrb[0].mxu0
  %4735 = vdwg.mxu0
  %v4736 = vadd.f32 %v4594, %v4412
  %v4737 = vadd.f32 %v4597, %v4415
  %v4738 = vadd.f32 %v4602, %v4420
  %v4739 = vadd.f32 %v4605, %v4423
  %v4740 = vadd.f32 %v4610, %v4428
  %v4741 = vadd.f32 %v4613, %v4431
  %v4742 = vadd.f32 %v4618, %v4436
  %v4743 = vadd.f32 %v4621, %v4439
  %v4744 = vadd.f32 %v4626, %v4444
  %v4745 = vadd.f32 %v4629, %v4447
  %v4746 = vadd.f32 %v4634, %v4452
  %v4747 = vadd.f32 %v4637, %v4455
  %v4748 = vadd.f32 %v4642, %v4460
  %v4749 = vadd.f32 %v4645, %v4463
  %v4750 = vadd.f32 %v4650, %v4468
  %v4751 = vadd.f32 %v4653, %v4471
  %v4752 = vadd.f32 %v4658, %v4476
  %v4753 = vadd.f32 %v4661, %v4479
  %v4754 = vadd.f32 %v4666, %v4484
  %v4755 = vadd.f32 %v4669, %v4487
  %v4756 = vadd.f32 %v4674, %v4492
  %v4757 = vadd.f32 %v4677, %v4495
  %v4758 = vadd.f32 %v4682, %v4500
  %v4759 = vadd.f32 %v4685, %v4503
  %v4760 = vadd.f32 %v4690, %v4508
  %v4761 = vadd.f32 %v4693, %v4511
  %v4762 = vadd.f32 %v4698, %v4516
  %v4763 = vadd.f32 %v4701, %v4519
  %v4764 = vadd.f32 %v4706, %v4524
  %v4765 = vadd.f32 %v4709, %v4527
  %v4766 = vadd.f32 %v4714, %v4532
  %v4767 = vadd.f32 %v4717, %v4535
  %v4768 = vadd.f32 %v4722, %v4540
  %v4769 = vadd.f32 %v4725, %v4543
  %v4770 = vadd.f32 %v4730, %v4548
  %v4771 = vadd.f32 %v4733, %v4551
  %s4772 = scalar_lea.vmem %s5, 2
  %v4773 = vld [vmem:[%s4772] sm:$0x1]
  %v4775 = vlaneseq
  %v4776 = vshrl.u32 %v4775, 7
  %v4777 = vsub.s32 0, %v4776
  %v4778 = vrot.slane %v4773, %v4777
  %v4780 = vadd.f32 %v4736, %v4778
  %v4781 = vadd.f32 %v4737, %v4778
  %v4782 = vadd.f32 %v4738, %v4778
  %v4783 = vadd.f32 %v4739, %v4778
  %v4784 = vadd.f32 %v4740, %v4778
  %v4785 = vadd.f32 %v4741, %v4778
  %v4786 = vadd.f32 %v4742, %v4778
  %v4787 = vadd.f32 %v4743, %v4778
  %v4788 = vadd.f32 %v4744, %v4778
  %v4789 = vadd.f32 %v4745, %v4778
  %v4790 = vadd.f32 %v4746, %v4778
  %v4791 = vadd.f32 %v4747, %v4778
  %v4792 = vadd.f32 %v4748, %v4778
  %v4793 = vadd.f32 %v4749, %v4778
  %v4794 = vadd.f32 %v4750, %v4778
  %v4795 = vadd.f32 %v4751, %v4778
  %v4796 = vadd.f32 %v4752, %v4778
  %v4797 = vadd.f32 %v4753, %v4778
  %v4798 = vadd.f32 %v4754, %v4778
  %v4799 = vadd.f32 %v4755, %v4778
  %v4800 = vadd.f32 %v4756, %v4778
  %v4801 = vadd.f32 %v4757, %v4778
  %v4802 = vadd.f32 %v4758, %v4778
  %v4803 = vadd.f32 %v4759, %v4778
  %v4804 = vadd.f32 %v4760, %v4778
  %v4805 = vadd.f32 %v4761, %v4778
  %v4806 = vadd.f32 %v4762, %v4778
  %v4807 = vadd.f32 %v4763, %v4778
  %v4808 = vadd.f32 %v4764, %v4778
  %v4809 = vadd.f32 %v4765, %v4778
  %v4810 = vadd.f32 %v4766, %v4778
  %v4811 = vadd.f32 %v4767, %v4778
  %v4812 = vadd.f32 %v4768, %v4778
  %v4813 = vadd.f32 %v4769, %v4778
  %v4814 = vadd.f32 %v4770, %v4778
  %v4815 = vadd.f32 %v4771, %v4778
  %s4816 = scalar_lea.vmem %s6, 2
  %v4817 = vld [vmem:[%s4816] sm:$0x1]
  %s4818 = scalar_lea.vmem %s7, 2
  %v4819 = vld [vmem:[%s4818] sm:$0x1]
  %v4820 = vadd.f32 %v4780, %v4781
  %v4821 = vadd.f32 %v4820, %v4782
  %v4822 = vadd.f32 %v4821, %v4783
  %v4823 = vadd.f32 %v4822, %v4784
  %v4824 = vadd.f32 %v4823, %v4785
  %v4825 = vadd.f32 %v4824, %v4786
  %v4826 = vadd.f32 %v4825, %v4787
  %v4827 = vadd.f32 %v4826, %v4788
  %v4828 = vadd.f32 %v4827, %v4789
  %v4829 = vadd.f32 %v4828, %v4790
  %v4830 = vadd.f32 %v4829, %v4791
  %v4831 = vadd.f32 %v4830, %v4792
  %v4832 = vadd.f32 %v4831, %v4793
  %v4833 = vadd.f32 %v4832, %v4794
  %v4834 = vadd.f32 %v4833, %v4795
  %v4835 = vadd.f32 %v4834, %v4796
  %v4836 = vadd.f32 %v4835, %v4797
  %v4837 = vadd.f32 %v4836, %v4798
  %v4838 = vadd.f32 %v4837, %v4799
  %v4839 = vadd.f32 %v4838, %v4800
  %v4840 = vadd.f32 %v4839, %v4801
  %v4841 = vadd.f32 %v4840, %v4802
  %v4842 = vadd.f32 %v4841, %v4803
  %v4843 = vadd.f32 %v4842, %v4804
  %v4844 = vadd.f32 %v4843, %v4805
  %v4845 = vadd.f32 %v4844, %v4806
  %v4846 = vadd.f32 %v4845, %v4807
  %v4847 = vadd.f32 %v4846, %v4808
  %v4848 = vadd.f32 %v4847, %v4809
  %v4849 = vadd.f32 %v4848, %v4810
  %v4850 = vadd.f32 %v4849, %v4811
  %v4851 = vadd.f32 %v4850, %v4812
  %v4852 = vadd.f32 %v4851, %v4813
  %v4853 = vadd.f32 %v4852, %v4814
  %v4854 = vadd.f32 %v4853, %v4815
  %v4855 = vrot.slane %v4854, 4
  %v4856 = vadd.f32 %v4854, %v4855
  %v4857 = vrot.slane %v4856, 2
  %v4858 = vadd.f32 %v4856, %v4857
  %v4859 = vrot.slane %v4858, 1
  %v4860 = vadd.f32 %v4858, %v4859
  %v4861 = vmul.f32 %v4860, 0.0034722222
  %v4862 = vsub.f32 %v4780, %v4861
  %v4863 = vsub.f32 %v4781, %v4861
  %v4864 = vsub.f32 %v4782, %v4861
  %v4865 = vsub.f32 %v4783, %v4861
  %v4866 = vsub.f32 %v4784, %v4861
  %v4867 = vsub.f32 %v4785, %v4861
  %v4868 = vsub.f32 %v4786, %v4861
  %v4869 = vsub.f32 %v4787, %v4861
  %v4870 = vsub.f32 %v4788, %v4861
  %v4871 = vsub.f32 %v4789, %v4861
  %v4872 = vsub.f32 %v4790, %v4861
  %v4873 = vsub.f32 %v4791, %v4861
  %v4874 = vsub.f32 %v4792, %v4861
  %v4875 = vsub.f32 %v4793, %v4861
  %v4876 = vsub.f32 %v4794, %v4861
  %v4877 = vsub.f32 %v4795, %v4861
  %v4878 = vsub.f32 %v4796, %v4861
  %v4879 = vsub.f32 %v4797, %v4861
  %v4880 = vsub.f32 %v4798, %v4861
  %v4881 = vsub.f32 %v4799, %v4861
  %v4882 = vsub.f32 %v4800, %v4861
  %v4883 = vsub.f32 %v4801, %v4861
  %v4884 = vsub.f32 %v4802, %v4861
  %v4885 = vsub.f32 %v4803, %v4861
  %v4886 = vsub.f32 %v4804, %v4861
  %v4887 = vsub.f32 %v4805, %v4861
  %v4888 = vsub.f32 %v4806, %v4861
  %v4889 = vsub.f32 %v4807, %v4861
  %v4890 = vsub.f32 %v4808, %v4861
  %v4891 = vsub.f32 %v4809, %v4861
  %v4892 = vsub.f32 %v4810, %v4861
  %v4893 = vsub.f32 %v4811, %v4861
  %v4894 = vsub.f32 %v4812, %v4861
  %v4895 = vsub.f32 %v4813, %v4861
  %v4896 = vsub.f32 %v4814, %v4861
  %v4897 = vsub.f32 %v4815, %v4861
  %v4898 = vmul.f32 %v4862, %v4862
  %v4899 = vmul.f32 %v4863, %v4863
  %v4900 = vmul.f32 %v4864, %v4864
  %v4901 = vmul.f32 %v4865, %v4865
  %v4902 = vmul.f32 %v4866, %v4866
  %v4903 = vmul.f32 %v4867, %v4867
  %v4904 = vmul.f32 %v4868, %v4868
  %v4905 = vmul.f32 %v4869, %v4869
  %v4906 = vmul.f32 %v4870, %v4870
  %v4907 = vmul.f32 %v4871, %v4871
  %v4908 = vmul.f32 %v4872, %v4872
  %v4909 = vmul.f32 %v4873, %v4873
  %v4910 = vmul.f32 %v4874, %v4874
  %v4911 = vmul.f32 %v4875, %v4875
  %v4912 = vmul.f32 %v4876, %v4876
  %v4913 = vmul.f32 %v4877, %v4877
  %v4914 = vmul.f32 %v4878, %v4878
  %v4915 = vmul.f32 %v4879, %v4879
  %v4916 = vmul.f32 %v4880, %v4880
  %v4917 = vmul.f32 %v4881, %v4881
  %v4918 = vmul.f32 %v4882, %v4882
  %v4919 = vmul.f32 %v4883, %v4883
  %v4920 = vmul.f32 %v4884, %v4884
  %v4921 = vmul.f32 %v4885, %v4885
  %v4922 = vmul.f32 %v4886, %v4886
  %v4923 = vmul.f32 %v4887, %v4887
  %v4924 = vmul.f32 %v4888, %v4888
  %v4925 = vmul.f32 %v4889, %v4889
  %v4926 = vmul.f32 %v4890, %v4890
  %v4927 = vmul.f32 %v4891, %v4891
  %v4928 = vmul.f32 %v4892, %v4892
  %v4929 = vmul.f32 %v4893, %v4893
  %v4930 = vmul.f32 %v4894, %v4894
  %v4931 = vmul.f32 %v4895, %v4895
  %v4932 = vmul.f32 %v4896, %v4896
  %v4933 = vmul.f32 %v4897, %v4897
  %v4934 = vadd.f32 %v4898, %v4899
  %v4935 = vadd.f32 %v4934, %v4900
  %v4936 = vadd.f32 %v4935, %v4901
  %v4937 = vadd.f32 %v4936, %v4902
  %v4938 = vadd.f32 %v4937, %v4903
  %v4939 = vadd.f32 %v4938, %v4904
  %v4940 = vadd.f32 %v4939, %v4905
  %v4941 = vadd.f32 %v4940, %v4906
  %v4942 = vadd.f32 %v4941, %v4907
  %v4943 = vadd.f32 %v4942, %v4908
  %v4944 = vadd.f32 %v4943, %v4909
  %v4945 = vadd.f32 %v4944, %v4910
  %v4946 = vadd.f32 %v4945, %v4911
  %v4947 = vadd.f32 %v4946, %v4912
  %v4948 = vadd.f32 %v4947, %v4913
  %v4949 = vadd.f32 %v4948, %v4914
  %v4950 = vadd.f32 %v4949, %v4915
  %v4951 = vadd.f32 %v4950, %v4916
  %v4952 = vadd.f32 %v4951, %v4917
  %v4953 = vadd.f32 %v4952, %v4918
  %v4954 = vadd.f32 %v4953, %v4919
  %v4955 = vadd.f32 %v4954, %v4920
  %v4956 = vadd.f32 %v4955, %v4921
  %v4957 = vadd.f32 %v4956, %v4922
  %v4958 = vadd.f32 %v4957, %v4923
  %v4959 = vadd.f32 %v4958, %v4924
  %v4960 = vadd.f32 %v4959, %v4925
  %v4961 = vadd.f32 %v4960, %v4926
  %v4962 = vadd.f32 %v4961, %v4927
  %v4963 = vadd.f32 %v4962, %v4928
  %v4964 = vadd.f32 %v4963, %v4929
  %v4965 = vadd.f32 %v4964, %v4930
  %v4966 = vadd.f32 %v4965, %v4931
  %v4967 = vadd.f32 %v4966, %v4932
  %v4968 = vadd.f32 %v4967, %v4933
  %v4969 = vrot.slane %v4968, 4
  %v4970 = vadd.f32 %v4968, %v4969
  %v4971 = vrot.slane %v4970, 2
  %v4972 = vadd.f32 %v4970, %v4971
  %v4973 = vrot.slane %v4972, 1
  %v4974 = vadd.f32 %v4972, %v4973
  %v4975 = vmul.f32 %v4974, 0.0034722222
  %v4976 = vadd.f32 %v4975, 1e-05
  %v4977 = vrsqrt.pop %v4976
  %v4978 = vmul.f32 %v4862, %v4977
  %v4979 = vmul.f32 %v4863, %v4977
  %v4980 = vmul.f32 %v4864, %v4977
  %v4981 = vmul.f32 %v4865, %v4977
  %v4982 = vmul.f32 %v4866, %v4977
  %v4983 = vmul.f32 %v4867, %v4977
  %v4984 = vmul.f32 %v4868, %v4977
  %v4985 = vmul.f32 %v4869, %v4977
  %v4986 = vmul.f32 %v4870, %v4977
  %v4987 = vmul.f32 %v4871, %v4977
  %v4988 = vmul.f32 %v4872, %v4977
  %v4989 = vmul.f32 %v4873, %v4977
  %v4990 = vmul.f32 %v4874, %v4977
  %v4991 = vmul.f32 %v4875, %v4977
  %v4992 = vmul.f32 %v4876, %v4977
  %v4993 = vmul.f32 %v4877, %v4977
  %v4994 = vmul.f32 %v4878, %v4977
  %v4995 = vmul.f32 %v4879, %v4977
  %v4996 = vmul.f32 %v4880, %v4977
  %v4997 = vmul.f32 %v4881, %v4977
  %v4998 = vmul.f32 %v4882, %v4977
  %v4999 = vmul.f32 %v4883, %v4977
  %v5000 = vmul.f32 %v4884, %v4977
  %v5001 = vmul.f32 %v4885, %v4977
  %v5002 = vmul.f32 %v4886, %v4977
  %v5003 = vmul.f32 %v4887, %v4977
  %v5004 = vmul.f32 %v4888, %v4977
  %v5005 = vmul.f32 %v4889, %v4977
  %v5006 = vmul.f32 %v4890, %v4977
  %v5007 = vmul.f32 %v4891, %v4977
  %v5008 = vmul.f32 %v4892, %v4977
  %v5009 = vmul.f32 %v4893, %v4977
  %v5010 = vmul.f32 %v4894, %v4977
  %v5011 = vmul.f32 %v4895, %v4977
  %v5012 = vmul.f32 %v4896, %v4977
  %v5013 = vmul.f32 %v4897, %v4977
  %v5015 = vlaneseq
  %v5016 = vshrl.u32 %v5015, 7
  %v5017 = vsub.s32 0, %v5016
  %v5018 = vrot.slane %v4817, %v5017
  %v5020 = vmul.f32 %v4978, %v5018
  %v5021 = vmul.f32 %v4979, %v5018
  %v5022 = vmul.f32 %v4980, %v5018
  %v5023 = vmul.f32 %v4981, %v5018
  %v5024 = vmul.f32 %v4982, %v5018
  %v5025 = vmul.f32 %v4983, %v5018
  %v5026 = vmul.f32 %v4984, %v5018
  %v5027 = vmul.f32 %v4985, %v5018
  %v5028 = vmul.f32 %v4986, %v5018
  %v5029 = vmul.f32 %v4987, %v5018
  %v5030 = vmul.f32 %v4988, %v5018
  %v5031 = vmul.f32 %v4989, %v5018
  %v5032 = vmul.f32 %v4990, %v5018
  %v5033 = vmul.f32 %v4991, %v5018
  %v5034 = vmul.f32 %v4992, %v5018
  %v5035 = vmul.f32 %v4993, %v5018
  %v5036 = vmul.f32 %v4994, %v5018
  %v5037 = vmul.f32 %v4995, %v5018
  %v5038 = vmul.f32 %v4996, %v5018
  %v5039 = vmul.f32 %v4997, %v5018
  %v5040 = vmul.f32 %v4998, %v5018
  %v5041 = vmul.f32 %v4999, %v5018
  %v5042 = vmul.f32 %v5000, %v5018
  %v5043 = vmul.f32 %v5001, %v5018
  %v5044 = vmul.f32 %v5002, %v5018
  %v5045 = vmul.f32 %v5003, %v5018
  %v5046 = vmul.f32 %v5004, %v5018
  %v5047 = vmul.f32 %v5005, %v5018
  %v5048 = vmul.f32 %v5006, %v5018
  %v5049 = vmul.f32 %v5007, %v5018
  %v5050 = vmul.f32 %v5008, %v5018
  %v5051 = vmul.f32 %v5009, %v5018
  %v5052 = vmul.f32 %v5010, %v5018
  %v5053 = vmul.f32 %v5011, %v5018
  %v5054 = vmul.f32 %v5012, %v5018
  %v5055 = vmul.f32 %v5013, %v5018
  %v5057 = vlaneseq
  %v5058 = vshrl.u32 %v5057, 7
  %v5059 = vsub.s32 0, %v5058
  %v5060 = vrot.slane %v4819, %v5059
  %v5062 = vadd.f32 %v5020, %v5060
  %v5063 = vadd.f32 %v5021, %v5060
  %v5064 = vadd.f32 %v5022, %v5060
  %v5065 = vadd.f32 %v5023, %v5060
  %v5066 = vadd.f32 %v5024, %v5060
  %v5067 = vadd.f32 %v5025, %v5060
  %v5068 = vadd.f32 %v5026, %v5060
  %v5069 = vadd.f32 %v5027, %v5060
  %v5070 = vadd.f32 %v5028, %v5060
  %v5071 = vadd.f32 %v5029, %v5060
  %v5072 = vadd.f32 %v5030, %v5060
  %v5073 = vadd.f32 %v5031, %v5060
  %v5074 = vadd.f32 %v5032, %v5060
  %v5075 = vadd.f32 %v5033, %v5060
  %v5076 = vadd.f32 %v5034, %v5060
  %v5077 = vadd.f32 %v5035, %v5060
  %v5078 = vadd.f32 %v5036, %v5060
  %v5079 = vadd.f32 %v5037, %v5060
  %v5080 = vadd.f32 %v5038, %v5060
  %v5081 = vadd.f32 %v5039, %v5060
  %v5082 = vadd.f32 %v5040, %v5060
  %v5083 = vadd.f32 %v5041, %v5060
  %v5084 = vadd.f32 %v5042, %v5060
  %v5085 = vadd.f32 %v5043, %v5060
  %v5086 = vadd.f32 %v5044, %v5060
  %v5087 = vadd.f32 %v5045, %v5060
  %v5088 = vadd.f32 %v5046, %v5060
  %v5089 = vadd.f32 %v5047, %v5060
  %v5090 = vadd.f32 %v5048, %v5060
  %v5091 = vadd.f32 %v5049, %v5060
  %v5092 = vadd.f32 %v5050, %v5060
  %v5093 = vadd.f32 %v5051, %v5060
  %v5094 = vadd.f32 %v5052, %v5060
  %v5095 = vadd.f32 %v5053, %v5060
  %v5096 = vadd.f32 %v5054, %v5060
  %v5097 = vadd.f32 %v5055, %v5060
  %v5098 = vsub.f32 0.0, %v5062
  %v5099 = vsub.f32 0.0, %v5063
  %v5100 = vsub.f32 0.0, %v5064
  %v5101 = vsub.f32 0.0, %v5065
  %v5102 = vsub.f32 0.0, %v5066
  %v5103 = vsub.f32 0.0, %v5067
  %v5104 = vsub.f32 0.0, %v5068
  %v5105 = vsub.f32 0.0, %v5069
  %v5106 = vsub.f32 0.0, %v5070
  %v5107 = vsub.f32 0.0, %v5071
  %v5108 = vsub.f32 0.0, %v5072
  %v5109 = vsub.f32 0.0, %v5073
  %v5110 = vsub.f32 0.0, %v5074
  %v5111 = vsub.f32 0.0, %v5075
  %v5112 = vsub.f32 0.0, %v5076
  %v5113 = vsub.f32 0.0, %v5077
  %v5114 = vsub.f32 0.0, %v5078
  %v5115 = vsub.f32 0.0, %v5079
  %v5116 = vsub.f32 0.0, %v5080
  %v5117 = vsub.f32 0.0, %v5081
  %v5118 = vsub.f32 0.0, %v5082
  %v5119 = vsub.f32 0.0, %v5083
  %v5120 = vsub.f32 0.0, %v5084
  %v5121 = vsub.f32 0.0, %v5085
  %v5122 = vsub.f32 0.0, %v5086
  %v5123 = vsub.f32 0.0, %v5087
  %v5124 = vsub.f32 0.0, %v5088
  %v5125 = vsub.f32 0.0, %v5089
  %v5126 = vsub.f32 0.0, %v5090
  %v5127 = vsub.f32 0.0, %v5091
  %v5128 = vsub.f32 0.0, %v5092
  %v5129 = vsub.f32 0.0, %v5093
  %v5130 = vsub.f32 0.0, %v5094
  %v5131 = vsub.f32 0.0, %v5095
  %v5132 = vsub.f32 0.0, %v5096
  %v5133 = vsub.f32 0.0, %v5097
  %v5134 = vmul.f32 %v5098, 1.442695
  %v5135 = vpow.pop %v5134
  %v5136 = vmul.f32 %v5099, 1.442695
  %v5137 = vpow.pop %v5136
  %v5138 = vmul.f32 %v5100, 1.442695
  %v5139 = vpow.pop %v5138
  %v5140 = vmul.f32 %v5101, 1.442695
  %v5141 = vpow.pop %v5140
  %v5142 = vmul.f32 %v5102, 1.442695
  %v5143 = vpow.pop %v5142
  %v5144 = vmul.f32 %v5103, 1.442695
  %v5145 = vpow.pop %v5144
  %v5146 = vmul.f32 %v5104, 1.442695
  %v5147 = vpow.pop %v5146
  %v5148 = vmul.f32 %v5105, 1.442695
  %v5149 = vpow.pop %v5148
  %v5150 = vmul.f32 %v5106, 1.442695
  %v5151 = vpow.pop %v5150
  %v5152 = vmul.f32 %v5107, 1.442695
  %v5153 = vpow.pop %v5152
  %v5154 = vmul.f32 %v5108, 1.442695
  %v5155 = vpow.pop %v5154
  %v5156 = vmul.f32 %v5109, 1.442695
  %v5157 = vpow.pop %v5156
  %v5158 = vmul.f32 %v5110, 1.442695
  %v5159 = vpow.pop %v5158
  %v5160 = vmul.f32 %v5111, 1.442695
  %v5161 = vpow.pop %v5160
  %v5162 = vmul.f32 %v5112, 1.442695
  %v5163 = vpow.pop %v5162
  %v5164 = vmul.f32 %v5113, 1.442695
  %v5165 = vpow.pop %v5164
  %v5166 = vmul.f32 %v5114, 1.442695
  %v5167 = vpow.pop %v5166
  %v5168 = vmul.f32 %v5115, 1.442695
  %v5169 = vpow.pop %v5168
  %v5170 = vmul.f32 %v5116, 1.442695
  %v5171 = vpow.pop %v5170
  %v5172 = vmul.f32 %v5117, 1.442695
  %v5173 = vpow.pop %v5172
  %v5174 = vmul.f32 %v5118, 1.442695
  %v5175 = vpow.pop %v5174
  %v5176 = vmul.f32 %v5119, 1.442695
  %v5177 = vpow.pop %v5176
  %v5178 = vmul.f32 %v5120, 1.442695
  %v5179 = vpow.pop %v5178
  %v5180 = vmul.f32 %v5121, 1.442695
  %v5181 = vpow.pop %v5180
  %v5182 = vmul.f32 %v5122, 1.442695
  %v5183 = vpow.pop %v5182
  %v5184 = vmul.f32 %v5123, 1.442695
  %v5185 = vpow.pop %v5184
  %v5186 = vmul.f32 %v5124, 1.442695
  %v5187 = vpow.pop %v5186
  %v5188 = vmul.f32 %v5125, 1.442695
  %v5189 = vpow.pop %v5188
  %v5190 = vmul.f32 %v5126, 1.442695
  %v5191 = vpow.pop %v5190
  %v5192 = vmul.f32 %v5127, 1.442695
  %v5193 = vpow.pop %v5192
  %v5194 = vmul.f32 %v5128, 1.442695
  %v5195 = vpow.pop %v5194
  %v5196 = vmul.f32 %v5129, 1.442695
  %v5197 = vpow.pop %v5196
  %v5198 = vmul.f32 %v5130, 1.442695
  %v5199 = vpow.pop %v5198
  %v5200 = vmul.f32 %v5131, 1.442695
  %v5201 = vpow.pop %v5200
  %v5202 = vmul.f32 %v5132, 1.442695
  %v5203 = vpow.pop %v5202
  %v5204 = vmul.f32 %v5133, 1.442695
  %v5205 = vpow.pop %v5204
  %v5206 = vadd.f32 %v5135, 1.0
  %v5207 = vadd.f32 %v5137, 1.0
  %v5208 = vadd.f32 %v5139, 1.0
  %v5209 = vadd.f32 %v5141, 1.0
  %v5210 = vadd.f32 %v5143, 1.0
  %v5211 = vadd.f32 %v5145, 1.0
  %v5212 = vadd.f32 %v5147, 1.0
  %v5213 = vadd.f32 %v5149, 1.0
  %v5214 = vadd.f32 %v5151, 1.0
  %v5215 = vadd.f32 %v5153, 1.0
  %v5216 = vadd.f32 %v5155, 1.0
  %v5217 = vadd.f32 %v5157, 1.0
  %v5218 = vadd.f32 %v5159, 1.0
  %v5219 = vadd.f32 %v5161, 1.0
  %v5220 = vadd.f32 %v5163, 1.0
  %v5221 = vadd.f32 %v5165, 1.0
  %v5222 = vadd.f32 %v5167, 1.0
  %v5223 = vadd.f32 %v5169, 1.0
  %v5224 = vadd.f32 %v5171, 1.0
  %v5225 = vadd.f32 %v5173, 1.0
  %v5226 = vadd.f32 %v5175, 1.0
  %v5227 = vadd.f32 %v5177, 1.0
  %v5228 = vadd.f32 %v5179, 1.0
  %v5229 = vadd.f32 %v5181, 1.0
  %v5230 = vadd.f32 %v5183, 1.0
  %v5231 = vadd.f32 %v5185, 1.0
  %v5232 = vadd.f32 %v5187, 1.0
  %v5233 = vadd.f32 %v5189, 1.0
  %v5234 = vadd.f32 %v5191, 1.0
  %v5235 = vadd.f32 %v5193, 1.0
  %v5236 = vadd.f32 %v5195, 1.0
  %v5237 = vadd.f32 %v5197, 1.0
  %v5238 = vadd.f32 %v5199, 1.0
  %v5239 = vadd.f32 %v5201, 1.0
  %v5240 = vadd.f32 %v5203, 1.0
  %v5241 = vadd.f32 %v5205, 1.0
  %v5242 = vrcp.pop %v5206
  %v5243 = vrcp.pop %v5207
  %v5244 = vrcp.pop %v5208
  %v5245 = vrcp.pop %v5209
  %v5246 = vrcp.pop %v5210
  %v5247 = vrcp.pop %v5211
  %v5248 = vrcp.pop %v5212
  %v5249 = vrcp.pop %v5213
  %v5250 = vrcp.pop %v5214
  %v5251 = vrcp.pop %v5215
  %v5252 = vrcp.pop %v5216
  %v5253 = vrcp.pop %v5217
  %v5254 = vrcp.pop %v5218
  %v5255 = vrcp.pop %v5219
  %v5256 = vrcp.pop %v5220
  %v5257 = vrcp.pop %v5221
  %v5258 = vrcp.pop %v5222
  %v5259 = vrcp.pop %v5223
  %v5260 = vrcp.pop %v5224
  %v5261 = vrcp.pop %v5225
  %v5262 = vrcp.pop %v5226
  %v5263 = vrcp.pop %v5227
  %v5264 = vrcp.pop %v5228
  %v5265 = vrcp.pop %v5229
  %v5266 = vrcp.pop %v5230
  %v5267 = vrcp.pop %v5231
  %v5268 = vrcp.pop %v5232
  %v5269 = vrcp.pop %v5233
  %v5270 = vrcp.pop %v5234
  %v5271 = vrcp.pop %v5235
  %v5272 = vrcp.pop %v5236
  %v5273 = vrcp.pop %v5237
  %v5274 = vrcp.pop %v5238
  %v5275 = vrcp.pop %v5239
  %v5276 = vrcp.pop %v5240
  %v5277 = vrcp.pop %v5241
  %vm5278 = vcmp.gt.f32.partialorder %v5062, 20.0
  %vm5279 = vcmp.gt.f32.partialorder %v5063, 20.0
  %vm5280 = vcmp.gt.f32.partialorder %v5064, 20.0
  %vm5281 = vcmp.gt.f32.partialorder %v5065, 20.0
  %vm5282 = vcmp.gt.f32.partialorder %v5066, 20.0
  %vm5283 = vcmp.gt.f32.partialorder %v5067, 20.0
  %vm5284 = vcmp.gt.f32.partialorder %v5068, 20.0
  %vm5285 = vcmp.gt.f32.partialorder %v5069, 20.0
  %vm5286 = vcmp.gt.f32.partialorder %v5070, 20.0
  %vm5287 = vcmp.gt.f32.partialorder %v5071, 20.0
  %vm5288 = vcmp.gt.f32.partialorder %v5072, 20.0
  %vm5289 = vcmp.gt.f32.partialorder %v5073, 20.0
  %vm5290 = vcmp.gt.f32.partialorder %v5074, 20.0
  %vm5291 = vcmp.gt.f32.partialorder %v5075, 20.0
  %vm5292 = vcmp.gt.f32.partialorder %v5076, 20.0
  %vm5293 = vcmp.gt.f32.partialorder %v5077, 20.0
  %vm5294 = vcmp.gt.f32.partialorder %v5078, 20.0
  %vm5295 = vcmp.gt.f32.partialorder %v5079, 20.0
  %vm5296 = vcmp.gt.f32.partialorder %v5080, 20.0
  %vm5297 = vcmp.gt.f32.partialorder %v5081, 20.0
  %vm5298 = vcmp.gt.f32.partialorder %v5082, 20.0
  %vm5299 = vcmp.gt.f32.partialorder %v5083, 20.0
  %vm5300 = vcmp.gt.f32.partialorder %v5084, 20.0
  %vm5301 = vcmp.gt.f32.partialorder %v5085, 20.0
  %vm5302 = vcmp.gt.f32.partialorder %v5086, 20.0
  %vm5303 = vcmp.gt.f32.partialorder %v5087, 20.0
  %vm5304 = vcmp.gt.f32.partialorder %v5088, 20.0
  %vm5305 = vcmp.gt.f32.partialorder %v5089, 20.0
  %vm5306 = vcmp.gt.f32.partialorder %v5090, 20.0
  %vm5307 = vcmp.gt.f32.partialorder %v5091, 20.0
  %vm5308 = vcmp.gt.f32.partialorder %v5092, 20.0
  %vm5309 = vcmp.gt.f32.partialorder %v5093, 20.0
  %vm5310 = vcmp.gt.f32.partialorder %v5094, 20.0
  %vm5311 = vcmp.gt.f32.partialorder %v5095, 20.0
  %vm5312 = vcmp.gt.f32.partialorder %v5096, 20.0
  %vm5313 = vcmp.gt.f32.partialorder %v5097, 20.0
  %v5314 = vmin.f32 %v5062, 20.0
  %v5315 = vmin.f32 %v5063, 20.0
  %v5316 = vmin.f32 %v5064, 20.0
  %v5317 = vmin.f32 %v5065, 20.0
  %v5318 = vmin.f32 %v5066, 20.0
  %v5319 = vmin.f32 %v5067, 20.0
  %v5320 = vmin.f32 %v5068, 20.0
  %v5321 = vmin.f32 %v5069, 20.0
  %v5322 = vmin.f32 %v5070, 20.0
  %v5323 = vmin.f32 %v5071, 20.0
  %v5324 = vmin.f32 %v5072, 20.0
  %v5325 = vmin.f32 %v5073, 20.0
  %v5326 = vmin.f32 %v5074, 20.0
  %v5327 = vmin.f32 %v5075, 20.0
  %v5328 = vmin.f32 %v5076, 20.0
  %v5329 = vmin.f32 %v5077, 20.0
  %v5330 = vmin.f32 %v5078, 20.0
  %v5331 = vmin.f32 %v5079, 20.0
  %v5332 = vmin.f32 %v5080, 20.0
  %v5333 = vmin.f32 %v5081, 20.0
  %v5334 = vmin.f32 %v5082, 20.0
  %v5335 = vmin.f32 %v5083, 20.0
  %v5336 = vmin.f32 %v5084, 20.0
  %v5337 = vmin.f32 %v5085, 20.0
  %v5338 = vmin.f32 %v5086, 20.0
  %v5339 = vmin.f32 %v5087, 20.0
  %v5340 = vmin.f32 %v5088, 20.0
  %v5341 = vmin.f32 %v5089, 20.0
  %v5342 = vmin.f32 %v5090, 20.0
  %v5343 = vmin.f32 %v5091, 20.0
  %v5344 = vmin.f32 %v5092, 20.0
  %v5345 = vmin.f32 %v5093, 20.0
  %v5346 = vmin.f32 %v5094, 20.0
  %v5347 = vmin.f32 %v5095, 20.0
  %v5348 = vmin.f32 %v5096, 20.0
  %v5349 = vmin.f32 %v5097, 20.0
  %v5350 = vmul.f32 %v5314, 1.442695
  %v5351 = vpow.pop %v5350
  %v5352 = vmul.f32 %v5315, 1.442695
  %v5353 = vpow.pop %v5352
  %v5354 = vmul.f32 %v5316, 1.442695
  %v5355 = vpow.pop %v5354
  %v5356 = vmul.f32 %v5317, 1.442695
  %v5357 = vpow.pop %v5356
  %v5358 = vmul.f32 %v5318, 1.442695
  %v5359 = vpow.pop %v5358
  %v5360 = vmul.f32 %v5319, 1.442695
  %v5361 = vpow.pop %v5360
  %v5362 = vmul.f32 %v5320, 1.442695
  %v5363 = vpow.pop %v5362
  %v5364 = vmul.f32 %v5321, 1.442695
  %v5365 = vpow.pop %v5364
  %v5366 = vmul.f32 %v5322, 1.442695
  %v5367 = vpow.pop %v5366
  %v5368 = vmul.f32 %v5323, 1.442695
  %v5369 = vpow.pop %v5368
  %v5370 = vmul.f32 %v5324, 1.442695
  %v5371 = vpow.pop %v5370
  %v5372 = vmul.f32 %v5325, 1.442695
  %v5373 = vpow.pop %v5372
  %v5374 = vmul.f32 %v5326, 1.442695
  %v5375 = vpow.pop %v5374
  %v5376 = vmul.f32 %v5327, 1.442695
  %v5377 = vpow.pop %v5376
  %v5378 = vmul.f32 %v5328, 1.442695
  %v5379 = vpow.pop %v5378
  %v5380 = vmul.f32 %v5329, 1.442695
  %v5381 = vpow.pop %v5380
  %v5382 = vmul.f32 %v5330, 1.442695
  %v5383 = vpow.pop %v5382
  %v5384 = vmul.f32 %v5331, 1.442695
  %v5385 = vpow.pop %v5384
  %v5386 = vmul.f32 %v5332, 1.442695
  %v5387 = vpow.pop %v5386
  %v5388 = vmul.f32 %v5333, 1.442695
  %v5389 = vpow.pop %v5388
  %v5390 = vmul.f32 %v5334, 1.442695
  %v5391 = vpow.pop %v5390
  %v5392 = vmul.f32 %v5335, 1.442695
  %v5393 = vpow.pop %v5392
  %v5394 = vmul.f32 %v5336, 1.442695
  %v5395 = vpow.pop %v5394
  %v5396 = vmul.f32 %v5337, 1.442695
  %v5397 = vpow.pop %v5396
  %v5398 = vmul.f32 %v5338, 1.442695
  %v5399 = vpow.pop %v5398
  %v5400 = vmul.f32 %v5339, 1.442695
  %v5401 = vpow.pop %v5400
  %v5402 = vmul.f32 %v5340, 1.442695
  %v5403 = vpow.pop %v5402
  %v5404 = vmul.f32 %v5341, 1.442695
  %v5405 = vpow.pop %v5404
  %v5406 = vmul.f32 %v5342, 1.442695
  %v5407 = vpow.pop %v5406
  %v5408 = vmul.f32 %v5343, 1.442695
  %v5409 = vpow.pop %v5408
  %v5410 = vmul.f32 %v5344, 1.442695
  %v5411 = vpow.pop %v5410
  %v5412 = vmul.f32 %v5345, 1.442695
  %v5413 = vpow.pop %v5412
  %v5414 = vmul.f32 %v5346, 1.442695
  %v5415 = vpow.pop %v5414
  %v5416 = vmul.f32 %v5347, 1.442695
  %v5417 = vpow.pop %v5416
  %v5418 = vmul.f32 %v5348, 1.442695
  %v5419 = vpow.pop %v5418
  %v5420 = vmul.f32 %v5349, 1.442695
  %v5421 = vpow.pop %v5420
  %v5422 = vadd.f32 %v5351, 1.0
  %v5423 = vlog2.pop %v5422
  %v5424 = vmul.f32 %v5423, 0.6931472
  %v5425 = vmul.f32 -0.5, %v5351
  %v5426 = vadd.f32 %v5425, 1.0
  %v5427 = vmul.f32 %v5426, %v5351
  %v5428 = vand.u32 2147483647, %v5351
  %vm5429 = vcmp.lt.f32.partialorder %v5428, 0.0004427343
  %v5430 = vsel %vm5429, %v5427, %v5424
  %v5431 = vadd.f32 %v5353, 1.0
  %v5432 = vlog2.pop %v5431
  %v5433 = vmul.f32 %v5432, 0.6931472
  %v5434 = vmul.f32 -0.5, %v5353
  %v5435 = vadd.f32 %v5434, 1.0
  %v5436 = vmul.f32 %v5435, %v5353
  %v5437 = vand.u32 2147483647, %v5353
  %vm5438 = vcmp.lt.f32.partialorder %v5437, 0.0004427343
  %v5439 = vsel %vm5438, %v5436, %v5433
  %v5440 = vadd.f32 %v5355, 1.0
  %v5441 = vlog2.pop %v5440
  %v5442 = vmul.f32 %v5441, 0.6931472
  %v5443 = vmul.f32 -0.5, %v5355
  %v5444 = vadd.f32 %v5443, 1.0
  %v5445 = vmul.f32 %v5444, %v5355
  %v5446 = vand.u32 2147483647, %v5355
  %vm5447 = vcmp.lt.f32.partialorder %v5446, 0.0004427343
  %v5448 = vsel %vm5447, %v5445, %v5442
  %v5449 = vadd.f32 %v5357, 1.0
  %v5450 = vlog2.pop %v5449
  %v5451 = vmul.f32 %v5450, 0.6931472
  %v5452 = vmul.f32 -0.5, %v5357
  %v5453 = vadd.f32 %v5452, 1.0
  %v5454 = vmul.f32 %v5453, %v5357
  %v5455 = vand.u32 2147483647, %v5357
  %vm5456 = vcmp.lt.f32.partialorder %v5455, 0.0004427343
  %v5457 = vsel %vm5456, %v5454, %v5451
  %v5458 = vadd.f32 %v5359, 1.0
  %v5459 = vlog2.pop %v5458
  %v5460 = vmul.f32 %v5459, 0.6931472
  %v5461 = vmul.f32 -0.5, %v5359
  %v5462 = vadd.f32 %v5461, 1.0
  %v5463 = vmul.f32 %v5462, %v5359
  %v5464 = vand.u32 2147483647, %v5359
  %vm5465 = vcmp.lt.f32.partialorder %v5464, 0.0004427343
  %v5466 = vsel %vm5465, %v5463, %v5460
  %v5467 = vadd.f32 %v5361, 1.0
  %v5468 = vlog2.pop %v5467
  %v5469 = vmul.f32 %v5468, 0.6931472
  %v5470 = vmul.f32 -0.5, %v5361
  %v5471 = vadd.f32 %v5470, 1.0
  %v5472 = vmul.f32 %v5471, %v5361
  %v5473 = vand.u32 2147483647, %v5361
  %vm5474 = vcmp.lt.f32.partialorder %v5473, 0.0004427343
  %v5475 = vsel %vm5474, %v5472, %v5469
  %v5476 = vadd.f32 %v5363, 1.0
  %v5477 = vlog2.pop %v5476
  %v5478 = vmul.f32 %v5477, 0.6931472
  %v5479 = vmul.f32 -0.5, %v5363
  %v5480 = vadd.f32 %v5479, 1.0
  %v5481 = vmul.f32 %v5480, %v5363
  %v5482 = vand.u32 2147483647, %v5363
  %vm5483 = vcmp.lt.f32.partialorder %v5482, 0.0004427343
  %v5484 = vsel %vm5483, %v5481, %v5478
  %v5485 = vadd.f32 %v5365, 1.0
  %v5486 = vlog2.pop %v5485
  %v5487 = vmul.f32 %v5486, 0.6931472
  %v5488 = vmul.f32 -0.5, %v5365
  %v5489 = vadd.f32 %v5488, 1.0
  %v5490 = vmul.f32 %v5489, %v5365
  %v5491 = vand.u32 2147483647, %v5365
  %vm5492 = vcmp.lt.f32.partialorder %v5491, 0.0004427343
  %v5493 = vsel %vm5492, %v5490, %v5487
  %v5494 = vadd.f32 %v5367, 1.0
  %v5495 = vlog2.pop %v5494
  %v5496 = vmul.f32 %v5495, 0.6931472
  %v5497 = vmul.f32 -0.5, %v5367
  %v5498 = vadd.f32 %v5497, 1.0
  %v5499 = vmul.f32 %v5498, %v5367
  %v5500 = vand.u32 2147483647, %v5367
  %vm5501 = vcmp.lt.f32.partialorder %v5500, 0.0004427343
  %v5502 = vsel %vm5501, %v5499, %v5496
  %v5503 = vadd.f32 %v5369, 1.0
  %v5504 = vlog2.pop %v5503
  %v5505 = vmul.f32 %v5504, 0.6931472
  %v5506 = vmul.f32 -0.5, %v5369
  %v5507 = vadd.f32 %v5506, 1.0
  %v5508 = vmul.f32 %v5507, %v5369
  %v5509 = vand.u32 2147483647, %v5369
  %vm5510 = vcmp.lt.f32.partialorder %v5509, 0.0004427343
  %v5511 = vsel %vm5510, %v5508, %v5505
  %v5512 = vadd.f32 %v5371, 1.0
  %v5513 = vlog2.pop %v5512
  %v5514 = vmul.f32 %v5513, 0.6931472
  %v5515 = vmul.f32 -0.5, %v5371
  %v5516 = vadd.f32 %v5515, 1.0
  %v5517 = vmul.f32 %v5516, %v5371
  %v5518 = vand.u32 2147483647, %v5371
  %vm5519 = vcmp.lt.f32.partialorder %v5518, 0.0004427343
  %v5520 = vsel %vm5519, %v5517, %v5514
  %v5521 = vadd.f32 %v5373, 1.0
  %v5522 = vlog2.pop %v5521
  %v5523 = vmul.f32 %v5522, 0.6931472
  %v5524 = vmul.f32 -0.5, %v5373
  %v5525 = vadd.f32 %v5524, 1.0
  %v5526 = vmul.f32 %v5525, %v5373
  %v5527 = vand.u32 2147483647, %v5373
  %vm5528 = vcmp.lt.f32.partialorder %v5527, 0.0004427343
  %v5529 = vsel %vm5528, %v5526, %v5523
  %v5530 = vadd.f32 %v5375, 1.0
  %v5531 = vlog2.pop %v5530
  %v5532 = vmul.f32 %v5531, 0.6931472
  %v5533 = vmul.f32 -0.5, %v5375
  %v5534 = vadd.f32 %v5533, 1.0
  %v5535 = vmul.f32 %v5534, %v5375
  %v5536 = vand.u32 2147483647, %v5375
  %vm5537 = vcmp.lt.f32.partialorder %v5536, 0.0004427343
  %v5538 = vsel %vm5537, %v5535, %v5532
  %v5539 = vadd.f32 %v5377, 1.0
  %v5540 = vlog2.pop %v5539
  %v5541 = vmul.f32 %v5540, 0.6931472
  %v5542 = vmul.f32 -0.5, %v5377
  %v5543 = vadd.f32 %v5542, 1.0
  %v5544 = vmul.f32 %v5543, %v5377
  %v5545 = vand.u32 2147483647, %v5377
  %vm5546 = vcmp.lt.f32.partialorder %v5545, 0.0004427343
  %v5547 = vsel %vm5546, %v5544, %v5541
  %v5548 = vadd.f32 %v5379, 1.0
  %v5549 = vlog2.pop %v5548
  %v5550 = vmul.f32 %v5549, 0.6931472
  %v5551 = vmul.f32 -0.5, %v5379
  %v5552 = vadd.f32 %v5551, 1.0
  %v5553 = vmul.f32 %v5552, %v5379
  %v5554 = vand.u32 2147483647, %v5379
  %vm5555 = vcmp.lt.f32.partialorder %v5554, 0.0004427343
  %v5556 = vsel %vm5555, %v5553, %v5550
  %v5557 = vadd.f32 %v5381, 1.0
  %v5558 = vlog2.pop %v5557
  %v5559 = vmul.f32 %v5558, 0.6931472
  %v5560 = vmul.f32 -0.5, %v5381
  %v5561 = vadd.f32 %v5560, 1.0
  %v5562 = vmul.f32 %v5561, %v5381
  %v5563 = vand.u32 2147483647, %v5381
  %vm5564 = vcmp.lt.f32.partialorder %v5563, 0.0004427343
  %v5565 = vsel %vm5564, %v5562, %v5559
  %v5566 = vadd.f32 %v5383, 1.0
  %v5567 = vlog2.pop %v5566
  %v5568 = vmul.f32 %v5567, 0.6931472
  %v5569 = vmul.f32 -0.5, %v5383
  %v5570 = vadd.f32 %v5569, 1.0
  %v5571 = vmul.f32 %v5570, %v5383
  %v5572 = vand.u32 2147483647, %v5383
  %vm5573 = vcmp.lt.f32.partialorder %v5572, 0.0004427343
  %v5574 = vsel %vm5573, %v5571, %v5568
  %v5575 = vadd.f32 %v5385, 1.0
  %v5576 = vlog2.pop %v5575
  %v5577 = vmul.f32 %v5576, 0.6931472
  %v5578 = vmul.f32 -0.5, %v5385
  %v5579 = vadd.f32 %v5578, 1.0
  %v5580 = vmul.f32 %v5579, %v5385
  %v5581 = vand.u32 2147483647, %v5385
  %vm5582 = vcmp.lt.f32.partialorder %v5581, 0.0004427343
  %v5583 = vsel %vm5582, %v5580, %v5577
  %v5584 = vadd.f32 %v5387, 1.0
  %v5585 = vlog2.pop %v5584
  %v5586 = vmul.f32 %v5585, 0.6931472
  %v5587 = vmul.f32 -0.5, %v5387
  %v5588 = vadd.f32 %v5587, 1.0
  %v5589 = vmul.f32 %v5588, %v5387
  %v5590 = vand.u32 2147483647, %v5387
  %vm5591 = vcmp.lt.f32.partialorder %v5590, 0.0004427343
  %v5592 = vsel %vm5591, %v5589, %v5586
  %v5593 = vadd.f32 %v5389, 1.0
  %v5594 = vlog2.pop %v5593
  %v5595 = vmul.f32 %v5594, 0.6931472
  %v5596 = vmul.f32 -0.5, %v5389
  %v5597 = vadd.f32 %v5596, 1.0
  %v5598 = vmul.f32 %v5597, %v5389
  %v5599 = vand.u32 2147483647, %v5389
  %vm5600 = vcmp.lt.f32.partialorder %v5599, 0.0004427343
  %v5601 = vsel %vm5600, %v5598, %v5595
  %v5602 = vadd.f32 %v5391, 1.0
  %v5603 = vlog2.pop %v5602
  %v5604 = vmul.f32 %v5603, 0.6931472
  %v5605 = vmul.f32 -0.5, %v5391
  %v5606 = vadd.f32 %v5605, 1.0
  %v5607 = vmul.f32 %v5606, %v5391
  %v5608 = vand.u32 2147483647, %v5391
  %vm5609 = vcmp.lt.f32.partialorder %v5608, 0.0004427343
  %v5610 = vsel %vm5609, %v5607, %v5604
  %v5611 = vadd.f32 %v5393, 1.0
  %v5612 = vlog2.pop %v5611
  %v5613 = vmul.f32 %v5612, 0.6931472
  %v5614 = vmul.f32 -0.5, %v5393
  %v5615 = vadd.f32 %v5614, 1.0
  %v5616 = vmul.f32 %v5615, %v5393
  %v5617 = vand.u32 2147483647, %v5393
  %vm5618 = vcmp.lt.f32.partialorder %v5617, 0.0004427343
  %v5619 = vsel %vm5618, %v5616, %v5613
  %v5620 = vadd.f32 %v5395, 1.0
  %v5621 = vlog2.pop %v5620
  %v5622 = vmul.f32 %v5621, 0.6931472
  %v5623 = vmul.f32 -0.5, %v5395
  %v5624 = vadd.f32 %v5623, 1.0
  %v5625 = vmul.f32 %v5624, %v5395
  %v5626 = vand.u32 2147483647, %v5395
  %vm5627 = vcmp.lt.f32.partialorder %v5626, 0.0004427343
  %v5628 = vsel %vm5627, %v5625, %v5622
  %v5629 = vadd.f32 %v5397, 1.0
  %v5630 = vlog2.pop %v5629
  %v5631 = vmul.f32 %v5630, 0.6931472
  %v5632 = vmul.f32 -0.5, %v5397
  %v5633 = vadd.f32 %v5632, 1.0
  %v5634 = vmul.f32 %v5633, %v5397
  %v5635 = vand.u32 2147483647, %v5397
  %vm5636 = vcmp.lt.f32.partialorder %v5635, 0.0004427343
  %v5637 = vsel %vm5636, %v5634, %v5631
  %v5638 = vadd.f32 %v5399, 1.0
  %v5639 = vlog2.pop %v5638
  %v5640 = vmul.f32 %v5639, 0.6931472
  %v5641 = vmul.f32 -0.5, %v5399
  %v5642 = vadd.f32 %v5641, 1.0
  %v5643 = vmul.f32 %v5642, %v5399
  %v5644 = vand.u32 2147483647, %v5399
  %vm5645 = vcmp.lt.f32.partialorder %v5644, 0.0004427343
  %v5646 = vsel %vm5645, %v5643, %v5640
  %v5647 = vadd.f32 %v5401, 1.0
  %v5648 = vlog2.pop %v5647
  %v5649 = vmul.f32 %v5648, 0.6931472
  %v5650 = vmul.f32 -0.5, %v5401
  %v5651 = vadd.f32 %v5650, 1.0
  %v5652 = vmul.f32 %v5651, %v5401
  %v5653 = vand.u32 2147483647, %v5401
  %vm5654 = vcmp.lt.f32.partialorder %v5653, 0.0004427343
  %v5655 = vsel %vm5654, %v5652, %v5649
  %v5656 = vadd.f32 %v5403, 1.0
  %v5657 = vlog2.pop %v5656
  %v5658 = vmul.f32 %v5657, 0.6931472
  %v5659 = vmul.f32 -0.5, %v5403
  %v5660 = vadd.f32 %v5659, 1.0
  %v5661 = vmul.f32 %v5660, %v5403
  %v5662 = vand.u32 2147483647, %v5403
  %vm5663 = vcmp.lt.f32.partialorder %v5662, 0.0004427343
  %v5664 = vsel %vm5663, %v5661, %v5658
  %v5665 = vadd.f32 %v5405, 1.0
  %v5666 = vlog2.pop %v5665
  %v5667 = vmul.f32 %v5666, 0.6931472
  %v5668 = vmul.f32 -0.5, %v5405
  %v5669 = vadd.f32 %v5668, 1.0
  %v5670 = vmul.f32 %v5669, %v5405
  %v5671 = vand.u32 2147483647, %v5405
  %vm5672 = vcmp.lt.f32.partialorder %v5671, 0.0004427343
  %v5673 = vsel %vm5672, %v5670, %v5667
  %v5674 = vadd.f32 %v5407, 1.0
  %v5675 = vlog2.pop %v5674
  %v5676 = vmul.f32 %v5675, 0.6931472
  %v5677 = vmul.f32 -0.5, %v5407
  %v5678 = vadd.f32 %v5677, 1.0
  %v5679 = vmul.f32 %v5678, %v5407
  %v5680 = vand.u32 2147483647, %v5407
  %vm5681 = vcmp.lt.f32.partialorder %v5680, 0.0004427343
  %v5682 = vsel %vm5681, %v5679, %v5676
  %v5683 = vadd.f32 %v5409, 1.0
  %v5684 = vlog2.pop %v5683
  %v5685 = vmul.f32 %v5684, 0.6931472
  %v5686 = vmul.f32 -0.5, %v5409
  %v5687 = vadd.f32 %v5686, 1.0
  %v5688 = vmul.f32 %v5687, %v5409
  %v5689 = vand.u32 2147483647, %v5409
  %vm5690 = vcmp.lt.f32.partialorder %v5689, 0.0004427343
  %v5691 = vsel %vm5690, %v5688, %v5685
  %v5692 = vadd.f32 %v5411, 1.0
  %v5693 = vlog2.pop %v5692
  %v5694 = vmul.f32 %v5693, 0.6931472
  %v5695 = vmul.f32 -0.5, %v5411
  %v5696 = vadd.f32 %v5695, 1.0
  %v5697 = vmul.f32 %v5696, %v5411
  %v5698 = vand.u32 2147483647, %v5411
  %vm5699 = vcmp.lt.f32.partialorder %v5698, 0.0004427343
  %v5700 = vsel %vm5699, %v5697, %v5694
  %v5701 = vadd.f32 %v5413, 1.0
  %v5702 = vlog2.pop %v5701
  %v5703 = vmul.f32 %v5702, 0.6931472
  %v5704 = vmul.f32 -0.5, %v5413
  %v5705 = vadd.f32 %v5704, 1.0
  %v5706 = vmul.f32 %v5705, %v5413
  %v5707 = vand.u32 2147483647, %v5413
  %vm5708 = vcmp.lt.f32.partialorder %v5707, 0.0004427343
  %v5709 = vsel %vm5708, %v5706, %v5703
  %v5710 = vadd.f32 %v5415, 1.0
  %v5711 = vlog2.pop %v5710
  %v5712 = vmul.f32 %v5711, 0.6931472
  %v5713 = vmul.f32 -0.5, %v5415
  %v5714 = vadd.f32 %v5713, 1.0
  %v5715 = vmul.f32 %v5714, %v5415
  %v5716 = vand.u32 2147483647, %v5415
  %vm5717 = vcmp.lt.f32.partialorder %v5716, 0.0004427343
  %v5718 = vsel %vm5717, %v5715, %v5712
  %v5719 = vadd.f32 %v5417, 1.0
  %v5720 = vlog2.pop %v5719
  %v5721 = vmul.f32 %v5720, 0.6931472
  %v5722 = vmul.f32 -0.5, %v5417
  %v5723 = vadd.f32 %v5722, 1.0
  %v5724 = vmul.f32 %v5723, %v5417
  %v5725 = vand.u32 2147483647, %v5417
  %vm5726 = vcmp.lt.f32.partialorder %v5725, 0.0004427343
  %v5727 = vsel %vm5726, %v5724, %v5721
  %v5728 = vadd.f32 %v5419, 1.0
  %v5729 = vlog2.pop %v5728
  %v5730 = vmul.f32 %v5729, 0.6931472
  %v5731 = vmul.f32 -0.5, %v5419
  %v5732 = vadd.f32 %v5731, 1.0
  %v5733 = vmul.f32 %v5732, %v5419
  %v5734 = vand.u32 2147483647, %v5419
  %vm5735 = vcmp.lt.f32.partialorder %v5734, 0.0004427343
  %v5736 = vsel %vm5735, %v5733, %v5730
  %v5737 = vadd.f32 %v5421, 1.0
  %v5738 = vlog2.pop %v5737
  %v5739 = vmul.f32 %v5738, 0.6931472
  %v5740 = vmul.f32 -0.5, %v5421
  %v5741 = vadd.f32 %v5740, 1.0
  %v5742 = vmul.f32 %v5741, %v5421
  %v5743 = vand.u32 2147483647, %v5421
  %vm5744 = vcmp.lt.f32.partialorder %v5743, 0.0004427343
  %v5745 = vsel %vm5744, %v5742, %v5739
  %v5746 = vsel %vm5278, %v5062, %v5430
  %v5747 = vsel %vm5279, %v5063, %v5439
  %v5748 = vsel %vm5280, %v5064, %v5448
  %v5749 = vsel %vm5281, %v5065, %v5457
  %v5750 = vsel %vm5282, %v5066, %v5466
  %v5751 = vsel %vm5283, %v5067, %v5475
  %v5752 = vsel %vm5284, %v5068, %v5484
  %v5753 = vsel %vm5285, %v5069, %v5493
  %v5754 = vsel %vm5286, %v5070, %v5502
  %v5755 = vsel %vm5287, %v5071, %v5511
  %v5756 = vsel %vm5288, %v5072, %v5520
  %v5757 = vsel %vm5289, %v5073, %v5529
  %v5758 = vsel %vm5290, %v5074, %v5538
  %v5759 = vsel %vm5291, %v5075, %v5547
  %v5760 = vsel %vm5292, %v5076, %v5556
  %v5761 = vsel %vm5293, %v5077, %v5565
  %v5762 = vsel %vm5294, %v5078, %v5574
  %v5763 = vsel %vm5295, %v5079, %v5583
  %v5764 = vsel %vm5296, %v5080, %v5592
  %v5765 = vsel %vm5297, %v5081, %v5601
  %v5766 = vsel %vm5298, %v5082, %v5610
  %v5767 = vsel %vm5299, %v5083, %v5619
  %v5768 = vsel %vm5300, %v5084, %v5628
  %v5769 = vsel %vm5301, %v5085, %v5637
  %v5770 = vsel %vm5302, %v5086, %v5646
  %v5771 = vsel %vm5303, %v5087, %v5655
  %v5772 = vsel %vm5304, %v5088, %v5664
  %v5773 = vsel %vm5305, %v5089, %v5673
  %v5774 = vsel %vm5306, %v5090, %v5682
  %v5775 = vsel %vm5307, %v5091, %v5691
  %v5776 = vsel %vm5308, %v5092, %v5700
  %v5777 = vsel %vm5309, %v5093, %v5709
  %v5778 = vsel %vm5310, %v5094, %v5718
  %v5779 = vsel %vm5311, %v5095, %v5727
  %v5780 = vsel %vm5312, %v5096, %v5736
  %v5781 = vsel %vm5313, %v5097, %v5745
  %5818 = vrot.lane.b32.xlu0 %v5746, 64
  %v5819 = vpop.permute.xlu0 %5818
  %5820 = vrot.lane.b32.xlu0 %v5747, 64
  %v5821 = vpop.permute.xlu0 %5820
  %5822 = vrot.lane.b32.xlu0 %v5748, 64
  %v5823 = vpop.permute.xlu0 %5822
  %5824 = vrot.lane.b32.xlu0 %v5749, 64
  %v5825 = vpop.permute.xlu0 %5824
  %5826 = vrot.lane.b32.xlu0 %v5750, 64
  %v5827 = vpop.permute.xlu0 %5826
  %5828 = vrot.lane.b32.xlu0 %v5751, 64
  %v5829 = vpop.permute.xlu0 %5828
  %5830 = vrot.lane.b32.xlu0 %v5752, 64
  %v5831 = vpop.permute.xlu0 %5830
  %5832 = vrot.lane.b32.xlu0 %v5753, 64
  %v5833 = vpop.permute.xlu0 %5832
  %5834 = vrot.lane.b32.xlu0 %v5754, 64
  %v5835 = vpop.permute.xlu0 %5834
  %5836 = vrot.lane.b32.xlu0 %v5755, 64
  %v5837 = vpop.permute.xlu0 %5836
  %5838 = vrot.lane.b32.xlu0 %v5756, 64
  %v5839 = vpop.permute.xlu0 %5838
  %5840 = vrot.lane.b32.xlu0 %v5757, 64
  %v5841 = vpop.permute.xlu0 %5840
  %5842 = vrot.lane.b32.xlu0 %v5758, 64
  %v5843 = vpop.permute.xlu0 %5842
  %5844 = vrot.lane.b32.xlu0 %v5759, 64
  %v5845 = vpop.permute.xlu0 %5844
  %5846 = vrot.lane.b32.xlu0 %v5760, 64
  %v5847 = vpop.permute.xlu0 %5846
  %5848 = vrot.lane.b32.xlu0 %v5761, 64
  %v5849 = vpop.permute.xlu0 %5848
  %5850 = vrot.lane.b32.xlu0 %v5762, 64
  %v5851 = vpop.permute.xlu0 %5850
  %5852 = vrot.lane.b32.xlu0 %v5763, 64
  %v5853 = vpop.permute.xlu0 %5852
  %5854 = vrot.lane.b32.xlu0 %v5764, 64
  %v5855 = vpop.permute.xlu0 %5854
  %5856 = vrot.lane.b32.xlu0 %v5765, 64
  %v5857 = vpop.permute.xlu0 %5856
  %5858 = vrot.lane.b32.xlu0 %v5766, 64
  %v5859 = vpop.permute.xlu0 %5858
  %5860 = vrot.lane.b32.xlu0 %v5767, 64
  %v5861 = vpop.permute.xlu0 %5860
  %5862 = vrot.lane.b32.xlu0 %v5768, 64
  %v5863 = vpop.permute.xlu0 %5862
  %5864 = vrot.lane.b32.xlu0 %v5769, 64
  %v5865 = vpop.permute.xlu0 %5864
  %5866 = vrot.lane.b32.xlu0 %v5770, 64
  %v5867 = vpop.permute.xlu0 %5866
  %5868 = vrot.lane.b32.xlu0 %v5771, 64
  %v5869 = vpop.permute.xlu0 %5868
  %5870 = vrot.lane.b32.xlu0 %v5772, 64
  %v5871 = vpop.permute.xlu0 %5870
  %5872 = vrot.lane.b32.xlu0 %v5773, 64
  %v5873 = vpop.permute.xlu0 %5872
  %5874 = vrot.lane.b32.xlu0 %v5774, 64
  %v5875 = vpop.permute.xlu0 %5874
  %5876 = vrot.lane.b32.xlu0 %v5775, 64
  %v5877 = vpop.permute.xlu0 %5876
  %5878 = vrot.lane.b32.xlu0 %v5776, 64
  %v5879 = vpop.permute.xlu0 %5878
  %5880 = vrot.lane.b32.xlu0 %v5777, 64
  %v5881 = vpop.permute.xlu0 %5880
  %5882 = vrot.lane.b32.xlu0 %v5778, 64
  %v5883 = vpop.permute.xlu0 %5882
  %5884 = vrot.lane.b32.xlu0 %v5779, 64
  %v5885 = vpop.permute.xlu0 %5884
  %5886 = vrot.lane.b32.xlu0 %v5780, 64
  %v5887 = vpop.permute.xlu0 %5886
  %5888 = vrot.lane.b32.xlu0 %v5781, 64
  %v5889 = vpop.permute.xlu0 %5888
  %v5926 = vmul.f32 %v5242, %v5819
  %v5927 = vmul.f32 %v5243, %v5821
  %v5928 = vmul.f32 %v5244, %v5823
  %v5929 = vmul.f32 %v5245, %v5825
  %v5930 = vmul.f32 %v5246, %v5827
  %v5931 = vmul.f32 %v5247, %v5829
  %v5932 = vmul.f32 %v5248, %v5831
  %v5933 = vmul.f32 %v5249, %v5833
  %v5934 = vmul.f32 %v5250, %v5835
  %v5935 = vmul.f32 %v5251, %v5837
  %v5936 = vmul.f32 %v5252, %v5839
  %v5937 = vmul.f32 %v5253, %v5841
  %v5938 = vmul.f32 %v5254, %v5843
  %v5939 = vmul.f32 %v5255, %v5845
  %v5940 = vmul.f32 %v5256, %v5847
  %v5941 = vmul.f32 %v5257, %v5849
  %v5942 = vmul.f32 %v5258, %v5851
  %v5943 = vmul.f32 %v5259, %v5853
  %v5944 = vmul.f32 %v5260, %v5855
  %v5945 = vmul.f32 %v5261, %v5857
  %v5946 = vmul.f32 %v5262, %v5859
  %v5947 = vmul.f32 %v5263, %v5861
  %v5948 = vmul.f32 %v5264, %v5863
  %v5949 = vmul.f32 %v5265, %v5865
  %v5950 = vmul.f32 %v5266, %v5867
  %v5951 = vmul.f32 %v5267, %v5869
  %v5952 = vmul.f32 %v5268, %v5871
  %v5953 = vmul.f32 %v5269, %v5873
  %v5954 = vmul.f32 %v5270, %v5875
  %v5955 = vmul.f32 %v5271, %v5877
  %v5956 = vmul.f32 %v5272, %v5879
  %v5957 = vmul.f32 %v5273, %v5881
  %v5958 = vmul.f32 %v5274, %v5883
  %v5959 = vmul.f32 %v5275, %v5885
  %v5960 = vmul.f32 %v5276, %v5887
  %v5961 = vmul.f32 %v5277, %v5889
  %v5962 = vadd.f32 %v5926, %v5929
  %v5963 = vadd.f32 %v5927, %v5930
  %v5964 = vadd.f32 %v5928, %v5931
  %v5965 = vadd.f32 %v5962, %v5932
  %v5966 = vadd.f32 %v5963, %v5933
  %v5967 = vadd.f32 %v5964, %v5934
  %v5968 = vadd.f32 %v5965, %v5935
  %v5969 = vadd.f32 %v5966, %v5936
  %v5970 = vadd.f32 %v5967, %v5937
  %v5971 = vadd.f32 %v5968, %v5938
  %v5972 = vadd.f32 %v5969, %v5939
  %v5973 = vadd.f32 %v5970, %v5940
  %v5974 = vadd.f32 %v5971, %v5941
  %v5975 = vadd.f32 %v5972, %v5942
  %v5976 = vadd.f32 %v5973, %v5943
  %v5977 = vadd.f32 %v5974, %v5944
  %v5978 = vadd.f32 %v5975, %v5945
  %v5979 = vadd.f32 %v5976, %v5946
  %v5980 = vadd.f32 %v5977, %v5947
  %v5981 = vadd.f32 %v5978, %v5948
  %v5982 = vadd.f32 %v5979, %v5949
  %v5983 = vadd.f32 %v5980, %v5950
  %v5984 = vadd.f32 %v5981, %v5951
  %v5985 = vadd.f32 %v5982, %v5952
  %v5986 = vadd.f32 %v5983, %v5953
  %v5987 = vadd.f32 %v5984, %v5954
  %v5988 = vadd.f32 %v5985, %v5955
  %v5989 = vadd.f32 %v5986, %v5956
  %v5990 = vadd.f32 %v5987, %v5957
  %v5991 = vadd.f32 %v5988, %v5958
  %v5992 = vadd.f32 %v5989, %v5959
  %v5993 = vadd.f32 %v5990, %v5960
  %v5994 = vadd.f32 %v5991, %v5961
  %s5995 = scalar_lea.vmem %s8, 2
  %v5996 = vld [vmem:[%s5995] sm:$0x1]
  %s5997 = scalar_lea.vmem %s9, 2
  %v5998 = vld [vmem:[%s5997] sm:$0x1]
  %v5999 = vsel %vm384, %v5992, 0.0
  %v6000 = vsel %vm384, %v5993, 0.0
  %v6001 = vadd.f32 %v5999, %v6000
  %v6002 = vsel %vm384, %v5994, 0.0
  %v6003 = vadd.f32 %v6001, %v6002
  %v6004 = vrot.slane %v6003, 4
  %v6005 = vadd.f32 %v6003, %v6004
  %v6006 = vrot.slane %v6005, 2
  %v6007 = vadd.f32 %v6005, %v6006
  %v6008 = vrot.slane %v6007, 1
  %v6009 = vadd.f32 %v6007, %v6008
  %v6010 = vmul.f32 %v6009, 0.041666668
  %v6011 = vsub.f32 %v5992, %v6010
  %v6012 = vsub.f32 %v5993, %v6010
  %v6013 = vsub.f32 %v5994, %v6010
  %v6014 = vmul.f32 %v6011, %v6011
  %v6015 = vmul.f32 %v6012, %v6012
  %v6016 = vmul.f32 %v6013, %v6013
  %v6017 = vsel %vm384, %v6014, 0.0
  %v6018 = vsel %vm384, %v6015, 0.0
  %v6019 = vadd.f32 %v6017, %v6018
  %v6020 = vsel %vm384, %v6016, 0.0
  %v6021 = vadd.f32 %v6019, %v6020
  %v6022 = vrot.slane %v6021, 4
  %v6023 = vadd.f32 %v6021, %v6022
  %v6024 = vrot.slane %v6023, 2
  %v6025 = vadd.f32 %v6023, %v6024
  %v6026 = vrot.slane %v6025, 1
  %v6027 = vadd.f32 %v6025, %v6026
  %v6028 = vmul.f32 %v6027, 0.041666668
  %v6029 = vadd.f32 %v6028, 1e-05
  %v6030 = vrsqrt.pop %v6029
  %v6031 = vmul.f32 %v6011, %v6030
  %v6032 = vmul.f32 %v6012, %v6030
  %v6033 = vmul.f32 %v6013, %v6030
  %v6035 = vlaneseq
  %v6036 = vshrl.u32 %v6035, 7
  %v6037 = vsub.s32 0, %v6036
  %v6038 = vrot.slane %v5996, %v6037
  %v6040 = vmul.f32 %v6031, %v6038
  %v6041 = vmul.f32 %v6032, %v6038
  %v6042 = vmul.f32 %v6033, %v6038
  %v6044 = vlaneseq
  %v6045 = vshrl.u32 %v6044, 7
  %v6046 = vsub.s32 0, %v6045
  %v6047 = vrot.slane %v5998, %v6046
  %v6049 = vadd.f32 %v6040, %v6047
  %v6050 = vadd.f32 %v6041, %v6047
  %v6051 = vadd.f32 %v6042, %v6047
  %v6052 = vadd.f32 %v4239, %v6049
  %v6053 = vadd.f32 %v4240, %v6050
  %v6054 = vadd.f32 %v4241, %v6051
  %vm6055 = vcmp.gt.f32.partialorder %v6052, 20.0
  %vm6056 = vcmp.gt.f32.partialorder %v6053, 20.0
  %vm6057 = vcmp.gt.f32.partialorder %v6054, 20.0
  %v6058 = vmin.f32 %v6052, 20.0
  %v6059 = vmin.f32 %v6053, 20.0
  %v6060 = vmin.f32 %v6054, 20.0
  %v6061 = vmul.f32 %v6058, 1.442695
  %v6062 = vpow.pop %v6061
  %v6063 = vmul.f32 %v6059, 1.442695
  %v6064 = vpow.pop %v6063
  %v6065 = vmul.f32 %v6060, 1.442695
  %v6066 = vpow.pop %v6065
  %v6067 = vadd.f32 %v6062, 1.0
  %v6068 = vlog2.pop %v6067
  %v6069 = vmul.f32 %v6068, 0.6931472
  %v6070 = vmul.f32 -0.5, %v6062
  %v6071 = vadd.f32 %v6070, 1.0
  %v6072 = vmul.f32 %v6071, %v6062
  %v6073 = vand.u32 2147483647, %v6062
  %vm6074 = vcmp.lt.f32.partialorder %v6073, 0.0004427343
  %v6075 = vsel %vm6074, %v6072, %v6069
  %v6076 = vadd.f32 %v6064, 1.0
  %v6077 = vlog2.pop %v6076
  %v6078 = vmul.f32 %v6077, 0.6931472
  %v6079 = vmul.f32 -0.5, %v6064
  %v6080 = vadd.f32 %v6079, 1.0
  %v6081 = vmul.f32 %v6080, %v6064
  %v6082 = vand.u32 2147483647, %v6064
  %vm6083 = vcmp.lt.f32.partialorder %v6082, 0.0004427343
  %v6084 = vsel %vm6083, %v6081, %v6078
  %v6085 = vadd.f32 %v6066, 1.0
  %v6086 = vlog2.pop %v6085
  %v6087 = vmul.f32 %v6086, 0.6931472
  %v6088 = vmul.f32 -0.5, %v6066
  %v6089 = vadd.f32 %v6088, 1.0
  %v6090 = vmul.f32 %v6089, %v6066
  %v6091 = vand.u32 2147483647, %v6066
  %vm6092 = vcmp.lt.f32.partialorder %v6091, 0.0004427343
  %v6093 = vsel %vm6092, %v6090, %v6087
  %v6094 = vsel %vm6055, %v6052, %v6075
  %v6095 = vsel %vm6056, %v6053, %v6084
  %v6096 = vsel %vm6057, %v6054, %v6093
  %v6097 = vld [vmem:[%s10] sm:$0x3]
  %v6099 = vsel %vm796, %v6097, 0
  %6101 = vmatprep.subr.mxu0 0.0
  %6102 = vmatpush1.msra.mxu0 %v6094
  %6103 = vmatprep.subr.mxu0 0.0
  %6104 = vmatpush1.msra.mxu0 %v6095
  %6105 = vmatprep.subr.mxu0 0.0
  %6106 = vmatpush1.msra.mxu0 %v6096
  %6107 = vmatprep.subr.mxu0 0.0
  %6108 = vmatpush1.msra.mxu0 0.0
  %6109 = vmatprep.subr.mxu0 0.0
  %6110 = vmatpush1.msra.mxu0 0.0
  %6111 = vmatprep.subr.mxu0 0.0
  %6112 = vmatpush1.msra.mxu0 0.0
  %6113 = vmatprep.subr.mxu0 0.0
  %6114 = vmatpush1.msra.mxu0 0.0
  %6115 = vmatprep.subr.mxu0 0.0
  %6116 = vmatpush1.msra.mxu0 0.0
  %6117 = vmatprep.subr.mxu0 0.0
  %6118 = vmatpush1.msra.mxu0 0.0
  %6119 = vmatprep.subr.mxu0 0.0
  %6120 = vmatpush1.msra.mxu0 0.0
  %6121 = vmatprep.subr.mxu0 0.0
  %6122 = vmatpush1.msra.mxu0 0.0
  %6123 = vmatprep.subr.mxu0 0.0
  %6124 = vmatpush1.msra.mxu0 0.0
  %6125 = vmatprep.subr.mxu0 0.0
  %6126 = vmatpush1.msra.mxu0 0.0
  %6127 = vmatprep.subr.mxu0 0.0
  %6128 = vmatpush1.msra.mxu0 0.0
  %6129 = vmatprep.subr.mxu0 0.0
  %6130 = vmatpush1.msra.mxu0 0.0
  %6131 = vmatprep.subr.mxu0 0.0
  %6132 = vmatpush1.msra.mxu0 0.0
  %6133 = vmatprep.subr.mxu0 0.0
  %6134 = vmatpush1.msra.mxu0 0.0
  %6135 = vmatprep.subr.mxu0 0.0
  %6136 = vmatpush1.msra.mxu0 0.0
  %6137 = vmatprep.subr.mxu0 0.0
  %6138 = vmatpush1.msra.mxu0 0.0
  %6139 = vmatprep.subr.mxu0 0.0
  %6140 = vmatpush1.msra.mxu0 0.0
  %6141 = vmatprep.subr.mxu0 0.0
  %6142 = vmatpush1.msra.mxu0 0.0
  %6143 = vmatprep.subr.mxu0 0.0
  %6144 = vmatpush1.msra.mxu0 0.0
  %6145 = vmatprep.subr.mxu0 0.0
  %6146 = vmatpush1.msra.mxu0 0.0
  %6147 = vmatprep.subr.mxu0 0.0
  %6148 = vmatpush1.msra.mxu0 0.0
  %6149 = vmatprep.subr.mxu0 0.0
  %6150 = vmatpush1.msra.mxu0 0.0
  %6151 = vmatprep.subr.mxu0 0.0
  %6152 = vmatpush1.msra.mxu0 0.0
  %6153 = vmatprep.subr.mxu0 0.0
  %6154 = vmatpush1.msra.mxu0 0.0
  %6155 = vmatprep.subr.mxu0 0.0
  %6156 = vmatpush1.msra.mxu0 0.0
  %6157 = vmatprep.subr.mxu0 0.0
  %6158 = vmatpush1.msra.mxu0 0.0
  %6159 = vmatprep.subr.mxu0 0.0
  %6160 = vmatpush1.msra.mxu0 0.0
  %6161 = vmatprep.subr.mxu0 0.0
  %6162 = vmatpush1.msra.mxu0 0.0
  %6163 = vmatprep.subr.mxu0 0.0
  %6164 = vmatpush1.msra.mxu0 0.0
  %6165 = vmatprep.mubr.f32.mxu0 0.0
  %6166 = vmatmul.mubr.f32.gmra.mrb[0].mxu0 %v6099
  %v6167 = vpop.f32.mrb[0].mxu0
  %v6168 = vadd.f32 0.0, %v6167
  %v6169 = vpop.f32.mrb[0].mxu0
  %6170 = vdwg.mxu0
  %vm6171 = vcmp.gt.f32.partialorder %v6168, 20.0
  %v6172 = vmin.f32 %v6168, 20.0
  %v6173 = vmul.f32 %v6172, 1.442695
  %v6174 = vpow.pop %v6173
  %v6175 = vadd.f32 %v6174, 1.0
  %v6176 = vlog2.pop %v6175
  %v6177 = vmul.f32 %v6176, 0.6931472
  %v6178 = vmul.f32 -0.5, %v6174
  %v6179 = vadd.f32 %v6178, 1.0
  %v6180 = vmul.f32 %v6179, %v6174
  %v6181 = vand.u32 2147483647, %v6174
  %vm6182 = vcmp.lt.f32.partialorder %v6181, 0.0004427343
  %v6183 = vsel %vm6182, %v6180, %v6177
  %v6184 = vsel %vm6171, %v6168, %v6183
  %v6185 = vld [vmem:[%s11] sm:$0x1]
  %v6186 = vld [vmem:[%s12] sm:$0x1]
  %vm6187 = vcmask 517120
  %v6188 = vsel %vm6187, %v6184, 0.0
  %v6189 = vrot.slane %v6188, 4
  %v6190 = vadd.f32 %v6188, %v6189
  %v6191 = vrot.slane %v6190, 2
  %v6192 = vadd.f32 %v6190, %v6191
  %v6193 = vrot.slane %v6192, 1
  %v6194 = vadd.f32 %v6192, %v6193
  %v6195 = vmul.f32 %v6194, 0.5
  %v6196 = vsub.f32 %v6184, %v6195
  %v6197 = vmul.f32 %v6196, %v6196
  %v6198 = vsel %vm6187, %v6197, 0.0
  %v6199 = vrot.slane %v6198, 4
  %v6200 = vadd.f32 %v6198, %v6199
  %v6201 = vrot.slane %v6200, 2
  %v6202 = vadd.f32 %v6200, %v6201
  %v6203 = vrot.slane %v6202, 1
  %v6204 = vadd.f32 %v6202, %v6203
  %v6205 = vmul.f32 %v6204, 0.5
  %v6206 = vadd.f32 %v6205, 1e-05
  %v6207 = vrsqrt.pop %v6206
  %v6208 = vmul.f32 %v6196, %v6207
  %v6210 = vlaneseq
  %v6211 = vshrl.u32 %v6210, 7
  %v6212 = vsub.s32 0, %v6211
  %v6213 = vrot.slane %v6185, %v6212
  %v6215 = vmul.f32 %v6208, %v6213
  %v6217 = vlaneseq
  %v6218 = vshrl.u32 %v6217, 7
  %v6219 = vsub.s32 0, %v6218
  %v6220 = vrot.slane %v6186, %v6219
  %v6222 = vadd.f32 %v6215, %v6220
  %v6223 = vld [vmem:[%s13] sm:$0xff]
  %v6224 = vld [vmem:[%s13 + $0x8] sm:$0xff]
  %v6225 = vld [vmem:[%s13 + $0x10] sm:$0xff]
  %v6226 = vld [vmem:[%s13 + $0x18] sm:$0xff]
  %v6227 = vld [vmem:[%s13 + $0x20] sm:$0xff]
  %v6228 = vld [vmem:[%s13 + $0x28] sm:$0xff]
  %v6229 = vld [vmem:[%s13 + $0x30] sm:$0xff]
  %v6230 = vld [vmem:[%s13 + $0x38] sm:$0xff]
  %v6231 = vld [vmem:[%s14] sm:$0x1]
  %v6233 = vlaneseq
  %v6234 = vshrl.u32 %v6233, 7
  %v6235 = vsub.s32 0, %v6234
  %v6236 = vrot.slane %v6231, %v6235
  %v6239 = vsel %vm384, %v6222, 0
  %6241 = vmatprep.subr.mxu0 0.0
  %6242 = vmatpush1.msra.mxu0 %v6223
  %6243 = vmatprep.subr.mxu0 0.0
  %6244 = vmatpush1.msra.mxu0 %v6224
  %6245 = vmatprep.subr.mxu0 0.0
  %6246 = vmatpush1.msra.mxu0 %v6225
  %6247 = vmatprep.subr.mxu0 0.0
  %6248 = vmatpush1.msra.mxu0 %v6226
  %6249 = vmatprep.subr.mxu0 0.0
  %6250 = vmatpush1.msra.mxu0 %v6227
  %6251 = vmatprep.subr.mxu0 0.0
  %6252 = vmatpush1.msra.mxu0 %v6228
  %6253 = vmatprep.subr.mxu0 0.0
  %6254 = vmatpush1.msra.mxu0 %v6229
  %6255 = vmatprep.subr.mxu0 0.0
  %6256 = vmatpush1.msra.mxu0 %v6230
  %6257 = vmatprep.subr.mxu0 0.0
  %6258 = vmatpush1.msra.mxu0 0.0
  %6259 = vmatprep.subr.mxu0 0.0
  %6260 = vmatpush1.msra.mxu0 0.0
  %6261 = vmatprep.subr.mxu0 0.0
  %6262 = vmatpush1.msra.mxu0 0.0
  %6263 = vmatprep.subr.mxu0 0.0
  %6264 = vmatpush1.msra.mxu0 0.0
  %6265 = vmatprep.subr.mxu0 0.0
  %6266 = vmatpush1.msra.mxu0 0.0
  %6267 = vmatprep.subr.mxu0 0.0
  %6268 = vmatpush1.msra.mxu0 0.0
  %6269 = vmatprep.subr.mxu0 0.0
  %6270 = vmatpush1.msra.mxu0 0.0
  %6271 = vmatprep.subr.mxu0 0.0
  %6272 = vmatpush1.msra.mxu0 0.0
  %6273 = vmatprep.subr.mxu0 0.0
  %6274 = vmatpush1.msra.mxu0 0.0
  %6275 = vmatprep.subr.mxu0 0.0
  %6276 = vmatpush1.msra.mxu0 0.0
  %6277 = vmatprep.subr.mxu0 0.0
  %6278 = vmatpush1.msra.mxu0 0.0
  %6279 = vmatprep.subr.mxu0 0.0
  %6280 = vmatpush1.msra.mxu0 0.0
  %6281 = vmatprep.subr.mxu0 0.0
  %6282 = vmatpush1.msra.mxu0 0.0
  %6283 = vmatprep.subr.mxu0 0.0
  %6284 = vmatpush1.msra.mxu0 0.0
  %6285 = vmatprep.subr.mxu0 0.0
  %6286 = vmatpush1.msra.mxu0 0.0
  %6287 = vmatprep.subr.mxu0 0.0
  %6288 = vmatpush1.msra.mxu0 0.0
  %6289 = vmatprep.subr.mxu0 0.0
  %6290 = vmatpush1.msra.mxu0 0.0
  %6291 = vmatprep.subr.mxu0 0.0
  %6292 = vmatpush1.msra.mxu0 0.0
  %6293 = vmatprep.subr.mxu0 0.0
  %6294 = vmatpush1.msra.mxu0 0.0
  %6295 = vmatprep.subr.mxu0 0.0
  %6296 = vmatpush1.msra.mxu0 0.0
  %6297 = vmatprep.subr.mxu0 0.0
  %6298 = vmatpush1.msra.mxu0 0.0
  %6299 = vmatprep.subr.mxu0 0.0
  %6300 = vmatpush1.msra.mxu0 0.0
  %6301 = vmatprep.subr.mxu0 0.0
  %6302 = vmatpush1.msra.mxu0 0.0
  %6303 = vmatprep.subr.mxu0 0.0
  %6304 = vmatpush1.msra.mxu0 0.0
  %6305 = vmatprep.mubr.f32.mxu0 0.0
  %6306 = vmatmul.mubr.f32.gmra.mrb[0].mxu0 %v6239
  %v6307 = vpop.f32.mrb[0].mxu0
  %v6308 = vadd.f32 %v6236, %v6307
  %v6309 = vpop.f32.mrb[0].mxu0
  %6310 = vdwg.mxu0
  %vm6311 = vcmp.gt.f32.partialorder %v6308, 20.0
  %v6312 = vmin.f32 %v6308, 20.0
  %v6313 = vmul.f32 %v6312, 1.442695
  %v6314 = vpow.pop %v6313
  %v6315 = vadd.f32 %v6314, 1.0
  %v6316 = vlog2.pop %v6315
  %v6317 = vmul.f32 %v6316, 0.6931472
  %v6318 = vmul.f32 -0.5, %v6314
  %v6319 = vadd.f32 %v6318, 1.0
  %v6320 = vmul.f32 %v6319, %v6314
  %v6321 = vand.u32 2147483647, %v6314
  %vm6322 = vcmp.lt.f32.partialorder %v6321, 0.0004427343
  %v6323 = vsel %vm6322, %v6320, %v6317
  %v6324 = vsel %vm6311, %v6308, %v6323
  %v6325 = vld [vmem:[%s15] sm:$0x1]
  %v6327 = vlaneseq
  %v6328 = vshrl.u32 %v6327, 7
  %v6329 = vsub.s32 0, %v6328
  %v6330 = vrot.slane %v6325, %v6329
  %v6332 = vmul.f32 %v6324, %v6330
  %vm6333 = vcmask 1041408
  %v6334 = vsel %vm6333, %v6332, 0.0
  %6335 = vadd.xlane.f32.xlu0 %v6334
  %v6336 = vpop.xlane.xlu0 %6335
  %v6337 = vld [vmem:[#allocation2] sm:$0x1]
  %v6339 = vlaneseq
  %v6340 = vshrl.u32 %v6339, 7
  %v6341 = vsub.s32 0, %v6340
  %v6342 = vrot.slane %v6337, %v6341
  %v6344 = vadd.f32 %v6336, %v6342
  %vm6345 = vcmask 1024
  %6346 = vst.msk [vmem:[%s17] sm:$0x3] %vm6345, %v6344
  // Predicated region
  $region70: #{tpu_custom_call.1} parent=0 // pred_check
    _
  $region71: #{tpu_custom_call.1} parent=0 // pred_check_branch
    %6348 = sbr.rel (0) target = $region73
  $region72: #{tpu_custom_call.1} parent=0 // pred_region
    _
  $region73: #{tpu_custom_call.1} parent=0 // pred_fallthru
    _
  // Predicated region
  $region74: #{tpu_custom_call.1} parent=0 // pred_check
    _
  $region75: #{tpu_custom_call.1} parent=0 // pred_check_branch
    %6350 = sbr.rel (0) target = $region77
  $region76: #{tpu_custom_call.1} parent=0 // pred_region
    _
  $region77: #{tpu_custom_call.1} parent=0 // pred_fallthru
    _

</llo_original>
